<compile_context>
chip_gen: v7x
topology: tpu7x:2x2x1
jax: 0.10.0
libtpu: 0.0.40
codegen_flags: <defaults>
</compile_context>

<pallas_src>
import functools
import math

import jax
import jax.numpy as jnp
from jax import lax
from jax.experimental import pallas as pl
from jax.experimental.pallas import tpu as pltpu


def _round_up(x, m):
    return (x + m - 1) // m * m


# --------------------------- Pallas kernel A --------------------------------
# Per batch: 3x3 conv (9 accumulated MXU matmuls over shifted slabs of the
# padded flattened input) + folded-BN bias + ReLU + separable bilinear width
# upsample (one 2D MXU matmul), for all four heads.  Emits channel-major
# bf16 (B, H*Cout, Wout) intermediates (direct, lane-dense stores).

def _conv_width_kernel(x2_ref, x3_ref, x4_ref, x5_ref,
                       wm2_ref, wm3_ref, wm4_ref, bias_ref,
                       ww2_ref, ww3_ref, ww4_ref, ww5_ref,
                       o2_ref, o3_ref, o4_ref, o5_ref,
                       *, Cout, geoms):
    heads = (
        (x2_ref, wm2_ref, ww2_ref, o2_ref, 0, geoms[0]),
        (x3_ref, wm3_ref, ww3_ref, o3_ref, 1, geoms[1]),
        (x4_ref, wm4_ref, ww4_ref, o4_ref, 2, geoms[2]),
        # forward() applies self.head2 to d5 -> reuse head2's folded weights.
        (x5_ref, wm2_ref, ww5_ref, o5_ref, 3, geoms[3]),
    )
    for x_ref, wm_ref, ww_ref, o_ref, hi, (H, Wp) in heads:
        M = H * Wp
        # 3x3 conv as nine accumulated (H*Wp, Cin) @ (Cin, Cout) MXU matmuls.
        # Tap (dh, dw) is a contiguous row slab of the flattened padded input;
        # columns [W, Wp) of each output row are junk and are zeroed later by
        # the zero-extended width-upsample matrix.
        acc = None
        for t in range(9):
            dh, dw = t // 3, t % 3
            start = dh * Wp + dw
            slab = x_ref[0, start:start + M, :]                       # (H*Wp, Cin)
            part = jnp.dot(slab, wm_ref[t],
                           preferred_element_type=jnp.float32)        # (H*Wp, Cout)
            acc = part if acc is None else acc + part
        # Folded-BN bias + ReLU (head3's double ReLU is a no-op).
        y = jnp.maximum(acc + bias_ref[hi:hi + 1, :], 0.0)             # (H*Wp, Cout)
        # Channel-major relayout: (H, Wp, C) -> (H, C, Wp) is a minor-dims XLU
        # transpose; both reshapes are sublane-tile aligned in f32 (Wp and
        # Cout are multiples of 8).
        y = y.reshape(H, Wp, Cout)
        y = jnp.transpose(y, (0, 2, 1)).reshape(H * Cout, Wp)
        # Width upsample: single (H*C, Wp) @ (Wp, Wout) MXU matmul; the zero
        # rows of ww kill the junk columns.  Direct lane-dense store.
        z = jnp.dot(y.astype(jnp.bfloat16), ww_ref[...],
                    preferred_element_type=jnp.float32)                # (H*C, Wout)
        o_ref[0] = z.astype(o_ref.dtype)


# --------------------------- Pallas kernel B --------------------------------
# Height upsample of all four heads for one (batch, output-row-tile) step.
# One big (TH, H) @ (H, C*Wout) matmul per head, then the result is written
# channel-by-channel straight into the NCHW concat output block.

def _height_nchw_kernel(z2_ref, z3_ref, z4_ref, z5_ref,
                        wh2_ref, wh3_ref, wh4_ref, wh5_ref,
                        o_ref, *, Cout, Wout):
    pairs = ((z2_ref, wh2_ref), (z3_ref, wh3_ref),
             (z4_ref, wh4_ref), (z5_ref, wh5_ref))
    for hi, (z_ref, wh_ref) in enumerate(pairs):
        z = jnp.dot(wh_ref[...], z_ref[0],
                    preferred_element_type=jnp.float32)                # (TH, C*Wout)
        z = z.astype(o_ref.dtype)
        # Static lane-window slices per channel; the relayout rides the
        # XLU/store slots while the (HBM-write-bound) pipeline streams.
        for c in range(Cout):
            o_ref[0, hi * Cout + c, :, :] = z[:, c * Wout:(c + 1) * Wout]


# ------------------------------ wrapper glue ---------------------------------

def bilinear_matrix(in_size, out_size):
    """(out, in) matrix matching nn.Upsample(mode='bilinear', align_corners=False)."""
    scale = in_size / out_size
    o = jnp.arange(out_size, dtype=jnp.float32)
    src = jnp.maximum((o + 0.5) * scale - 0.5, 0.0)
    i0f = jnp.floor(src)
    lam = src - i0f
    i0 = jnp.clip(i0f.astype(jnp.int32), 0, in_size - 1)
    i1 = jnp.clip(i0 + 1, 0, in_size - 1)
    return (jax.nn.one_hot(i0, in_size, dtype=jnp.float32) * (1.0 - lam)[:, None]
            + jax.nn.one_hot(i1, in_size, dtype=jnp.float32) * lam[:, None])


def _fold_weight(w_oihw, scale):
    """OIHW conv weight with folded-BN scale -> bf16 (9, Cin, Cout) tap weights."""
    Cout, Cin = w_oihw.shape[0], w_oihw.shape[1]
    w = jnp.transpose(w_oihw, (2, 3, 1, 0)).reshape(9, Cin, Cout)      # t = dh*3+dw
    return (w.astype(jnp.float32)
            * scale.astype(jnp.float32)[None, None, :]).astype(jnp.bfloat16)


def _pad_flat_nhwc(x_nchw, Wp):
    """NCHW -> zero-padded, flattened NHWC bf16: (B, (H+3)*Wp, Cin).

    1 top + 2 bottom zero rows, 1 left + (Wp-W-1) right zero cols.  The extra
    bottom row / right columns only ever feed the junk output columns that the
    zero-extended width-upsample matrix discards (also keeps all nine in-kernel
    tap slabs in bounds)."""
    B, Cin, H, W = x_nchw.shape
    x = jnp.transpose(x_nchw, (0, 2, 3, 1)).astype(jnp.bfloat16)
    xp = jnp.pad(x, ((0, 0), (1, 2), (1, Wp - W - 1), (0, 0)))
    return xp.reshape(B, (H + 3) * Wp, Cin)


def _bytes(shape, dtype):
    return math.prod(shape) * jnp.dtype(dtype).itemsize


def _vmem_limit_bytes(block_bytes):
    """2x (double-buffered) block bytes + temporaries headroom, capped per-gen."""
    cap = 64 << 20                                   # conservative (v7x physical)
    try:
        info = pltpu.get_tpu_info()
        for attr in ("vmem_capacity_bytes", "vmem_bytes", "vmem_size_bytes"):
            v = getattr(info, attr, None)
            if v:
                cap = int(v)
                break
    except Exception:
        pass
    need = 2 * block_bytes + (32 << 20)
    return int(min(max(need, 32 << 20), int(0.85 * cap)))


def _pick_tile_h(Hout, tile_h):
    cands = [t for t in range(8, min(tile_h, Hout) + 1, 8) if Hout % t == 0]
    return max(cands) if cands else Hout


def bimff_forward(d2, d3, d4, d5, head2_p, head3_p, head4_p,
                  out_hw=None, tile_h=64, out_dtype=jnp.bfloat16):
    """head*_p = (conv_weight_OIHW, folded_bn_scale, folded_bn_bias).

    Returns (cat, head2, head3, head4, head5) in NCHW, matching
    BiMFFHead.forward (head5 is self.head2 applied to d5).  out_dtype defaults
    to bf16 (kernel B is HBM-write bound); pass jnp.float32 for exact dtype
    parity with the PyTorch module."""
    inputs = (d2, d3, d4, d5)
    B, Cin = d2.shape[0], d2.shape[1]
    Cout = head2_p[0].shape[0]
    assert Cout % 8 == 0, "mlahead_channels must be a multiple of 8"
    spatial = tuple((int(x.shape[2]), int(x.shape[3])) for x in inputs)
    if out_hw is None:
        out_hw = (4 * spatial[0][0], 4 * spatial[0][1])
    Hout, Wout = out_hw

    Wps = tuple(_round_up(W + 2, 8) for (_H, W) in spatial)
    geoms = tuple((H, Wp) for (H, _W), Wp in zip(spatial, Wps))

    TH = _pick_tile_h(Hout, tile_h)
    NT = Hout // TH
    WC = Wout * Cout

    # ---- wrapper-side prep (XLA): 1x-traffic pad/flatten + tiny weights -----
    xflats = [_pad_flat_nhwc(x, Wp) for x, Wp in zip(inputs, Wps)]
    wms = [_fold_weight(head2_p[0], head2_p[1]),
           _fold_weight(head3_p[0], head3_p[1]),
           _fold_weight(head4_p[0], head4_p[1])]
    # Folded-BN bias per head (head5 reuses head2's).
    bias = jnp.stack([head2_p[2], head3_p[2], head4_p[2], head2_p[2]]
                     ).astype(jnp.float32)                             # (4, Cout)
    # Width-upsample matrices, transposed and zero-extended to Wp rows so the
    # conv's junk columns contribute nothing.
    wws = [jnp.pad(bilinear_matrix(W, Wout).T,
                   ((0, Wp - W), (0, 0))).astype(jnp.bfloat16)
           for (_H, W), Wp in zip(spatial, Wps)]                        # (Wp, Wout)
    whs = [bilinear_matrix(H, Hout).astype(jnp.bfloat16)
           for (H, _W) in spatial]                                      # (Hout, H)

    # ---- kernel A: conv + BN + ReLU + width upsample (all heads fused) ------
    a_bytes = (sum(_bytes((1, (H + 3) * Wp, Cin), jnp.bfloat16)
                   for (H, _W), Wp in zip(spatial, Wps))
               + 3 * _bytes((9, Cin, Cout), jnp.bfloat16)
               + _bytes((4, Cout), jnp.float32)
               + sum(_bytes((Wp, Wout), jnp.bfloat16) for Wp in Wps)
               + sum(_bytes((1, H * Cout, Wout), jnp.bfloat16)
                     for (H, _W) in spatial))
    zs = pl.pallas_call(
        functools.partial(_conv_width_kernel, Cout=Cout, geoms=geoms),
        out_shape=tuple(jax.ShapeDtypeStruct((B, H * Cout, Wout), jnp.bfloat16)
                        for (H, _W) in spatial),
        grid_spec=pltpu.PrefetchScalarGridSpec(
            num_scalar_prefetch=0,
            grid=(B,),
            in_specs=([pl.BlockSpec((1, (H + 3) * Wp, Cin), lambda b: (b, 0, 0))
                       for (H, _W), Wp in zip(spatial, Wps)]
                      + [pl.BlockSpec((9, Cin, Cout), lambda b: (0, 0, 0))] * 3
                      + [pl.BlockSpec((4, Cout), lambda b: (0, 0))]
                      + [pl.BlockSpec((Wp, Wout), lambda b: (0, 0))
                         for Wp in Wps]),
            out_specs=tuple(pl.BlockSpec((1, H * Cout, Wout), lambda b: (b, 0, 0))
                            for (H, _W) in spatial),
        ),
        compiler_params=pltpu.CompilerParams(
            dimension_semantics=("parallel",),
            vmem_limit_bytes=_vmem_limit_bytes(a_bytes),
        ),
    )(*xflats, *wms, bias, *wws)

    # Free row-major reinterpretation in HBM: (B, H*C, Wout) == (B, H, C*Wout).
    zs2d = [z.reshape(B, H, WC) for z, (H, _W) in zip(zs, spatial)]

    # ---- kernel B: height upsample + direct NCHW concat ---------------------
    b_bytes = (sum(_bytes((1, H, WC), jnp.bfloat16) for (H, _W) in spatial)
               + sum(_bytes((TH, H), jnp.bfloat16) for (H, _W) in spatial)
               + _bytes((1, 4 * Cout, TH, Wout), out_dtype))
    cat = pl.pallas_call(
        functools.partial(_height_nchw_kernel, Cout=Cout, Wout=Wout),
        out_shape=jax.ShapeDtypeStruct((B, 4 * Cout, Hout, Wout), out_dtype),
        grid_spec=pltpu.PrefetchScalarGridSpec(
            num_scalar_prefetch=0,
            grid=(B, NT),
            in_specs=([pl.BlockSpec((1, H, WC), lambda b, t: (b, 0, 0))
                       for (H, _W) in spatial]
                      + [pl.BlockSpec((TH, H), lambda b, t: (t, 0))
                         for (H, _W) in spatial]),
            out_specs=pl.BlockSpec((1, 4 * Cout, TH, Wout),
                                   lambda b, t: (b, 0, t, 0)),
        ),
        compiler_params=pltpu.CompilerParams(
            dimension_semantics=("parallel", "parallel"),
            vmem_limit_bytes=_vmem_limit_bytes(b_bytes),
        ),
    )(*zs2d, *whs)

    # Per-head outputs are cheap channel slices of the NCHW concat.
    heads = tuple(cat[:, hi * Cout:(hi + 1) * Cout] for hi in range(4))
    return (cat,) + heads


# ------------------------------ reference -----------------------------------

def _ref_head(x, w_oihw, scale, bias, Hout, Wout):
    y = lax.conv_general_dilated(
        x.astype(jnp.float32), w_oihw.astype(jnp.float32),
        window_strides=(1, 1), padding=((1, 1), (1, 1)),
        dimension_numbers=("NCHW", "OIHW", "NCHW"))
    y = jnp.maximum(y * scale[None, :, None, None] + bias[None, :, None, None], 0.0)
    Wh = bilinear_matrix(y.shape[2], Hout)
    Ww = bilinear_matrix(y.shape[3], Wout)
    return jnp.einsum("ph,qw,bchw->bcpq", Wh, Ww, y)


# --------------------------------- main --------------------------------------

if __name__ == "__main__":
    B = 2
    mla_channels = 8        # small stand-in for 256
    mlahead_channels = 8    # small stand-in for 64 (must be a multiple of 8)
    S = 16                  # d2 spatial; d3 = S/2, d4 = S/4, d5 = S/8
    Hout = Wout = 4 * S     # every head lands at the same 64x64 resolution

    keys = jax.random.split(jax.random.PRNGKey(0), 24)
    ki = iter(keys)

    def make_head_params():
        kw, kg, kb, km, kv = (next(ki) for _ in range(5))
        w = jax.random.normal(kw, (mlahead_channels, mla_channels, 3, 3),
                              jnp.float32) * (2.0 / (mla_channels * 9)) ** 0.5
        gamma = 1.0 + 0.1 * jax.random.normal(kg, (mlahead_channels,), jnp.float32)
        beta = 0.05 * jax.random.normal(kb, (mlahead_channels,), jnp.float32)
        mean = 0.1 * jax.random.normal(km, (mlahead_channels,), jnp.float32)
        var = 0.5 + jnp.abs(jax.random.normal(kv, (mlahead_channels,), jnp.float32))
        scl = gamma / jnp.sqrt(var + 1e-5)
        return w, scl, beta - mean * scl

    p2 = make_head_params()   # self.head2
    p3 = make_head_params()   # self.head3 (extra ReLU is a no-op)
    p4 = make_head_params()   # self.head4
    _p5 = make_head_params()  # self.head5 exists but forward() never uses it

    d2 = jax.random.normal(next(ki), (B, mla_channels, S, S), jnp.float32)
    d3 = jax.random.normal(next(ki), (B, mla_channels, S // 2, S // 2), jnp.float32)
    d4 = jax.random.normal(next(ki), (B, mla_channels, S // 4, S // 4), jnp.float32)
    d5 = jax.random.normal(next(ki), (B, mla_channels, S // 8, S // 8), jnp.float32)

    outputs = bimff_forward(d2, d3, d4, d5, p2, p3, p4, (Hout, Wout), tile_h=64)
    jax.block_until_ready(outputs)
    cat, head2, head3, head4, head5 = outputs

    refs = (_ref_head(d2, *p2, Hout, Wout),
            _ref_head(d3, *p3, Hout, Wout),
            _ref_head(d4, *p4, Hout, Wout),
            _ref_head(d5, *p2, Hout, Wout))   # forward() applies self.head2 to d5

    assert cat.shape == (B, 4 * mlahead_channels, Hout, Wout)
    for got, ref in zip((head2, head3, head4, head5), refs):
        assert got.shape == (B, mlahead_channels, Hout, Wout)
        got = got.astype(jnp.float32)
        ref_scale = float(jnp.max(jnp.abs(ref))) + 1e-6
        max_err = float(jnp.max(jnp.abs(got - ref)))
        mean_err = float(jnp.mean(jnp.abs(got - ref)))
        # bf16 matmul operands / bf16 output (f32 accumulation) -> loose tolerance.
        assert max_err <= 3e-2 * ref_scale + 1e-2, (max_err, ref_scale)
        assert mean_err <= 5e-3 * ref_scale + 1e-3, (mean_err, ref_scale)

    print("KERNEL_OK")
</pallas_src>

<mosaic_0001>
module attributes {stable_mosaic.version = 11 : i64} {
  func.func @_conv_width_kernel(%arg0: i32, %arg1: memref<1x456x8xbf16, #tpu.memory_space<vmem>>, %arg2: memref<1x176x8xbf16, #tpu.memory_space<vmem>>, %arg3: memref<1x56x8xbf16, #tpu.memory_space<vmem>>, %arg4: memref<1x40x8xbf16, #tpu.memory_space<vmem>>, %arg5: memref<9x8x8xbf16, #tpu.memory_space<vmem>>, %arg6: memref<9x8x8xbf16, #tpu.memory_space<vmem>>, %arg7: memref<9x8x8xbf16, #tpu.memory_space<vmem>>, %arg8: memref<4x8xf32, #tpu.memory_space<vmem>>, %arg9: memref<24x64xbf16, #tpu.memory_space<vmem>>, %arg10: memref<16x64xbf16, #tpu.memory_space<vmem>>, %arg11: memref<8x64xbf16, #tpu.memory_space<vmem>>, %arg12: memref<8x64xbf16, #tpu.memory_space<vmem>>, %arg13: memref<1x128x64xbf16, #tpu.memory_space<vmem>>, %arg14: memref<1x64x64xbf16, #tpu.memory_space<vmem>>, %arg15: memref<1x32x64xbf16, #tpu.memory_space<vmem>>, %arg16: memref<1x16x64xbf16, #tpu.memory_space<vmem>>) attributes {dimension_semantics = [#tpu.dimension_semantics<parallel>], iteration_bounds = array<i64: 2>, scalar_prefetch = 0 : i64, scratch_operands = 0 : i64, tpu.core_type = #tpu.core_type<tc>, window_params = [{transform_indices = @transform_0, window_bounds = array<i64: 1, 456, 8>}, {transform_indices = @transform_1, window_bounds = array<i64: 1, 176, 8>}, {transform_indices = @transform_2, window_bounds = array<i64: 1, 56, 8>}, {transform_indices = @transform_3, window_bounds = array<i64: 1, 40, 8>}, {pipeline_mode = #tpu.pipeline_mode<synchronous>, transform_indices = @transform_4, window_bounds = array<i64: 9, 8, 8>}, {pipeline_mode = #tpu.pipeline_mode<synchronous>, transform_indices = @transform_5, window_bounds = array<i64: 9, 8, 8>}, {pipeline_mode = #tpu.pipeline_mode<synchronous>, transform_indices = @transform_6, window_bounds = array<i64: 9, 8, 8>}, {pipeline_mode = #tpu.pipeline_mode<synchronous>, transform_indices = @transform_7, window_bounds = array<i64: 4, 8>}, {pipeline_mode = #tpu.pipeline_mode<synchronous>, transform_indices = @transform_8, window_bounds = array<i64: 24, 64>}, {pipeline_mode = #tpu.pipeline_mode<synchronous>, transform_indices = @transform_9, window_bounds = array<i64: 16, 64>}, {pipeline_mode = #tpu.pipeline_mode<synchronous>, transform_indices = @transform_10, window_bounds = array<i64: 8, 64>}, {pipeline_mode = #tpu.pipeline_mode<synchronous>, transform_indices = @transform_11, window_bounds = array<i64: 8, 64>}, {transform_indices = @transform_12, window_bounds = array<i64: 1, 128, 64>}, {transform_indices = @transform_13, window_bounds = array<i64: 1, 64, 64>}, {transform_indices = @transform_14, window_bounds = array<i64: 1, 32, 64>}, {transform_indices = @transform_15, window_bounds = array<i64: 1, 16, 64>}]} {
    %c0 = arith.constant 0 : index
    %c0_0 = arith.constant 0 : index
    %c0_1 = arith.constant 0 : index
    %0 = vector.load %arg1[%c0, %c0_0, %c0_1] : memref<1x456x8xbf16, #tpu.memory_space<vmem>>, vector<1x384x8xbf16>
    %1 = vector.shape_cast %0 : vector<1x384x8xbf16> to vector<384x8xbf16>
    %c0_2 = arith.constant 0 : index
    %c0_3 = arith.constant 0 : index
    %c0_4 = arith.constant 0 : index
    %2 = vector.load %arg5[%c0_2, %c0_3, %c0_4] : memref<9x8x8xbf16, #tpu.memory_space<vmem>>, vector<1x8x8xbf16>
    %3 = vector.shape_cast %2 : vector<1x8x8xbf16> to vector<8x8xbf16>
    %cst = arith.constant dense<0.000000e+00> : vector<384x8xf32>
    %4 = tpu.matmul %1, %3, %cst {dimension_numbers = #tpu.dot_dimension_numbers<[1], [0], [0], [1], [0, 0, 1, 1], [], []>} : vector<384x8xbf16>, vector<8x8xbf16>, vector<384x8xf32> -> vector<384x8xf32>
    %c0_5 = arith.constant 0 : index
    %c1 = arith.constant 1 : index
    %c0_6 = arith.constant 0 : index
    %5 = vector.load %arg1[%c0_5, %c1, %c0_6] : memref<1x456x8xbf16, #tpu.memory_space<vmem>>, vector<1x384x8xbf16>
    %6 = vector.shape_cast %5 : vector<1x384x8xbf16> to vector<384x8xbf16>
    %c1_7 = arith.constant 1 : index
    %c0_8 = arith.constant 0 : index
    %c0_9 = arith.constant 0 : index
    %7 = vector.load %arg5[%c1_7, %c0_8, %c0_9] : memref<9x8x8xbf16, #tpu.memory_space<vmem>>, vector<1x8x8xbf16>
    %8 = vector.shape_cast %7 : vector<1x8x8xbf16> to vector<8x8xbf16>
    %cst_10 = arith.constant dense<0.000000e+00> : vector<384x8xf32>
    %9 = tpu.matmul %6, %8, %cst_10 {dimension_numbers = #tpu.dot_dimension_numbers<[1], [0], [0], [1], [0, 0, 1, 1], [], []>} : vector<384x8xbf16>, vector<8x8xbf16>, vector<384x8xf32> -> vector<384x8xf32>
    %10 = arith.addf %4, %9 : vector<384x8xf32>
    %c0_11 = arith.constant 0 : index
    %c2 = arith.constant 2 : index
    %c0_12 = arith.constant 0 : index
    %11 = vector.load %arg1[%c0_11, %c2, %c0_12] : memref<1x456x8xbf16, #tpu.memory_space<vmem>>, vector<1x384x8xbf16>
    %12 = vector.shape_cast %11 : vector<1x384x8xbf16> to vector<384x8xbf16>
    %c2_13 = arith.constant 2 : index
    %c0_14 = arith.constant 0 : index
    %c0_15 = arith.constant 0 : index
    %13 = vector.load %arg5[%c2_13, %c0_14, %c0_15] : memref<9x8x8xbf16, #tpu.memory_space<vmem>>, vector<1x8x8xbf16>
    %14 = vector.shape_cast %13 : vector<1x8x8xbf16> to vector<8x8xbf16>
    %cst_16 = arith.constant dense<0.000000e+00> : vector<384x8xf32>
    %15 = tpu.matmul %12, %14, %cst_16 {dimension_numbers = #tpu.dot_dimension_numbers<[1], [0], [0], [1], [0, 0, 1, 1], [], []>} : vector<384x8xbf16>, vector<8x8xbf16>, vector<384x8xf32> -> vector<384x8xf32>
    %16 = arith.addf %10, %15 : vector<384x8xf32>
    %c0_17 = arith.constant 0 : index
    %c24 = arith.constant 24 : index
    %c0_18 = arith.constant 0 : index
    %17 = vector.load %arg1[%c0_17, %c24, %c0_18] : memref<1x456x8xbf16, #tpu.memory_space<vmem>>, vector<1x384x8xbf16>
    %18 = vector.shape_cast %17 : vector<1x384x8xbf16> to vector<384x8xbf16>
    %c3 = arith.constant 3 : index
    %c0_19 = arith.constant 0 : index
    %c0_20 = arith.constant 0 : index
    %19 = vector.load %arg5[%c3, %c0_19, %c0_20] : memref<9x8x8xbf16, #tpu.memory_space<vmem>>, vector<1x8x8xbf16>
    %20 = vector.shape_cast %19 : vector<1x8x8xbf16> to vector<8x8xbf16>
    %cst_21 = arith.constant dense<0.000000e+00> : vector<384x8xf32>
    %21 = tpu.matmul %18, %20, %cst_21 {dimension_numbers = #tpu.dot_dimension_numbers<[1], [0], [0], [1], [0, 0, 1, 1], [], []>} : vector<384x8xbf16>, vector<8x8xbf16>, vector<384x8xf32> -> vector<384x8xf32>
    %22 = arith.addf %16, %21 : vector<384x8xf32>
    %c0_22 = arith.constant 0 : index
    %c25 = arith.constant 25 : index
    %c0_23 = arith.constant 0 : index
    %23 = vector.load %arg1[%c0_22, %c25, %c0_23] : memref<1x456x8xbf16, #tpu.memory_space<vmem>>, vector<1x384x8xbf16>
    %24 = vector.shape_cast %23 : vector<1x384x8xbf16> to vector<384x8xbf16>
    %c4 = arith.constant 4 : index
    %c0_24 = arith.constant 0 : index
    %c0_25 = arith.constant 0 : index
    %25 = vector.load %arg5[%c4, %c0_24, %c0_25] : memref<9x8x8xbf16, #tpu.memory_space<vmem>>, vector<1x8x8xbf16>
    %26 = vector.shape_cast %25 : vector<1x8x8xbf16> to vector<8x8xbf16>
    %cst_26 = arith.constant dense<0.000000e+00> : vector<384x8xf32>
    %27 = tpu.matmul %24, %26, %cst_26 {dimension_numbers = #tpu.dot_dimension_numbers<[1], [0], [0], [1], [0, 0, 1, 1], [], []>} : vector<384x8xbf16>, vector<8x8xbf16>, vector<384x8xf32> -> vector<384x8xf32>
    %28 = arith.addf %22, %27 : vector<384x8xf32>
    %c0_27 = arith.constant 0 : index
    %c26 = arith.constant 26 : index
    %c0_28 = arith.constant 0 : index
    %29 = vector.load %arg1[%c0_27, %c26, %c0_28] : memref<1x456x8xbf16, #tpu.memory_space<vmem>>, vector<1x384x8xbf16>
    %30 = vector.shape_cast %29 : vector<1x384x8xbf16> to vector<384x8xbf16>
    %c5 = arith.constant 5 : index
    %c0_29 = arith.constant 0 : index
    %c0_30 = arith.constant 0 : index
    %31 = vector.load %arg5[%c5, %c0_29, %c0_30] : memref<9x8x8xbf16, #tpu.memory_space<vmem>>, vector<1x8x8xbf16>
    %32 = vector.shape_cast %31 : vector<1x8x8xbf16> to vector<8x8xbf16>
    %cst_31 = arith.constant dense<0.000000e+00> : vector<384x8xf32>
    %33 = tpu.matmul %30, %32, %cst_31 {dimension_numbers = #tpu.dot_dimension_numbers<[1], [0], [0], [1], [0, 0, 1, 1], [], []>} : vector<384x8xbf16>, vector<8x8xbf16>, vector<384x8xf32> -> vector<384x8xf32>
    %34 = arith.addf %28, %33 : vector<384x8xf32>
    %c0_32 = arith.constant 0 : index
    %c48 = arith.constant 48 : index
    %c0_33 = arith.constant 0 : index
    %35 = vector.load %arg1[%c0_32, %c48, %c0_33] : memref<1x456x8xbf16, #tpu.memory_space<vmem>>, vector<1x384x8xbf16>
    %36 = vector.shape_cast %35 : vector<1x384x8xbf16> to vector<384x8xbf16>
    %c6 = arith.constant 6 : index
    %c0_34 = arith.constant 0 : index
    %c0_35 = arith.constant 0 : index
    %37 = vector.load %arg5[%c6, %c0_34, %c0_35] : memref<9x8x8xbf16, #tpu.memory_space<vmem>>, vector<1x8x8xbf16>
    %38 = vector.shape_cast %37 : vector<1x8x8xbf16> to vector<8x8xbf16>
    %cst_36 = arith.constant dense<0.000000e+00> : vector<384x8xf32>
    %39 = tpu.matmul %36, %38, %cst_36 {dimension_numbers = #tpu.dot_dimension_numbers<[1], [0], [0], [1], [0, 0, 1, 1], [], []>} : vector<384x8xbf16>, vector<8x8xbf16>, vector<384x8xf32> -> vector<384x8xf32>
    %40 = arith.addf %34, %39 : vector<384x8xf32>
    %c0_37 = arith.constant 0 : index
    %c49 = arith.constant 49 : index
    %c0_38 = arith.constant 0 : index
    %41 = vector.load %arg1[%c0_37, %c49, %c0_38] : memref<1x456x8xbf16, #tpu.memory_space<vmem>>, vector<1x384x8xbf16>
    %42 = vector.shape_cast %41 : vector<1x384x8xbf16> to vector<384x8xbf16>
    %c7 = arith.constant 7 : index
    %c0_39 = arith.constant 0 : index
    %c0_40 = arith.constant 0 : index
    %43 = vector.load %arg5[%c7, %c0_39, %c0_40] : memref<9x8x8xbf16, #tpu.memory_space<vmem>>, vector<1x8x8xbf16>
    %44 = vector.shape_cast %43 : vector<1x8x8xbf16> to vector<8x8xbf16>
    %cst_41 = arith.constant dense<0.000000e+00> : vector<384x8xf32>
    %45 = tpu.matmul %42, %44, %cst_41 {dimension_numbers = #tpu.dot_dimension_numbers<[1], [0], [0], [1], [0, 0, 1, 1], [], []>} : vector<384x8xbf16>, vector<8x8xbf16>, vector<384x8xf32> -> vector<384x8xf32>
    %46 = arith.addf %40, %45 : vector<384x8xf32>
    %c0_42 = arith.constant 0 : index
    %c50 = arith.constant 50 : index
    %c0_43 = arith.constant 0 : index
    %47 = vector.load %arg1[%c0_42, %c50, %c0_43] : memref<1x456x8xbf16, #tpu.memory_space<vmem>>, vector<1x384x8xbf16>
    %48 = vector.shape_cast %47 : vector<1x384x8xbf16> to vector<384x8xbf16>
    %c8 = arith.constant 8 : index
    %c0_44 = arith.constant 0 : index
    %c0_45 = arith.constant 0 : index
    %49 = vector.load %arg5[%c8, %c0_44, %c0_45] : memref<9x8x8xbf16, #tpu.memory_space<vmem>>, vector<1x8x8xbf16>
    %50 = vector.shape_cast %49 : vector<1x8x8xbf16> to vector<8x8xbf16>
    %cst_46 = arith.constant dense<0.000000e+00> : vector<384x8xf32>
    %51 = tpu.matmul %48, %50, %cst_46 {dimension_numbers = #tpu.dot_dimension_numbers<[1], [0], [0], [1], [0, 0, 1, 1], [], []>} : vector<384x8xbf16>, vector<8x8xbf16>, vector<384x8xf32> -> vector<384x8xf32>
    %52 = arith.addf %46, %51 : vector<384x8xf32>
    %c0_47 = arith.constant 0 : index
    %c0_48 = arith.constant 0 : index
    %53 = vector.load %arg8[%c0_47, %c0_48] : memref<4x8xf32, #tpu.memory_space<vmem>>, vector<1x8xf32>
    %54 = vector.broadcast %53 : vector<1x8xf32> to vector<384x8xf32>
    %55 = arith.addf %52, %54 : vector<384x8xf32>
    %cst_49 = arith.constant 0.000000e+00 : f32
    %56 = vector.broadcast %cst_49 : f32 to vector<384x8xf32>
    %57 = arith.maximumf %55, %56 : vector<384x8xf32>
    %58 = vector.shape_cast %57 : vector<384x8xf32> to vector<16x24x8xf32>
    %59 = tpu.transpose %58, [0, 2, 1] : vector<16x24x8xf32> -> vector<16x8x24xf32>
    %60 = vector.shape_cast %59 : vector<16x8x24xf32> to vector<128x24xf32>
    %61 = arith.truncf %60 : vector<128x24xf32> to vector<128x24xbf16>
    %c0_50 = arith.constant 0 : index
    %c0_51 = arith.constant 0 : index
    %62 = vector.load %arg9[%c0_50, %c0_51] : memref<24x64xbf16, #tpu.memory_space<vmem>>, vector<24x64xbf16>
    %cst_52 = arith.constant dense<0.000000e+00> : vector<128x64xf32>
    %63 = tpu.matmul %61, %62, %cst_52 {dimension_numbers = #tpu.dot_dimension_numbers<[1], [0], [0], [1], [0, 0, 1, 1], [], []>} : vector<128x24xbf16>, vector<24x64xbf16>, vector<128x64xf32> -> vector<128x64xf32>
    %64 = arith.truncf %63 : vector<128x64xf32> to vector<128x64xbf16>
    %c0_53 = arith.constant 0 : index
    %c0_54 = arith.constant 0 : index
    %c0_55 = arith.constant 0 : index
    %65 = vector.load %arg13[%c0_53, %c0_54, %c0_55] : memref<1x128x64xbf16, #tpu.memory_space<vmem>>, vector<1x128x64xbf16>
    %66 = vector.shape_cast %65 : vector<1x128x64xbf16> to vector<128x64xbf16>
    %67 = vector.shape_cast %64 : vector<128x64xbf16> to vector<1x128x64xbf16>
    tpu.vector_store %arg13[%c0_53, %c0_54, %c0_55], %67 {strides = array<i32>} : memref<1x128x64xbf16, #tpu.memory_space<vmem>>, vector<1x128x64xbf16>,
    %c0_56 = arith.constant 0 : index
    %c0_57 = arith.constant 0 : index
    %c0_58 = arith.constant 0 : index
    %68 = vector.load %arg2[%c0_56, %c0_57, %c0_58] : memref<1x176x8xbf16, #tpu.memory_space<vmem>>, vector<1x128x8xbf16>
    %69 = vector.shape_cast %68 : vector<1x128x8xbf16> to vector<128x8xbf16>
    %c0_59 = arith.constant 0 : index
    %c0_60 = arith.constant 0 : index
    %c0_61 = arith.constant 0 : index
    %70 = vector.load %arg6[%c0_59, %c0_60, %c0_61] : memref<9x8x8xbf16, #tpu.memory_space<vmem>>, vector<1x8x8xbf16>
    %71 = vector.shape_cast %70 : vector<1x8x8xbf16> to vector<8x8xbf16>
    %cst_62 = arith.constant dense<0.000000e+00> : vector<128x8xf32>
    %72 = tpu.matmul %69, %71, %cst_62 {dimension_numbers = #tpu.dot_dimension_numbers<[1], [0], [0], [1], [0, 0, 1, 1], [], []>} : vector<128x8xbf16>, vector<8x8xbf16>, vector<128x8xf32> -> vector<128x8xf32>
    %c0_63 = arith.constant 0 : index
    %c1_64 = arith.constant 1 : index
    %c0_65 = arith.constant 0 : index
    %73 = vector.load %arg2[%c0_63, %c1_64, %c0_65] : memref<1x176x8xbf16, #tpu.memory_space<vmem>>, vector<1x128x8xbf16>
    %74 = vector.shape_cast %73 : vector<1x128x8xbf16> to vector<128x8xbf16>
    %c1_66 = arith.constant 1 : index
    %c0_67 = arith.constant 0 : index
    %c0_68 = arith.constant 0 : index
    %75 = vector.load %arg6[%c1_66, %c0_67, %c0_68] : memref<9x8x8xbf16, #tpu.memory_space<vmem>>, vector<1x8x8xbf16>
    %76 = vector.shape_cast %75 : vector<1x8x8xbf16> to vector<8x8xbf16>
    %cst_69 = arith.constant dense<0.000000e+00> : vector<128x8xf32>
    %77 = tpu.matmul %74, %76, %cst_69 {dimension_numbers = #tpu.dot_dimension_numbers<[1], [0], [0], [1], [0, 0, 1, 1], [], []>} : vector<128x8xbf16>, vector<8x8xbf16>, vector<128x8xf32> -> vector<128x8xf32>
    %78 = arith.addf %72, %77 : vector<128x8xf32>
    %c0_70 = arith.constant 0 : index
    %c2_71 = arith.constant 2 : index
    %c0_72 = arith.constant 0 : index
    %79 = vector.load %arg2[%c0_70, %c2_71, %c0_72] : memref<1x176x8xbf16, #tpu.memory_space<vmem>>, vector<1x128x8xbf16>
    %80 = vector.shape_cast %79 : vector<1x128x8xbf16> to vector<128x8xbf16>
    %c2_73 = arith.constant 2 : index
    %c0_74 = arith.constant 0 : index
    %c0_75 = arith.constant 0 : index
    %81 = vector.load %arg6[%c2_73, %c0_74, %c0_75] : memref<9x8x8xbf16, #tpu.memory_space<vmem>>, vector<1x8x8xbf16>
    %82 = vector.shape_cast %81 : vector<1x8x8xbf16> to vector<8x8xbf16>
    %cst_76 = arith.constant dense<0.000000e+00> : vector<128x8xf32>
    %83 = tpu.matmul %80, %82, %cst_76 {dimension_numbers = #tpu.dot_dimension_numbers<[1], [0], [0], [1], [0, 0, 1, 1], [], []>} : vector<128x8xbf16>, vector<8x8xbf16>, vector<128x8xf32> -> vector<128x8xf32>
    %84 = arith.addf %78, %83 : vector<128x8xf32>
    %c0_77 = arith.constant 0 : index
    %c16 = arith.constant 16 : index
    %c0_78 = arith.constant 0 : index
    %85 = vector.load %arg2[%c0_77, %c16, %c0_78] : memref<1x176x8xbf16, #tpu.memory_space<vmem>>, vector<1x128x8xbf16>
    %86 = vector.shape_cast %85 : vector<1x128x8xbf16> to vector<128x8xbf16>
    %c3_79 = arith.constant 3 : index
    %c0_80 = arith.constant 0 : index
    %c0_81 = arith.constant 0 : index
    %87 = vector.load %arg6[%c3_79, %c0_80, %c0_81] : memref<9x8x8xbf16, #tpu.memory_space<vmem>>, vector<1x8x8xbf16>
    %88 = vector.shape_cast %87 : vector<1x8x8xbf16> to vector<8x8xbf16>
    %cst_82 = arith.constant dense<0.000000e+00> : vector<128x8xf32>
    %89 = tpu.matmul %86, %88, %cst_82 {dimension_numbers = #tpu.dot_dimension_numbers<[1], [0], [0], [1], [0, 0, 1, 1], [], []>} : vector<128x8xbf16>, vector<8x8xbf16>, vector<128x8xf32> -> vector<128x8xf32>
    %90 = arith.addf %84, %89 : vector<128x8xf32>
    %c0_83 = arith.constant 0 : index
    %c17 = arith.constant 17 : index
    %c0_84 = arith.constant 0 : index
    %91 = vector.load %arg2[%c0_83, %c17, %c0_84] : memref<1x176x8xbf16, #tpu.memory_space<vmem>>, vector<1x128x8xbf16>
    %92 = vector.shape_cast %91 : vector<1x128x8xbf16> to vector<128x8xbf16>
    %c4_85 = arith.constant 4 : index
    %c0_86 = arith.constant 0 : index
    %c0_87 = arith.constant 0 : index
    %93 = vector.load %arg6[%c4_85, %c0_86, %c0_87] : memref<9x8x8xbf16, #tpu.memory_space<vmem>>, vector<1x8x8xbf16>
    %94 = vector.shape_cast %93 : vector<1x8x8xbf16> to vector<8x8xbf16>
    %cst_88 = arith.constant dense<0.000000e+00> : vector<128x8xf32>
    %95 = tpu.matmul %92, %94, %cst_88 {dimension_numbers = #tpu.dot_dimension_numbers<[1], [0], [0], [1], [0, 0, 1, 1], [], []>} : vector<128x8xbf16>, vector<8x8xbf16>, vector<128x8xf32> -> vector<128x8xf32>
    %96 = arith.addf %90, %95 : vector<128x8xf32>
    %c0_89 = arith.constant 0 : index
    %c18 = arith.constant 18 : index
    %c0_90 = arith.constant 0 : index
    %97 = vector.load %arg2[%c0_89, %c18, %c0_90] : memref<1x176x8xbf16, #tpu.memory_space<vmem>>, vector<1x128x8xbf16>
    %98 = vector.shape_cast %97 : vector<1x128x8xbf16> to vector<128x8xbf16>
    %c5_91 = arith.constant 5 : index
    %c0_92 = arith.constant 0 : index
    %c0_93 = arith.constant 0 : index
    %99 = vector.load %arg6[%c5_91, %c0_92, %c0_93] : memref<9x8x8xbf16, #tpu.memory_space<vmem>>, vector<1x8x8xbf16>
    %100 = vector.shape_cast %99 : vector<1x8x8xbf16> to vector<8x8xbf16>
    %cst_94 = arith.constant dense<0.000000e+00> : vector<128x8xf32>
    %101 = tpu.matmul %98, %100, %cst_94 {dimension_numbers = #tpu.dot_dimension_numbers<[1], [0], [0], [1], [0, 0, 1, 1], [], []>} : vector<128x8xbf16>, vector<8x8xbf16>, vector<128x8xf32> -> vector<128x8xf32>
    %102 = arith.addf %96, %101 : vector<128x8xf32>
    %c0_95 = arith.constant 0 : index
    %c32 = arith.constant 32 : index
    %c0_96 = arith.constant 0 : index
    %103 = vector.load %arg2[%c0_95, %c32, %c0_96] : memref<1x176x8xbf16, #tpu.memory_space<vmem>>, vector<1x128x8xbf16>
    %104 = vector.shape_cast %103 : vector<1x128x8xbf16> to vector<128x8xbf16>
    %c6_97 = arith.constant 6 : index
    %c0_98 = arith.constant 0 : index
    %c0_99 = arith.constant 0 : index
    %105 = vector.load %arg6[%c6_97, %c0_98, %c0_99] : memref<9x8x8xbf16, #tpu.memory_space<vmem>>, vector<1x8x8xbf16>
    %106 = vector.shape_cast %105 : vector<1x8x8xbf16> to vector<8x8xbf16>
    %cst_100 = arith.constant dense<0.000000e+00> : vector<128x8xf32>
    %107 = tpu.matmul %104, %106, %cst_100 {dimension_numbers = #tpu.dot_dimension_numbers<[1], [0], [0], [1], [0, 0, 1, 1], [], []>} : vector<128x8xbf16>, vector<8x8xbf16>, vector<128x8xf32> -> vector<128x8xf32>
    %108 = arith.addf %102, %107 : vector<128x8xf32>
    %c0_101 = arith.constant 0 : index
    %c33 = arith.constant 33 : index
    %c0_102 = arith.constant 0 : index
    %109 = vector.load %arg2[%c0_101, %c33, %c0_102] : memref<1x176x8xbf16, #tpu.memory_space<vmem>>, vector<1x128x8xbf16>
    %110 = vector.shape_cast %109 : vector<1x128x8xbf16> to vector<128x8xbf16>
    %c7_103 = arith.constant 7 : index
    %c0_104 = arith.constant 0 : index
    %c0_105 = arith.constant 0 : index
    %111 = vector.load %arg6[%c7_103, %c0_104, %c0_105] : memref<9x8x8xbf16, #tpu.memory_space<vmem>>, vector<1x8x8xbf16>
    %112 = vector.shape_cast %111 : vector<1x8x8xbf16> to vector<8x8xbf16>
    %cst_106 = arith.constant dense<0.000000e+00> : vector<128x8xf32>
    %113 = tpu.matmul %110, %112, %cst_106 {dimension_numbers = #tpu.dot_dimension_numbers<[1], [0], [0], [1], [0, 0, 1, 1], [], []>} : vector<128x8xbf16>, vector<8x8xbf16>, vector<128x8xf32> -> vector<128x8xf32>
    %114 = arith.addf %108, %113 : vector<128x8xf32>
    %c0_107 = arith.constant 0 : index
    %c34 = arith.constant 34 : index
    %c0_108 = arith.constant 0 : index
    %115 = vector.load %arg2[%c0_107, %c34, %c0_108] : memref<1x176x8xbf16, #tpu.memory_space<vmem>>, vector<1x128x8xbf16>
    %116 = vector.shape_cast %115 : vector<1x128x8xbf16> to vector<128x8xbf16>
    %c8_109 = arith.constant 8 : index
    %c0_110 = arith.constant 0 : index
    %c0_111 = arith.constant 0 : index
    %117 = vector.load %arg6[%c8_109, %c0_110, %c0_111] : memref<9x8x8xbf16, #tpu.memory_space<vmem>>, vector<1x8x8xbf16>
    %118 = vector.shape_cast %117 : vector<1x8x8xbf16> to vector<8x8xbf16>
    %cst_112 = arith.constant dense<0.000000e+00> : vector<128x8xf32>
    %119 = tpu.matmul %116, %118, %cst_112 {dimension_numbers = #tpu.dot_dimension_numbers<[1], [0], [0], [1], [0, 0, 1, 1], [], []>} : vector<128x8xbf16>, vector<8x8xbf16>, vector<128x8xf32> -> vector<128x8xf32>
    %120 = arith.addf %114, %119 : vector<128x8xf32>
    %c1_113 = arith.constant 1 : index
    %c0_114 = arith.constant 0 : index
    %121 = vector.load %arg8[%c1_113, %c0_114] : memref<4x8xf32, #tpu.memory_space<vmem>>, vector<1x8xf32>
    %122 = vector.broadcast %121 : vector<1x8xf32> to vector<128x8xf32>
    %123 = arith.addf %120, %122 : vector<128x8xf32>
    %cst_115 = arith.constant 0.000000e+00 : f32
    %124 = vector.broadcast %cst_115 : f32 to vector<128x8xf32>
    %125 = arith.maximumf %123, %124 : vector<128x8xf32>
    %126 = vector.shape_cast %125 : vector<128x8xf32> to vector<8x16x8xf32>
    %127 = tpu.transpose %126, [0, 2, 1] : vector<8x16x8xf32> -> vector<8x8x16xf32>
    %128 = vector.shape_cast %127 : vector<8x8x16xf32> to vector<64x16xf32>
    %129 = arith.truncf %128 : vector<64x16xf32> to vector<64x16xbf16>
    %c0_116 = arith.constant 0 : index
    %c0_117 = arith.constant 0 : index
    %130 = vector.load %arg10[%c0_116, %c0_117] : memref<16x64xbf16, #tpu.memory_space<vmem>>, vector<16x64xbf16>
    %cst_118 = arith.constant dense<0.000000e+00> : vector<64x64xf32>
    %131 = tpu.matmul %129, %130, %cst_118 {dimension_numbers = #tpu.dot_dimension_numbers<[1], [0], [0], [1], [0, 0, 1, 1], [], []>} : vector<64x16xbf16>, vector<16x64xbf16>, vector<64x64xf32> -> vector<64x64xf32>
    %132 = arith.truncf %131 : vector<64x64xf32> to vector<64x64xbf16>
    %c0_119 = arith.constant 0 : index
    %c0_120 = arith.constant 0 : index
    %c0_121 = arith.constant 0 : index
    %133 = vector.load %arg14[%c0_119, %c0_120, %c0_121] : memref<1x64x64xbf16, #tpu.memory_space<vmem>>, vector<1x64x64xbf16>
    %134 = vector.shape_cast %133 : vector<1x64x64xbf16> to vector<64x64xbf16>
    %135 = vector.shape_cast %132 : vector<64x64xbf16> to vector<1x64x64xbf16>
    tpu.vector_store %arg14[%c0_119, %c0_120, %c0_121], %135 {strides = array<i32>} : memref<1x64x64xbf16, #tpu.memory_space<vmem>>, vector<1x64x64xbf16>,
    %c0_122 = arith.constant 0 : index
    %c0_123 = arith.constant 0 : index
    %c0_124 = arith.constant 0 : index
    %136 = vector.load %arg3[%c0_122, %c0_123, %c0_124] : memref<1x56x8xbf16, #tpu.memory_space<vmem>>, vector<1x32x8xbf16>
    %137 = vector.shape_cast %136 : vector<1x32x8xbf16> to vector<32x8xbf16>
    %c0_125 = arith.constant 0 : index
    %c0_126 = arith.constant 0 : index
    %c0_127 = arith.constant 0 : index
    %138 = vector.load %arg7[%c0_125, %c0_126, %c0_127] : memref<9x8x8xbf16, #tpu.memory_space<vmem>>, vector<1x8x8xbf16>
    %139 = vector.shape_cast %138 : vector<1x8x8xbf16> to vector<8x8xbf16>
    %cst_128 = arith.constant dense<0.000000e+00> : vector<32x8xf32>
    %140 = tpu.matmul %137, %139, %cst_128 {dimension_numbers = #tpu.dot_dimension_numbers<[1], [0], [0], [1], [0, 0, 1, 1], [], []>} : vector<32x8xbf16>, vector<8x8xbf16>, vector<32x8xf32> -> vector<32x8xf32>
    %c0_129 = arith.constant 0 : index
    %c1_130 = arith.constant 1 : index
    %c0_131 = arith.constant 0 : index
    %141 = vector.load %arg3[%c0_129, %c1_130, %c0_131] : memref<1x56x8xbf16, #tpu.memory_space<vmem>>, vector<1x32x8xbf16>
    %142 = vector.shape_cast %141 : vector<1x32x8xbf16> to vector<32x8xbf16>
    %c1_132 = arith.constant 1 : index
    %c0_133 = arith.constant 0 : index
    %c0_134 = arith.constant 0 : index
    %143 = vector.load %arg7[%c1_132, %c0_133, %c0_134] : memref<9x8x8xbf16, #tpu.memory_space<vmem>>, vector<1x8x8xbf16>
    %144 = vector.shape_cast %143 : vector<1x8x8xbf16> to vector<8x8xbf16>
    %cst_135 = arith.constant dense<0.000000e+00> : vector<32x8xf32>
    %145 = tpu.matmul %142, %144, %cst_135 {dimension_numbers = #tpu.dot_dimension_numbers<[1], [0], [0], [1], [0, 0, 1, 1], [], []>} : vector<32x8xbf16>, vector<8x8xbf16>, vector<32x8xf32> -> vector<32x8xf32>
    %146 = arith.addf %140, %145 : vector<32x8xf32>
    %c0_136 = arith.constant 0 : index
    %c2_137 = arith.constant 2 : index
    %c0_138 = arith.constant 0 : index
    %147 = vector.load %arg3[%c0_136, %c2_137, %c0_138] : memref<1x56x8xbf16, #tpu.memory_space<vmem>>, vector<1x32x8xbf16>
    %148 = vector.shape_cast %147 : vector<1x32x8xbf16> to vector<32x8xbf16>
    %c2_139 = arith.constant 2 : index
    %c0_140 = arith.constant 0 : index
    %c0_141 = arith.constant 0 : index
    %149 = vector.load %arg7[%c2_139, %c0_140, %c0_141] : memref<9x8x8xbf16, #tpu.memory_space<vmem>>, vector<1x8x8xbf16>
    %150 = vector.shape_cast %149 : vector<1x8x8xbf16> to vector<8x8xbf16>
    %cst_142 = arith.constant dense<0.000000e+00> : vector<32x8xf32>
    %151 = tpu.matmul %148, %150, %cst_142 {dimension_numbers = #tpu.dot_dimension_numbers<[1], [0], [0], [1], [0, 0, 1, 1], [], []>} : vector<32x8xbf16>, vector<8x8xbf16>, vector<32x8xf32> -> vector<32x8xf32>
    %152 = arith.addf %146, %151 : vector<32x8xf32>
    %c0_143 = arith.constant 0 : index
    %c8_144 = arith.constant 8 : index
    %c0_145 = arith.constant 0 : index
    %153 = vector.load %arg3[%c0_143, %c8_144, %c0_145] : memref<1x56x8xbf16, #tpu.memory_space<vmem>>, vector<1x32x8xbf16>
    %154 = vector.shape_cast %153 : vector<1x32x8xbf16> to vector<32x8xbf16>
    %c3_146 = arith.constant 3 : index
    %c0_147 = arith.constant 0 : index
    %c0_148 = arith.constant 0 : index
    %155 = vector.load %arg7[%c3_146, %c0_147, %c0_148] : memref<9x8x8xbf16, #tpu.memory_space<vmem>>, vector<1x8x8xbf16>
    %156 = vector.shape_cast %155 : vector<1x8x8xbf16> to vector<8x8xbf16>
    %cst_149 = arith.constant dense<0.000000e+00> : vector<32x8xf32>
    %157 = tpu.matmul %154, %156, %cst_149 {dimension_numbers = #tpu.dot_dimension_numbers<[1], [0], [0], [1], [0, 0, 1, 1], [], []>} : vector<32x8xbf16>, vector<8x8xbf16>, vector<32x8xf32> -> vector<32x8xf32>
    %158 = arith.addf %152, %157 : vector<32x8xf32>
    %c0_150 = arith.constant 0 : index
    %c9 = arith.constant 9 : index
    %c0_151 = arith.constant 0 : index
    %159 = vector.load %arg3[%c0_150, %c9, %c0_151] : memref<1x56x8xbf16, #tpu.memory_space<vmem>>, vector<1x32x8xbf16>
    %160 = vector.shape_cast %159 : vector<1x32x8xbf16> to vector<32x8xbf16>
    %c4_152 = arith.constant 4 : index
    %c0_153 = arith.constant 0 : index
    %c0_154 = arith.constant 0 : index
    %161 = vector.load %arg7[%c4_152, %c0_153, %c0_154] : memref<9x8x8xbf16, #tpu.memory_space<vmem>>, vector<1x8x8xbf16>
    %162 = vector.shape_cast %161 : vector<1x8x8xbf16> to vector<8x8xbf16>
    %cst_155 = arith.constant dense<0.000000e+00> : vector<32x8xf32>
    %163 = tpu.matmul %160, %162, %cst_155 {dimension_numbers = #tpu.dot_dimension_numbers<[1], [0], [0], [1], [0, 0, 1, 1], [], []>} : vector<32x8xbf16>, vector<8x8xbf16>, vector<32x8xf32> -> vector<32x8xf32>
    %164 = arith.addf %158, %163 : vector<32x8xf32>
    %c0_156 = arith.constant 0 : index
    %c10 = arith.constant 10 : index
    %c0_157 = arith.constant 0 : index
    %165 = vector.load %arg3[%c0_156, %c10, %c0_157] : memref<1x56x8xbf16, #tpu.memory_space<vmem>>, vector<1x32x8xbf16>
    %166 = vector.shape_cast %165 : vector<1x32x8xbf16> to vector<32x8xbf16>
    %c5_158 = arith.constant 5 : index
    %c0_159 = arith.constant 0 : index
    %c0_160 = arith.constant 0 : index
    %167 = vector.load %arg7[%c5_158, %c0_159, %c0_160] : memref<9x8x8xbf16, #tpu.memory_space<vmem>>, vector<1x8x8xbf16>
    %168 = vector.shape_cast %167 : vector<1x8x8xbf16> to vector<8x8xbf16>
    %cst_161 = arith.constant dense<0.000000e+00> : vector<32x8xf32>
    %169 = tpu.matmul %166, %168, %cst_161 {dimension_numbers = #tpu.dot_dimension_numbers<[1], [0], [0], [1], [0, 0, 1, 1], [], []>} : vector<32x8xbf16>, vector<8x8xbf16>, vector<32x8xf32> -> vector<32x8xf32>
    %170 = arith.addf %164, %169 : vector<32x8xf32>
    %c0_162 = arith.constant 0 : index
    %c16_163 = arith.constant 16 : index
    %c0_164 = arith.constant 0 : index
    %171 = vector.load %arg3[%c0_162, %c16_163, %c0_164] : memref<1x56x8xbf16, #tpu.memory_space<vmem>>, vector<1x32x8xbf16>
    %172 = vector.shape_cast %171 : vector<1x32x8xbf16> to vector<32x8xbf16>
    %c6_165 = arith.constant 6 : index
    %c0_166 = arith.constant 0 : index
    %c0_167 = arith.constant 0 : index
    %173 = vector.load %arg7[%c6_165, %c0_166, %c0_167] : memref<9x8x8xbf16, #tpu.memory_space<vmem>>, vector<1x8x8xbf16>
    %174 = vector.shape_cast %173 : vector<1x8x8xbf16> to vector<8x8xbf16>
    %cst_168 = arith.constant dense<0.000000e+00> : vector<32x8xf32>
    %175 = tpu.matmul %172, %174, %cst_168 {dimension_numbers = #tpu.dot_dimension_numbers<[1], [0], [0], [1], [0, 0, 1, 1], [], []>} : vector<32x8xbf16>, vector<8x8xbf16>, vector<32x8xf32> -> vector<32x8xf32>
    %176 = arith.addf %170, %175 : vector<32x8xf32>
    %c0_169 = arith.constant 0 : index
    %c17_170 = arith.constant 17 : index
    %c0_171 = arith.constant 0 : index
    %177 = vector.load %arg3[%c0_169, %c17_170, %c0_171] : memref<1x56x8xbf16, #tpu.memory_space<vmem>>, vector<1x32x8xbf16>
    %178 = vector.shape_cast %177 : vector<1x32x8xbf16> to vector<32x8xbf16>
    %c7_172 = arith.constant 7 : index
    %c0_173 = arith.constant 0 : index
    %c0_174 = arith.constant 0 : index
    %179 = vector.load %arg7[%c7_172, %c0_173, %c0_174] : memref<9x8x8xbf16, #tpu.memory_space<vmem>>, vector<1x8x8xbf16>
    %180 = vector.shape_cast %179 : vector<1x8x8xbf16> to vector<8x8xbf16>
    %cst_175 = arith.constant dense<0.000000e+00> : vector<32x8xf32>
    %181 = tpu.matmul %178, %180, %cst_175 {dimension_numbers = #tpu.dot_dimension_numbers<[1], [0], [0], [1], [0, 0, 1, 1], [], []>} : vector<32x8xbf16>, vector<8x8xbf16>, vector<32x8xf32> -> vector<32x8xf32>
    %182 = arith.addf %176, %181 : vector<32x8xf32>
    %c0_176 = arith.constant 0 : index
    %c18_177 = arith.constant 18 : index
    %c0_178 = arith.constant 0 : index
    %183 = vector.load %arg3[%c0_176, %c18_177, %c0_178] : memref<1x56x8xbf16, #tpu.memory_space<vmem>>, vector<1x32x8xbf16>
    %184 = vector.shape_cast %183 : vector<1x32x8xbf16> to vector<32x8xbf16>
    %c8_179 = arith.constant 8 : index
    %c0_180 = arith.constant 0 : index
    %c0_181 = arith.constant 0 : index
    %185 = vector.load %arg7[%c8_179, %c0_180, %c0_181] : memref<9x8x8xbf16, #tpu.memory_space<vmem>>, vector<1x8x8xbf16>
    %186 = vector.shape_cast %185 : vector<1x8x8xbf16> to vector<8x8xbf16>
    %cst_182 = arith.constant dense<0.000000e+00> : vector<32x8xf32>
    %187 = tpu.matmul %184, %186, %cst_182 {dimension_numbers = #tpu.dot_dimension_numbers<[1], [0], [0], [1], [0, 0, 1, 1], [], []>} : vector<32x8xbf16>, vector<8x8xbf16>, vector<32x8xf32> -> vector<32x8xf32>
    %188 = arith.addf %182, %187 : vector<32x8xf32>
    %c2_183 = arith.constant 2 : index
    %c0_184 = arith.constant 0 : index
    %189 = vector.load %arg8[%c2_183, %c0_184] : memref<4x8xf32, #tpu.memory_space<vmem>>, vector<1x8xf32>
    %190 = vector.broadcast %189 : vector<1x8xf32> to vector<32x8xf32>
    %191 = arith.addf %188, %190 : vector<32x8xf32>
    %cst_185 = arith.constant 0.000000e+00 : f32
    %192 = vector.broadcast %cst_185 : f32 to vector<32x8xf32>
    %193 = arith.maximumf %191, %192 : vector<32x8xf32>
    %194 = vector.shape_cast %193 : vector<32x8xf32> to vector<4x8x8xf32>
    %195 = tpu.transpose %194, [0, 2, 1] : vector<4x8x8xf32> -> vector<4x8x8xf32>
    %196 = vector.shape_cast %195 : vector<4x8x8xf32> to vector<32x8xf32>
    %197 = arith.truncf %196 : vector<32x8xf32> to vector<32x8xbf16>
    %c0_186 = arith.constant 0 : index
    %c0_187 = arith.constant 0 : index
    %198 = vector.load %arg11[%c0_186, %c0_187] : memref<8x64xbf16, #tpu.memory_space<vmem>>, vector<8x64xbf16>
    %cst_188 = arith.constant dense<0.000000e+00> : vector<32x64xf32>
    %199 = tpu.matmul %197, %198, %cst_188 {dimension_numbers = #tpu.dot_dimension_numbers<[1], [0], [0], [1], [0, 0, 1, 1], [], []>} : vector<32x8xbf16>, vector<8x64xbf16>, vector<32x64xf32> -> vector<32x64xf32>
    %200 = arith.truncf %199 : vector<32x64xf32> to vector<32x64xbf16>
    %c0_189 = arith.constant 0 : index
    %c0_190 = arith.constant 0 : index
    %c0_191 = arith.constant 0 : index
    %201 = vector.load %arg15[%c0_189, %c0_190, %c0_191] : memref<1x32x64xbf16, #tpu.memory_space<vmem>>, vector<1x32x64xbf16>
    %202 = vector.shape_cast %201 : vector<1x32x64xbf16> to vector<32x64xbf16>
    %203 = vector.shape_cast %200 : vector<32x64xbf16> to vector<1x32x64xbf16>
    tpu.vector_store %arg15[%c0_189, %c0_190, %c0_191], %203 {strides = array<i32>} : memref<1x32x64xbf16, #tpu.memory_space<vmem>>, vector<1x32x64xbf16>,
    %c0_192 = arith.constant 0 : index
    %c0_193 = arith.constant 0 : index
    %c0_194 = arith.constant 0 : index
    %204 = vector.load %arg4[%c0_192, %c0_193, %c0_194] : memref<1x40x8xbf16, #tpu.memory_space<vmem>>, vector<1x16x8xbf16>
    %205 = vector.shape_cast %204 : vector<1x16x8xbf16> to vector<16x8xbf16>
    %c0_195 = arith.constant 0 : index
    %c0_196 = arith.constant 0 : index
    %c0_197 = arith.constant 0 : index
    %206 = vector.load %arg5[%c0_195, %c0_196, %c0_197] : memref<9x8x8xbf16, #tpu.memory_space<vmem>>, vector<1x8x8xbf16>
    %207 = vector.shape_cast %206 : vector<1x8x8xbf16> to vector<8x8xbf16>
    %cst_198 = arith.constant dense<0.000000e+00> : vector<16x8xf32>
    %208 = tpu.matmul %205, %207, %cst_198 {dimension_numbers = #tpu.dot_dimension_numbers<[1], [0], [0], [1], [0, 0, 1, 1], [], []>} : vector<16x8xbf16>, vector<8x8xbf16>, vector<16x8xf32> -> vector<16x8xf32>
    %c0_199 = arith.constant 0 : index
    %c1_200 = arith.constant 1 : index
    %c0_201 = arith.constant 0 : index
    %209 = vector.load %arg4[%c0_199, %c1_200, %c0_201] : memref<1x40x8xbf16, #tpu.memory_space<vmem>>, vector<1x16x8xbf16>
    %210 = vector.shape_cast %209 : vector<1x16x8xbf16> to vector<16x8xbf16>
    %c1_202 = arith.constant 1 : index
    %c0_203 = arith.constant 0 : index
    %c0_204 = arith.constant 0 : index
    %211 = vector.load %arg5[%c1_202, %c0_203, %c0_204] : memref<9x8x8xbf16, #tpu.memory_space<vmem>>, vector<1x8x8xbf16>
    %212 = vector.shape_cast %211 : vector<1x8x8xbf16> to vector<8x8xbf16>
    %cst_205 = arith.constant dense<0.000000e+00> : vector<16x8xf32>
    %213 = tpu.matmul %210, %212, %cst_205 {dimension_numbers = #tpu.dot_dimension_numbers<[1], [0], [0], [1], [0, 0, 1, 1], [], []>} : vector<16x8xbf16>, vector<8x8xbf16>, vector<16x8xf32> -> vector<16x8xf32>
    %214 = arith.addf %208, %213 : vector<16x8xf32>
    %c0_206 = arith.constant 0 : index
    %c2_207 = arith.constant 2 : index
    %c0_208 = arith.constant 0 : index
    %215 = vector.load %arg4[%c0_206, %c2_207, %c0_208] : memref<1x40x8xbf16, #tpu.memory_space<vmem>>, vector<1x16x8xbf16>
    %216 = vector.shape_cast %215 : vector<1x16x8xbf16> to vector<16x8xbf16>
    %c2_209 = arith.constant 2 : index
    %c0_210 = arith.constant 0 : index
    %c0_211 = arith.constant 0 : index
    %217 = vector.load %arg5[%c2_209, %c0_210, %c0_211] : memref<9x8x8xbf16, #tpu.memory_space<vmem>>, vector<1x8x8xbf16>
    %218 = vector.shape_cast %217 : vector<1x8x8xbf16> to vector<8x8xbf16>
    %cst_212 = arith.constant dense<0.000000e+00> : vector<16x8xf32>
    %219 = tpu.matmul %216, %218, %cst_212 {dimension_numbers = #tpu.dot_dimension_numbers<[1], [0], [0], [1], [0, 0, 1, 1], [], []>} : vector<16x8xbf16>, vector<8x8xbf16>, vector<16x8xf32> -> vector<16x8xf32>
    %220 = arith.addf %214, %219 : vector<16x8xf32>
    %c0_213 = arith.constant 0 : index
    %c8_214 = arith.constant 8 : index
    %c0_215 = arith.constant 0 : index
    %221 = vector.load %arg4[%c0_213, %c8_214, %c0_215] : memref<1x40x8xbf16, #tpu.memory_space<vmem>>, vector<1x16x8xbf16>
    %222 = vector.shape_cast %221 : vector<1x16x8xbf16> to vector<16x8xbf16>
    %c3_216 = arith.constant 3 : index
    %c0_217 = arith.constant 0 : index
    %c0_218 = arith.constant 0 : index
    %223 = vector.load %arg5[%c3_216, %c0_217, %c0_218] : memref<9x8x8xbf16, #tpu.memory_space<vmem>>, vector<1x8x8xbf16>
    %224 = vector.shape_cast %223 : vector<1x8x8xbf16> to vector<8x8xbf16>
    %cst_219 = arith.constant dense<0.000000e+00> : vector<16x8xf32>
    %225 = tpu.matmul %222, %224, %cst_219 {dimension_numbers = #tpu.dot_dimension_numbers<[1], [0], [0], [1], [0, 0, 1, 1], [], []>} : vector<16x8xbf16>, vector<8x8xbf16>, vector<16x8xf32> -> vector<16x8xf32>
    %226 = arith.addf %220, %225 : vector<16x8xf32>
    %c0_220 = arith.constant 0 : index
    %c9_221 = arith.constant 9 : index
    %c0_222 = arith.constant 0 : index
    %227 = vector.load %arg4[%c0_220, %c9_221, %c0_222] : memref<1x40x8xbf16, #tpu.memory_space<vmem>>, vector<1x16x8xbf16>
    %228 = vector.shape_cast %227 : vector<1x16x8xbf16> to vector<16x8xbf16>
    %c4_223 = arith.constant 4 : index
    %c0_224 = arith.constant 0 : index
    %c0_225 = arith.constant 0 : index
    %229 = vector.load %arg5[%c4_223, %c0_224, %c0_225] : memref<9x8x8xbf16, #tpu.memory_space<vmem>>, vector<1x8x8xbf16>
    %230 = vector.shape_cast %229 : vector<1x8x8xbf16> to vector<8x8xbf16>
    %cst_226 = arith.constant dense<0.000000e+00> : vector<16x8xf32>
    %231 = tpu.matmul %228, %230, %cst_226 {dimension_numbers = #tpu.dot_dimension_numbers<[1], [0], [0], [1], [0, 0, 1, 1], [], []>} : vector<16x8xbf16>, vector<8x8xbf16>, vector<16x8xf32> -> vector<16x8xf32>
    %232 = arith.addf %226, %231 : vector<16x8xf32>
    %c0_227 = arith.constant 0 : index
    %c10_228 = arith.constant 10 : index
    %c0_229 = arith.constant 0 : index
    %233 = vector.load %arg4[%c0_227, %c10_228, %c0_229] : memref<1x40x8xbf16, #tpu.memory_space<vmem>>, vector<1x16x8xbf16>
    %234 = vector.shape_cast %233 : vector<1x16x8xbf16> to vector<16x8xbf16>
    %c5_230 = arith.constant 5 : index
    %c0_231 = arith.constant 0 : index
    %c0_232 = arith.constant 0 : index
    %235 = vector.load %arg5[%c5_230, %c0_231, %c0_232] : memref<9x8x8xbf16, #tpu.memory_space<vmem>>, vector<1x8x8xbf16>
    %236 = vector.shape_cast %235 : vector<1x8x8xbf16> to vector<8x8xbf16>
    %cst_233 = arith.constant dense<0.000000e+00> : vector<16x8xf32>
    %237 = tpu.matmul %234, %236, %cst_233 {dimension_numbers = #tpu.dot_dimension_numbers<[1], [0], [0], [1], [0, 0, 1, 1], [], []>} : vector<16x8xbf16>, vector<8x8xbf16>, vector<16x8xf32> -> vector<16x8xf32>
    %238 = arith.addf %232, %237 : vector<16x8xf32>
    %c0_234 = arith.constant 0 : index
    %c16_235 = arith.constant 16 : index
    %c0_236 = arith.constant 0 : index
    %239 = vector.load %arg4[%c0_234, %c16_235, %c0_236] : memref<1x40x8xbf16, #tpu.memory_space<vmem>>, vector<1x16x8xbf16>
    %240 = vector.shape_cast %239 : vector<1x16x8xbf16> to vector<16x8xbf16>
    %c6_237 = arith.constant 6 : index
    %c0_238 = arith.constant 0 : index
    %c0_239 = arith.constant 0 : index
    %241 = vector.load %arg5[%c6_237, %c0_238, %c0_239] : memref<9x8x8xbf16, #tpu.memory_space<vmem>>, vector<1x8x8xbf16>
    %242 = vector.shape_cast %241 : vector<1x8x8xbf16> to vector<8x8xbf16>
    %cst_240 = arith.constant dense<0.000000e+00> : vector<16x8xf32>
    %243 = tpu.matmul %240, %242, %cst_240 {dimension_numbers = #tpu.dot_dimension_numbers<[1], [0], [0], [1], [0, 0, 1, 1], [], []>} : vector<16x8xbf16>, vector<8x8xbf16>, vector<16x8xf32> -> vector<16x8xf32>
    %244 = arith.addf %238, %243 : vector<16x8xf32>
    %c0_241 = arith.constant 0 : index
    %c17_242 = arith.constant 17 : index
    %c0_243 = arith.constant 0 : index
    %245 = vector.load %arg4[%c0_241, %c17_242, %c0_243] : memref<1x40x8xbf16, #tpu.memory_space<vmem>>, vector<1x16x8xbf16>
    %246 = vector.shape_cast %245 : vector<1x16x8xbf16> to vector<16x8xbf16>
    %c7_244 = arith.constant 7 : index
    %c0_245 = arith.constant 0 : index
    %c0_246 = arith.constant 0 : index
    %247 = vector.load %arg5[%c7_244, %c0_245, %c0_246] : memref<9x8x8xbf16, #tpu.memory_space<vmem>>, vector<1x8x8xbf16>
    %248 = vector.shape_cast %247 : vector<1x8x8xbf16> to vector<8x8xbf16>
    %cst_247 = arith.constant dense<0.000000e+00> : vector<16x8xf32>
    %249 = tpu.matmul %246, %248, %cst_247 {dimension_numbers = #tpu.dot_dimension_numbers<[1], [0], [0], [1], [0, 0, 1, 1], [], []>} : vector<16x8xbf16>, vector<8x8xbf16>, vector<16x8xf32> -> vector<16x8xf32>
    %250 = arith.addf %244, %249 : vector<16x8xf32>
    %c0_248 = arith.constant 0 : index
    %c18_249 = arith.constant 18 : index
    %c0_250 = arith.constant 0 : index
    %251 = vector.load %arg4[%c0_248, %c18_249, %c0_250] : memref<1x40x8xbf16, #tpu.memory_space<vmem>>, vector<1x16x8xbf16>
    %252 = vector.shape_cast %251 : vector<1x16x8xbf16> to vector<16x8xbf16>
    %c8_251 = arith.constant 8 : index
    %c0_252 = arith.constant 0 : index
    %c0_253 = arith.constant 0 : index
    %253 = vector.load %arg5[%c8_251, %c0_252, %c0_253] : memref<9x8x8xbf16, #tpu.memory_space<vmem>>, vector<1x8x8xbf16>
    %254 = vector.shape_cast %253 : vector<1x8x8xbf16> to vector<8x8xbf16>
    %cst_254 = arith.constant dense<0.000000e+00> : vector<16x8xf32>
    %255 = tpu.matmul %252, %254, %cst_254 {dimension_numbers = #tpu.dot_dimension_numbers<[1], [0], [0], [1], [0, 0, 1, 1], [], []>} : vector<16x8xbf16>, vector<8x8xbf16>, vector<16x8xf32> -> vector<16x8xf32>
    %256 = arith.addf %250, %255 : vector<16x8xf32>
    %c3_255 = arith.constant 3 : index
    %c0_256 = arith.constant 0 : index
    %257 = vector.load %arg8[%c3_255, %c0_256] : memref<4x8xf32, #tpu.memory_space<vmem>>, vector<1x8xf32>
    %258 = vector.broadcast %257 : vector<1x8xf32> to vector<16x8xf32>
    %259 = arith.addf %256, %258 : vector<16x8xf32>
    %cst_257 = arith.constant 0.000000e+00 : f32
    %260 = vector.broadcast %cst_257 : f32 to vector<16x8xf32>
    %261 = arith.maximumf %259, %260 : vector<16x8xf32>
    %262 = vector.shape_cast %261 : vector<16x8xf32> to vector<2x8x8xf32>
    %263 = tpu.transpose %262, [0, 2, 1] : vector<2x8x8xf32> -> vector<2x8x8xf32>
    %264 = vector.shape_cast %263 : vector<2x8x8xf32> to vector<16x8xf32>
    %265 = arith.truncf %264 : vector<16x8xf32> to vector<16x8xbf16>
    %c0_258 = arith.constant 0 : index
    %c0_259 = arith.constant 0 : index
    %266 = vector.load %arg12[%c0_258, %c0_259] : memref<8x64xbf16, #tpu.memory_space<vmem>>, vector<8x64xbf16>
    %cst_260 = arith.constant dense<0.000000e+00> : vector<16x64xf32>
    %267 = tpu.matmul %265, %266, %cst_260 {dimension_numbers = #tpu.dot_dimension_numbers<[1], [0], [0], [1], [0, 0, 1, 1], [], []>} : vector<16x8xbf16>, vector<8x64xbf16>, vector<16x64xf32> -> vector<16x64xf32>
    %268 = arith.truncf %267 : vector<16x64xf32> to vector<16x64xbf16>
    %c0_261 = arith.constant 0 : index
    %c0_262 = arith.constant 0 : index
    %c0_263 = arith.constant 0 : index
    %269 = vector.load %arg16[%c0_261, %c0_262, %c0_263] : memref<1x16x64xbf16, #tpu.memory_space<vmem>>, vector<1x16x64xbf16>
    %270 = vector.shape_cast %269 : vector<1x16x64xbf16> to vector<16x64xbf16>
    %271 = vector.shape_cast %268 : vector<16x64xbf16> to vector<1x16x64xbf16>
    tpu.vector_store %arg16[%c0_261, %c0_262, %c0_263], %271 {strides = array<i32>} : memref<1x16x64xbf16, #tpu.memory_space<vmem>>, vector<1x16x64xbf16>,
    return
  }
  func.func @transform_0(%arg0: i32) -> (i32, i32, i32) {
    %c0_i32 = arith.constant 0 : i32
    %c0_i32_0 = arith.constant 0 : i32
    %c0_i32_1 = arith.constant 0 : i32
    return %arg0, %c0_i32, %c0_i32_0 : i32, i32, i32
  }
  func.func @transform_1(%arg0: i32) -> (i32, i32, i32) {
    %c0_i32 = arith.constant 0 : i32
    %c0_i32_0 = arith.constant 0 : i32
    %c0_i32_1 = arith.constant 0 : i32
    return %arg0, %c0_i32, %c0_i32_0 : i32, i32, i32
  }
  func.func @transform_2(%arg0: i32) -> (i32, i32, i32) {
    %c0_i32 = arith.constant 0 : i32
    %c0_i32_0 = arith.constant 0 : i32
    %c0_i32_1 = arith.constant 0 : i32
    return %arg0, %c0_i32, %c0_i32_0 : i32, i32, i32
  }
  func.func @transform_3(%arg0: i32) -> (i32, i32, i32) {
    %c0_i32 = arith.constant 0 : i32
    %c0_i32_0 = arith.constant 0 : i32
    %c0_i32_1 = arith.constant 0 : i32
    return %arg0, %c0_i32, %c0_i32_0 : i32, i32, i32
  }
  func.func @transform_4(%arg0: i32) -> (i32, i32, i32) {
    %c0_i32 = arith.constant 0 : i32
    %c0_i32_0 = arith.constant 0 : i32
    %c0_i32_1 = arith.constant 0 : i32
    %c0_i32_2 = arith.constant 0 : i32
    return %c0_i32, %c0_i32_0, %c0_i32_1 : i32, i32, i32
  }
  func.func @transform_5(%arg0: i32) -> (i32, i32, i32) {
    %c0_i32 = arith.constant 0 : i32
    %c0_i32_0 = arith.constant 0 : i32
    %c0_i32_1 = arith.constant 0 : i32
    %c0_i32_2 = arith.constant 0 : i32
    return %c0_i32, %c0_i32_0, %c0_i32_1 : i32, i32, i32
  }
  func.func @transform_6(%arg0: i32) -> (i32, i32, i32) {
    %c0_i32 = arith.constant 0 : i32
    %c0_i32_0 = arith.constant 0 : i32
    %c0_i32_1 = arith.constant 0 : i32
    %c0_i32_2 = arith.constant 0 : i32
    return %c0_i32, %c0_i32_0, %c0_i32_1 : i32, i32, i32
  }
  func.func @transform_7(%arg0: i32) -> (i32, i32) {
    %c0_i32 = arith.constant 0 : i32
    %c0_i32_0 = arith.constant 0 : i32
    %c0_i32_1 = arith.constant 0 : i32
    return %c0_i32, %c0_i32_0 : i32, i32
  }
  func.func @transform_8(%arg0: i32) -> (i32, i32) {
    %c0_i32 = arith.constant 0 : i32
    %c0_i32_0 = arith.constant 0 : i32
    %c0_i32_1 = arith.constant 0 : i32
    return %c0_i32, %c0_i32_0 : i32, i32
  }
  func.func @transform_9(%arg0: i32) -> (i32, i32) {
    %c0_i32 = arith.constant 0 : i32
    %c0_i32_0 = arith.constant 0 : i32
    %c0_i32_1 = arith.constant 0 : i32
    return %c0_i32, %c0_i32_0 : i32, i32
  }
  func.func @transform_10(%arg0: i32) -> (i32, i32) {
    %c0_i32 = arith.constant 0 : i32
    %c0_i32_0 = arith.constant 0 : i32
    %c0_i32_1 = arith.constant 0 : i32
    return %c0_i32, %c0_i32_0 : i32, i32
  }
  func.func @transform_11(%arg0: i32) -> (i32, i32) {
    %c0_i32 = arith.constant 0 : i32
    %c0_i32_0 = arith.constant 0 : i32
    %c0_i32_1 = arith.constant 0 : i32
    return %c0_i32, %c0_i32_0 : i32, i32
  }
  func.func @transform_12(%arg0: i32) -> (i32, i32, i32) {
    %c0_i32 = arith.constant 0 : i32
    %c0_i32_0 = arith.constant 0 : i32
    %c0_i32_1 = arith.constant 0 : i32
    return %arg0, %c0_i32, %c0_i32_0 : i32, i32, i32
  }
  func.func @transform_13(%arg0: i32) -> (i32, i32, i32) {
    %c0_i32 = arith.constant 0 : i32
    %c0_i32_0 = arith.constant 0 : i32
    %c0_i32_1 = arith.constant 0 : i32
    return %arg0, %c0_i32, %c0_i32_0 : i32, i32, i32
  }
  func.func @transform_14(%arg0: i32) -> (i32, i32, i32) {
    %c0_i32 = arith.constant 0 : i32
    %c0_i32_0 = arith.constant 0 : i32
    %c0_i32_1 = arith.constant 0 : i32
    return %arg0, %c0_i32, %c0_i32_0 : i32, i32, i32
  }
  func.func @transform_15(%arg0: i32) -> (i32, i32, i32) {
    %c0_i32 = arith.constant 0 : i32
    %c0_i32_0 = arith.constant 0 : i32
    %c0_i32_1 = arith.constant 0 : i32
    return %arg0, %c0_i32, %c0_i32_0 : i32, i32, i32
  }
}

</mosaic_0001>

<llo_original>
// kernel: tpu_custom_call.1
$region0: #{tpu_custom_call.1}
  #allocation0 [shape = 'u32[]', space=smem, size = 0x4, offset = 0x4, fixed_abs, tag = 'smem constant byte address 0x4 - core index']
  #allocation1 [shape = 'u32[144,128]{1,0:T(1,128)}', space=vmem, size = 0x12000, scoped, tag = 'internal scratch']
  %s0 = inlined_call_operand.vmem [shape: bf16[2,456,8], index: 0, kind: input, shape index: {}]
  %s1 = inlined_call_operand.vmem [shape: bf16[2,176,8], index: 1, kind: input, shape index: {}]
  %s2 = inlined_call_operand.vmem [shape: bf16[2,56,8], index: 2, kind: input, shape index: {}]
  %s3 = inlined_call_operand.vmem [shape: bf16[2,40,8], index: 3, kind: input, shape index: {}]
  %s4 = inlined_call_operand.vmem [shape: bf16[9,8,8], index: 4, kind: input, shape index: {}]
  %s5 = inlined_call_operand.vmem [shape: bf16[9,8,8], index: 5, kind: input, shape index: {}]
  %s6 = inlined_call_operand.vmem [shape: bf16[9,8,8], index: 6, kind: input, shape index: {}]
  %s7 = inlined_call_operand.vmem [shape: f32[4,8], index: 7, kind: input, shape index: {}]
  %s8 = inlined_call_operand.vmem [shape: bf16[24,64], index: 8, kind: input, shape index: {}]
  %s9 = inlined_call_operand.vmem [shape: bf16[16,64], index: 9, kind: input, shape index: {}]
  %s10 = inlined_call_operand.vmem [shape: bf16[8,64], index: 10, kind: input, shape index: {}]
  %s11 = inlined_call_operand.vmem [shape: bf16[8,64], index: 11, kind: input, shape index: {}]
  %s12 = inlined_call_operand.vmem [shape: bf16[2,128,64], index: 12, kind: output, shape index: {0}]
  %s13 = inlined_call_operand.hbm [shape: bf16[2,64,64], index: 13, kind: output, shape index: {1}]
  %s14 = inlined_call_operand.hbm [shape: bf16[2,32,64], index: 14, kind: output, shape index: {2}]
  %s15 = inlined_call_operand.hbm [shape: bf16[2,16,64], index: 15, kind: output, shape index: {3}]
  %16 = xla_tuple %s12, %s13, %s14, %s15
  %s17 = sld [smem:[#allocation0]]
  $region105: #{tpu_custom_call.1} parent=0
    _
  %s19 = ssub.s32 1, %s17
  %s20 = scalar_select 0, %s19, %s17
  $region1: #{tpu_custom_call.1} parent=0
    #allocation2 [shape = 'u8[32768]{0}', space=vmem, size = 0x8000, scoped, tag = 'output window, operand 1']
    #allocation3 [shape = 's32[2]{0}', space=sflag, size = 0x8, scoped, tag = 'scoped memory for tpu_custom_call.1']
    #allocation4 [shape = 'u8[16384]{0}', space=vmem, size = 0x4000, scoped, tag = 'output window, operand 2']
    #allocation5 [shape = 's32[2]{0}', space=sflag, size = 0x8, scoped, tag = 'scoped memory for tpu_custom_call.1']
    #allocation6 [shape = 'u8[8192]{0}', space=vmem, size = 0x2000, scoped, tag = 'output window, operand 3']
    %21 = vsyncpa [#allocation3], 0
    %s22 = scalar_lea.sflag [#allocation3], 1
    %23 = vsyncpa %s22, 0
    %24 = vsyncpa [#allocation5], 0
    %s25 = scalar_lea.sflag [#allocation5], 1
    %26 = vsyncpa %s25, 0
    loop: start=0, step=1, limit=4
    $region2: #{tpu_custom_call.1} parent=1 // loop_pre_header
      _
    $region3: #{tpu_custom_call.1} parent=1 // loop_header
      %s28 = sphi 0, %s32
      %p29 = scmp.ge.s32.totalorder %s28, 4
      %s38 = sphi 0, %s40
      %s41 = sphi 0, %s38
      %s42 = sphi 0, %s41
      %s58 = sphi 0, %s42
      %s64 = sphi 0, %s66
      %s67 = sphi 0, %s64
      %s68 = sphi 0, %s67
      %s84 = sphi 0, %s68
      %s90 = sphi 0, %s92
      %s93 = sphi 0, %s90
      %s94 = sphi 0, %s93
      %s110 = sphi 0, %s94
      %s116 = sphi 0, %s118
      %s119 = sphi 0, %s116
      %s120 = sphi 0, %s119
      %s136 = sphi 0, %s120
      %s140 = sphi 0, %s140
      %s142 = sphi 0, %s140
      %s143 = sphi 0, %s142
      %s157 = sphi 0, %s143
      %s161 = sphi 0, %s161
      %s163 = sphi 0, %s161
      %s164 = sphi 0, %s163
      %s178 = sphi 0, %s164
      %s182 = sphi 0, %s182
      %s184 = sphi 0, %s182
      %s185 = sphi 0, %s184
      %s199 = sphi 0, %s185
      %s203 = sphi 0, %s203
      %s205 = sphi 0, %s203
      %s206 = sphi 0, %s205
      %s220 = sphi 0, %s206
      %s224 = sphi 0, %s224
      %s226 = sphi 0, %s224
      %s227 = sphi 0, %s226
      %s241 = sphi 0, %s227
      %s245 = sphi 0, %s245
      %s247 = sphi 0, %s245
      %s248 = sphi 0, %s247
      %s262 = sphi 0, %s248
      %s266 = sphi 0, %s266
      %s268 = sphi 0, %s266
      %s269 = sphi 0, %s268
      %s283 = sphi 0, %s269
      %s287 = sphi 0, %s287
      %s289 = sphi 0, %s287
      %s290 = sphi 0, %s289
      %s304 = sphi 0, %s290
      %s310 = sphi 0, %s312
      %s313 = sphi 0, %s310
      %s314 = sphi 0, %s313
      %s330 = sphi 0, %s314
      %s336 = sphi 0, %s338
      %s339 = sphi 0, %s336
      %s340 = sphi 0, %s339
      %s356 = sphi 0, %s340
      %s362 = sphi 0, %s364
      %s365 = sphi 0, %s362
      %s366 = sphi 0, %s365
      %s382 = sphi 0, %s366
      %s388 = sphi 0, %s390
      %s391 = sphi 0, %s388
      %s392 = sphi 0, %s391
      %s408 = sphi 0, %s392
    $region4: #{tpu_custom_call.1} parent=1 // loop_header_branch
      %31 = sbr.rel (%p29) target = $region8
    $region5: #{tpu_custom_call.1} parent=1 // loop_body
      %s33 = ssub.s32 %s28, 1
      %s34 = ssub.s32 %s28, 2
      %s35 = sadd.s32 %s28, 1
      %s36 = ssub.s32 %s28, %s35
      %p37 = scmp.eq.s32.totalorder %s36, 0
      %s39 = sadd.s32 %s38, 1
      %s40 = scalar_select %p37, %s38, %s39
      %p43 = pneg %p37
      %p44 = scmp.eq.s32.totalorder %s28, 1
      %p45 = por %p43, %p44
      %p46 = scmp.ne.s32.totalorder %s38, %s41
      %p47 = scmp.eq.s32.totalorder %s28, 0
      %p48 = por %p46, %p47
      %p49 = scmp.ne.s32.totalorder %s38, %s41
      %p50 = scmp.eq.s32.totalorder %s33, 1
      %p51 = por %p49, %p50
      %p52 = scmp.ne.s32.totalorder %s41, %s42
      %p53 = scmp.eq.s32.totalorder %s33, 0
      %p54 = por %p52, %p53
      %p55 = scmp.ne.s32.totalorder %s41, %s42
      %p56 = scmp.eq.s32.totalorder %s34, 1
      %p57 = por %p55, %p56
      %p59 = scmp.ne.s32.totalorder %s42, %s58
      %p60 = scmp.eq.s32.totalorder %s34, 0
      %p61 = por %p59, %p60
      %s62 = ssub.s32 %s28, %s35
      %p63 = scmp.eq.s32.totalorder %s62, 0
      %s65 = sadd.s32 %s64, 1
      %s66 = scalar_select %p63, %s64, %s65
      %p69 = pneg %p63
      %p70 = scmp.eq.s32.totalorder %s28, 1
      %p71 = por %p69, %p70
      %p72 = scmp.ne.s32.totalorder %s64, %s67
      %p73 = scmp.eq.s32.totalorder %s28, 0
      %p74 = por %p72, %p73
      %p75 = scmp.ne.s32.totalorder %s64, %s67
      %p76 = scmp.eq.s32.totalorder %s33, 1
      %p77 = por %p75, %p76
      %p78 = scmp.ne.s32.totalorder %s67, %s68
      %p79 = scmp.eq.s32.totalorder %s33, 0
      %p80 = por %p78, %p79
      %p81 = scmp.ne.s32.totalorder %s67, %s68
      %p82 = scmp.eq.s32.totalorder %s34, 1
      %p83 = por %p81, %p82
      %p85 = scmp.ne.s32.totalorder %s68, %s84
      %p86 = scmp.eq.s32.totalorder %s34, 0
      %p87 = por %p85, %p86
      %s88 = ssub.s32 %s28, %s35
      %p89 = scmp.eq.s32.totalorder %s88, 0
      %s91 = sadd.s32 %s90, 1
      %s92 = scalar_select %p89, %s90, %s91
      %p95 = pneg %p89
      %p96 = scmp.eq.s32.totalorder %s28, 1
      %p97 = por %p95, %p96
      %p98 = scmp.ne.s32.totalorder %s90, %s93
      %p99 = scmp.eq.s32.totalorder %s28, 0
      %p100 = por %p98, %p99
      %p101 = scmp.ne.s32.totalorder %s90, %s93
      %p102 = scmp.eq.s32.totalorder %s33, 1
      %p103 = por %p101, %p102
      %p104 = scmp.ne.s32.totalorder %s93, %s94
      %p105 = scmp.eq.s32.totalorder %s33, 0
      %p106 = por %p104, %p105
      %p107 = scmp.ne.s32.totalorder %s93, %s94
      %p108 = scmp.eq.s32.totalorder %s34, 1
      %p109 = por %p107, %p108
      %p111 = scmp.ne.s32.totalorder %s94, %s110
      %p112 = scmp.eq.s32.totalorder %s34, 0
      %p113 = por %p111, %p112
      %s114 = ssub.s32 %s28, %s35
      %p115 = scmp.eq.s32.totalorder %s114, 0
      %s117 = sadd.s32 %s116, 1
      %s118 = scalar_select %p115, %s116, %s117
      %p121 = pneg %p115
      %p122 = scmp.eq.s32.totalorder %s28, 1
      %p123 = por %p121, %p122
      %p124 = scmp.ne.s32.totalorder %s116, %s119
      %p125 = scmp.eq.s32.totalorder %s28, 0
      %p126 = por %p124, %p125
      %p127 = scmp.ne.s32.totalorder %s116, %s119
      %p128 = scmp.eq.s32.totalorder %s33, 1
      %p129 = por %p127, %p128
      %p130 = scmp.ne.s32.totalorder %s119, %s120
      %p131 = scmp.eq.s32.totalorder %s33, 0
      %p132 = por %p130, %p131
      %p133 = scmp.ne.s32.totalorder %s119, %s120
      %p134 = scmp.eq.s32.totalorder %s34, 1
      %p135 = por %p133, %p134
      %p137 = scmp.ne.s32.totalorder %s120, %s136
      %p138 = scmp.eq.s32.totalorder %s34, 0
      %p139 = por %p137, %p138
      %s141 = sadd.s32 %s140, 1
      %p144 = scmp.eq.s32.totalorder %s28, 1
      %p145 = scmp.ne.s32.totalorder %s140, %s142
      %p146 = scmp.eq.s32.totalorder %s28, 0
      %p147 = por %p145, %p146
      %p148 = scmp.ne.s32.totalorder %s140, %s142
      %p149 = scmp.eq.s32.totalorder %s33, 1
      %p150 = por %p148, %p149
      %p151 = scmp.ne.s32.totalorder %s142, %s143
      %p152 = scmp.eq.s32.totalorder %s33, 0
      %p153 = por %p151, %p152
      %p154 = scmp.ne.s32.totalorder %s142, %s143
      %p155 = scmp.eq.s32.totalorder %s34, 1
      %p156 = por %p154, %p155
      %p158 = scmp.ne.s32.totalorder %s143, %s157
      %p159 = scmp.eq.s32.totalorder %s34, 0
      %p160 = por %p158, %p159
      %s162 = sadd.s32 %s161, 1
      %p165 = scmp.eq.s32.totalorder %s28, 1
      %p166 = scmp.ne.s32.totalorder %s161, %s163
      %p167 = scmp.eq.s32.totalorder %s28, 0
      %p168 = por %p166, %p167
      %p169 = scmp.ne.s32.totalorder %s161, %s163
      %p170 = scmp.eq.s32.totalorder %s33, 1
      %p171 = por %p169, %p170
      %p172 = scmp.ne.s32.totalorder %s163, %s164
      %p173 = scmp.eq.s32.totalorder %s33, 0
      %p174 = por %p172, %p173
      %p175 = scmp.ne.s32.totalorder %s163, %s164
      %p176 = scmp.eq.s32.totalorder %s34, 1
      %p177 = por %p175, %p176
      %p179 = scmp.ne.s32.totalorder %s164, %s178
      %p180 = scmp.eq.s32.totalorder %s34, 0
      %p181 = por %p179, %p180
      %s183 = sadd.s32 %s182, 1
      %p186 = scmp.eq.s32.totalorder %s28, 1
      %p187 = scmp.ne.s32.totalorder %s182, %s184
      %p188 = scmp.eq.s32.totalorder %s28, 0
      %p189 = por %p187, %p188
      %p190 = scmp.ne.s32.totalorder %s182, %s184
      %p191 = scmp.eq.s32.totalorder %s33, 1
      %p192 = por %p190, %p191
      %p193 = scmp.ne.s32.totalorder %s184, %s185
      %p194 = scmp.eq.s32.totalorder %s33, 0
      %p195 = por %p193, %p194
      %p196 = scmp.ne.s32.totalorder %s184, %s185
      %p197 = scmp.eq.s32.totalorder %s34, 1
      %p198 = por %p196, %p197
      %p200 = scmp.ne.s32.totalorder %s185, %s199
      %p201 = scmp.eq.s32.totalorder %s34, 0
      %p202 = por %p200, %p201
      %s204 = sadd.s32 %s203, 1
      %p207 = scmp.eq.s32.totalorder %s28, 1
      %p208 = scmp.ne.s32.totalorder %s203, %s205
      %p209 = scmp.eq.s32.totalorder %s28, 0
      %p210 = por %p208, %p209
      %p211 = scmp.ne.s32.totalorder %s203, %s205
      %p212 = scmp.eq.s32.totalorder %s33, 1
      %p213 = por %p211, %p212
      %p214 = scmp.ne.s32.totalorder %s205, %s206
      %p215 = scmp.eq.s32.totalorder %s33, 0
      %p216 = por %p214, %p215
      %p217 = scmp.ne.s32.totalorder %s205, %s206
      %p218 = scmp.eq.s32.totalorder %s34, 1
      %p219 = por %p217, %p218
      %p221 = scmp.ne.s32.totalorder %s206, %s220
      %p222 = scmp.eq.s32.totalorder %s34, 0
      %p223 = por %p221, %p222
      %s225 = sadd.s32 %s224, 1
      %p228 = scmp.eq.s32.totalorder %s28, 1
      %p229 = scmp.ne.s32.totalorder %s224, %s226
      %p230 = scmp.eq.s32.totalorder %s28, 0
      %p231 = por %p229, %p230
      %p232 = scmp.ne.s32.totalorder %s224, %s226
      %p233 = scmp.eq.s32.totalorder %s33, 1
      %p234 = por %p232, %p233
      %p235 = scmp.ne.s32.totalorder %s226, %s227
      %p236 = scmp.eq.s32.totalorder %s33, 0
      %p237 = por %p235, %p236
      %p238 = scmp.ne.s32.totalorder %s226, %s227
      %p239 = scmp.eq.s32.totalorder %s34, 1
      %p240 = por %p238, %p239
      %p242 = scmp.ne.s32.totalorder %s227, %s241
      %p243 = scmp.eq.s32.totalorder %s34, 0
      %p244 = por %p242, %p243
      %s246 = sadd.s32 %s245, 1
      %p249 = scmp.eq.s32.totalorder %s28, 1
      %p250 = scmp.ne.s32.totalorder %s245, %s247
      %p251 = scmp.eq.s32.totalorder %s28, 0
      %p252 = por %p250, %p251
      %p253 = scmp.ne.s32.totalorder %s245, %s247
      %p254 = scmp.eq.s32.totalorder %s33, 1
      %p255 = por %p253, %p254
      %p256 = scmp.ne.s32.totalorder %s247, %s248
      %p257 = scmp.eq.s32.totalorder %s33, 0
      %p258 = por %p256, %p257
      %p259 = scmp.ne.s32.totalorder %s247, %s248
      %p260 = scmp.eq.s32.totalorder %s34, 1
      %p261 = por %p259, %p260
      %p263 = scmp.ne.s32.totalorder %s248, %s262
      %p264 = scmp.eq.s32.totalorder %s34, 0
      %p265 = por %p263, %p264
      %s267 = sadd.s32 %s266, 1
      %p270 = scmp.eq.s32.totalorder %s28, 1
      %p271 = scmp.ne.s32.totalorder %s266, %s268
      %p272 = scmp.eq.s32.totalorder %s28, 0
      %p273 = por %p271, %p272
      %p274 = scmp.ne.s32.totalorder %s266, %s268
      %p275 = scmp.eq.s32.totalorder %s33, 1
      %p276 = por %p274, %p275
      %p277 = scmp.ne.s32.totalorder %s268, %s269
      %p278 = scmp.eq.s32.totalorder %s33, 0
      %p279 = por %p277, %p278
      %p280 = scmp.ne.s32.totalorder %s268, %s269
      %p281 = scmp.eq.s32.totalorder %s34, 1
      %p282 = por %p280, %p281
      %p284 = scmp.ne.s32.totalorder %s269, %s283
      %p285 = scmp.eq.s32.totalorder %s34, 0
      %p286 = por %p284, %p285
      %s288 = sadd.s32 %s287, 1
      %p291 = scmp.eq.s32.totalorder %s28, 1
      %p292 = scmp.ne.s32.totalorder %s287, %s289
      %p293 = scmp.eq.s32.totalorder %s28, 0
      %p294 = por %p292, %p293
      %p295 = scmp.ne.s32.totalorder %s287, %s289
      %p296 = scmp.eq.s32.totalorder %s33, 1
      %p297 = por %p295, %p296
      %p298 = scmp.ne.s32.totalorder %s289, %s290
      %p299 = scmp.eq.s32.totalorder %s33, 0
      %p300 = por %p298, %p299
      %p301 = scmp.ne.s32.totalorder %s289, %s290
      %p302 = scmp.eq.s32.totalorder %s34, 1
      %p303 = por %p301, %p302
      %p305 = scmp.ne.s32.totalorder %s290, %s304
      %p306 = scmp.eq.s32.totalorder %s34, 0
      %p307 = por %p305, %p306
      %s308 = ssub.s32 %s28, %s35
      %p309 = scmp.eq.s32.totalorder %s308, 0
      %s311 = sadd.s32 %s310, 1
      %s312 = scalar_select %p309, %s310, %s311
      %p315 = pneg %p309
      %p316 = scmp.eq.s32.totalorder %s28, 1
      %p317 = por %p315, %p316
      %p318 = scmp.ne.s32.totalorder %s310, %s313
      %p319 = scmp.eq.s32.totalorder %s28, 0
      %p320 = por %p318, %p319
      %p321 = scmp.ne.s32.totalorder %s310, %s313
      %p322 = scmp.eq.s32.totalorder %s33, 1
      %p323 = por %p321, %p322
      %p324 = scmp.ne.s32.totalorder %s313, %s314
      %p325 = scmp.eq.s32.totalorder %s33, 0
      %p326 = por %p324, %p325
      %p327 = scmp.ne.s32.totalorder %s313, %s314
      %p328 = scmp.eq.s32.totalorder %s34, 1
      %p329 = por %p327, %p328
      %p331 = scmp.ne.s32.totalorder %s314, %s330
      %p332 = scmp.eq.s32.totalorder %s34, 0
      %p333 = por %p331, %p332
      %s334 = ssub.s32 %s28, %s35
      %p335 = scmp.eq.s32.totalorder %s334, 0
      %s337 = sadd.s32 %s336, 1
      %s338 = scalar_select %p335, %s336, %s337
      %p341 = pneg %p335
      %p342 = scmp.eq.s32.totalorder %s28, 1
      %p343 = por %p341, %p342
      %p344 = scmp.ne.s32.totalorder %s336, %s339
      %p345 = scmp.eq.s32.totalorder %s28, 0
      %p346 = por %p344, %p345
      %p347 = scmp.ne.s32.totalorder %s336, %s339
      %p348 = scmp.eq.s32.totalorder %s33, 1
      %p349 = por %p347, %p348
      %p350 = scmp.ne.s32.totalorder %s339, %s340
      %p351 = scmp.eq.s32.totalorder %s33, 0
      %p352 = por %p350, %p351
      %p353 = scmp.ne.s32.totalorder %s339, %s340
      %p354 = scmp.eq.s32.totalorder %s34, 1
      %p355 = por %p353, %p354
      %p357 = scmp.ne.s32.totalorder %s340, %s356
      %p358 = scmp.eq.s32.totalorder %s34, 0
      %p359 = por %p357, %p358
      %s360 = ssub.s32 %s28, %s35
      %p361 = scmp.eq.s32.totalorder %s360, 0
      %s363 = sadd.s32 %s362, 1
      %s364 = scalar_select %p361, %s362, %s363
      %p367 = pneg %p361
      %p368 = scmp.eq.s32.totalorder %s28, 1
      %p369 = por %p367, %p368
      %p370 = scmp.ne.s32.totalorder %s362, %s365
      %p371 = scmp.eq.s32.totalorder %s28, 0
      %p372 = por %p370, %p371
      %p373 = scmp.ne.s32.totalorder %s362, %s365
      %p374 = scmp.eq.s32.totalorder %s33, 1
      %p375 = por %p373, %p374
      %p376 = scmp.ne.s32.totalorder %s365, %s366
      %p377 = scmp.eq.s32.totalorder %s33, 0
      %p378 = por %p376, %p377
      %p379 = scmp.ne.s32.totalorder %s365, %s366
      %p380 = scmp.eq.s32.totalorder %s34, 1
      %p381 = por %p379, %p380
      %p383 = scmp.ne.s32.totalorder %s366, %s382
      %p384 = scmp.eq.s32.totalorder %s34, 0
      %p385 = por %p383, %p384
      %s386 = ssub.s32 %s28, %s35
      %p387 = scmp.eq.s32.totalorder %s386, 0
      %s389 = sadd.s32 %s388, 1
      %s390 = scalar_select %p387, %s388, %s389
      %p393 = pneg %p387
      %p394 = scmp.eq.s32.totalorder %s28, 1
      %p395 = por %p393, %p394
      %p396 = scmp.ne.s32.totalorder %s388, %s391
      %p397 = scmp.eq.s32.totalorder %s28, 0
      %p398 = por %p396, %p397
      %p399 = scmp.ne.s32.totalorder %s388, %s391
      %p400 = scmp.eq.s32.totalorder %s33, 1
      %p401 = por %p399, %p400
      %p402 = scmp.ne.s32.totalorder %s391, %s392
      %p403 = scmp.eq.s32.totalorder %s33, 0
      %p404 = por %p402, %p403
      %p405 = scmp.ne.s32.totalorder %s391, %s392
      %p406 = scmp.eq.s32.totalorder %s34, 1
      %p407 = por %p405, %p406
      %p409 = scmp.ne.s32.totalorder %s392, %s408
      %p410 = scmp.eq.s32.totalorder %s34, 0
      %p411 = por %p409, %p410
      %p412 = scmp.le.s32.totalorder 1, %s28
      %p413 = scmp.lt.s32.totalorder %s28, 3
      %p414 = pnand %p412, %p413
      %p415 = pneg %p414
      // Predicated region
      $region9: #{tpu_custom_call.1} parent=5 // pred_check
        _
      $region10: #{tpu_custom_call.1} parent=5 // pred_check_branch
        %417 = sbr.rel (%p414) target = $region12
      $region11: #{tpu_custom_call.1} parent=5 // pred_region
        %s418 = ssub.s32 %s28, 1
        // Predicated region
        $region13: #{tpu_custom_call.1} parent=11 // pred_check
          %p419 = pneg %p153
        $region14: #{tpu_custom_call.1} parent=11 // pred_check_branch
          %421 = sbr.rel (%p419) target = $region16
        $region15: #{tpu_custom_call.1} parent=11 // pred_region
          _
        $region16: #{tpu_custom_call.1} parent=11 // pred_fallthru
          _
        // Predicated region
        $region17: #{tpu_custom_call.1} parent=11 // pred_check
          %p422 = pneg %p174
        $region18: #{tpu_custom_call.1} parent=11 // pred_check_branch
          %424 = sbr.rel (%p422) target = $region20
        $region19: #{tpu_custom_call.1} parent=11 // pred_region
          _
        $region20: #{tpu_custom_call.1} parent=11 // pred_fallthru
          _
        // Predicated region
        $region21: #{tpu_custom_call.1} parent=11 // pred_check
          %p425 = pneg %p195
        $region22: #{tpu_custom_call.1} parent=11 // pred_check_branch
          %427 = sbr.rel (%p425) target = $region24
        $region23: #{tpu_custom_call.1} parent=11 // pred_region
          _
        $region24: #{tpu_custom_call.1} parent=11 // pred_fallthru
          _
        // Predicated region
        $region25: #{tpu_custom_call.1} parent=11 // pred_check
          %p428 = pneg %p216
        $region26: #{tpu_custom_call.1} parent=11 // pred_check_branch
          %430 = sbr.rel (%p428) target = $region28
        $region27: #{tpu_custom_call.1} parent=11 // pred_region
          _
        $region28: #{tpu_custom_call.1} parent=11 // pred_fallthru
          _
        // Predicated region
        $region29: #{tpu_custom_call.1} parent=11 // pred_check
          %p431 = pneg %p237
        $region30: #{tpu_custom_call.1} parent=11 // pred_check_branch
          %433 = sbr.rel (%p431) target = $region32
        $region31: #{tpu_custom_call.1} parent=11 // pred_region
          _
        $region32: #{tpu_custom_call.1} parent=11 // pred_fallthru
          _
        // Predicated region
        $region33: #{tpu_custom_call.1} parent=11 // pred_check
          %p434 = pneg %p258
        $region34: #{tpu_custom_call.1} parent=11 // pred_check_branch
          %436 = sbr.rel (%p434) target = $region36
        $region35: #{tpu_custom_call.1} parent=11 // pred_region
          _
        $region36: #{tpu_custom_call.1} parent=11 // pred_fallthru
          _
        // Predicated region
        $region37: #{tpu_custom_call.1} parent=11 // pred_check
          %p437 = pneg %p279
        $region38: #{tpu_custom_call.1} parent=11 // pred_check_branch
          %439 = sbr.rel (%p437) target = $region40
        $region39: #{tpu_custom_call.1} parent=11 // pred_region
          _
        $region40: #{tpu_custom_call.1} parent=11 // pred_fallthru
          _
        // Predicated region
        $region41: #{tpu_custom_call.1} parent=11 // pred_check
          %p440 = pneg %p300
        $region42: #{tpu_custom_call.1} parent=11 // pred_check_branch
          %442 = sbr.rel (%p440) target = $region44
        $region43: #{tpu_custom_call.1} parent=11 // pred_region
          _
        $region44: #{tpu_custom_call.1} parent=11 // pred_fallthru
          _
      $region12: #{tpu_custom_call.1} parent=5 // pred_fallthru
        _
      %p443 = scmp.lt.s32.totalorder %s28, 2
      // Predicated region
      $region45: #{tpu_custom_call.1} parent=5 // pred_check
        %p444 = pneg %p443
      $region46: #{tpu_custom_call.1} parent=5 // pred_check_branch
        %446 = sbr.rel (%p444) target = $region48
      $region47: #{tpu_custom_call.1} parent=5 // pred_region
        // Predicated region
        $region49: #{tpu_custom_call.1} parent=47 // pred_check
          %p447 = pneg %p48
        $region50: #{tpu_custom_call.1} parent=47 // pred_check_branch
          %449 = sbr.rel (%p447) target = $region52
        $region51: #{tpu_custom_call.1} parent=47 // pred_region
          %p450 = scmp.lt.s32.totalorder %s28, 1
          %s451 = scalar_select %p450, %s28, 1
          %s452 = smul.addr %s451, 57
          %s453 = smul.addr %s452, 4
          %s454 = scalar_lea.vmem %s0, %s453
        $region52: #{tpu_custom_call.1} parent=47 // pred_fallthru
          _
        // Predicated region
        $region53: #{tpu_custom_call.1} parent=47 // pred_check
          %p455 = pneg %p74
        $region54: #{tpu_custom_call.1} parent=47 // pred_check_branch
          %457 = sbr.rel (%p455) target = $region56
        $region55: #{tpu_custom_call.1} parent=47 // pred_region
          %p458 = scmp.lt.s32.totalorder %s28, 1
          %s459 = scalar_select %p458, %s28, 1
          %s460 = smul.addr %s459, 22
          %s461 = smul.addr %s460, 4
          %s462 = scalar_lea.vmem %s1, %s461
        $region56: #{tpu_custom_call.1} parent=47 // pred_fallthru
          _
        // Predicated region
        $region57: #{tpu_custom_call.1} parent=47 // pred_check
          %p463 = pneg %p100
        $region58: #{tpu_custom_call.1} parent=47 // pred_check_branch
          %465 = sbr.rel (%p463) target = $region60
        $region59: #{tpu_custom_call.1} parent=47 // pred_region
          %p466 = scmp.lt.s32.totalorder %s28, 1
          %s467 = scalar_select %p466, %s28, 1
          %s468 = smul.addr %s467, 7
          %s469 = smul.addr %s468, 4
          %s470 = scalar_lea.vmem %s2, %s469
        $region60: #{tpu_custom_call.1} parent=47 // pred_fallthru
          _
        // Predicated region
        $region61: #{tpu_custom_call.1} parent=47 // pred_check
          %p471 = pneg %p126
        $region62: #{tpu_custom_call.1} parent=47 // pred_check_branch
          %473 = sbr.rel (%p471) target = $region64
        $region63: #{tpu_custom_call.1} parent=47 // pred_region
          %p474 = scmp.lt.s32.totalorder %s28, 1
          %s475 = scalar_select %p474, %s28, 1
          %s476 = smul.addr %s475, 5
          %s477 = smul.addr %s476, 4
          %s478 = scalar_lea.vmem %s3, %s477
        $region64: #{tpu_custom_call.1} parent=47 // pred_fallthru
          _
      $region48: #{tpu_custom_call.1} parent=5 // pred_fallthru
        _
      %p479 = scmp.le.s32.totalorder 1, %s28
      %p480 = scmp.lt.s32.totalorder %s28, 3
      %p481 = pnand %p479, %p480
      %p482 = pneg %p481
      // Predicated region
      $region65: #{tpu_custom_call.1} parent=5 // pred_check
        _
      $region66: #{tpu_custom_call.1} parent=5 // pred_check_branch
        %484 = sbr.rel (%p481) target = $region68
      $region67: #{tpu_custom_call.1} parent=5 // pred_region
        %s485 = ssub.s32 %s28, 1
        %p486 = scmp.lt.s32.totalorder %s33, 1
        %s487 = scalar_select %p486, %s33, 1
        %s488 = smul.addr %s487, 57
        %s489 = smul.addr %s488, 4
        %s490 = scalar_lea.vmem %s0, %s489
        %p491 = pneg %p54
        %p492 = pneg %p51
        %p493 = scmp.lt.s32.totalorder %s33, 1
        %s494 = scalar_select %p493, %s33, 1
        %s495 = smul.addr %s494, 22
        %s496 = smul.addr %s495, 4
        %s497 = scalar_lea.vmem %s1, %s496
        %p498 = pneg %p80
        %p499 = pneg %p77
        %p500 = scmp.lt.s32.totalorder %s33, 1
        %s501 = scalar_select %p500, %s33, 1
        %s502 = smul.addr %s501, 7
        %s503 = smul.addr %s502, 4
        %s504 = scalar_lea.vmem %s2, %s503
        %p505 = pneg %p106
        %p506 = pneg %p103
        %p507 = scmp.lt.s32.totalorder %s33, 1
        %s508 = scalar_select %p507, %s33, 1
        %s509 = smul.addr %s508, 5
        %s510 = smul.addr %s509, 4
        %s511 = scalar_lea.vmem %s3, %s510
        %p512 = pneg %p132
        %p513 = pneg %p129
        %p514 = pneg %p153
        %p515 = pneg %p150
        %p516 = pneg %p174
        %p517 = pneg %p171
        %p518 = pneg %p195
        %p519 = pneg %p192
        %p520 = pneg %p216
        %p521 = pneg %p213
        %p522 = pneg %p237
        %p523 = pneg %p234
        %p524 = pneg %p258
        %p525 = pneg %p255
        %p526 = pneg %p279
        %p527 = pneg %p276
        %p528 = pneg %p300
        %p529 = pneg %p297
        %p530 = pneg %p326
        %p531 = pneg %p323
        %p532 = scmp.lt.s32.totalorder %s33, 1
        %s533 = scalar_select %p532, %s33, 1
        %s534 = smul.addr %s533, 16
        %s535 = smul.addr %s534, 4
        %s536 = scalar_lea.vmem %s12, %s535
        %p537 = pneg %p352
        %p538 = pneg %p349
        %s539 = sand.u32 %s339, 1
        %s540 = scalar_lea.sflag [#allocation3], %s539
        %s541 = sand.u32 %s339, 1
        %s542 = smul.addr %s541, 32
        %s543 = scalar_lea.vmem [#allocation2], %s542
        %p544 = pneg %p378
        %p545 = pneg %p375
        %s546 = sand.u32 %s33, 1
        %s547 = scalar_lea.sflag [#allocation5], %s546
        %s548 = sand.u32 %s365, 1
        %s549 = smul.addr %s548, 16
        %s550 = scalar_lea.vmem [#allocation4], %s549
        %p551 = pneg %p404
        %p552 = pneg %p401
        %s553 = sand.u32 %s33, 1
        %s554 = scalar_lea.sflag [#allocation5], %s553
        %s555 = sand.u32 %s391, 1
        %s556 = smul.addr %s555, 8
        %s557 = scalar_lea.vmem [#allocation6], %s556
        %p558 = scmp.lt.s32.totalorder %s33, 1
        %s559 = scalar_select %p558, %s33, 1
        %s560 = smul.addr %s559, 57
        %s561 = smul.addr %s560, 4
        %s562 = scalar_lea.vmem %s0, %s561
        %p563 = scmp.lt.s32.totalorder %s33, 1
        %s564 = scalar_select %p563, %s33, 1
        %s565 = smul.addr %s564, 22
        %s566 = smul.addr %s565, 4
        %s567 = scalar_lea.vmem %s1, %s566
        %p568 = scmp.lt.s32.totalorder %s33, 1
        %s569 = scalar_select %p568, %s33, 1
        %s570 = smul.addr %s569, 7
        %s571 = smul.addr %s570, 4
        %s572 = scalar_lea.vmem %s2, %s571
        %p573 = scmp.lt.s32.totalorder %s33, 1
        %s574 = scalar_select %p573, %s33, 1
        %s575 = smul.addr %s574, 5
        %s576 = smul.addr %s575, 4
        %s577 = scalar_lea.vmem %s3, %s576
        %p578 = scmp.lt.s32.totalorder %s33, 1
        %s579 = scalar_select %p578, %s33, 1
        %s580 = smul.addr %s579, 16
        %s581 = smul.addr %s580, 4
        %s582 = scalar_lea.vmem %s12, %s581
        %v584 = vld [vmem:[%s562] sm:$0xf]
        %v585 = vld [vmem:[%s562 + $0x4] sm:$0xf]
        %v586 = vld [vmem:[%s562 + $0x8] sm:$0xf]
        %v587 = vld [vmem:[%s562 + $0xc] sm:$0xf]
        %v588 = vld [vmem:[%s562 + $0x10] sm:$0xf]
        %v589 = vld [vmem:[%s562 + $0x14] sm:$0xf]
        %v590 = vld [vmem:[%s562 + $0x18] sm:$0xf]
        %v591 = vld [vmem:[%s562 + $0x1c] sm:$0xf]
        %v592 = vld [vmem:[%s562 + $0x20] sm:$0xf]
        %v593 = vld [vmem:[%s562 + $0x24] sm:$0xf]
        %v594 = vld [vmem:[%s562 + $0x28] sm:$0xf]
        %v595 = vld [vmem:[%s562 + $0x2c] sm:$0xf]
        %v596 = vld [vmem:[%s562 + $0x30] sm:$0xf]
        %v597 = vld [vmem:[%s562 + $0x34] sm:$0xf]
        %v598 = vld [vmem:[%s562 + $0x38] sm:$0xf]
        %v599 = vld [vmem:[%s562 + $0x3c] sm:$0xf]
        %v600 = vld [vmem:[%s562 + $0x40] sm:$0xf]
        %v601 = vld [vmem:[%s562 + $0x44] sm:$0xf]
        %v602 = vld [vmem:[%s562 + $0x48] sm:$0xf]
        %v603 = vld [vmem:[%s562 + $0x4c] sm:$0xf]
        %v604 = vld [vmem:[%s562 + $0x50] sm:$0xf]
        %v605 = vld [vmem:[%s562 + $0x54] sm:$0xf]
        %v606 = vld [vmem:[%s562 + $0x58] sm:$0xf]
        %v607 = vld [vmem:[%s562 + $0x5c] sm:$0xf]
        %v608 = vld [vmem:[%s562 + $0x60] sm:$0xf]
        %v609 = vld [vmem:[%s562 + $0x64] sm:$0xf]
        %v610 = vld [vmem:[%s562 + $0x68] sm:$0xf]
        %v611 = vld [vmem:[%s562 + $0x6c] sm:$0xf]
        %v612 = vld [vmem:[%s562 + $0x70] sm:$0xf]
        %v613 = vld [vmem:[%s562 + $0x74] sm:$0xf]
        %v614 = vld [vmem:[%s562 + $0x78] sm:$0xf]
        %v615 = vld [vmem:[%s562 + $0x7c] sm:$0xf]
        %v616 = vld [vmem:[%s562 + $0x80] sm:$0xf]
        %v617 = vld [vmem:[%s562 + $0x84] sm:$0xf]
        %v618 = vld [vmem:[%s562 + $0x88] sm:$0xf]
        %v619 = vld [vmem:[%s562 + $0x8c] sm:$0xf]
        %v620 = vld [vmem:[%s562 + $0x90] sm:$0xf]
        %v621 = vld [vmem:[%s562 + $0x94] sm:$0xf]
        %v622 = vld [vmem:[%s562 + $0x98] sm:$0xf]
        %v623 = vld [vmem:[%s562 + $0x9c] sm:$0xf]
        %v624 = vld [vmem:[%s562 + $0xa0] sm:$0xf]
        %v625 = vld [vmem:[%s562 + $0xa4] sm:$0xf]
        %v626 = vld [vmem:[%s562 + $0xa8] sm:$0xf]
        %v627 = vld [vmem:[%s562 + $0xac] sm:$0xf]
        %v628 = vld [vmem:[%s562 + $0xb0] sm:$0xf]
        %v629 = vld [vmem:[%s562 + $0xb4] sm:$0xf]
        %v630 = vld [vmem:[%s562 + $0xb8] sm:$0xf]
        %v631 = vld [vmem:[%s562 + $0xbc] sm:$0xf]
        %v632 = vld [vmem:[%s4] sm:$0xf]
        %v633 = vld [vmem:[%s562 + $0xc0] sm:$0x1]
        %s634 = scalar_lea.vmem %s4, 4
        %v635 = vld [vmem:[%s634] sm:$0xf]
        %v685 = vunpack.c.l.b16 %v584
        %v686 = vunpack.c.l.b16 %v585
        %v687 = vunpack.c.l.b16 %v586
        %v688 = vunpack.c.l.b16 %v587
        %v689 = vunpack.c.l.b16 %v588
        %v690 = vunpack.c.l.b16 %v589
        %v691 = vunpack.c.l.b16 %v590
        %v692 = vunpack.c.l.b16 %v591
        %v693 = vunpack.c.l.b16 %v592
        %v694 = vunpack.c.l.b16 %v593
        %v695 = vunpack.c.l.b16 %v594
        %v696 = vunpack.c.l.b16 %v595
        %v697 = vunpack.c.l.b16 %v596
        %v698 = vunpack.c.l.b16 %v597
        %v699 = vunpack.c.l.b16 %v598
        %v700 = vunpack.c.l.b16 %v599
        %v701 = vunpack.c.l.b16 %v600
        %v702 = vunpack.c.l.b16 %v601
        %v703 = vunpack.c.l.b16 %v602
        %v704 = vunpack.c.l.b16 %v603
        %v705 = vunpack.c.l.b16 %v604
        %v706 = vunpack.c.l.b16 %v605
        %v707 = vunpack.c.l.b16 %v606
        %v708 = vunpack.c.l.b16 %v607
        %v709 = vunpack.c.l.b16 %v608
        %v710 = vunpack.c.l.b16 %v609
        %v711 = vunpack.c.l.b16 %v610
        %v712 = vunpack.c.l.b16 %v611
        %v713 = vunpack.c.l.b16 %v612
        %v714 = vunpack.c.l.b16 %v613
        %v715 = vunpack.c.l.b16 %v614
        %v716 = vunpack.c.l.b16 %v615
        %v717 = vunpack.c.l.b16 %v616
        %v718 = vunpack.c.l.b16 %v617
        %v719 = vunpack.c.l.b16 %v618
        %v720 = vunpack.c.l.b16 %v619
        %v721 = vunpack.c.l.b16 %v620
        %v722 = vunpack.c.l.b16 %v621
        %v723 = vunpack.c.l.b16 %v622
        %v724 = vunpack.c.l.b16 %v623
        %v725 = vunpack.c.l.b16 %v624
        %v726 = vunpack.c.l.b16 %v625
        %v727 = vunpack.c.l.b16 %v626
        %v728 = vunpack.c.l.b16 %v627
        %v729 = vunpack.c.l.b16 %v628
        %v730 = vunpack.c.l.b16 %v629
        %v731 = vunpack.c.l.b16 %v630
        %v732 = vunpack.c.l.b16 %v631
        %v733 = vunpack.c.l.b16 %v633
        %v734 = vpack.c.b16 %v686, %v685
        %v735 = vpack.c.b16 %v688, %v687
        %v736 = vpack.c.b16 %v690, %v689
        %v737 = vpack.c.b16 %v692, %v691
        %v738 = vpack.c.b16 %v694, %v693
        %v739 = vpack.c.b16 %v696, %v695
        %v740 = vpack.c.b16 %v698, %v697
        %v741 = vpack.c.b16 %v700, %v699
        %v742 = vpack.c.b16 %v702, %v701
        %v743 = vpack.c.b16 %v704, %v703
        %v744 = vpack.c.b16 %v706, %v705
        %v745 = vpack.c.b16 %v708, %v707
        %v746 = vpack.c.b16 %v710, %v709
        %v747 = vpack.c.b16 %v712, %v711
        %v748 = vpack.c.b16 %v714, %v713
        %v749 = vpack.c.b16 %v716, %v715
        %v750 = vpack.c.b16 %v718, %v717
        %v751 = vpack.c.b16 %v720, %v719
        %v752 = vpack.c.b16 %v722, %v721
        %v753 = vpack.c.b16 %v724, %v723
        %v754 = vpack.c.b16 %v726, %v725
        %v755 = vpack.c.b16 %v728, %v727
        %v756 = vpack.c.b16 %v730, %v729
        %v757 = vpack.c.b16 %v732, %v731
        %v758 = vpack.c.b16 %v733, %v733
        %vm759 = vsmask.f32 7424
        %v761 = vshrl.u32 %v734, 16
        %v763 = vshll.u32 %v734, 16
        %v765 = vrot.slane %v763, 1
        %v766 = vor.u32 %v761, %v765
        %v768 = vshll.u32 %v735, 16
        %v770 = vrot.slane %v768, 1
        %v771 = vsel %vm759, %v766, %v770
        %v772 = vshrl.u32 %v735, 16
        %v774 = vor.u32 %v772, %v770
        %v776 = vshll.u32 %v736, 16
        %v778 = vrot.slane %v776, 1
        %v779 = vsel %vm759, %v774, %v778
        %v780 = vshrl.u32 %v736, 16
        %v782 = vor.u32 %v780, %v778
        %v784 = vshll.u32 %v737, 16
        %v786 = vrot.slane %v784, 1
        %v787 = vsel %vm759, %v782, %v786
        %v788 = vshrl.u32 %v737, 16
        %v790 = vor.u32 %v788, %v786
        %v792 = vshll.u32 %v738, 16
        %v794 = vrot.slane %v792, 1
        %v795 = vsel %vm759, %v790, %v794
        %v796 = vshrl.u32 %v738, 16
        %v798 = vor.u32 %v796, %v794
        %v800 = vshll.u32 %v739, 16
        %v802 = vrot.slane %v800, 1
        %v803 = vsel %vm759, %v798, %v802
        %v804 = vshrl.u32 %v739, 16
        %v806 = vor.u32 %v804, %v802
        %v808 = vshll.u32 %v740, 16
        %v810 = vrot.slane %v808, 1
        %v811 = vsel %vm759, %v806, %v810
        %v812 = vshrl.u32 %v740, 16
        %v814 = vor.u32 %v812, %v810
        %v816 = vshll.u32 %v741, 16
        %v818 = vrot.slane %v816, 1
        %v819 = vsel %vm759, %v814, %v818
        %v820 = vshrl.u32 %v741, 16
        %v822 = vor.u32 %v820, %v818
        %v824 = vshll.u32 %v742, 16
        %v826 = vrot.slane %v824, 1
        %v827 = vsel %vm759, %v822, %v826
        %v828 = vshrl.u32 %v742, 16
        %v830 = vor.u32 %v828, %v826
        %v832 = vshll.u32 %v743, 16
        %v834 = vrot.slane %v832, 1
        %v835 = vsel %vm759, %v830, %v834
        %v836 = vshrl.u32 %v743, 16
        %v838 = vor.u32 %v836, %v834
        %v840 = vshll.u32 %v744, 16
        %v842 = vrot.slane %v840, 1
        %v843 = vsel %vm759, %v838, %v842
        %v844 = vshrl.u32 %v744, 16
        %v846 = vor.u32 %v844, %v842
        %v848 = vshll.u32 %v745, 16
        %v850 = vrot.slane %v848, 1
        %v851 = vsel %vm759, %v846, %v850
        %v852 = vshrl.u32 %v745, 16
        %v854 = vor.u32 %v852, %v850
        %v856 = vshll.u32 %v746, 16
        %v858 = vrot.slane %v856, 1
        %v859 = vsel %vm759, %v854, %v858
        %v860 = vshrl.u32 %v746, 16
        %v862 = vor.u32 %v860, %v858
        %v864 = vshll.u32 %v747, 16
        %v866 = vrot.slane %v864, 1
        %v867 = vsel %vm759, %v862, %v866
        %v868 = vshrl.u32 %v747, 16
        %v870 = vor.u32 %v868, %v866
        %v872 = vshll.u32 %v748, 16
        %v874 = vrot.slane %v872, 1
        %v875 = vsel %vm759, %v870, %v874
        %v876 = vshrl.u32 %v748, 16
        %v878 = vor.u32 %v876, %v874
        %v880 = vshll.u32 %v749, 16
        %v882 = vrot.slane %v880, 1
        %v883 = vsel %vm759, %v878, %v882
        %v884 = vshrl.u32 %v749, 16
        %v886 = vor.u32 %v884, %v882
        %v888 = vshll.u32 %v750, 16
        %v890 = vrot.slane %v888, 1
        %v891 = vsel %vm759, %v886, %v890
        %v892 = vshrl.u32 %v750, 16
        %v894 = vor.u32 %v892, %v890
        %v896 = vshll.u32 %v751, 16
        %v898 = vrot.slane %v896, 1
        %v899 = vsel %vm759, %v894, %v898
        %v900 = vshrl.u32 %v751, 16
        %v902 = vor.u32 %v900, %v898
        %v904 = vshll.u32 %v752, 16
        %v906 = vrot.slane %v904, 1
        %v907 = vsel %vm759, %v902, %v906
        %v908 = vshrl.u32 %v752, 16
        %v910 = vor.u32 %v908, %v906
        %v912 = vshll.u32 %v753, 16
        %v914 = vrot.slane %v912, 1
        %v915 = vsel %vm759, %v910, %v914
        %v916 = vshrl.u32 %v753, 16
        %v918 = vor.u32 %v916, %v914
        %v920 = vshll.u32 %v754, 16
        %v922 = vrot.slane %v920, 1
        %v923 = vsel %vm759, %v918, %v922
        %v924 = vshrl.u32 %v754, 16
        %v926 = vor.u32 %v924, %v922
        %v928 = vshll.u32 %v755, 16
        %v930 = vrot.slane %v928, 1
        %v931 = vsel %vm759, %v926, %v930
        %v932 = vshrl.u32 %v755, 16
        %v934 = vor.u32 %v932, %v930
        %v936 = vshll.u32 %v756, 16
        %v938 = vrot.slane %v936, 1
        %v939 = vsel %vm759, %v934, %v938
        %v940 = vshrl.u32 %v756, 16
        %v942 = vor.u32 %v940, %v938
        %v944 = vshll.u32 %v757, 16
        %v946 = vrot.slane %v944, 1
        %v947 = vsel %vm759, %v942, %v946
        %v948 = vshrl.u32 %v757, 16
        %v950 = vor.u32 %v948, %v946
        %v952 = vshll.u32 %v758, 16
        %v954 = vrot.slane %v952, 1
        %v955 = vsel %vm759, %v950, %v954
        %vm956 = vcmask 64512
        %v958 = vsel %vm956, %v771, 0
        %v961 = vsel %vm956, %v779, 0
        %v964 = vsel %vm956, %v787, 0
        %v967 = vsel %vm956, %v795, 0
        %v970 = vsel %vm956, %v803, 0
        %v973 = vsel %vm956, %v811, 0
        %v976 = vsel %vm956, %v819, 0
        %v979 = vsel %vm956, %v827, 0
        %v982 = vsel %vm956, %v835, 0
        %v985 = vsel %vm956, %v843, 0
        %v988 = vsel %vm956, %v851, 0
        %v991 = vsel %vm956, %v859, 0
        %v994 = vsel %vm956, %v867, 0
        %v997 = vsel %vm956, %v875, 0
        %v1000 = vsel %vm956, %v883, 0
        %v1003 = vsel %vm956, %v891, 0
        %v1006 = vsel %vm956, %v899, 0
        %v1009 = vsel %vm956, %v907, 0
        %v1012 = vsel %vm956, %v915, 0
        %v1015 = vsel %vm956, %v923, 0
        %v1018 = vsel %vm956, %v931, 0
        %v1021 = vsel %vm956, %v939, 0
        %v1024 = vsel %vm956, %v947, 0
        %v1027 = vsel %vm956, %v955, 0
        %vm1029 = vcmask 1043456
        %v1031 = vsel %vm1029, %v635, 0
        %1033 = vmatprep.subr.bf16.mxu0 0
        %1034 = vmatpush1.bf16.msra.mxu0 %v1031
        %1035 = vmatprep.subr.bf16.mxu0 0
        %1036 = vmatpush1.bf16.msra.mxu0 0
        %1037 = vmatprep.subr.bf16.mxu0 0
        %1038 = vmatpush1.bf16.msra.mxu0 0
        %1039 = vmatprep.subr.bf16.mxu0 0
        %1040 = vmatpush1.bf16.msra.mxu0 0
        %1041 = vmatprep.subr.bf16.mxu0 0
        %1042 = vmatpush1.bf16.msra.mxu0 0
        %1043 = vmatprep.subr.bf16.mxu0 0
        %1044 = vmatpush1.bf16.msra.mxu0 0
        %1045 = vmatprep.subr.bf16.mxu0 0
        %1046 = vmatpush1.bf16.msra.mxu0 0
        %1047 = vmatprep.subr.bf16.mxu0 0
        %1048 = vmatpush1.bf16.msra.mxu0 0
        %1049 = vmatprep.subr.bf16.mxu0 0
        %1050 = vmatpush1.bf16.msra.mxu0 0
        %1051 = vmatprep.subr.bf16.mxu0 0
        %1052 = vmatpush1.bf16.msra.mxu0 0
        %1053 = vmatprep.subr.bf16.mxu0 0
        %1054 = vmatpush1.bf16.msra.mxu0 0
        %1055 = vmatprep.subr.bf16.mxu0 0
        %1056 = vmatpush1.bf16.msra.mxu0 0
        %1057 = vmatprep.subr.bf16.mxu0 0
        %1058 = vmatpush1.bf16.msra.mxu0 0
        %1059 = vmatprep.subr.bf16.mxu0 0
        %1060 = vmatpush1.bf16.msra.mxu0 0
        %1061 = vmatprep.subr.bf16.mxu0 0
        %1062 = vmatpush1.bf16.msra.mxu0 0
        %1063 = vmatprep.subr.bf16.mxu0 0
        %1064 = vmatpush1.bf16.msra.mxu0 0
        %1065 = vmatprep.mubr.bf16.mxu0 0
        %1066 = vmatmul.mubr.bf16.gmra.mrb[0].mxu0 %v958
        %v1067 = vpop.f32.mrb[0].mxu0
        %v1068 = vadd.f32 0.0, %v1067
        %v1069 = vpop.f32.mrb[0].mxu0
        %v1070 = vpop.f32.mrb[0].mxu0
        %v1071 = vadd.f32 0.0, %v1070
        %v1072 = vpop.f32.mrb[0].mxu0
        %1073 = vmatprep.mubr.bf16.mxu0 0
        %1074 = vmatmul.mubr.bf16.gmra.mrb[0].mxu0 %v961
        %v1075 = vpop.f32.mrb[0].mxu0
        %v1076 = vadd.f32 0.0, %v1075
        %v1077 = vpop.f32.mrb[0].mxu0
        %v1078 = vpop.f32.mrb[0].mxu0
        %v1079 = vadd.f32 0.0, %v1078
        %v1080 = vpop.f32.mrb[0].mxu0
        %1081 = vmatprep.mubr.bf16.mxu0 0
        %1082 = vmatmul.mubr.bf16.gmra.mrb[0].mxu0 %v964
        %v1083 = vpop.f32.mrb[0].mxu0
        %v1084 = vadd.f32 0.0, %v1083
        %v1085 = vpop.f32.mrb[0].mxu0
        %v1086 = vpop.f32.mrb[0].mxu0
        %v1087 = vadd.f32 0.0, %v1086
        %v1088 = vpop.f32.mrb[0].mxu0
        %1089 = vmatprep.mubr.bf16.mxu0 0
        %1090 = vmatmul.mubr.bf16.gmra.mrb[0].mxu0 %v967
        %v1091 = vpop.f32.mrb[0].mxu0
        %v1092 = vadd.f32 0.0, %v1091
        %v1093 = vpop.f32.mrb[0].mxu0
        %v1094 = vpop.f32.mrb[0].mxu0
        %v1095 = vadd.f32 0.0, %v1094
        %v1096 = vpop.f32.mrb[0].mxu0
        %1097 = vmatprep.mubr.bf16.mxu0 0
        %1098 = vmatmul.mubr.bf16.gmra.mrb[0].mxu0 %v970
        %v1099 = vpop.f32.mrb[0].mxu0
        %v1100 = vadd.f32 0.0, %v1099
        %v1101 = vpop.f32.mrb[0].mxu0
        %v1102 = vpop.f32.mrb[0].mxu0
        %v1103 = vadd.f32 0.0, %v1102
        %v1104 = vpop.f32.mrb[0].mxu0
        %1105 = vmatprep.mubr.bf16.mxu0 0
        %1106 = vmatmul.mubr.bf16.gmra.mrb[0].mxu0 %v973
        %v1107 = vpop.f32.mrb[0].mxu0
        %v1108 = vadd.f32 0.0, %v1107
        %v1109 = vpop.f32.mrb[0].mxu0
        %v1110 = vpop.f32.mrb[0].mxu0
        %v1111 = vadd.f32 0.0, %v1110
        %v1112 = vpop.f32.mrb[0].mxu0
        %1113 = vmatprep.mubr.bf16.mxu0 0
        %1114 = vmatmul.mubr.bf16.gmra.mrb[0].mxu0 %v976
        %v1115 = vpop.f32.mrb[0].mxu0
        %v1116 = vadd.f32 0.0, %v1115
        %v1117 = vpop.f32.mrb[0].mxu0
        %v1118 = vpop.f32.mrb[0].mxu0
        %v1119 = vadd.f32 0.0, %v1118
        %v1120 = vpop.f32.mrb[0].mxu0
        %1121 = vmatprep.mubr.bf16.mxu0 0
        %1122 = vmatmul.mubr.bf16.gmra.mrb[0].mxu0 %v979
        %v1123 = vpop.f32.mrb[0].mxu0
        %v1124 = vadd.f32 0.0, %v1123
        %v1125 = vpop.f32.mrb[0].mxu0
        %v1126 = vpop.f32.mrb[0].mxu0
        %v1127 = vadd.f32 0.0, %v1126
        %v1128 = vpop.f32.mrb[0].mxu0
        %1129 = vmatprep.mubr.bf16.mxu0 0
        %1130 = vmatmul.mubr.bf16.gmra.mrb[0].mxu0 %v982
        %v1131 = vpop.f32.mrb[0].mxu0
        %v1132 = vadd.f32 0.0, %v1131
        %v1133 = vpop.f32.mrb[0].mxu0
        %v1134 = vpop.f32.mrb[0].mxu0
        %v1135 = vadd.f32 0.0, %v1134
        %v1136 = vpop.f32.mrb[0].mxu0
        %1137 = vmatprep.mubr.bf16.mxu0 0
        %1138 = vmatmul.mubr.bf16.gmra.mrb[0].mxu0 %v985
        %v1139 = vpop.f32.mrb[0].mxu0
        %v1140 = vadd.f32 0.0, %v1139
        %v1141 = vpop.f32.mrb[0].mxu0
        %v1142 = vpop.f32.mrb[0].mxu0
        %v1143 = vadd.f32 0.0, %v1142
        %v1144 = vpop.f32.mrb[0].mxu0
        %1145 = vmatprep.mubr.bf16.mxu0 0
        %1146 = vmatmul.mubr.bf16.gmra.mrb[0].mxu0 %v988
        %v1147 = vpop.f32.mrb[0].mxu0
        %v1148 = vadd.f32 0.0, %v1147
        %v1149 = vpop.f32.mrb[0].mxu0
        %v1150 = vpop.f32.mrb[0].mxu0
        %v1151 = vadd.f32 0.0, %v1150
        %v1152 = vpop.f32.mrb[0].mxu0
        %1153 = vmatprep.mubr.bf16.mxu0 0
        %1154 = vmatmul.mubr.bf16.gmra.mrb[0].mxu0 %v991
        %v1155 = vpop.f32.mrb[0].mxu0
        %v1156 = vadd.f32 0.0, %v1155
        %v1157 = vpop.f32.mrb[0].mxu0
        %v1158 = vpop.f32.mrb[0].mxu0
        %v1159 = vadd.f32 0.0, %v1158
        %v1160 = vpop.f32.mrb[0].mxu0
        %1161 = vmatprep.mubr.bf16.mxu0 0
        %1162 = vmatmul.mubr.bf16.gmra.mrb[0].mxu0 %v994
        %v1163 = vpop.f32.mrb[0].mxu0
        %v1164 = vadd.f32 0.0, %v1163
        %v1165 = vpop.f32.mrb[0].mxu0
        %v1166 = vpop.f32.mrb[0].mxu0
        %v1167 = vadd.f32 0.0, %v1166
        %v1168 = vpop.f32.mrb[0].mxu0
        %1169 = vmatprep.mubr.bf16.mxu0 0
        %1170 = vmatmul.mubr.bf16.gmra.mrb[0].mxu0 %v997
        %v1171 = vpop.f32.mrb[0].mxu0
        %v1172 = vadd.f32 0.0, %v1171
        %v1173 = vpop.f32.mrb[0].mxu0
        %v1174 = vpop.f32.mrb[0].mxu0
        %v1175 = vadd.f32 0.0, %v1174
        %v1176 = vpop.f32.mrb[0].mxu0
        %1177 = vmatprep.mubr.bf16.mxu0 0
        %1178 = vmatmul.mubr.bf16.gmra.mrb[0].mxu0 %v1000
        %v1179 = vpop.f32.mrb[0].mxu0
        %v1180 = vadd.f32 0.0, %v1179
        %v1181 = vpop.f32.mrb[0].mxu0
        %v1182 = vpop.f32.mrb[0].mxu0
        %v1183 = vadd.f32 0.0, %v1182
        %v1184 = vpop.f32.mrb[0].mxu0
        %1185 = vmatprep.mubr.bf16.mxu0 0
        %1186 = vmatmul.mubr.bf16.gmra.mrb[0].mxu0 %v1003
        %v1187 = vpop.f32.mrb[0].mxu0
        %v1188 = vadd.f32 0.0, %v1187
        %v1189 = vpop.f32.mrb[0].mxu0
        %v1190 = vpop.f32.mrb[0].mxu0
        %v1191 = vadd.f32 0.0, %v1190
        %v1192 = vpop.f32.mrb[0].mxu0
        %1193 = vmatprep.mubr.bf16.mxu0 0
        %1194 = vmatmul.mubr.bf16.gmra.mrb[0].mxu0 %v1006
        %v1195 = vpop.f32.mrb[0].mxu0
        %v1196 = vadd.f32 0.0, %v1195
        %v1197 = vpop.f32.mrb[0].mxu0
        %v1198 = vpop.f32.mrb[0].mxu0
        %v1199 = vadd.f32 0.0, %v1198
        %v1200 = vpop.f32.mrb[0].mxu0
        %1201 = vmatprep.mubr.bf16.mxu0 0
        %1202 = vmatmul.mubr.bf16.gmra.mrb[0].mxu0 %v1009
        %v1203 = vpop.f32.mrb[0].mxu0
        %v1204 = vadd.f32 0.0, %v1203
        %v1205 = vpop.f32.mrb[0].mxu0
        %v1206 = vpop.f32.mrb[0].mxu0
        %v1207 = vadd.f32 0.0, %v1206
        %v1208 = vpop.f32.mrb[0].mxu0
        %1209 = vmatprep.mubr.bf16.mxu0 0
        %1210 = vmatmul.mubr.bf16.gmra.mrb[0].mxu0 %v1012
        %v1211 = vpop.f32.mrb[0].mxu0
        %v1212 = vadd.f32 0.0, %v1211
        %v1213 = vpop.f32.mrb[0].mxu0
        %v1214 = vpop.f32.mrb[0].mxu0
        %v1215 = vadd.f32 0.0, %v1214
        %v1216 = vpop.f32.mrb[0].mxu0
        %1217 = vmatprep.mubr.bf16.mxu0 0
        %1218 = vmatmul.mubr.bf16.gmra.mrb[0].mxu0 %v1015
        %v1219 = vpop.f32.mrb[0].mxu0
        %v1220 = vadd.f32 0.0, %v1219
        %v1221 = vpop.f32.mrb[0].mxu0
        %v1222 = vpop.f32.mrb[0].mxu0
        %v1223 = vadd.f32 0.0, %v1222
        %v1224 = vpop.f32.mrb[0].mxu0
        %1225 = vmatprep.mubr.bf16.mxu0 0
        %1226 = vmatmul.mubr.bf16.gmra.mrb[0].mxu0 %v1018
        %v1227 = vpop.f32.mrb[0].mxu0
        %v1228 = vadd.f32 0.0, %v1227
        %v1229 = vpop.f32.mrb[0].mxu0
        %v1230 = vpop.f32.mrb[0].mxu0
        %v1231 = vadd.f32 0.0, %v1230
        %v1232 = vpop.f32.mrb[0].mxu0
        %1233 = vmatprep.mubr.bf16.mxu0 0
        %1234 = vmatmul.mubr.bf16.gmra.mrb[0].mxu0 %v1021
        %v1235 = vpop.f32.mrb[0].mxu0
        %v1236 = vadd.f32 0.0, %v1235
        %v1237 = vpop.f32.mrb[0].mxu0
        %v1238 = vpop.f32.mrb[0].mxu0
        %v1239 = vadd.f32 0.0, %v1238
        %v1240 = vpop.f32.mrb[0].mxu0
        %1241 = vmatprep.mubr.bf16.mxu0 0
        %1242 = vmatmul.mubr.bf16.gmra.mrb[0].mxu0 %v1024
        %v1243 = vpop.f32.mrb[0].mxu0
        %v1244 = vadd.f32 0.0, %v1243
        %v1245 = vpop.f32.mrb[0].mxu0
        %v1246 = vpop.f32.mrb[0].mxu0
        %v1247 = vadd.f32 0.0, %v1246
        %v1248 = vpop.f32.mrb[0].mxu0
        %1249 = vmatprep.mubr.bf16.mxu0 0
        %1250 = vmatmul.mubr.bf16.gmra.mrb[0].mxu0 %v1027
        %v1251 = vpop.f32.mrb[0].mxu0
        %v1252 = vadd.f32 0.0, %v1251
        %v1253 = vpop.f32.mrb[0].mxu0
        %v1254 = vpop.f32.mrb[0].mxu0
        %v1255 = vadd.f32 0.0, %v1254
        %v1256 = vpop.f32.mrb[0].mxu0
        %1257 = vdwg.mxu0
        %v1258 = vsel %vm956, %v734, 0
        %v1260 = vsel %vm956, %v735, 0
        %v1262 = vsel %vm956, %v736, 0
        %v1264 = vsel %vm956, %v737, 0
        %v1266 = vsel %vm956, %v738, 0
        %v1268 = vsel %vm956, %v739, 0
        %v1270 = vsel %vm956, %v740, 0
        %v1272 = vsel %vm956, %v741, 0
        %v1274 = vsel %vm956, %v742, 0
        %v1276 = vsel %vm956, %v743, 0
        %v1278 = vsel %vm956, %v744, 0
        %v1280 = vsel %vm956, %v745, 0
        %v1282 = vsel %vm956, %v746, 0
        %v1284 = vsel %vm956, %v747, 0
        %v1286 = vsel %vm956, %v748, 0
        %v1288 = vsel %vm956, %v749, 0
        %v1290 = vsel %vm956, %v750, 0
        %v1292 = vsel %vm956, %v751, 0
        %v1294 = vsel %vm956, %v752, 0
        %v1296 = vsel %vm956, %v753, 0
        %v1298 = vsel %vm956, %v754, 0
        %v1300 = vsel %vm956, %v755, 0
        %v1302 = vsel %vm956, %v756, 0
        %v1304 = vsel %vm956, %v757, 0
        %v1307 = vsel %vm1029, %v632, 0
        %1309 = vmatprep.subr.bf16.mxu0 0
        %1310 = vmatpush1.bf16.msra.mxu0 %v1307
        %1311 = vmatprep.subr.bf16.mxu0 0
        %1312 = vmatpush1.bf16.msra.mxu0 0
        %1313 = vmatprep.subr.bf16.mxu0 0
        %1314 = vmatpush1.bf16.msra.mxu0 0
        %1315 = vmatprep.subr.bf16.mxu0 0
        %1316 = vmatpush1.bf16.msra.mxu0 0
        %1317 = vmatprep.subr.bf16.mxu0 0
        %1318 = vmatpush1.bf16.msra.mxu0 0
        %1319 = vmatprep.subr.bf16.mxu0 0
        %1320 = vmatpush1.bf16.msra.mxu0 0
        %1321 = vmatprep.subr.bf16.mxu0 0
        %1322 = vmatpush1.bf16.msra.mxu0 0
        %1323 = vmatprep.subr.bf16.mxu0 0
        %1324 = vmatpush1.bf16.msra.mxu0 0
        %1325 = vmatprep.subr.bf16.mxu0 0
        %1326 = vmatpush1.bf16.msra.mxu0 0
        %1327 = vmatprep.subr.bf16.mxu0 0
        %1328 = vmatpush1.bf16.msra.mxu0 0
        %1329 = vmatprep.subr.bf16.mxu0 0
        %1330 = vmatpush1.bf16.msra.mxu0 0
        %1331 = vmatprep.subr.bf16.mxu0 0
        %1332 = vmatpush1.bf16.msra.mxu0 0
        %1333 = vmatprep.subr.bf16.mxu0 0
        %1334 = vmatpush1.bf16.msra.mxu0 0
        %1335 = vmatprep.subr.bf16.mxu0 0
        %1336 = vmatpush1.bf16.msra.mxu0 0
        %1337 = vmatprep.subr.bf16.mxu0 0
        %1338 = vmatpush1.bf16.msra.mxu0 0
        %1339 = vmatprep.subr.bf16.mxu0 0
        %1340 = vmatpush1.bf16.msra.mxu0 0
        %1341 = vmatprep.mubr.bf16.mxu0 0
        %1342 = vmatmul.mubr.bf16.gmra.mrb[0].mxu0 %v1258
        %v1343 = vpop.f32.mrb[0].mxu0
        %v1344 = vadd.f32 %v1068, %v1343
        %v1345 = vpop.f32.mrb[0].mxu0
        %v1346 = vpop.f32.mrb[0].mxu0
        %v1347 = vadd.f32 %v1071, %v1346
        %v1348 = vpop.f32.mrb[0].mxu0
        %1349 = vmatprep.mubr.bf16.mxu0 0
        %1350 = vmatmul.mubr.bf16.gmra.mrb[0].mxu0 %v1260
        %v1351 = vpop.f32.mrb[0].mxu0
        %v1352 = vadd.f32 %v1076, %v1351
        %v1353 = vpop.f32.mrb[0].mxu0
        %v1354 = vpop.f32.mrb[0].mxu0
        %v1355 = vadd.f32 %v1079, %v1354
        %v1356 = vpop.f32.mrb[0].mxu0
        %1357 = vmatprep.mubr.bf16.mxu0 0
        %1358 = vmatmul.mubr.bf16.gmra.mrb[0].mxu0 %v1262
        %v1359 = vpop.f32.mrb[0].mxu0
        %v1360 = vadd.f32 %v1084, %v1359
        %v1361 = vpop.f32.mrb[0].mxu0
        %v1362 = vpop.f32.mrb[0].mxu0
        %v1363 = vadd.f32 %v1087, %v1362
        %v1364 = vpop.f32.mrb[0].mxu0
        %1365 = vmatprep.mubr.bf16.mxu0 0
        %1366 = vmatmul.mubr.bf16.gmra.mrb[0].mxu0 %v1264
        %v1367 = vpop.f32.mrb[0].mxu0
        %v1368 = vadd.f32 %v1092, %v1367
        %v1369 = vpop.f32.mrb[0].mxu0
        %v1370 = vpop.f32.mrb[0].mxu0
        %v1371 = vadd.f32 %v1095, %v1370
        %v1372 = vpop.f32.mrb[0].mxu0
        %1373 = vmatprep.mubr.bf16.mxu0 0
        %1374 = vmatmul.mubr.bf16.gmra.mrb[0].mxu0 %v1266
        %v1375 = vpop.f32.mrb[0].mxu0
        %v1376 = vadd.f32 %v1100, %v1375
        %v1377 = vpop.f32.mrb[0].mxu0
        %v1378 = vpop.f32.mrb[0].mxu0
        %v1379 = vadd.f32 %v1103, %v1378
        %v1380 = vpop.f32.mrb[0].mxu0
        %1381 = vmatprep.mubr.bf16.mxu0 0
        %1382 = vmatmul.mubr.bf16.gmra.mrb[0].mxu0 %v1268
        %v1383 = vpop.f32.mrb[0].mxu0
        %v1384 = vadd.f32 %v1108, %v1383
        %v1385 = vpop.f32.mrb[0].mxu0
        %v1386 = vpop.f32.mrb[0].mxu0
        %v1387 = vadd.f32 %v1111, %v1386
        %v1388 = vpop.f32.mrb[0].mxu0
        %1389 = vmatprep.mubr.bf16.mxu0 0
        %1390 = vmatmul.mubr.bf16.gmra.mrb[0].mxu0 %v1270
        %v1391 = vpop.f32.mrb[0].mxu0
        %v1392 = vadd.f32 %v1116, %v1391
        %v1393 = vpop.f32.mrb[0].mxu0
        %v1394 = vpop.f32.mrb[0].mxu0
        %v1395 = vadd.f32 %v1119, %v1394
        %v1396 = vpop.f32.mrb[0].mxu0
        %1397 = vmatprep.mubr.bf16.mxu0 0
        %1398 = vmatmul.mubr.bf16.gmra.mrb[0].mxu0 %v1272
        %v1399 = vpop.f32.mrb[0].mxu0
        %v1400 = vadd.f32 %v1124, %v1399
        %v1401 = vpop.f32.mrb[0].mxu0
        %v1402 = vpop.f32.mrb[0].mxu0
        %v1403 = vadd.f32 %v1127, %v1402
        %v1404 = vpop.f32.mrb[0].mxu0
        %1405 = vmatprep.mubr.bf16.mxu0 0
        %1406 = vmatmul.mubr.bf16.gmra.mrb[0].mxu0 %v1274
        %v1407 = vpop.f32.mrb[0].mxu0
        %v1408 = vadd.f32 %v1132, %v1407
        %v1409 = vpop.f32.mrb[0].mxu0
        %v1410 = vpop.f32.mrb[0].mxu0
        %v1411 = vadd.f32 %v1135, %v1410
        %v1412 = vpop.f32.mrb[0].mxu0
        %1413 = vmatprep.mubr.bf16.mxu0 0
        %1414 = vmatmul.mubr.bf16.gmra.mrb[0].mxu0 %v1276
        %v1415 = vpop.f32.mrb[0].mxu0
        %v1416 = vadd.f32 %v1140, %v1415
        %v1417 = vpop.f32.mrb[0].mxu0
        %v1418 = vpop.f32.mrb[0].mxu0
        %v1419 = vadd.f32 %v1143, %v1418
        %v1420 = vpop.f32.mrb[0].mxu0
        %1421 = vmatprep.mubr.bf16.mxu0 0
        %1422 = vmatmul.mubr.bf16.gmra.mrb[0].mxu0 %v1278
        %v1423 = vpop.f32.mrb[0].mxu0
        %v1424 = vadd.f32 %v1148, %v1423
        %v1425 = vpop.f32.mrb[0].mxu0
        %v1426 = vpop.f32.mrb[0].mxu0
        %v1427 = vadd.f32 %v1151, %v1426
        %v1428 = vpop.f32.mrb[0].mxu0
        %1429 = vmatprep.mubr.bf16.mxu0 0
        %1430 = vmatmul.mubr.bf16.gmra.mrb[0].mxu0 %v1280
        %v1431 = vpop.f32.mrb[0].mxu0
        %v1432 = vadd.f32 %v1156, %v1431
        %v1433 = vpop.f32.mrb[0].mxu0
        %v1434 = vpop.f32.mrb[0].mxu0
        %v1435 = vadd.f32 %v1159, %v1434
        %v1436 = vpop.f32.mrb[0].mxu0
        %1437 = vmatprep.mubr.bf16.mxu0 0
        %1438 = vmatmul.mubr.bf16.gmra.mrb[0].mxu0 %v1282
        %v1439 = vpop.f32.mrb[0].mxu0
        %v1440 = vadd.f32 %v1164, %v1439
        %v1441 = vpop.f32.mrb[0].mxu0
        %v1442 = vpop.f32.mrb[0].mxu0
        %v1443 = vadd.f32 %v1167, %v1442
        %v1444 = vpop.f32.mrb[0].mxu0
        %1445 = vmatprep.mubr.bf16.mxu0 0
        %1446 = vmatmul.mubr.bf16.gmra.mrb[0].mxu0 %v1284
        %v1447 = vpop.f32.mrb[0].mxu0
        %v1448 = vadd.f32 %v1172, %v1447
        %v1449 = vpop.f32.mrb[0].mxu0
        %v1450 = vpop.f32.mrb[0].mxu0
        %v1451 = vadd.f32 %v1175, %v1450
        %v1452 = vpop.f32.mrb[0].mxu0
        %1453 = vmatprep.mubr.bf16.mxu0 0
        %1454 = vmatmul.mubr.bf16.gmra.mrb[0].mxu0 %v1286
        %v1455 = vpop.f32.mrb[0].mxu0
        %v1456 = vadd.f32 %v1180, %v1455
        %v1457 = vpop.f32.mrb[0].mxu0
        %v1458 = vpop.f32.mrb[0].mxu0
        %v1459 = vadd.f32 %v1183, %v1458
        %v1460 = vpop.f32.mrb[0].mxu0
        %1461 = vmatprep.mubr.bf16.mxu0 0
        %1462 = vmatmul.mubr.bf16.gmra.mrb[0].mxu0 %v1288
        %v1463 = vpop.f32.mrb[0].mxu0
        %v1464 = vadd.f32 %v1188, %v1463
        %v1465 = vpop.f32.mrb[0].mxu0
        %v1466 = vpop.f32.mrb[0].mxu0
        %v1467 = vadd.f32 %v1191, %v1466
        %v1468 = vpop.f32.mrb[0].mxu0
        %1469 = vmatprep.mubr.bf16.mxu0 0
        %1470 = vmatmul.mubr.bf16.gmra.mrb[0].mxu0 %v1290
        %v1471 = vpop.f32.mrb[0].mxu0
        %v1472 = vadd.f32 %v1196, %v1471
        %v1473 = vpop.f32.mrb[0].mxu0
        %v1474 = vpop.f32.mrb[0].mxu0
        %v1475 = vadd.f32 %v1199, %v1474
        %v1476 = vpop.f32.mrb[0].mxu0
        %1477 = vmatprep.mubr.bf16.mxu0 0
        %1478 = vmatmul.mubr.bf16.gmra.mrb[0].mxu0 %v1292
        %v1479 = vpop.f32.mrb[0].mxu0
        %v1480 = vadd.f32 %v1204, %v1479
        %v1481 = vpop.f32.mrb[0].mxu0
        %v1482 = vpop.f32.mrb[0].mxu0
        %v1483 = vadd.f32 %v1207, %v1482
        %v1484 = vpop.f32.mrb[0].mxu0
        %1485 = vmatprep.mubr.bf16.mxu0 0
        %1486 = vmatmul.mubr.bf16.gmra.mrb[0].mxu0 %v1294
        %v1487 = vpop.f32.mrb[0].mxu0
        %v1488 = vadd.f32 %v1212, %v1487
        %v1489 = vpop.f32.mrb[0].mxu0
        %v1490 = vpop.f32.mrb[0].mxu0
        %v1491 = vadd.f32 %v1215, %v1490
        %v1492 = vpop.f32.mrb[0].mxu0
        %1493 = vmatprep.mubr.bf16.mxu0 0
        %1494 = vmatmul.mubr.bf16.gmra.mrb[0].mxu0 %v1296
        %v1495 = vpop.f32.mrb[0].mxu0
        %v1496 = vadd.f32 %v1220, %v1495
        %v1497 = vpop.f32.mrb[0].mxu0
        %v1498 = vpop.f32.mrb[0].mxu0
        %v1499 = vadd.f32 %v1223, %v1498
        %v1500 = vpop.f32.mrb[0].mxu0
        %1501 = vmatprep.mubr.bf16.mxu0 0
        %1502 = vmatmul.mubr.bf16.gmra.mrb[0].mxu0 %v1298
        %v1503 = vpop.f32.mrb[0].mxu0
        %v1504 = vadd.f32 %v1228, %v1503
        %v1505 = vpop.f32.mrb[0].mxu0
        %v1506 = vpop.f32.mrb[0].mxu0
        %v1507 = vadd.f32 %v1231, %v1506
        %v1508 = vpop.f32.mrb[0].mxu0
        %1509 = vmatprep.mubr.bf16.mxu0 0
        %1510 = vmatmul.mubr.bf16.gmra.mrb[0].mxu0 %v1300
        %v1511 = vpop.f32.mrb[0].mxu0
        %v1512 = vadd.f32 %v1236, %v1511
        %v1513 = vpop.f32.mrb[0].mxu0
        %v1514 = vpop.f32.mrb[0].mxu0
        %v1515 = vadd.f32 %v1239, %v1514
        %v1516 = vpop.f32.mrb[0].mxu0
        %1517 = vmatprep.mubr.bf16.mxu0 0
        %1518 = vmatmul.mubr.bf16.gmra.mrb[0].mxu0 %v1302
        %v1519 = vpop.f32.mrb[0].mxu0
        %v1520 = vadd.f32 %v1244, %v1519
        %v1521 = vpop.f32.mrb[0].mxu0
        %v1522 = vpop.f32.mrb[0].mxu0
        %v1523 = vadd.f32 %v1247, %v1522
        %v1524 = vpop.f32.mrb[0].mxu0
        %1525 = vmatprep.mubr.bf16.mxu0 0
        %1526 = vmatmul.mubr.bf16.gmra.mrb[0].mxu0 %v1304
        %v1527 = vpop.f32.mrb[0].mxu0
        %v1528 = vadd.f32 %v1252, %v1527
        %v1529 = vpop.f32.mrb[0].mxu0
        %v1530 = vpop.f32.mrb[0].mxu0
        %v1531 = vadd.f32 %v1255, %v1530
        %v1532 = vpop.f32.mrb[0].mxu0
        %1533 = vdwg.mxu0
        %v1534 = vld [vmem:[%s562] sm:$0xe]
        %s1535 = scalar_lea.vmem %s4, 8
        %v1536 = vld [vmem:[%s1535] sm:$0xf]
        %v1538 = vunpack.c.l.b16 %v1534
        %v1539 = vpack.c.b16 %v686, %v1538
        %vm1540 = vcmask 1046528
        %v1541 = vrot.slane %v1539, 1
        %v1542 = vrot.slane %v735, 1
        %v1543 = vsel %vm1540, %v1541, %v1542
        %v1544 = vrot.slane %v736, 1
        %v1545 = vsel %vm1540, %v1542, %v1544
        %v1546 = vrot.slane %v737, 1
        %v1547 = vsel %vm1540, %v1544, %v1546
        %v1548 = vrot.slane %v738, 1
        %v1549 = vsel %vm1540, %v1546, %v1548
        %v1550 = vrot.slane %v739, 1
        %v1551 = vsel %vm1540, %v1548, %v1550
        %v1552 = vrot.slane %v740, 1
        %v1553 = vsel %vm1540, %v1550, %v1552
        %v1554 = vrot.slane %v741, 1
        %v1555 = vsel %vm1540, %v1552, %v1554
        %v1556 = vrot.slane %v742, 1
        %v1557 = vsel %vm1540, %v1554, %v1556
        %v1558 = vrot.slane %v743, 1
        %v1559 = vsel %vm1540, %v1556, %v1558
        %v1560 = vrot.slane %v744, 1
        %v1561 = vsel %vm1540, %v1558, %v1560
        %v1562 = vrot.slane %v745, 1
        %v1563 = vsel %vm1540, %v1560, %v1562
        %v1564 = vrot.slane %v746, 1
        %v1565 = vsel %vm1540, %v1562, %v1564
        %v1566 = vrot.slane %v747, 1
        %v1567 = vsel %vm1540, %v1564, %v1566
        %v1568 = vrot.slane %v748, 1
        %v1569 = vsel %vm1540, %v1566, %v1568
        %v1570 = vrot.slane %v749, 1
        %v1571 = vsel %vm1540, %v1568, %v1570
        %v1572 = vrot.slane %v750, 1
        %v1573 = vsel %vm1540, %v1570, %v1572
        %v1574 = vrot.slane %v751, 1
        %v1575 = vsel %vm1540, %v1572, %v1574
        %v1576 = vrot.slane %v752, 1
        %v1577 = vsel %vm1540, %v1574, %v1576
        %v1578 = vrot.slane %v753, 1
        %v1579 = vsel %vm1540, %v1576, %v1578
        %v1580 = vrot.slane %v754, 1
        %v1581 = vsel %vm1540, %v1578, %v1580
        %v1582 = vrot.slane %v755, 1
        %v1583 = vsel %vm1540, %v1580, %v1582
        %v1584 = vrot.slane %v756, 1
        %v1585 = vsel %vm1540, %v1582, %v1584
        %v1586 = vrot.slane %v757, 1
        %v1587 = vsel %vm1540, %v1584, %v1586
        %v1588 = vrot.slane %v758, 1
        %v1589 = vsel %vm1540, %v1586, %v1588
        %v1591 = vsel %vm956, %v1543, 0
        %v1594 = vsel %vm956, %v1545, 0
        %v1597 = vsel %vm956, %v1547, 0
        %v1600 = vsel %vm956, %v1549, 0
        %v1603 = vsel %vm956, %v1551, 0
        %v1606 = vsel %vm956, %v1553, 0
        %v1609 = vsel %vm956, %v1555, 0
        %v1612 = vsel %vm956, %v1557, 0
        %v1615 = vsel %vm956, %v1559, 0
        %v1618 = vsel %vm956, %v1561, 0
        %v1621 = vsel %vm956, %v1563, 0
        %v1624 = vsel %vm956, %v1565, 0
        %v1627 = vsel %vm956, %v1567, 0
        %v1630 = vsel %vm956, %v1569, 0
        %v1633 = vsel %vm956, %v1571, 0
        %v1636 = vsel %vm956, %v1573, 0
        %v1639 = vsel %vm956, %v1575, 0
        %v1642 = vsel %vm956, %v1577, 0
        %v1645 = vsel %vm956, %v1579, 0
        %v1648 = vsel %vm956, %v1581, 0
        %v1651 = vsel %vm956, %v1583, 0
        %v1654 = vsel %vm956, %v1585, 0
        %v1657 = vsel %vm956, %v1587, 0
        %v1660 = vsel %vm956, %v1589, 0
        %v1663 = vsel %vm1029, %v1536, 0
        %1665 = vmatprep.subr.bf16.mxu0 0
        %1666 = vmatpush1.bf16.msra.mxu0 %v1663
        %1667 = vmatprep.subr.bf16.mxu0 0
        %1668 = vmatpush1.bf16.msra.mxu0 0
        %1669 = vmatprep.subr.bf16.mxu0 0
        %1670 = vmatpush1.bf16.msra.mxu0 0
        %1671 = vmatprep.subr.bf16.mxu0 0
        %1672 = vmatpush1.bf16.msra.mxu0 0
        %1673 = vmatprep.subr.bf16.mxu0 0
        %1674 = vmatpush1.bf16.msra.mxu0 0
        %1675 = vmatprep.subr.bf16.mxu0 0
        %1676 = vmatpush1.bf16.msra.mxu0 0
        %1677 = vmatprep.subr.bf16.mxu0 0
        %1678 = vmatpush1.bf16.msra.mxu0 0
        %1679 = vmatprep.subr.bf16.mxu0 0
        %1680 = vmatpush1.bf16.msra.mxu0 0
        %1681 = vmatprep.subr.bf16.mxu0 0
        %1682 = vmatpush1.bf16.msra.mxu0 0
        %1683 = vmatprep.subr.bf16.mxu0 0
        %1684 = vmatpush1.bf16.msra.mxu0 0
        %1685 = vmatprep.subr.bf16.mxu0 0
        %1686 = vmatpush1.bf16.msra.mxu0 0
        %1687 = vmatprep.subr.bf16.mxu0 0
        %1688 = vmatpush1.bf16.msra.mxu0 0
        %1689 = vmatprep.subr.bf16.mxu0 0
        %1690 = vmatpush1.bf16.msra.mxu0 0
        %1691 = vmatprep.subr.bf16.mxu0 0
        %1692 = vmatpush1.bf16.msra.mxu0 0
        %1693 = vmatprep.subr.bf16.mxu0 0
        %1694 = vmatpush1.bf16.msra.mxu0 0
        %1695 = vmatprep.subr.bf16.mxu0 0
        %1696 = vmatpush1.bf16.msra.mxu0 0
        %1697 = vmatprep.mubr.bf16.mxu0 0
        %1698 = vmatmul.mubr.bf16.gmra.mrb[0].mxu0 %v1591
        %v1699 = vpop.f32.mrb[0].mxu0
        %v1700 = vadd.f32 0.0, %v1699
        %v1701 = vpop.f32.mrb[0].mxu0
        %v1702 = vpop.f32.mrb[0].mxu0
        %v1703 = vadd.f32 0.0, %v1702
        %v1704 = vpop.f32.mrb[0].mxu0
        %1705 = vmatprep.mubr.bf16.mxu0 0
        %1706 = vmatmul.mubr.bf16.gmra.mrb[0].mxu0 %v1594
        %v1707 = vpop.f32.mrb[0].mxu0
        %v1708 = vadd.f32 0.0, %v1707
        %v1709 = vpop.f32.mrb[0].mxu0
        %v1710 = vpop.f32.mrb[0].mxu0
        %v1711 = vadd.f32 0.0, %v1710
        %v1712 = vpop.f32.mrb[0].mxu0
        %1713 = vmatprep.mubr.bf16.mxu0 0
        %1714 = vmatmul.mubr.bf16.gmra.mrb[0].mxu0 %v1597
        %v1715 = vpop.f32.mrb[0].mxu0
        %v1716 = vadd.f32 0.0, %v1715
        %v1717 = vpop.f32.mrb[0].mxu0
        %v1718 = vpop.f32.mrb[0].mxu0
        %v1719 = vadd.f32 0.0, %v1718
        %v1720 = vpop.f32.mrb[0].mxu0
        %1721 = vmatprep.mubr.bf16.mxu0 0
        %1722 = vmatmul.mubr.bf16.gmra.mrb[0].mxu0 %v1600
        %v1723 = vpop.f32.mrb[0].mxu0
        %v1724 = vadd.f32 0.0, %v1723
        %v1725 = vpop.f32.mrb[0].mxu0
        %v1726 = vpop.f32.mrb[0].mxu0
        %v1727 = vadd.f32 0.0, %v1726
        %v1728 = vpop.f32.mrb[0].mxu0
        %1729 = vmatprep.mubr.bf16.mxu0 0
        %1730 = vmatmul.mubr.bf16.gmra.mrb[0].mxu0 %v1603
        %v1731 = vpop.f32.mrb[0].mxu0
        %v1732 = vadd.f32 0.0, %v1731
        %v1733 = vpop.f32.mrb[0].mxu0
        %v1734 = vpop.f32.mrb[0].mxu0
        %v1735 = vadd.f32 0.0, %v1734
        %v1736 = vpop.f32.mrb[0].mxu0
        %1737 = vmatprep.mubr.bf16.mxu0 0
        %1738 = vmatmul.mubr.bf16.gmra.mrb[0].mxu0 %v1606
        %v1739 = vpop.f32.mrb[0].mxu0
        %v1740 = vadd.f32 0.0, %v1739
        %v1741 = vpop.f32.mrb[0].mxu0
        %v1742 = vpop.f32.mrb[0].mxu0
        %v1743 = vadd.f32 0.0, %v1742
        %v1744 = vpop.f32.mrb[0].mxu0
        %1745 = vmatprep.mubr.bf16.mxu0 0
        %1746 = vmatmul.mubr.bf16.gmra.mrb[0].mxu0 %v1609
        %v1747 = vpop.f32.mrb[0].mxu0
        %v1748 = vadd.f32 0.0, %v1747
        %v1749 = vpop.f32.mrb[0].mxu0
        %v1750 = vpop.f32.mrb[0].mxu0
        %v1751 = vadd.f32 0.0, %v1750
        %v1752 = vpop.f32.mrb[0].mxu0
        %1753 = vmatprep.mubr.bf16.mxu0 0
        %1754 = vmatmul.mubr.bf16.gmra.mrb[0].mxu0 %v1612
        %v1755 = vpop.f32.mrb[0].mxu0
        %v1756 = vadd.f32 0.0, %v1755
        %v1757 = vpop.f32.mrb[0].mxu0
        %v1758 = vpop.f32.mrb[0].mxu0
        %v1759 = vadd.f32 0.0, %v1758
        %v1760 = vpop.f32.mrb[0].mxu0
        %1761 = vmatprep.mubr.bf16.mxu0 0
        %1762 = vmatmul.mubr.bf16.gmra.mrb[0].mxu0 %v1615
        %v1763 = vpop.f32.mrb[0].mxu0
        %v1764 = vadd.f32 0.0, %v1763
        %v1765 = vpop.f32.mrb[0].mxu0
        %v1766 = vpop.f32.mrb[0].mxu0
        %v1767 = vadd.f32 0.0, %v1766
        %v1768 = vpop.f32.mrb[0].mxu0
        %1769 = vmatprep.mubr.bf16.mxu0 0
        %1770 = vmatmul.mubr.bf16.gmra.mrb[0].mxu0 %v1618
        %v1771 = vpop.f32.mrb[0].mxu0
        %v1772 = vadd.f32 0.0, %v1771
        %v1773 = vpop.f32.mrb[0].mxu0
        %v1774 = vpop.f32.mrb[0].mxu0
        %v1775 = vadd.f32 0.0, %v1774
        %v1776 = vpop.f32.mrb[0].mxu0
        %1777 = vmatprep.mubr.bf16.mxu0 0
        %1778 = vmatmul.mubr.bf16.gmra.mrb[0].mxu0 %v1621
        %v1779 = vpop.f32.mrb[0].mxu0
        %v1780 = vadd.f32 0.0, %v1779
        %v1781 = vpop.f32.mrb[0].mxu0
        %v1782 = vpop.f32.mrb[0].mxu0
        %v1783 = vadd.f32 0.0, %v1782
        %v1784 = vpop.f32.mrb[0].mxu0
        %1785 = vmatprep.mubr.bf16.mxu0 0
        %1786 = vmatmul.mubr.bf16.gmra.mrb[0].mxu0 %v1624
        %v1787 = vpop.f32.mrb[0].mxu0
        %v1788 = vadd.f32 0.0, %v1787
        %v1789 = vpop.f32.mrb[0].mxu0
        %v1790 = vpop.f32.mrb[0].mxu0
        %v1791 = vadd.f32 0.0, %v1790
        %v1792 = vpop.f32.mrb[0].mxu0
        %1793 = vmatprep.mubr.bf16.mxu0 0
        %1794 = vmatmul.mubr.bf16.gmra.mrb[0].mxu0 %v1627
        %v1795 = vpop.f32.mrb[0].mxu0
        %v1796 = vadd.f32 0.0, %v1795
        %v1797 = vpop.f32.mrb[0].mxu0
        %v1798 = vpop.f32.mrb[0].mxu0
        %v1799 = vadd.f32 0.0, %v1798
        %v1800 = vpop.f32.mrb[0].mxu0
        %1801 = vmatprep.mubr.bf16.mxu0 0
        %1802 = vmatmul.mubr.bf16.gmra.mrb[0].mxu0 %v1630
        %v1803 = vpop.f32.mrb[0].mxu0
        %v1804 = vadd.f32 0.0, %v1803
        %v1805 = vpop.f32.mrb[0].mxu0
        %v1806 = vpop.f32.mrb[0].mxu0
        %v1807 = vadd.f32 0.0, %v1806
        %v1808 = vpop.f32.mrb[0].mxu0
        %1809 = vmatprep.mubr.bf16.mxu0 0
        %1810 = vmatmul.mubr.bf16.gmra.mrb[0].mxu0 %v1633
        %v1811 = vpop.f32.mrb[0].mxu0
        %v1812 = vadd.f32 0.0, %v1811
        %v1813 = vpop.f32.mrb[0].mxu0
        %v1814 = vpop.f32.mrb[0].mxu0
        %v1815 = vadd.f32 0.0, %v1814
        %v1816 = vpop.f32.mrb[0].mxu0
        %1817 = vmatprep.mubr.bf16.mxu0 0
        %1818 = vmatmul.mubr.bf16.gmra.mrb[0].mxu0 %v1636
        %v1819 = vpop.f32.mrb[0].mxu0
        %v1820 = vadd.f32 0.0, %v1819
        %v1821 = vpop.f32.mrb[0].mxu0
        %v1822 = vpop.f32.mrb[0].mxu0
        %v1823 = vadd.f32 0.0, %v1822
        %v1824 = vpop.f32.mrb[0].mxu0
        %1825 = vmatprep.mubr.bf16.mxu0 0
        %1826 = vmatmul.mubr.bf16.gmra.mrb[0].mxu0 %v1639
        %v1827 = vpop.f32.mrb[0].mxu0
        %v1828 = vadd.f32 0.0, %v1827
        %v1829 = vpop.f32.mrb[0].mxu0
        %v1830 = vpop.f32.mrb[0].mxu0
        %v1831 = vadd.f32 0.0, %v1830
        %v1832 = vpop.f32.mrb[0].mxu0
        %1833 = vmatprep.mubr.bf16.mxu0 0
        %1834 = vmatmul.mubr.bf16.gmra.mrb[0].mxu0 %v1642
        %v1835 = vpop.f32.mrb[0].mxu0
        %v1836 = vadd.f32 0.0, %v1835
        %v1837 = vpop.f32.mrb[0].mxu0
        %v1838 = vpop.f32.mrb[0].mxu0
        %v1839 = vadd.f32 0.0, %v1838
        %v1840 = vpop.f32.mrb[0].mxu0
        %1841 = vmatprep.mubr.bf16.mxu0 0
        %1842 = vmatmul.mubr.bf16.gmra.mrb[0].mxu0 %v1645
        %v1843 = vpop.f32.mrb[0].mxu0
        %v1844 = vadd.f32 0.0, %v1843
        %v1845 = vpop.f32.mrb[0].mxu0
        %v1846 = vpop.f32.mrb[0].mxu0
        %v1847 = vadd.f32 0.0, %v1846
        %v1848 = vpop.f32.mrb[0].mxu0
        %1849 = vmatprep.mubr.bf16.mxu0 0
        %1850 = vmatmul.mubr.bf16.gmra.mrb[0].mxu0 %v1648
        %v1851 = vpop.f32.mrb[0].mxu0
        %v1852 = vadd.f32 0.0, %v1851
        %v1853 = vpop.f32.mrb[0].mxu0
        %v1854 = vpop.f32.mrb[0].mxu0
        %v1855 = vadd.f32 0.0, %v1854
        %v1856 = vpop.f32.mrb[0].mxu0
        %1857 = vmatprep.mubr.bf16.mxu0 0
        %1858 = vmatmul.mubr.bf16.gmra.mrb[0].mxu0 %v1651
        %v1859 = vpop.f32.mrb[0].mxu0
        %v1860 = vadd.f32 0.0, %v1859
        %v1861 = vpop.f32.mrb[0].mxu0
        %v1862 = vpop.f32.mrb[0].mxu0
        %v1863 = vadd.f32 0.0, %v1862
        %v1864 = vpop.f32.mrb[0].mxu0
        %1865 = vmatprep.mubr.bf16.mxu0 0
        %1866 = vmatmul.mubr.bf16.gmra.mrb[0].mxu0 %v1654
        %v1867 = vpop.f32.mrb[0].mxu0
        %v1868 = vadd.f32 0.0, %v1867
        %v1869 = vpop.f32.mrb[0].mxu0
        %v1870 = vpop.f32.mrb[0].mxu0
        %v1871 = vadd.f32 0.0, %v1870
        %v1872 = vpop.f32.mrb[0].mxu0
        %1873 = vmatprep.mubr.bf16.mxu0 0
        %1874 = vmatmul.mubr.bf16.gmra.mrb[0].mxu0 %v1657
        %v1875 = vpop.f32.mrb[0].mxu0
        %v1876 = vadd.f32 0.0, %v1875
        %v1877 = vpop.f32.mrb[0].mxu0
        %v1878 = vpop.f32.mrb[0].mxu0
        %v1879 = vadd.f32 0.0, %v1878
        %v1880 = vpop.f32.mrb[0].mxu0
        %1881 = vmatprep.mubr.bf16.mxu0 0
        %1882 = vmatmul.mubr.bf16.gmra.mrb[0].mxu0 %v1660
        %v1883 = vpop.f32.mrb[0].mxu0
        %v1884 = vadd.f32 0.0, %v1883
        %v1885 = vpop.f32.mrb[0].mxu0
        %v1886 = vpop.f32.mrb[0].mxu0
        %v1887 = vadd.f32 0.0, %v1886
        %v1888 = vpop.f32.mrb[0].mxu0
        %1889 = vdwg.mxu0
        %v1890 = vadd.f32 %v1344, %v1700
        %v1891 = vadd.f32 %v1347, %v1703
        %v1892 = vadd.f32 %v1352, %v1708
        %v1893 = vadd.f32 %v1355, %v1711
        %v1894 = vadd.f32 %v1360, %v1716
        %v1895 = vadd.f32 %v1363, %v1719
        %v1896 = vadd.f32 %v1368, %v1724
        %v1897 = vadd.f32 %v1371, %v1727
        %v1898 = vadd.f32 %v1376, %v1732
        %v1899 = vadd.f32 %v1379, %v1735
        %v1900 = vadd.f32 %v1384, %v1740
        %v1901 = vadd.f32 %v1387, %v1743
        %v1902 = vadd.f32 %v1392, %v1748
        %v1903 = vadd.f32 %v1395, %v1751
        %v1904 = vadd.f32 %v1400, %v1756
        %v1905 = vadd.f32 %v1403, %v1759
        %v1906 = vadd.f32 %v1408, %v1764
        %v1907 = vadd.f32 %v1411, %v1767
        %v1908 = vadd.f32 %v1416, %v1772
        %v1909 = vadd.f32 %v1419, %v1775
        %v1910 = vadd.f32 %v1424, %v1780
        %v1911 = vadd.f32 %v1427, %v1783
        %v1912 = vadd.f32 %v1432, %v1788
        %v1913 = vadd.f32 %v1435, %v1791
        %v1914 = vadd.f32 %v1440, %v1796
        %v1915 = vadd.f32 %v1443, %v1799
        %v1916 = vadd.f32 %v1448, %v1804
        %v1917 = vadd.f32 %v1451, %v1807
        %v1918 = vadd.f32 %v1456, %v1812
        %v1919 = vadd.f32 %v1459, %v1815
        %v1920 = vadd.f32 %v1464, %v1820
        %v1921 = vadd.f32 %v1467, %v1823
        %v1922 = vadd.f32 %v1472, %v1828
        %v1923 = vadd.f32 %v1475, %v1831
        %v1924 = vadd.f32 %v1480, %v1836
        %v1925 = vadd.f32 %v1483, %v1839
        %v1926 = vadd.f32 %v1488, %v1844
        %v1927 = vadd.f32 %v1491, %v1847
        %v1928 = vadd.f32 %v1496, %v1852
        %v1929 = vadd.f32 %v1499, %v1855
        %v1930 = vadd.f32 %v1504, %v1860
        %v1931 = vadd.f32 %v1507, %v1863
        %v1932 = vadd.f32 %v1512, %v1868
        %v1933 = vadd.f32 %v1515, %v1871
        %v1934 = vadd.f32 %v1520, %v1876
        %v1935 = vadd.f32 %v1523, %v1879
        %v1936 = vadd.f32 %v1528, %v1884
        %v1937 = vadd.f32 %v1531, %v1887
        %v1938 = vld [vmem:[%s562 + $0xc] sm:$0xf]
        %v1939 = vld [vmem:[%s562 + $0x10] sm:$0xf]
        %v1940 = vld [vmem:[%s562 + $0x14] sm:$0xf]
        %v1941 = vld [vmem:[%s562 + $0x18] sm:$0xf]
        %v1942 = vld [vmem:[%s562 + $0x1c] sm:$0xf]
        %v1943 = vld [vmem:[%s562 + $0x20] sm:$0xf]
        %v1944 = vld [vmem:[%s562 + $0x24] sm:$0xf]
        %v1945 = vld [vmem:[%s562 + $0x28] sm:$0xf]
        %v1946 = vld [vmem:[%s562 + $0x2c] sm:$0xf]
        %v1947 = vld [vmem:[%s562 + $0x30] sm:$0xf]
        %v1948 = vld [vmem:[%s562 + $0x34] sm:$0xf]
        %v1949 = vld [vmem:[%s562 + $0x38] sm:$0xf]
        %v1950 = vld [vmem:[%s562 + $0x3c] sm:$0xf]
        %v1951 = vld [vmem:[%s562 + $0x40] sm:$0xf]
        %v1952 = vld [vmem:[%s562 + $0x44] sm:$0xf]
        %v1953 = vld [vmem:[%s562 + $0x48] sm:$0xf]
        %v1954 = vld [vmem:[%s562 + $0x4c] sm:$0xf]
        %v1955 = vld [vmem:[%s562 + $0x50] sm:$0xf]
        %v1956 = vld [vmem:[%s562 + $0x54] sm:$0xf]
        %v1957 = vld [vmem:[%s562 + $0x58] sm:$0xf]
        %v1958 = vld [vmem:[%s562 + $0x5c] sm:$0xf]
        %v1959 = vld [vmem:[%s562 + $0x60] sm:$0xf]
        %v1960 = vld [vmem:[%s562 + $0x64] sm:$0xf]
        %v1961 = vld [vmem:[%s562 + $0x68] sm:$0xf]
        %v1962 = vld [vmem:[%s562 + $0x6c] sm:$0xf]
        %v1963 = vld [vmem:[%s562 + $0x70] sm:$0xf]
        %v1964 = vld [vmem:[%s562 + $0x74] sm:$0xf]
        %v1965 = vld [vmem:[%s562 + $0x78] sm:$0xf]
        %v1966 = vld [vmem:[%s562 + $0x7c] sm:$0xf]
        %v1967 = vld [vmem:[%s562 + $0x80] sm:$0xf]
        %v1968 = vld [vmem:[%s562 + $0x84] sm:$0xf]
        %v1969 = vld [vmem:[%s562 + $0x88] sm:$0xf]
        %v1970 = vld [vmem:[%s562 + $0x8c] sm:$0xf]
        %v1971 = vld [vmem:[%s562 + $0x90] sm:$0xf]
        %v1972 = vld [vmem:[%s562 + $0x94] sm:$0xf]
        %v1973 = vld [vmem:[%s562 + $0x98] sm:$0xf]
        %v1974 = vld [vmem:[%s562 + $0x9c] sm:$0xf]
        %v1975 = vld [vmem:[%s562 + $0xa0] sm:$0xf]
        %v1976 = vld [vmem:[%s562 + $0xa4] sm:$0xf]
        %v1977 = vld [vmem:[%s562 + $0xa8] sm:$0xf]
        %v1978 = vld [vmem:[%s562 + $0xac] sm:$0xf]
        %v1979 = vld [vmem:[%s562 + $0xb0] sm:$0xf]
        %v1980 = vld [vmem:[%s562 + $0xb4] sm:$0xf]
        %v1981 = vld [vmem:[%s562 + $0xb8] sm:$0xf]
        %v1982 = vld [vmem:[%s562 + $0xbc] sm:$0xf]
        %v1983 = vld [vmem:[%s562 + $0xc0] sm:$0xf]
        %v1984 = vld [vmem:[%s562 + $0xc4] sm:$0xf]
        %v1985 = vld [vmem:[%s562 + $0xc8] sm:$0xf]
        %s1986 = scalar_lea.vmem %s4, 12
        %v1987 = vld [vmem:[%s1986] sm:$0xf]
        %v2036 = vunpack.c.l.b16 %v1938
        %v2037 = vunpack.c.l.b16 %v1939
        %v2038 = vunpack.c.l.b16 %v1940
        %v2039 = vunpack.c.l.b16 %v1941
        %v2040 = vunpack.c.l.b16 %v1942
        %v2041 = vunpack.c.l.b16 %v1943
        %v2042 = vunpack.c.l.b16 %v1944
        %v2043 = vunpack.c.l.b16 %v1945
        %v2044 = vunpack.c.l.b16 %v1946
        %v2045 = vunpack.c.l.b16 %v1947
        %v2046 = vunpack.c.l.b16 %v1948
        %v2047 = vunpack.c.l.b16 %v1949
        %v2048 = vunpack.c.l.b16 %v1950
        %v2049 = vunpack.c.l.b16 %v1951
        %v2050 = vunpack.c.l.b16 %v1952
        %v2051 = vunpack.c.l.b16 %v1953
        %v2052 = vunpack.c.l.b16 %v1954
        %v2053 = vunpack.c.l.b16 %v1955
        %v2054 = vunpack.c.l.b16 %v1956
        %v2055 = vunpack.c.l.b16 %v1957
        %v2056 = vunpack.c.l.b16 %v1958
        %v2057 = vunpack.c.l.b16 %v1959
        %v2058 = vunpack.c.l.b16 %v1960
        %v2059 = vunpack.c.l.b16 %v1961
        %v2060 = vunpack.c.l.b16 %v1962
        %v2061 = vunpack.c.l.b16 %v1963
        %v2062 = vunpack.c.l.b16 %v1964
        %v2063 = vunpack.c.l.b16 %v1965
        %v2064 = vunpack.c.l.b16 %v1966
        %v2065 = vunpack.c.l.b16 %v1967
        %v2066 = vunpack.c.l.b16 %v1968
        %v2067 = vunpack.c.l.b16 %v1969
        %v2068 = vunpack.c.l.b16 %v1970
        %v2069 = vunpack.c.l.b16 %v1971
        %v2070 = vunpack.c.l.b16 %v1972
        %v2071 = vunpack.c.l.b16 %v1973
        %v2072 = vunpack.c.l.b16 %v1974
        %v2073 = vunpack.c.l.b16 %v1975
        %v2074 = vunpack.c.l.b16 %v1976
        %v2075 = vunpack.c.l.b16 %v1977
        %v2076 = vunpack.c.l.b16 %v1978
        %v2077 = vunpack.c.l.b16 %v1979
        %v2078 = vunpack.c.l.b16 %v1980
        %v2079 = vunpack.c.l.b16 %v1981
        %v2080 = vunpack.c.l.b16 %v1982
        %v2081 = vunpack.c.l.b16 %v1983
        %v2082 = vunpack.c.l.b16 %v1984
        %v2083 = vunpack.c.l.b16 %v1985
        %v2084 = vpack.c.b16 %v2037, %v2036
        %v2085 = vpack.c.b16 %v2039, %v2038
        %v2086 = vpack.c.b16 %v2041, %v2040
        %v2087 = vpack.c.b16 %v2043, %v2042
        %v2088 = vpack.c.b16 %v2045, %v2044
        %v2089 = vpack.c.b16 %v2047, %v2046
        %v2090 = vpack.c.b16 %v2049, %v2048
        %v2091 = vpack.c.b16 %v2051, %v2050
        %v2092 = vpack.c.b16 %v2053, %v2052
        %v2093 = vpack.c.b16 %v2055, %v2054
        %v2094 = vpack.c.b16 %v2057, %v2056
        %v2095 = vpack.c.b16 %v2059, %v2058
        %v2096 = vpack.c.b16 %v2061, %v2060
        %v2097 = vpack.c.b16 %v2063, %v2062
        %v2098 = vpack.c.b16 %v2065, %v2064
        %v2099 = vpack.c.b16 %v2067, %v2066
        %v2100 = vpack.c.b16 %v2069, %v2068
        %v2101 = vpack.c.b16 %v2071, %v2070
        %v2102 = vpack.c.b16 %v2073, %v2072
        %v2103 = vpack.c.b16 %v2075, %v2074
        %v2104 = vpack.c.b16 %v2077, %v2076
        %v2105 = vpack.c.b16 %v2079, %v2078
        %v2106 = vpack.c.b16 %v2081, %v2080
        %v2107 = vpack.c.b16 %v2083, %v2082
        %v2109 = vsel %vm956, %v2084, 0
        %v2112 = vsel %vm956, %v2085, 0
        %v2115 = vsel %vm956, %v2086, 0
        %v2118 = vsel %vm956, %v2087, 0
        %v2121 = vsel %vm956, %v2088, 0
        %v2124 = vsel %vm956, %v2089, 0
        %v2127 = vsel %vm956, %v2090, 0
        %v2130 = vsel %vm956, %v2091, 0
        %v2133 = vsel %vm956, %v2092, 0
        %v2136 = vsel %vm956, %v2093, 0
        %v2139 = vsel %vm956, %v2094, 0
        %v2142 = vsel %vm956, %v2095, 0
        %v2145 = vsel %vm956, %v2096, 0
        %v2148 = vsel %vm956, %v2097, 0
        %v2151 = vsel %vm956, %v2098, 0
        %v2154 = vsel %vm956, %v2099, 0
        %v2157 = vsel %vm956, %v2100, 0
        %v2160 = vsel %vm956, %v2101, 0
        %v2163 = vsel %vm956, %v2102, 0
        %v2166 = vsel %vm956, %v2103, 0
        %v2169 = vsel %vm956, %v2104, 0
        %v2172 = vsel %vm956, %v2105, 0
        %v2175 = vsel %vm956, %v2106, 0
        %v2178 = vsel %vm956, %v2107, 0
        %v2181 = vsel %vm1029, %v1987, 0
        %2183 = vmatprep.subr.bf16.mxu0 0
        %2184 = vmatpush1.bf16.msra.mxu0 %v2181
        %2185 = vmatprep.subr.bf16.mxu0 0
        %2186 = vmatpush1.bf16.msra.mxu0 0
        %2187 = vmatprep.subr.bf16.mxu0 0
        %2188 = vmatpush1.bf16.msra.mxu0 0
        %2189 = vmatprep.subr.bf16.mxu0 0
        %2190 = vmatpush1.bf16.msra.mxu0 0
        %2191 = vmatprep.subr.bf16.mxu0 0
        %2192 = vmatpush1.bf16.msra.mxu0 0
        %2193 = vmatprep.subr.bf16.mxu0 0
        %2194 = vmatpush1.bf16.msra.mxu0 0
        %2195 = vmatprep.subr.bf16.mxu0 0
        %2196 = vmatpush1.bf16.msra.mxu0 0
        %2197 = vmatprep.subr.bf16.mxu0 0
        %2198 = vmatpush1.bf16.msra.mxu0 0
        %2199 = vmatprep.subr.bf16.mxu0 0
        %2200 = vmatpush1.bf16.msra.mxu0 0
        %2201 = vmatprep.subr.bf16.mxu0 0
        %2202 = vmatpush1.bf16.msra.mxu0 0
        %2203 = vmatprep.subr.bf16.mxu0 0
        %2204 = vmatpush1.bf16.msra.mxu0 0
        %2205 = vmatprep.subr.bf16.mxu0 0
        %2206 = vmatpush1.bf16.msra.mxu0 0
        %2207 = vmatprep.subr.bf16.mxu0 0
        %2208 = vmatpush1.bf16.msra.mxu0 0
        %2209 = vmatprep.subr.bf16.mxu0 0
        %2210 = vmatpush1.bf16.msra.mxu0 0
        %2211 = vmatprep.subr.bf16.mxu0 0
        %2212 = vmatpush1.bf16.msra.mxu0 0
        %2213 = vmatprep.subr.bf16.mxu0 0
        %2214 = vmatpush1.bf16.msra.mxu0 0
        %2215 = vmatprep.mubr.bf16.mxu0 0
        %2216 = vmatmul.mubr.bf16.gmra.mrb[0].mxu0 %v2109
        %v2217 = vpop.f32.mrb[0].mxu0
        %v2218 = vadd.f32 0.0, %v2217
        %v2219 = vpop.f32.mrb[0].mxu0
        %v2220 = vpop.f32.mrb[0].mxu0
        %v2221 = vadd.f32 0.0, %v2220
        %v2222 = vpop.f32.mrb[0].mxu0
        %2223 = vmatprep.mubr.bf16.mxu0 0
        %2224 = vmatmul.mubr.bf16.gmra.mrb[0].mxu0 %v2112
        %v2225 = vpop.f32.mrb[0].mxu0
        %v2226 = vadd.f32 0.0, %v2225
        %v2227 = vpop.f32.mrb[0].mxu0
        %v2228 = vpop.f32.mrb[0].mxu0
        %v2229 = vadd.f32 0.0, %v2228
        %v2230 = vpop.f32.mrb[0].mxu0
        %2231 = vmatprep.mubr.bf16.mxu0 0
        %2232 = vmatmul.mubr.bf16.gmra.mrb[0].mxu0 %v2115
        %v2233 = vpop.f32.mrb[0].mxu0
        %v2234 = vadd.f32 0.0, %v2233
        %v2235 = vpop.f32.mrb[0].mxu0
        %v2236 = vpop.f32.mrb[0].mxu0
        %v2237 = vadd.f32 0.0, %v2236
        %v2238 = vpop.f32.mrb[0].mxu0
        %2239 = vmatprep.mubr.bf16.mxu0 0
        %2240 = vmatmul.mubr.bf16.gmra.mrb[0].mxu0 %v2118
        %v2241 = vpop.f32.mrb[0].mxu0
        %v2242 = vadd.f32 0.0, %v2241
        %v2243 = vpop.f32.mrb[0].mxu0
        %v2244 = vpop.f32.mrb[0].mxu0
        %v2245 = vadd.f32 0.0, %v2244
        %v2246 = vpop.f32.mrb[0].mxu0
        %2247 = vmatprep.mubr.bf16.mxu0 0
        %2248 = vmatmul.mubr.bf16.gmra.mrb[0].mxu0 %v2121
        %v2249 = vpop.f32.mrb[0].mxu0
        %v2250 = vadd.f32 0.0, %v2249
        %v2251 = vpop.f32.mrb[0].mxu0
        %v2252 = vpop.f32.mrb[0].mxu0
        %v2253 = vadd.f32 0.0, %v2252
        %v2254 = vpop.f32.mrb[0].mxu0
        %2255 = vmatprep.mubr.bf16.mxu0 0
        %2256 = vmatmul.mubr.bf16.gmra.mrb[0].mxu0 %v2124
        %v2257 = vpop.f32.mrb[0].mxu0
        %v2258 = vadd.f32 0.0, %v2257
        %v2259 = vpop.f32.mrb[0].mxu0
        %v2260 = vpop.f32.mrb[0].mxu0
        %v2261 = vadd.f32 0.0, %v2260
        %v2262 = vpop.f32.mrb[0].mxu0
        %2263 = vmatprep.mubr.bf16.mxu0 0
        %2264 = vmatmul.mubr.bf16.gmra.mrb[0].mxu0 %v2127
        %v2265 = vpop.f32.mrb[0].mxu0
        %v2266 = vadd.f32 0.0, %v2265
        %v2267 = vpop.f32.mrb[0].mxu0
        %v2268 = vpop.f32.mrb[0].mxu0
        %v2269 = vadd.f32 0.0, %v2268
        %v2270 = vpop.f32.mrb[0].mxu0
        %2271 = vmatprep.mubr.bf16.mxu0 0
        %2272 = vmatmul.mubr.bf16.gmra.mrb[0].mxu0 %v2130
        %v2273 = vpop.f32.mrb[0].mxu0
        %v2274 = vadd.f32 0.0, %v2273
        %v2275 = vpop.f32.mrb[0].mxu0
        %v2276 = vpop.f32.mrb[0].mxu0
        %v2277 = vadd.f32 0.0, %v2276
        %v2278 = vpop.f32.mrb[0].mxu0
        %2279 = vmatprep.mubr.bf16.mxu0 0
        %2280 = vmatmul.mubr.bf16.gmra.mrb[0].mxu0 %v2133
        %v2281 = vpop.f32.mrb[0].mxu0
        %v2282 = vadd.f32 0.0, %v2281
        %v2283 = vpop.f32.mrb[0].mxu0
        %v2284 = vpop.f32.mrb[0].mxu0
        %v2285 = vadd.f32 0.0, %v2284
        %v2286 = vpop.f32.mrb[0].mxu0
        %2287 = vmatprep.mubr.bf16.mxu0 0
        %2288 = vmatmul.mubr.bf16.gmra.mrb[0].mxu0 %v2136
        %v2289 = vpop.f32.mrb[0].mxu0
        %v2290 = vadd.f32 0.0, %v2289
        %v2291 = vpop.f32.mrb[0].mxu0
        %v2292 = vpop.f32.mrb[0].mxu0
        %v2293 = vadd.f32 0.0, %v2292
        %v2294 = vpop.f32.mrb[0].mxu0
        %2295 = vmatprep.mubr.bf16.mxu0 0
        %2296 = vmatmul.mubr.bf16.gmra.mrb[0].mxu0 %v2139
        %v2297 = vpop.f32.mrb[0].mxu0
        %v2298 = vadd.f32 0.0, %v2297
        %v2299 = vpop.f32.mrb[0].mxu0
        %v2300 = vpop.f32.mrb[0].mxu0
        %v2301 = vadd.f32 0.0, %v2300
        %v2302 = vpop.f32.mrb[0].mxu0
        %2303 = vmatprep.mubr.bf16.mxu0 0
        %2304 = vmatmul.mubr.bf16.gmra.mrb[0].mxu0 %v2142
        %v2305 = vpop.f32.mrb[0].mxu0
        %v2306 = vadd.f32 0.0, %v2305
        %v2307 = vpop.f32.mrb[0].mxu0
        %v2308 = vpop.f32.mrb[0].mxu0
        %v2309 = vadd.f32 0.0, %v2308
        %v2310 = vpop.f32.mrb[0].mxu0
        %2311 = vmatprep.mubr.bf16.mxu0 0
        %2312 = vmatmul.mubr.bf16.gmra.mrb[0].mxu0 %v2145
        %v2313 = vpop.f32.mrb[0].mxu0
        %v2314 = vadd.f32 0.0, %v2313
        %v2315 = vpop.f32.mrb[0].mxu0
        %v2316 = vpop.f32.mrb[0].mxu0
        %v2317 = vadd.f32 0.0, %v2316
        %v2318 = vpop.f32.mrb[0].mxu0
        %2319 = vmatprep.mubr.bf16.mxu0 0
        %2320 = vmatmul.mubr.bf16.gmra.mrb[0].mxu0 %v2148
        %v2321 = vpop.f32.mrb[0].mxu0
        %v2322 = vadd.f32 0.0, %v2321
        %v2323 = vpop.f32.mrb[0].mxu0
        %v2324 = vpop.f32.mrb[0].mxu0
        %v2325 = vadd.f32 0.0, %v2324
        %v2326 = vpop.f32.mrb[0].mxu0
        %2327 = vmatprep.mubr.bf16.mxu0 0
        %2328 = vmatmul.mubr.bf16.gmra.mrb[0].mxu0 %v2151
        %v2329 = vpop.f32.mrb[0].mxu0
        %v2330 = vadd.f32 0.0, %v2329
        %v2331 = vpop.f32.mrb[0].mxu0
        %v2332 = vpop.f32.mrb[0].mxu0
        %v2333 = vadd.f32 0.0, %v2332
        %v2334 = vpop.f32.mrb[0].mxu0
        %2335 = vmatprep.mubr.bf16.mxu0 0
        %2336 = vmatmul.mubr.bf16.gmra.mrb[0].mxu0 %v2154
        %v2337 = vpop.f32.mrb[0].mxu0
        %v2338 = vadd.f32 0.0, %v2337
        %v2339 = vpop.f32.mrb[0].mxu0
        %v2340 = vpop.f32.mrb[0].mxu0
        %v2341 = vadd.f32 0.0, %v2340
        %v2342 = vpop.f32.mrb[0].mxu0
        %2343 = vmatprep.mubr.bf16.mxu0 0
        %2344 = vmatmul.mubr.bf16.gmra.mrb[0].mxu0 %v2157
        %v2345 = vpop.f32.mrb[0].mxu0
        %v2346 = vadd.f32 0.0, %v2345
        %v2347 = vpop.f32.mrb[0].mxu0
        %v2348 = vpop.f32.mrb[0].mxu0
        %v2349 = vadd.f32 0.0, %v2348
        %v2350 = vpop.f32.mrb[0].mxu0
        %2351 = vmatprep.mubr.bf16.mxu0 0
        %2352 = vmatmul.mubr.bf16.gmra.mrb[0].mxu0 %v2160
        %v2353 = vpop.f32.mrb[0].mxu0
        %v2354 = vadd.f32 0.0, %v2353
        %v2355 = vpop.f32.mrb[0].mxu0
        %v2356 = vpop.f32.mrb[0].mxu0
        %v2357 = vadd.f32 0.0, %v2356
        %v2358 = vpop.f32.mrb[0].mxu0
        %2359 = vmatprep.mubr.bf16.mxu0 0
        %2360 = vmatmul.mubr.bf16.gmra.mrb[0].mxu0 %v2163
        %v2361 = vpop.f32.mrb[0].mxu0
        %v2362 = vadd.f32 0.0, %v2361
        %v2363 = vpop.f32.mrb[0].mxu0
        %v2364 = vpop.f32.mrb[0].mxu0
        %v2365 = vadd.f32 0.0, %v2364
        %v2366 = vpop.f32.mrb[0].mxu0
        %2367 = vmatprep.mubr.bf16.mxu0 0
        %2368 = vmatmul.mubr.bf16.gmra.mrb[0].mxu0 %v2166
        %v2369 = vpop.f32.mrb[0].mxu0
        %v2370 = vadd.f32 0.0, %v2369
        %v2371 = vpop.f32.mrb[0].mxu0
        %v2372 = vpop.f32.mrb[0].mxu0
        %v2373 = vadd.f32 0.0, %v2372
        %v2374 = vpop.f32.mrb[0].mxu0
        %2375 = vmatprep.mubr.bf16.mxu0 0
        %2376 = vmatmul.mubr.bf16.gmra.mrb[0].mxu0 %v2169
        %v2377 = vpop.f32.mrb[0].mxu0
        %v2378 = vadd.f32 0.0, %v2377
        %v2379 = vpop.f32.mrb[0].mxu0
        %v2380 = vpop.f32.mrb[0].mxu0
        %v2381 = vadd.f32 0.0, %v2380
        %v2382 = vpop.f32.mrb[0].mxu0
        %2383 = vmatprep.mubr.bf16.mxu0 0
        %2384 = vmatmul.mubr.bf16.gmra.mrb[0].mxu0 %v2172
        %v2385 = vpop.f32.mrb[0].mxu0
        %v2386 = vadd.f32 0.0, %v2385
        %v2387 = vpop.f32.mrb[0].mxu0
        %v2388 = vpop.f32.mrb[0].mxu0
        %v2389 = vadd.f32 0.0, %v2388
        %v2390 = vpop.f32.mrb[0].mxu0
        %2391 = vmatprep.mubr.bf16.mxu0 0
        %2392 = vmatmul.mubr.bf16.gmra.mrb[0].mxu0 %v2175
        %v2393 = vpop.f32.mrb[0].mxu0
        %v2394 = vadd.f32 0.0, %v2393
        %v2395 = vpop.f32.mrb[0].mxu0
        %v2396 = vpop.f32.mrb[0].mxu0
        %v2397 = vadd.f32 0.0, %v2396
        %v2398 = vpop.f32.mrb[0].mxu0
        %2399 = vmatprep.mubr.bf16.mxu0 0
        %2400 = vmatmul.mubr.bf16.gmra.mrb[0].mxu0 %v2178
        %v2401 = vpop.f32.mrb[0].mxu0
        %v2402 = vadd.f32 0.0, %v2401
        %v2403 = vpop.f32.mrb[0].mxu0
        %v2404 = vpop.f32.mrb[0].mxu0
        %v2405 = vadd.f32 0.0, %v2404
        %v2406 = vpop.f32.mrb[0].mxu0
        %2407 = vdwg.mxu0
        %v2408 = vadd.f32 %v1890, %v2218
        %v2409 = vadd.f32 %v1891, %v2221
        %v2410 = vadd.f32 %v1892, %v2226
        %v2411 = vadd.f32 %v1893, %v2229
        %v2412 = vadd.f32 %v1894, %v2234
        %v2413 = vadd.f32 %v1895, %v2237
        %v2414 = vadd.f32 %v1896, %v2242
        %v2415 = vadd.f32 %v1897, %v2245
        %v2416 = vadd.f32 %v1898, %v2250
        %v2417 = vadd.f32 %v1899, %v2253
        %v2418 = vadd.f32 %v1900, %v2258
        %v2419 = vadd.f32 %v1901, %v2261
        %v2420 = vadd.f32 %v1902, %v2266
        %v2421 = vadd.f32 %v1903, %v2269
        %v2422 = vadd.f32 %v1904, %v2274
        %v2423 = vadd.f32 %v1905, %v2277
        %v2424 = vadd.f32 %v1906, %v2282
        %v2425 = vadd.f32 %v1907, %v2285
        %v2426 = vadd.f32 %v1908, %v2290
        %v2427 = vadd.f32 %v1909, %v2293
        %v2428 = vadd.f32 %v1910, %v2298
        %v2429 = vadd.f32 %v1911, %v2301
        %v2430 = vadd.f32 %v1912, %v2306
        %v2431 = vadd.f32 %v1913, %v2309
        %v2432 = vadd.f32 %v1914, %v2314
        %v2433 = vadd.f32 %v1915, %v2317
        %v2434 = vadd.f32 %v1916, %v2322
        %v2435 = vadd.f32 %v1917, %v2325
        %v2436 = vadd.f32 %v1918, %v2330
        %v2437 = vadd.f32 %v1919, %v2333
        %v2438 = vadd.f32 %v1920, %v2338
        %v2439 = vadd.f32 %v1921, %v2341
        %v2440 = vadd.f32 %v1922, %v2346
        %v2441 = vadd.f32 %v1923, %v2349
        %v2442 = vadd.f32 %v1924, %v2354
        %v2443 = vadd.f32 %v1925, %v2357
        %v2444 = vadd.f32 %v1926, %v2362
        %v2445 = vadd.f32 %v1927, %v2365
        %v2446 = vadd.f32 %v1928, %v2370
        %v2447 = vadd.f32 %v1929, %v2373
        %v2448 = vadd.f32 %v1930, %v2378
        %v2449 = vadd.f32 %v1931, %v2381
        %v2450 = vadd.f32 %v1932, %v2386
        %v2451 = vadd.f32 %v1933, %v2389
        %v2452 = vadd.f32 %v1934, %v2394
        %v2453 = vadd.f32 %v1935, %v2397
        %v2454 = vadd.f32 %v1936, %v2402
        %v2455 = vadd.f32 %v1937, %v2405
        %v2456 = vld [vmem:[%s562 + $0xc] sm:$0xf]
        %v2457 = vld [vmem:[%s562 + $0x10] sm:$0xf]
        %v2458 = vld [vmem:[%s562 + $0x14] sm:$0xf]
        %v2459 = vld [vmem:[%s562 + $0x18] sm:$0xf]
        %v2460 = vld [vmem:[%s562 + $0x1c] sm:$0xf]
        %v2461 = vld [vmem:[%s562 + $0x20] sm:$0xf]
        %v2462 = vld [vmem:[%s562 + $0x24] sm:$0xf]
        %v2463 = vld [vmem:[%s562 + $0x28] sm:$0xf]
        %v2464 = vld [vmem:[%s562 + $0x2c] sm:$0xf]
        %v2465 = vld [vmem:[%s562 + $0x30] sm:$0xf]
        %v2466 = vld [vmem:[%s562 + $0x34] sm:$0xf]
        %v2467 = vld [vmem:[%s562 + $0x38] sm:$0xf]
        %v2468 = vld [vmem:[%s562 + $0x3c] sm:$0xf]
        %v2469 = vld [vmem:[%s562 + $0x40] sm:$0xf]
        %v2470 = vld [vmem:[%s562 + $0x44] sm:$0xf]
        %v2471 = vld [vmem:[%s562 + $0x48] sm:$0xf]
        %v2472 = vld [vmem:[%s562 + $0x4c] sm:$0xf]
        %v2473 = vld [vmem:[%s562 + $0x50] sm:$0xf]
        %v2474 = vld [vmem:[%s562 + $0x54] sm:$0xf]
        %v2475 = vld [vmem:[%s562 + $0x58] sm:$0xf]
        %v2476 = vld [vmem:[%s562 + $0x5c] sm:$0xf]
        %v2477 = vld [vmem:[%s562 + $0x60] sm:$0xf]
        %v2478 = vld [vmem:[%s562 + $0x64] sm:$0xf]
        %v2479 = vld [vmem:[%s562 + $0x68] sm:$0xf]
        %v2480 = vld [vmem:[%s562 + $0x6c] sm:$0xf]
        %v2481 = vld [vmem:[%s562 + $0x70] sm:$0xf]
        %v2482 = vld [vmem:[%s562 + $0x74] sm:$0xf]
        %v2483 = vld [vmem:[%s562 + $0x78] sm:$0xf]
        %v2484 = vld [vmem:[%s562 + $0x7c] sm:$0xf]
        %v2485 = vld [vmem:[%s562 + $0x80] sm:$0xf]
        %v2486 = vld [vmem:[%s562 + $0x84] sm:$0xf]
        %v2487 = vld [vmem:[%s562 + $0x88] sm:$0xf]
        %v2488 = vld [vmem:[%s562 + $0x8c] sm:$0xf]
        %v2489 = vld [vmem:[%s562 + $0x90] sm:$0xf]
        %v2490 = vld [vmem:[%s562 + $0x94] sm:$0xf]
        %v2491 = vld [vmem:[%s562 + $0x98] sm:$0xf]
        %v2492 = vld [vmem:[%s562 + $0x9c] sm:$0xf]
        %v2493 = vld [vmem:[%s562 + $0xa0] sm:$0xf]
        %v2494 = vld [vmem:[%s562 + $0xa4] sm:$0xf]
        %v2495 = vld [vmem:[%s562 + $0xa8] sm:$0xf]
        %v2496 = vld [vmem:[%s562 + $0xac] sm:$0xf]
        %v2497 = vld [vmem:[%s562 + $0xb0] sm:$0xf]
        %v2498 = vld [vmem:[%s562 + $0xb4] sm:$0xf]
        %v2499 = vld [vmem:[%s562 + $0xb8] sm:$0xf]
        %v2500 = vld [vmem:[%s562 + $0xbc] sm:$0xf]
        %v2501 = vld [vmem:[%s562 + $0xc0] sm:$0xf]
        %v2502 = vld [vmem:[%s562 + $0xc4] sm:$0xf]
        %v2503 = vld [vmem:[%s562 + $0xc8] sm:$0xf]
        %v2504 = vld [vmem:[%s562 + $0xcc] sm:$0x1]
        %s2505 = scalar_lea.vmem %s4, 16
        %v2506 = vld [vmem:[%s2505] sm:$0xf]
        %v2556 = vunpack.c.l.b16 %v2456
        %v2557 = vunpack.c.l.b16 %v2457
        %v2558 = vunpack.c.l.b16 %v2458
        %v2559 = vunpack.c.l.b16 %v2459
        %v2560 = vunpack.c.l.b16 %v2460
        %v2561 = vunpack.c.l.b16 %v2461
        %v2562 = vunpack.c.l.b16 %v2462
        %v2563 = vunpack.c.l.b16 %v2463
        %v2564 = vunpack.c.l.b16 %v2464
        %v2565 = vunpack.c.l.b16 %v2465
        %v2566 = vunpack.c.l.b16 %v2466
        %v2567 = vunpack.c.l.b16 %v2467
        %v2568 = vunpack.c.l.b16 %v2468
        %v2569 = vunpack.c.l.b16 %v2469
        %v2570 = vunpack.c.l.b16 %v2470
        %v2571 = vunpack.c.l.b16 %v2471
        %v2572 = vunpack.c.l.b16 %v2472
        %v2573 = vunpack.c.l.b16 %v2473
        %v2574 = vunpack.c.l.b16 %v2474
        %v2575 = vunpack.c.l.b16 %v2475
        %v2576 = vunpack.c.l.b16 %v2476
        %v2577 = vunpack.c.l.b16 %v2477
        %v2578 = vunpack.c.l.b16 %v2478
        %v2579 = vunpack.c.l.b16 %v2479
        %v2580 = vunpack.c.l.b16 %v2480
        %v2581 = vunpack.c.l.b16 %v2481
        %v2582 = vunpack.c.l.b16 %v2482
        %v2583 = vunpack.c.l.b16 %v2483
        %v2584 = vunpack.c.l.b16 %v2484
        %v2585 = vunpack.c.l.b16 %v2485
        %v2586 = vunpack.c.l.b16 %v2486
        %v2587 = vunpack.c.l.b16 %v2487
        %v2588 = vunpack.c.l.b16 %v2488
        %v2589 = vunpack.c.l.b16 %v2489
        %v2590 = vunpack.c.l.b16 %v2490
        %v2591 = vunpack.c.l.b16 %v2491
        %v2592 = vunpack.c.l.b16 %v2492
        %v2593 = vunpack.c.l.b16 %v2493
        %v2594 = vunpack.c.l.b16 %v2494
        %v2595 = vunpack.c.l.b16 %v2495
        %v2596 = vunpack.c.l.b16 %v2496
        %v2597 = vunpack.c.l.b16 %v2497
        %v2598 = vunpack.c.l.b16 %v2498
        %v2599 = vunpack.c.l.b16 %v2499
        %v2600 = vunpack.c.l.b16 %v2500
        %v2601 = vunpack.c.l.b16 %v2501
        %v2602 = vunpack.c.l.b16 %v2502
        %v2603 = vunpack.c.l.b16 %v2503
        %v2604 = vunpack.c.l.b16 %v2504
        %v2605 = vpack.c.b16 %v2557, %v2556
        %v2606 = vpack.c.b16 %v2559, %v2558
        %v2607 = vpack.c.b16 %v2561, %v2560
        %v2608 = vpack.c.b16 %v2563, %v2562
        %v2609 = vpack.c.b16 %v2565, %v2564
        %v2610 = vpack.c.b16 %v2567, %v2566
        %v2611 = vpack.c.b16 %v2569, %v2568
        %v2612 = vpack.c.b16 %v2571, %v2570
        %v2613 = vpack.c.b16 %v2573, %v2572
        %v2614 = vpack.c.b16 %v2575, %v2574
        %v2615 = vpack.c.b16 %v2577, %v2576
        %v2616 = vpack.c.b16 %v2579, %v2578
        %v2617 = vpack.c.b16 %v2581, %v2580
        %v2618 = vpack.c.b16 %v2583, %v2582
        %v2619 = vpack.c.b16 %v2585, %v2584
        %v2620 = vpack.c.b16 %v2587, %v2586
        %v2621 = vpack.c.b16 %v2589, %v2588
        %v2622 = vpack.c.b16 %v2591, %v2590
        %v2623 = vpack.c.b16 %v2593, %v2592
        %v2624 = vpack.c.b16 %v2595, %v2594
        %v2625 = vpack.c.b16 %v2597, %v2596
        %v2626 = vpack.c.b16 %v2599, %v2598
        %v2627 = vpack.c.b16 %v2601, %v2600
        %v2628 = vpack.c.b16 %v2603, %v2602
        %v2629 = vpack.c.b16 %v2604, %v2604
        %v2631 = vshrl.u32 %v2605, 16
        %v2633 = vshll.u32 %v2605, 16
        %v2635 = vrot.slane %v2633, 1
        %v2636 = vor.u32 %v2631, %v2635
        %v2638 = vshll.u32 %v2606, 16
        %v2640 = vrot.slane %v2638, 1
        %v2641 = vsel %vm759, %v2636, %v2640
        %v2642 = vshrl.u32 %v2606, 16
        %v2644 = vor.u32 %v2642, %v2640
        %v2646 = vshll.u32 %v2607, 16
        %v2648 = vrot.slane %v2646, 1
        %v2649 = vsel %vm759, %v2644, %v2648
        %v2650 = vshrl.u32 %v2607, 16
        %v2652 = vor.u32 %v2650, %v2648
        %v2654 = vshll.u32 %v2608, 16
        %v2656 = vrot.slane %v2654, 1
        %v2657 = vsel %vm759, %v2652, %v2656
        %v2658 = vshrl.u32 %v2608, 16
        %v2660 = vor.u32 %v2658, %v2656
        %v2662 = vshll.u32 %v2609, 16
        %v2664 = vrot.slane %v2662, 1
        %v2665 = vsel %vm759, %v2660, %v2664
        %v2666 = vshrl.u32 %v2609, 16
        %v2668 = vor.u32 %v2666, %v2664
        %v2670 = vshll.u32 %v2610, 16
        %v2672 = vrot.slane %v2670, 1
        %v2673 = vsel %vm759, %v2668, %v2672
        %v2674 = vshrl.u32 %v2610, 16
        %v2676 = vor.u32 %v2674, %v2672
        %v2678 = vshll.u32 %v2611, 16
        %v2680 = vrot.slane %v2678, 1
        %v2681 = vsel %vm759, %v2676, %v2680
        %v2682 = vshrl.u32 %v2611, 16
        %v2684 = vor.u32 %v2682, %v2680
        %v2686 = vshll.u32 %v2612, 16
        %v2688 = vrot.slane %v2686, 1
        %v2689 = vsel %vm759, %v2684, %v2688
        %v2690 = vshrl.u32 %v2612, 16
        %v2692 = vor.u32 %v2690, %v2688
        %v2694 = vshll.u32 %v2613, 16
        %v2696 = vrot.slane %v2694, 1
        %v2697 = vsel %vm759, %v2692, %v2696
        %v2698 = vshrl.u32 %v2613, 16
        %v2700 = vor.u32 %v2698, %v2696
        %v2702 = vshll.u32 %v2614, 16
        %v2704 = vrot.slane %v2702, 1
        %v2705 = vsel %vm759, %v2700, %v2704
        %v2706 = vshrl.u32 %v2614, 16
        %v2708 = vor.u32 %v2706, %v2704
        %v2710 = vshll.u32 %v2615, 16
        %v2712 = vrot.slane %v2710, 1
        %v2713 = vsel %vm759, %v2708, %v2712
        %v2714 = vshrl.u32 %v2615, 16
        %v2716 = vor.u32 %v2714, %v2712
        %v2718 = vshll.u32 %v2616, 16
        %v2720 = vrot.slane %v2718, 1
        %v2721 = vsel %vm759, %v2716, %v2720
        %v2722 = vshrl.u32 %v2616, 16
        %v2724 = vor.u32 %v2722, %v2720
        %v2726 = vshll.u32 %v2617, 16
        %v2728 = vrot.slane %v2726, 1
        %v2729 = vsel %vm759, %v2724, %v2728
        %v2730 = vshrl.u32 %v2617, 16
        %v2732 = vor.u32 %v2730, %v2728
        %v2734 = vshll.u32 %v2618, 16
        %v2736 = vrot.slane %v2734, 1
        %v2737 = vsel %vm759, %v2732, %v2736
        %v2738 = vshrl.u32 %v2618, 16
        %v2740 = vor.u32 %v2738, %v2736
        %v2742 = vshll.u32 %v2619, 16
        %v2744 = vrot.slane %v2742, 1
        %v2745 = vsel %vm759, %v2740, %v2744
        %v2746 = vshrl.u32 %v2619, 16
        %v2748 = vor.u32 %v2746, %v2744
        %v2750 = vshll.u32 %v2620, 16
        %v2752 = vrot.slane %v2750, 1
        %v2753 = vsel %vm759, %v2748, %v2752
        %v2754 = vshrl.u32 %v2620, 16
        %v2756 = vor.u32 %v2754, %v2752
        %v2758 = vshll.u32 %v2621, 16
        %v2760 = vrot.slane %v2758, 1
        %v2761 = vsel %vm759, %v2756, %v2760
        %v2762 = vshrl.u32 %v2621, 16
        %v2764 = vor.u32 %v2762, %v2760
        %v2766 = vshll.u32 %v2622, 16
        %v2768 = vrot.slane %v2766, 1
        %v2769 = vsel %vm759, %v2764, %v2768
        %v2770 = vshrl.u32 %v2622, 16
        %v2772 = vor.u32 %v2770, %v2768
        %v2774 = vshll.u32 %v2623, 16
        %v2776 = vrot.slane %v2774, 1
        %v2777 = vsel %vm759, %v2772, %v2776
        %v2778 = vshrl.u32 %v2623, 16
        %v2780 = vor.u32 %v2778, %v2776
        %v2782 = vshll.u32 %v2624, 16
        %v2784 = vrot.slane %v2782, 1
        %v2785 = vsel %vm759, %v2780, %v2784
        %v2786 = vshrl.u32 %v2624, 16
        %v2788 = vor.u32 %v2786, %v2784
        %v2790 = vshll.u32 %v2625, 16
        %v2792 = vrot.slane %v2790, 1
        %v2793 = vsel %vm759, %v2788, %v2792
        %v2794 = vshrl.u32 %v2625, 16
        %v2796 = vor.u32 %v2794, %v2792
        %v2798 = vshll.u32 %v2626, 16
        %v2800 = vrot.slane %v2798, 1
        %v2801 = vsel %vm759, %v2796, %v2800
        %v2802 = vshrl.u32 %v2626, 16
        %v2804 = vor.u32 %v2802, %v2800
        %v2806 = vshll.u32 %v2627, 16
        %v2808 = vrot.slane %v2806, 1
        %v2809 = vsel %vm759, %v2804, %v2808
        %v2810 = vshrl.u32 %v2627, 16
        %v2812 = vor.u32 %v2810, %v2808
        %v2814 = vshll.u32 %v2628, 16
        %v2816 = vrot.slane %v2814, 1
        %v2817 = vsel %vm759, %v2812, %v2816
        %v2818 = vshrl.u32 %v2628, 16
        %v2820 = vor.u32 %v2818, %v2816
        %v2822 = vshll.u32 %v2629, 16
        %v2824 = vrot.slane %v2822, 1
        %v2825 = vsel %vm759, %v2820, %v2824
        %v2827 = vsel %vm956, %v2641, 0
        %v2830 = vsel %vm956, %v2649, 0
        %v2833 = vsel %vm956, %v2657, 0
        %v2836 = vsel %vm956, %v2665, 0
        %v2839 = vsel %vm956, %v2673, 0
        %v2842 = vsel %vm956, %v2681, 0
        %v2845 = vsel %vm956, %v2689, 0
        %v2848 = vsel %vm956, %v2697, 0
        %v2851 = vsel %vm956, %v2705, 0
        %v2854 = vsel %vm956, %v2713, 0
        %v2857 = vsel %vm956, %v2721, 0
        %v2860 = vsel %vm956, %v2729, 0
        %v2863 = vsel %vm956, %v2737, 0
        %v2866 = vsel %vm956, %v2745, 0
        %v2869 = vsel %vm956, %v2753, 0
        %v2872 = vsel %vm956, %v2761, 0
        %v2875 = vsel %vm956, %v2769, 0
        %v2878 = vsel %vm956, %v2777, 0
        %v2881 = vsel %vm956, %v2785, 0
        %v2884 = vsel %vm956, %v2793, 0
        %v2887 = vsel %vm956, %v2801, 0
        %v2890 = vsel %vm956, %v2809, 0
        %v2893 = vsel %vm956, %v2817, 0
        %v2896 = vsel %vm956, %v2825, 0
        %v2899 = vsel %vm1029, %v2506, 0
        %2901 = vmatprep.subr.bf16.mxu0 0
        %2902 = vmatpush1.bf16.msra.mxu0 %v2899
        %2903 = vmatprep.subr.bf16.mxu0 0
        %2904 = vmatpush1.bf16.msra.mxu0 0
        %2905 = vmatprep.subr.bf16.mxu0 0
        %2906 = vmatpush1.bf16.msra.mxu0 0
        %2907 = vmatprep.subr.bf16.mxu0 0
        %2908 = vmatpush1.bf16.msra.mxu0 0
        %2909 = vmatprep.subr.bf16.mxu0 0
        %2910 = vmatpush1.bf16.msra.mxu0 0
        %2911 = vmatprep.subr.bf16.mxu0 0
        %2912 = vmatpush1.bf16.msra.mxu0 0
        %2913 = vmatprep.subr.bf16.mxu0 0
        %2914 = vmatpush1.bf16.msra.mxu0 0
        %2915 = vmatprep.subr.bf16.mxu0 0
        %2916 = vmatpush1.bf16.msra.mxu0 0
        %2917 = vmatprep.subr.bf16.mxu0 0
        %2918 = vmatpush1.bf16.msra.mxu0 0
        %2919 = vmatprep.subr.bf16.mxu0 0
        %2920 = vmatpush1.bf16.msra.mxu0 0
        %2921 = vmatprep.subr.bf16.mxu0 0
        %2922 = vmatpush1.bf16.msra.mxu0 0
        %2923 = vmatprep.subr.bf16.mxu0 0
        %2924 = vmatpush1.bf16.msra.mxu0 0
        %2925 = vmatprep.subr.bf16.mxu0 0
        %2926 = vmatpush1.bf16.msra.mxu0 0
        %2927 = vmatprep.subr.bf16.mxu0 0
        %2928 = vmatpush1.bf16.msra.mxu0 0
        %2929 = vmatprep.subr.bf16.mxu0 0
        %2930 = vmatpush1.bf16.msra.mxu0 0
        %2931 = vmatprep.subr.bf16.mxu0 0
        %2932 = vmatpush1.bf16.msra.mxu0 0
        %2933 = vmatprep.mubr.bf16.mxu0 0
        %2934 = vmatmul.mubr.bf16.gmra.mrb[0].mxu0 %v2827
        %v2935 = vpop.f32.mrb[0].mxu0
        %v2936 = vadd.f32 0.0, %v2935
        %v2937 = vpop.f32.mrb[0].mxu0
        %v2938 = vpop.f32.mrb[0].mxu0
        %v2939 = vadd.f32 0.0, %v2938
        %v2940 = vpop.f32.mrb[0].mxu0
        %2941 = vmatprep.mubr.bf16.mxu0 0
        %2942 = vmatmul.mubr.bf16.gmra.mrb[0].mxu0 %v2830
        %v2943 = vpop.f32.mrb[0].mxu0
        %v2944 = vadd.f32 0.0, %v2943
        %v2945 = vpop.f32.mrb[0].mxu0
        %v2946 = vpop.f32.mrb[0].mxu0
        %v2947 = vadd.f32 0.0, %v2946
        %v2948 = vpop.f32.mrb[0].mxu0
        %2949 = vmatprep.mubr.bf16.mxu0 0
        %2950 = vmatmul.mubr.bf16.gmra.mrb[0].mxu0 %v2833
        %v2951 = vpop.f32.mrb[0].mxu0
        %v2952 = vadd.f32 0.0, %v2951
        %v2953 = vpop.f32.mrb[0].mxu0
        %v2954 = vpop.f32.mrb[0].mxu0
        %v2955 = vadd.f32 0.0, %v2954
        %v2956 = vpop.f32.mrb[0].mxu0
        %2957 = vmatprep.mubr.bf16.mxu0 0
        %2958 = vmatmul.mubr.bf16.gmra.mrb[0].mxu0 %v2836
        %v2959 = vpop.f32.mrb[0].mxu0
        %v2960 = vadd.f32 0.0, %v2959
        %v2961 = vpop.f32.mrb[0].mxu0
        %v2962 = vpop.f32.mrb[0].mxu0
        %v2963 = vadd.f32 0.0, %v2962
        %v2964 = vpop.f32.mrb[0].mxu0
        %2965 = vmatprep.mubr.bf16.mxu0 0
        %2966 = vmatmul.mubr.bf16.gmra.mrb[0].mxu0 %v2839
        %v2967 = vpop.f32.mrb[0].mxu0
        %v2968 = vadd.f32 0.0, %v2967
        %v2969 = vpop.f32.mrb[0].mxu0
        %v2970 = vpop.f32.mrb[0].mxu0
        %v2971 = vadd.f32 0.0, %v2970
        %v2972 = vpop.f32.mrb[0].mxu0
        %2973 = vmatprep.mubr.bf16.mxu0 0
        %2974 = vmatmul.mubr.bf16.gmra.mrb[0].mxu0 %v2842
        %v2975 = vpop.f32.mrb[0].mxu0
        %v2976 = vadd.f32 0.0, %v2975
        %v2977 = vpop.f32.mrb[0].mxu0
        %v2978 = vpop.f32.mrb[0].mxu0
        %v2979 = vadd.f32 0.0, %v2978
        %v2980 = vpop.f32.mrb[0].mxu0
        %2981 = vmatprep.mubr.bf16.mxu0 0
        %2982 = vmatmul.mubr.bf16.gmra.mrb[0].mxu0 %v2845
        %v2983 = vpop.f32.mrb[0].mxu0
        %v2984 = vadd.f32 0.0, %v2983
        %v2985 = vpop.f32.mrb[0].mxu0
        %v2986 = vpop.f32.mrb[0].mxu0
        %v2987 = vadd.f32 0.0, %v2986
        %v2988 = vpop.f32.mrb[0].mxu0
        %2989 = vmatprep.mubr.bf16.mxu0 0
        %2990 = vmatmul.mubr.bf16.gmra.mrb[0].mxu0 %v2848
        %v2991 = vpop.f32.mrb[0].mxu0
        %v2992 = vadd.f32 0.0, %v2991
        %v2993 = vpop.f32.mrb[0].mxu0
        %v2994 = vpop.f32.mrb[0].mxu0
        %v2995 = vadd.f32 0.0, %v2994
        %v2996 = vpop.f32.mrb[0].mxu0
        %2997 = vmatprep.mubr.bf16.mxu0 0
        %2998 = vmatmul.mubr.bf16.gmra.mrb[0].mxu0 %v2851
        %v2999 = vpop.f32.mrb[0].mxu0
        %v3000 = vadd.f32 0.0, %v2999
        %v3001 = vpop.f32.mrb[0].mxu0
        %v3002 = vpop.f32.mrb[0].mxu0
        %v3003 = vadd.f32 0.0, %v3002
        %v3004 = vpop.f32.mrb[0].mxu0
        %3005 = vmatprep.mubr.bf16.mxu0 0
        %3006 = vmatmul.mubr.bf16.gmra.mrb[0].mxu0 %v2854
        %v3007 = vpop.f32.mrb[0].mxu0
        %v3008 = vadd.f32 0.0, %v3007
        %v3009 = vpop.f32.mrb[0].mxu0
        %v3010 = vpop.f32.mrb[0].mxu0
        %v3011 = vadd.f32 0.0, %v3010
        %v3012 = vpop.f32.mrb[0].mxu0
        %3013 = vmatprep.mubr.bf16.mxu0 0
        %3014 = vmatmul.mubr.bf16.gmra.mrb[0].mxu0 %v2857
        %v3015 = vpop.f32.mrb[0].mxu0
        %v3016 = vadd.f32 0.0, %v3015
        %v3017 = vpop.f32.mrb[0].mxu0
        %v3018 = vpop.f32.mrb[0].mxu0
        %v3019 = vadd.f32 0.0, %v3018
        %v3020 = vpop.f32.mrb[0].mxu0
        %3021 = vmatprep.mubr.bf16.mxu0 0
        %3022 = vmatmul.mubr.bf16.gmra.mrb[0].mxu0 %v2860
        %v3023 = vpop.f32.mrb[0].mxu0
        %v3024 = vadd.f32 0.0, %v3023
        %v3025 = vpop.f32.mrb[0].mxu0
        %v3026 = vpop.f32.mrb[0].mxu0
        %v3027 = vadd.f32 0.0, %v3026
        %v3028 = vpop.f32.mrb[0].mxu0
        %3029 = vmatprep.mubr.bf16.mxu0 0
        %3030 = vmatmul.mubr.bf16.gmra.mrb[0].mxu0 %v2863
        %v3031 = vpop.f32.mrb[0].mxu0
        %v3032 = vadd.f32 0.0, %v3031
        %v3033 = vpop.f32.mrb[0].mxu0
        %v3034 = vpop.f32.mrb[0].mxu0
        %v3035 = vadd.f32 0.0, %v3034
        %v3036 = vpop.f32.mrb[0].mxu0
        %3037 = vmatprep.mubr.bf16.mxu0 0
        %3038 = vmatmul.mubr.bf16.gmra.mrb[0].mxu0 %v2866
        %v3039 = vpop.f32.mrb[0].mxu0
        %v3040 = vadd.f32 0.0, %v3039
        %v3041 = vpop.f32.mrb[0].mxu0
        %v3042 = vpop.f32.mrb[0].mxu0
        %v3043 = vadd.f32 0.0, %v3042
        %v3044 = vpop.f32.mrb[0].mxu0
        %3045 = vmatprep.mubr.bf16.mxu0 0
        %3046 = vmatmul.mubr.bf16.gmra.mrb[0].mxu0 %v2869
        %v3047 = vpop.f32.mrb[0].mxu0
        %v3048 = vadd.f32 0.0, %v3047
        %v3049 = vpop.f32.mrb[0].mxu0
        %v3050 = vpop.f32.mrb[0].mxu0
        %v3051 = vadd.f32 0.0, %v3050
        %v3052 = vpop.f32.mrb[0].mxu0
        %3053 = vmatprep.mubr.bf16.mxu0 0
        %3054 = vmatmul.mubr.bf16.gmra.mrb[0].mxu0 %v2872
        %v3055 = vpop.f32.mrb[0].mxu0
        %v3056 = vadd.f32 0.0, %v3055
        %v3057 = vpop.f32.mrb[0].mxu0
        %v3058 = vpop.f32.mrb[0].mxu0
        %v3059 = vadd.f32 0.0, %v3058
        %v3060 = vpop.f32.mrb[0].mxu0
        %3061 = vmatprep.mubr.bf16.mxu0 0
        %3062 = vmatmul.mubr.bf16.gmra.mrb[0].mxu0 %v2875
        %v3063 = vpop.f32.mrb[0].mxu0
        %v3064 = vadd.f32 0.0, %v3063
        %v3065 = vpop.f32.mrb[0].mxu0
        %v3066 = vpop.f32.mrb[0].mxu0
        %v3067 = vadd.f32 0.0, %v3066
        %v3068 = vpop.f32.mrb[0].mxu0
        %3069 = vmatprep.mubr.bf16.mxu0 0
        %3070 = vmatmul.mubr.bf16.gmra.mrb[0].mxu0 %v2878
        %v3071 = vpop.f32.mrb[0].mxu0
        %v3072 = vadd.f32 0.0, %v3071
        %v3073 = vpop.f32.mrb[0].mxu0
        %v3074 = vpop.f32.mrb[0].mxu0
        %v3075 = vadd.f32 0.0, %v3074
        %v3076 = vpop.f32.mrb[0].mxu0
        %3077 = vmatprep.mubr.bf16.mxu0 0
        %3078 = vmatmul.mubr.bf16.gmra.mrb[0].mxu0 %v2881
        %v3079 = vpop.f32.mrb[0].mxu0
        %v3080 = vadd.f32 0.0, %v3079
        %v3081 = vpop.f32.mrb[0].mxu0
        %v3082 = vpop.f32.mrb[0].mxu0
        %v3083 = vadd.f32 0.0, %v3082
        %v3084 = vpop.f32.mrb[0].mxu0
        %3085 = vmatprep.mubr.bf16.mxu0 0
        %3086 = vmatmul.mubr.bf16.gmra.mrb[0].mxu0 %v2884
        %v3087 = vpop.f32.mrb[0].mxu0
        %v3088 = vadd.f32 0.0, %v3087
        %v3089 = vpop.f32.mrb[0].mxu0
        %v3090 = vpop.f32.mrb[0].mxu0
        %v3091 = vadd.f32 0.0, %v3090
        %v3092 = vpop.f32.mrb[0].mxu0
        %3093 = vmatprep.mubr.bf16.mxu0 0
        %3094 = vmatmul.mubr.bf16.gmra.mrb[0].mxu0 %v2887
        %v3095 = vpop.f32.mrb[0].mxu0
        %v3096 = vadd.f32 0.0, %v3095
        %v3097 = vpop.f32.mrb[0].mxu0
        %v3098 = vpop.f32.mrb[0].mxu0
        %v3099 = vadd.f32 0.0, %v3098
        %v3100 = vpop.f32.mrb[0].mxu0
        %3101 = vmatprep.mubr.bf16.mxu0 0
        %3102 = vmatmul.mubr.bf16.gmra.mrb[0].mxu0 %v2890
        %v3103 = vpop.f32.mrb[0].mxu0
        %v3104 = vadd.f32 0.0, %v3103
        %v3105 = vpop.f32.mrb[0].mxu0
        %v3106 = vpop.f32.mrb[0].mxu0
        %v3107 = vadd.f32 0.0, %v3106
        %v3108 = vpop.f32.mrb[0].mxu0
        %3109 = vmatprep.mubr.bf16.mxu0 0
        %3110 = vmatmul.mubr.bf16.gmra.mrb[0].mxu0 %v2893
        %v3111 = vpop.f32.mrb[0].mxu0
        %v3112 = vadd.f32 0.0, %v3111
        %v3113 = vpop.f32.mrb[0].mxu0
        %v3114 = vpop.f32.mrb[0].mxu0
        %v3115 = vadd.f32 0.0, %v3114
        %v3116 = vpop.f32.mrb[0].mxu0
        %3117 = vmatprep.mubr.bf16.mxu0 0
        %3118 = vmatmul.mubr.bf16.gmra.mrb[0].mxu0 %v2896
        %v3119 = vpop.f32.mrb[0].mxu0
        %v3120 = vadd.f32 0.0, %v3119
        %v3121 = vpop.f32.mrb[0].mxu0
        %v3122 = vpop.f32.mrb[0].mxu0
        %v3123 = vadd.f32 0.0, %v3122
        %v3124 = vpop.f32.mrb[0].mxu0
        %3125 = vdwg.mxu0
        %v3126 = vadd.f32 %v2408, %v2936
        %v3127 = vadd.f32 %v2409, %v2939
        %v3128 = vadd.f32 %v2410, %v2944
        %v3129 = vadd.f32 %v2411, %v2947
        %v3130 = vadd.f32 %v2412, %v2952
        %v3131 = vadd.f32 %v2413, %v2955
        %v3132 = vadd.f32 %v2414, %v2960
        %v3133 = vadd.f32 %v2415, %v2963
        %v3134 = vadd.f32 %v2416, %v2968
        %v3135 = vadd.f32 %v2417, %v2971
        %v3136 = vadd.f32 %v2418, %v2976
        %v3137 = vadd.f32 %v2419, %v2979
        %v3138 = vadd.f32 %v2420, %v2984
        %v3139 = vadd.f32 %v2421, %v2987
        %v3140 = vadd.f32 %v2422, %v2992
        %v3141 = vadd.f32 %v2423, %v2995
        %v3142 = vadd.f32 %v2424, %v3000
        %v3143 = vadd.f32 %v2425, %v3003
        %v3144 = vadd.f32 %v2426, %v3008
        %v3145 = vadd.f32 %v2427, %v3011
        %v3146 = vadd.f32 %v2428, %v3016
        %v3147 = vadd.f32 %v2429, %v3019
        %v3148 = vadd.f32 %v2430, %v3024
        %v3149 = vadd.f32 %v2431, %v3027
        %v3150 = vadd.f32 %v2432, %v3032
        %v3151 = vadd.f32 %v2433, %v3035
        %v3152 = vadd.f32 %v2434, %v3040
        %v3153 = vadd.f32 %v2435, %v3043
        %v3154 = vadd.f32 %v2436, %v3048
        %v3155 = vadd.f32 %v2437, %v3051
        %v3156 = vadd.f32 %v2438, %v3056
        %v3157 = vadd.f32 %v2439, %v3059
        %v3158 = vadd.f32 %v2440, %v3064
        %v3159 = vadd.f32 %v2441, %v3067
        %v3160 = vadd.f32 %v2442, %v3072
        %v3161 = vadd.f32 %v2443, %v3075
        %v3162 = vadd.f32 %v2444, %v3080
        %v3163 = vadd.f32 %v2445, %v3083
        %v3164 = vadd.f32 %v2446, %v3088
        %v3165 = vadd.f32 %v2447, %v3091
        %v3166 = vadd.f32 %v2448, %v3096
        %v3167 = vadd.f32 %v2449, %v3099
        %v3168 = vadd.f32 %v2450, %v3104
        %v3169 = vadd.f32 %v2451, %v3107
        %v3170 = vadd.f32 %v2452, %v3112
        %v3171 = vadd.f32 %v2453, %v3115
        %v3172 = vadd.f32 %v2454, %v3120
        %v3173 = vadd.f32 %v2455, %v3123
        %v3174 = vld [vmem:[%s562 + $0xc] sm:$0xe]
        %s3175 = scalar_lea.vmem %s4, 20
        %v3176 = vld [vmem:[%s3175] sm:$0xf]
        %v3178 = vunpack.c.l.b16 %v3174
        %v3179 = vpack.c.b16 %v2557, %v3178
        %v3180 = vrot.slane %v3179, 1
        %v3181 = vrot.slane %v2606, 1
        %v3182 = vsel %vm1540, %v3180, %v3181
        %v3183 = vrot.slane %v2607, 1
        %v3184 = vsel %vm1540, %v3181, %v3183
        %v3185 = vrot.slane %v2608, 1
        %v3186 = vsel %vm1540, %v3183, %v3185
        %v3187 = vrot.slane %v2609, 1
        %v3188 = vsel %vm1540, %v3185, %v3187
        %v3189 = vrot.slane %v2610, 1
        %v3190 = vsel %vm1540, %v3187, %v3189
        %v3191 = vrot.slane %v2611, 1
        %v3192 = vsel %vm1540, %v3189, %v3191
        %v3193 = vrot.slane %v2612, 1
        %v3194 = vsel %vm1540, %v3191, %v3193
        %v3195 = vrot.slane %v2613, 1
        %v3196 = vsel %vm1540, %v3193, %v3195
        %v3197 = vrot.slane %v2614, 1
        %v3198 = vsel %vm1540, %v3195, %v3197
        %v3199 = vrot.slane %v2615, 1
        %v3200 = vsel %vm1540, %v3197, %v3199
        %v3201 = vrot.slane %v2616, 1
        %v3202 = vsel %vm1540, %v3199, %v3201
        %v3203 = vrot.slane %v2617, 1
        %v3204 = vsel %vm1540, %v3201, %v3203
        %v3205 = vrot.slane %v2618, 1
        %v3206 = vsel %vm1540, %v3203, %v3205
        %v3207 = vrot.slane %v2619, 1
        %v3208 = vsel %vm1540, %v3205, %v3207
        %v3209 = vrot.slane %v2620, 1
        %v3210 = vsel %vm1540, %v3207, %v3209
        %v3211 = vrot.slane %v2621, 1
        %v3212 = vsel %vm1540, %v3209, %v3211
        %v3213 = vrot.slane %v2622, 1
        %v3214 = vsel %vm1540, %v3211, %v3213
        %v3215 = vrot.slane %v2623, 1
        %v3216 = vsel %vm1540, %v3213, %v3215
        %v3217 = vrot.slane %v2624, 1
        %v3218 = vsel %vm1540, %v3215, %v3217
        %v3219 = vrot.slane %v2625, 1
        %v3220 = vsel %vm1540, %v3217, %v3219
        %v3221 = vrot.slane %v2626, 1
        %v3222 = vsel %vm1540, %v3219, %v3221
        %v3223 = vrot.slane %v2627, 1
        %v3224 = vsel %vm1540, %v3221, %v3223
        %v3225 = vrot.slane %v2628, 1
        %v3226 = vsel %vm1540, %v3223, %v3225
        %v3227 = vrot.slane %v2629, 1
        %v3228 = vsel %vm1540, %v3225, %v3227
        %v3230 = vsel %vm956, %v3182, 0
        %v3233 = vsel %vm956, %v3184, 0
        %v3236 = vsel %vm956, %v3186, 0
        %v3239 = vsel %vm956, %v3188, 0
        %v3242 = vsel %vm956, %v3190, 0
        %v3245 = vsel %vm956, %v3192, 0
        %v3248 = vsel %vm956, %v3194, 0
        %v3251 = vsel %vm956, %v3196, 0
        %v3254 = vsel %vm956, %v3198, 0
        %v3257 = vsel %vm956, %v3200, 0
        %v3260 = vsel %vm956, %v3202, 0
        %v3263 = vsel %vm956, %v3204, 0
        %v3266 = vsel %vm956, %v3206, 0
        %v3269 = vsel %vm956, %v3208, 0
        %v3272 = vsel %vm956, %v3210, 0
        %v3275 = vsel %vm956, %v3212, 0
        %v3278 = vsel %vm956, %v3214, 0
        %v3281 = vsel %vm956, %v3216, 0
        %v3284 = vsel %vm956, %v3218, 0
        %v3287 = vsel %vm956, %v3220, 0
        %v3290 = vsel %vm956, %v3222, 0
        %v3293 = vsel %vm956, %v3224, 0
        %v3296 = vsel %vm956, %v3226, 0
        %v3299 = vsel %vm956, %v3228, 0
        %v3302 = vsel %vm1029, %v3176, 0
        %3304 = vmatprep.subr.bf16.mxu0 0
        %3305 = vmatpush1.bf16.msra.mxu0 %v3302
        %3306 = vmatprep.subr.bf16.mxu0 0
        %3307 = vmatpush1.bf16.msra.mxu0 0
        %3308 = vmatprep.subr.bf16.mxu0 0
        %3309 = vmatpush1.bf16.msra.mxu0 0
        %3310 = vmatprep.subr.bf16.mxu0 0
        %3311 = vmatpush1.bf16.msra.mxu0 0
        %3312 = vmatprep.subr.bf16.mxu0 0
        %3313 = vmatpush1.bf16.msra.mxu0 0
        %3314 = vmatprep.subr.bf16.mxu0 0
        %3315 = vmatpush1.bf16.msra.mxu0 0
        %3316 = vmatprep.subr.bf16.mxu0 0
        %3317 = vmatpush1.bf16.msra.mxu0 0
        %3318 = vmatprep.subr.bf16.mxu0 0
        %3319 = vmatpush1.bf16.msra.mxu0 0
        %3320 = vmatprep.subr.bf16.mxu0 0
        %3321 = vmatpush1.bf16.msra.mxu0 0
        %3322 = vmatprep.subr.bf16.mxu0 0
        %3323 = vmatpush1.bf16.msra.mxu0 0
        %3324 = vmatprep.subr.bf16.mxu0 0
        %3325 = vmatpush1.bf16.msra.mxu0 0
        %3326 = vmatprep.subr.bf16.mxu0 0
        %3327 = vmatpush1.bf16.msra.mxu0 0
        %3328 = vmatprep.subr.bf16.mxu0 0
        %3329 = vmatpush1.bf16.msra.mxu0 0
        %3330 = vmatprep.subr.bf16.mxu0 0
        %3331 = vmatpush1.bf16.msra.mxu0 0
        %3332 = vmatprep.subr.bf16.mxu0 0
        %3333 = vmatpush1.bf16.msra.mxu0 0
        %3334 = vmatprep.subr.bf16.mxu0 0
        %3335 = vmatpush1.bf16.msra.mxu0 0
        %3336 = vmatprep.mubr.bf16.mxu0 0
        %3337 = vmatmul.mubr.bf16.gmra.mrb[0].mxu0 %v3230
        %v3338 = vpop.f32.mrb[0].mxu0
        %v3339 = vadd.f32 0.0, %v3338
        %v3340 = vpop.f32.mrb[0].mxu0
        %v3341 = vpop.f32.mrb[0].mxu0
        %v3342 = vadd.f32 0.0, %v3341
        %v3343 = vpop.f32.mrb[0].mxu0
        %3344 = vmatprep.mubr.bf16.mxu0 0
        %3345 = vmatmul.mubr.bf16.gmra.mrb[0].mxu0 %v3233
        %v3346 = vpop.f32.mrb[0].mxu0
        %v3347 = vadd.f32 0.0, %v3346
        %v3348 = vpop.f32.mrb[0].mxu0
        %v3349 = vpop.f32.mrb[0].mxu0
        %v3350 = vadd.f32 0.0, %v3349
        %v3351 = vpop.f32.mrb[0].mxu0
        %3352 = vmatprep.mubr.bf16.mxu0 0
        %3353 = vmatmul.mubr.bf16.gmra.mrb[0].mxu0 %v3236
        %v3354 = vpop.f32.mrb[0].mxu0
        %v3355 = vadd.f32 0.0, %v3354
        %v3356 = vpop.f32.mrb[0].mxu0
        %v3357 = vpop.f32.mrb[0].mxu0
        %v3358 = vadd.f32 0.0, %v3357
        %v3359 = vpop.f32.mrb[0].mxu0
        %3360 = vmatprep.mubr.bf16.mxu0 0
        %3361 = vmatmul.mubr.bf16.gmra.mrb[0].mxu0 %v3239
        %v3362 = vpop.f32.mrb[0].mxu0
        %v3363 = vadd.f32 0.0, %v3362
        %v3364 = vpop.f32.mrb[0].mxu0
        %v3365 = vpop.f32.mrb[0].mxu0
        %v3366 = vadd.f32 0.0, %v3365
        %v3367 = vpop.f32.mrb[0].mxu0
        %3368 = vmatprep.mubr.bf16.mxu0 0
        %3369 = vmatmul.mubr.bf16.gmra.mrb[0].mxu0 %v3242
        %v3370 = vpop.f32.mrb[0].mxu0
        %v3371 = vadd.f32 0.0, %v3370
        %v3372 = vpop.f32.mrb[0].mxu0
        %v3373 = vpop.f32.mrb[0].mxu0
        %v3374 = vadd.f32 0.0, %v3373
        %v3375 = vpop.f32.mrb[0].mxu0
        %3376 = vmatprep.mubr.bf16.mxu0 0
        %3377 = vmatmul.mubr.bf16.gmra.mrb[0].mxu0 %v3245
        %v3378 = vpop.f32.mrb[0].mxu0
        %v3379 = vadd.f32 0.0, %v3378
        %v3380 = vpop.f32.mrb[0].mxu0
        %v3381 = vpop.f32.mrb[0].mxu0
        %v3382 = vadd.f32 0.0, %v3381
        %v3383 = vpop.f32.mrb[0].mxu0
        %3384 = vmatprep.mubr.bf16.mxu0 0
        %3385 = vmatmul.mubr.bf16.gmra.mrb[0].mxu0 %v3248
        %v3386 = vpop.f32.mrb[0].mxu0
        %v3387 = vadd.f32 0.0, %v3386
        %v3388 = vpop.f32.mrb[0].mxu0
        %v3389 = vpop.f32.mrb[0].mxu0
        %v3390 = vadd.f32 0.0, %v3389
        %v3391 = vpop.f32.mrb[0].mxu0
        %3392 = vmatprep.mubr.bf16.mxu0 0
        %3393 = vmatmul.mubr.bf16.gmra.mrb[0].mxu0 %v3251
        %v3394 = vpop.f32.mrb[0].mxu0
        %v3395 = vadd.f32 0.0, %v3394
        %v3396 = vpop.f32.mrb[0].mxu0
        %v3397 = vpop.f32.mrb[0].mxu0
        %v3398 = vadd.f32 0.0, %v3397
        %v3399 = vpop.f32.mrb[0].mxu0
        %3400 = vmatprep.mubr.bf16.mxu0 0
        %3401 = vmatmul.mubr.bf16.gmra.mrb[0].mxu0 %v3254
        %v3402 = vpop.f32.mrb[0].mxu0
        %v3403 = vadd.f32 0.0, %v3402
        %v3404 = vpop.f32.mrb[0].mxu0
        %v3405 = vpop.f32.mrb[0].mxu0
        %v3406 = vadd.f32 0.0, %v3405
        %v3407 = vpop.f32.mrb[0].mxu0
        %3408 = vmatprep.mubr.bf16.mxu0 0
        %3409 = vmatmul.mubr.bf16.gmra.mrb[0].mxu0 %v3257
        %v3410 = vpop.f32.mrb[0].mxu0
        %v3411 = vadd.f32 0.0, %v3410
        %v3412 = vpop.f32.mrb[0].mxu0
        %v3413 = vpop.f32.mrb[0].mxu0
        %v3414 = vadd.f32 0.0, %v3413
        %v3415 = vpop.f32.mrb[0].mxu0
        %3416 = vmatprep.mubr.bf16.mxu0 0
        %3417 = vmatmul.mubr.bf16.gmra.mrb[0].mxu0 %v3260
        %v3418 = vpop.f32.mrb[0].mxu0
        %v3419 = vadd.f32 0.0, %v3418
        %v3420 = vpop.f32.mrb[0].mxu0
        %v3421 = vpop.f32.mrb[0].mxu0
        %v3422 = vadd.f32 0.0, %v3421
        %v3423 = vpop.f32.mrb[0].mxu0
        %3424 = vmatprep.mubr.bf16.mxu0 0
        %3425 = vmatmul.mubr.bf16.gmra.mrb[0].mxu0 %v3263
        %v3426 = vpop.f32.mrb[0].mxu0
        %v3427 = vadd.f32 0.0, %v3426
        %v3428 = vpop.f32.mrb[0].mxu0
        %v3429 = vpop.f32.mrb[0].mxu0
        %v3430 = vadd.f32 0.0, %v3429
        %v3431 = vpop.f32.mrb[0].mxu0
        %3432 = vmatprep.mubr.bf16.mxu0 0
        %3433 = vmatmul.mubr.bf16.gmra.mrb[0].mxu0 %v3266
        %v3434 = vpop.f32.mrb[0].mxu0
        %v3435 = vadd.f32 0.0, %v3434
        %v3436 = vpop.f32.mrb[0].mxu0
        %v3437 = vpop.f32.mrb[0].mxu0
        %v3438 = vadd.f32 0.0, %v3437
        %v3439 = vpop.f32.mrb[0].mxu0
        %3440 = vmatprep.mubr.bf16.mxu0 0
        %3441 = vmatmul.mubr.bf16.gmra.mrb[0].mxu0 %v3269
        %v3442 = vpop.f32.mrb[0].mxu0
        %v3443 = vadd.f32 0.0, %v3442
        %v3444 = vpop.f32.mrb[0].mxu0
        %v3445 = vpop.f32.mrb[0].mxu0
        %v3446 = vadd.f32 0.0, %v3445
        %v3447 = vpop.f32.mrb[0].mxu0
        %3448 = vmatprep.mubr.bf16.mxu0 0
        %3449 = vmatmul.mubr.bf16.gmra.mrb[0].mxu0 %v3272
        %v3450 = vpop.f32.mrb[0].mxu0
        %v3451 = vadd.f32 0.0, %v3450
        %v3452 = vpop.f32.mrb[0].mxu0
        %v3453 = vpop.f32.mrb[0].mxu0
        %v3454 = vadd.f32 0.0, %v3453
        %v3455 = vpop.f32.mrb[0].mxu0
        %3456 = vmatprep.mubr.bf16.mxu0 0
        %3457 = vmatmul.mubr.bf16.gmra.mrb[0].mxu0 %v3275
        %v3458 = vpop.f32.mrb[0].mxu0
        %v3459 = vadd.f32 0.0, %v3458
        %v3460 = vpop.f32.mrb[0].mxu0
        %v3461 = vpop.f32.mrb[0].mxu0
        %v3462 = vadd.f32 0.0, %v3461
        %v3463 = vpop.f32.mrb[0].mxu0
        %3464 = vmatprep.mubr.bf16.mxu0 0
        %3465 = vmatmul.mubr.bf16.gmra.mrb[0].mxu0 %v3278
        %v3466 = vpop.f32.mrb[0].mxu0
        %v3467 = vadd.f32 0.0, %v3466
        %v3468 = vpop.f32.mrb[0].mxu0
        %v3469 = vpop.f32.mrb[0].mxu0
        %v3470 = vadd.f32 0.0, %v3469
        %v3471 = vpop.f32.mrb[0].mxu0
        %3472 = vmatprep.mubr.bf16.mxu0 0
        %3473 = vmatmul.mubr.bf16.gmra.mrb[0].mxu0 %v3281
        %v3474 = vpop.f32.mrb[0].mxu0
        %v3475 = vadd.f32 0.0, %v3474
        %v3476 = vpop.f32.mrb[0].mxu0
        %v3477 = vpop.f32.mrb[0].mxu0
        %v3478 = vadd.f32 0.0, %v3477
        %v3479 = vpop.f32.mrb[0].mxu0
        %3480 = vmatprep.mubr.bf16.mxu0 0
        %3481 = vmatmul.mubr.bf16.gmra.mrb[0].mxu0 %v3284
        %v3482 = vpop.f32.mrb[0].mxu0
        %v3483 = vadd.f32 0.0, %v3482
        %v3484 = vpop.f32.mrb[0].mxu0
        %v3485 = vpop.f32.mrb[0].mxu0
        %v3486 = vadd.f32 0.0, %v3485
        %v3487 = vpop.f32.mrb[0].mxu0
        %3488 = vmatprep.mubr.bf16.mxu0 0
        %3489 = vmatmul.mubr.bf16.gmra.mrb[0].mxu0 %v3287
        %v3490 = vpop.f32.mrb[0].mxu0
        %v3491 = vadd.f32 0.0, %v3490
        %v3492 = vpop.f32.mrb[0].mxu0
        %v3493 = vpop.f32.mrb[0].mxu0
        %v3494 = vadd.f32 0.0, %v3493
        %v3495 = vpop.f32.mrb[0].mxu0
        %3496 = vmatprep.mubr.bf16.mxu0 0
        %3497 = vmatmul.mubr.bf16.gmra.mrb[0].mxu0 %v3290
        %v3498 = vpop.f32.mrb[0].mxu0
        %v3499 = vadd.f32 0.0, %v3498
        %v3500 = vpop.f32.mrb[0].mxu0
        %v3501 = vpop.f32.mrb[0].mxu0
        %v3502 = vadd.f32 0.0, %v3501
        %v3503 = vpop.f32.mrb[0].mxu0
        %3504 = vmatprep.mubr.bf16.mxu0 0
        %3505 = vmatmul.mubr.bf16.gmra.mrb[0].mxu0 %v3293
        %v3506 = vpop.f32.mrb[0].mxu0
        %v3507 = vadd.f32 0.0, %v3506
        %v3508 = vpop.f32.mrb[0].mxu0
        %v3509 = vpop.f32.mrb[0].mxu0
        %v3510 = vadd.f32 0.0, %v3509
        %v3511 = vpop.f32.mrb[0].mxu0
        %3512 = vmatprep.mubr.bf16.mxu0 0
        %3513 = vmatmul.mubr.bf16.gmra.mrb[0].mxu0 %v3296
        %v3514 = vpop.f32.mrb[0].mxu0
        %v3515 = vadd.f32 0.0, %v3514
        %v3516 = vpop.f32.mrb[0].mxu0
        %v3517 = vpop.f32.mrb[0].mxu0
        %v3518 = vadd.f32 0.0, %v3517
        %v3519 = vpop.f32.mrb[0].mxu0
        %3520 = vmatprep.mubr.bf16.mxu0 0
        %3521 = vmatmul.mubr.bf16.gmra.mrb[0].mxu0 %v3299
        %v3522 = vpop.f32.mrb[0].mxu0
        %v3523 = vadd.f32 0.0, %v3522
        %v3524 = vpop.f32.mrb[0].mxu0
        %v3525 = vpop.f32.mrb[0].mxu0
        %v3526 = vadd.f32 0.0, %v3525
        %v3527 = vpop.f32.mrb[0].mxu0
        %3528 = vdwg.mxu0
        %v3529 = vadd.f32 %v3126, %v3339
        %v3530 = vadd.f32 %v3127, %v3342
        %v3531 = vadd.f32 %v3128, %v3347
        %v3532 = vadd.f32 %v3129, %v3350
        %v3533 = vadd.f32 %v3130, %v3355
        %v3534 = vadd.f32 %v3131, %v3358
        %v3535 = vadd.f32 %v3132, %v3363
        %v3536 = vadd.f32 %v3133, %v3366
        %v3537 = vadd.f32 %v3134, %v3371
        %v3538 = vadd.f32 %v3135, %v3374
        %v3539 = vadd.f32 %v3136, %v3379
        %v3540 = vadd.f32 %v3137, %v3382
        %v3541 = vadd.f32 %v3138, %v3387
        %v3542 = vadd.f32 %v3139, %v3390
        %v3543 = vadd.f32 %v3140, %v3395
        %v3544 = vadd.f32 %v3141, %v3398
        %v3545 = vadd.f32 %v3142, %v3403
        %v3546 = vadd.f32 %v3143, %v3406
        %v3547 = vadd.f32 %v3144, %v3411
        %v3548 = vadd.f32 %v3145, %v3414
        %v3549 = vadd.f32 %v3146, %v3419
        %v3550 = vadd.f32 %v3147, %v3422
        %v3551 = vadd.f32 %v3148, %v3427
        %v3552 = vadd.f32 %v3149, %v3430
        %v3553 = vadd.f32 %v3150, %v3435
        %v3554 = vadd.f32 %v3151, %v3438
        %v3555 = vadd.f32 %v3152, %v3443
        %v3556 = vadd.f32 %v3153, %v3446
        %v3557 = vadd.f32 %v3154, %v3451
        %v3558 = vadd.f32 %v3155, %v3454
        %v3559 = vadd.f32 %v3156, %v3459
        %v3560 = vadd.f32 %v3157, %v3462
        %v3561 = vadd.f32 %v3158, %v3467
        %v3562 = vadd.f32 %v3159, %v3470
        %v3563 = vadd.f32 %v3160, %v3475
        %v3564 = vadd.f32 %v3161, %v3478
        %v3565 = vadd.f32 %v3162, %v3483
        %v3566 = vadd.f32 %v3163, %v3486
        %v3567 = vadd.f32 %v3164, %v3491
        %v3568 = vadd.f32 %v3165, %v3494
        %v3569 = vadd.f32 %v3166, %v3499
        %v3570 = vadd.f32 %v3167, %v3502
        %v3571 = vadd.f32 %v3168, %v3507
        %v3572 = vadd.f32 %v3169, %v3510
        %v3573 = vadd.f32 %v3170, %v3515
        %v3574 = vadd.f32 %v3171, %v3518
        %v3575 = vadd.f32 %v3172, %v3523
        %v3576 = vadd.f32 %v3173, %v3526
        %v3577 = vld [vmem:[%s562 + $0x18] sm:$0xf]
        %v3578 = vld [vmem:[%s562 + $0x1c] sm:$0xf]
        %v3579 = vld [vmem:[%s562 + $0x20] sm:$0xf]
        %v3580 = vld [vmem:[%s562 + $0x24] sm:$0xf]
        %v3581 = vld [vmem:[%s562 + $0x28] sm:$0xf]
        %v3582 = vld [vmem:[%s562 + $0x2c] sm:$0xf]
        %v3583 = vld [vmem:[%s562 + $0x30] sm:$0xf]
        %v3584 = vld [vmem:[%s562 + $0x34] sm:$0xf]
        %v3585 = vld [vmem:[%s562 + $0x38] sm:$0xf]
        %v3586 = vld [vmem:[%s562 + $0x3c] sm:$0xf]
        %v3587 = vld [vmem:[%s562 + $0x40] sm:$0xf]
        %v3588 = vld [vmem:[%s562 + $0x44] sm:$0xf]
        %v3589 = vld [vmem:[%s562 + $0x48] sm:$0xf]
        %v3590 = vld [vmem:[%s562 + $0x4c] sm:$0xf]
        %v3591 = vld [vmem:[%s562 + $0x50] sm:$0xf]
        %v3592 = vld [vmem:[%s562 + $0x54] sm:$0xf]
        %v3593 = vld [vmem:[%s562 + $0x58] sm:$0xf]
        %v3594 = vld [vmem:[%s562 + $0x5c] sm:$0xf]
        %v3595 = vld [vmem:[%s562 + $0x60] sm:$0xf]
        %v3596 = vld [vmem:[%s562 + $0x64] sm:$0xf]
        %v3597 = vld [vmem:[%s562 + $0x68] sm:$0xf]
        %v3598 = vld [vmem:[%s562 + $0x6c] sm:$0xf]
        %v3599 = vld [vmem:[%s562 + $0x70] sm:$0xf]
        %v3600 = vld [vmem:[%s562 + $0x74] sm:$0xf]
        %v3601 = vld [vmem:[%s562 + $0x78] sm:$0xf]
        %v3602 = vld [vmem:[%s562 + $0x7c] sm:$0xf]
        %v3603 = vld [vmem:[%s562 + $0x80] sm:$0xf]
        %v3604 = vld [vmem:[%s562 + $0x84] sm:$0xf]
        %v3605 = vld [vmem:[%s562 + $0x88] sm:$0xf]
        %v3606 = vld [vmem:[%s562 + $0x8c] sm:$0xf]
        %v3607 = vld [vmem:[%s562 + $0x90] sm:$0xf]
        %v3608 = vld [vmem:[%s562 + $0x94] sm:$0xf]
        %v3609 = vld [vmem:[%s562 + $0x98] sm:$0xf]
        %v3610 = vld [vmem:[%s562 + $0x9c] sm:$0xf]
        %v3611 = vld [vmem:[%s562 + $0xa0] sm:$0xf]
        %v3612 = vld [vmem:[%s562 + $0xa4] sm:$0xf]
        %v3613 = vld [vmem:[%s562 + $0xa8] sm:$0xf]
        %v3614 = vld [vmem:[%s562 + $0xac] sm:$0xf]
        %v3615 = vld [vmem:[%s562 + $0xb0] sm:$0xf]
        %v3616 = vld [vmem:[%s562 + $0xb4] sm:$0xf]
        %v3617 = vld [vmem:[%s562 + $0xb8] sm:$0xf]
        %v3618 = vld [vmem:[%s562 + $0xbc] sm:$0xf]
        %v3619 = vld [vmem:[%s562 + $0xc0] sm:$0xf]
        %v3620 = vld [vmem:[%s562 + $0xc4] sm:$0xf]
        %v3621 = vld [vmem:[%s562 + $0xc8] sm:$0xf]
        %v3622 = vld [vmem:[%s562 + $0xcc] sm:$0xf]
        %v3623 = vld [vmem:[%s562 + $0xd0] sm:$0xf]
        %v3624 = vld [vmem:[%s562 + $0xd4] sm:$0xf]
        %s3625 = scalar_lea.vmem %s4, 24
        %v3626 = vld [vmem:[%s3625] sm:$0xf]
        %v3675 = vunpack.c.l.b16 %v3577
        %v3676 = vunpack.c.l.b16 %v3578
        %v3677 = vunpack.c.l.b16 %v3579
        %v3678 = vunpack.c.l.b16 %v3580
        %v3679 = vunpack.c.l.b16 %v3581
        %v3680 = vunpack.c.l.b16 %v3582
        %v3681 = vunpack.c.l.b16 %v3583
        %v3682 = vunpack.c.l.b16 %v3584
        %v3683 = vunpack.c.l.b16 %v3585
        %v3684 = vunpack.c.l.b16 %v3586
        %v3685 = vunpack.c.l.b16 %v3587
        %v3686 = vunpack.c.l.b16 %v3588
        %v3687 = vunpack.c.l.b16 %v3589
        %v3688 = vunpack.c.l.b16 %v3590
        %v3689 = vunpack.c.l.b16 %v3591
        %v3690 = vunpack.c.l.b16 %v3592
        %v3691 = vunpack.c.l.b16 %v3593
        %v3692 = vunpack.c.l.b16 %v3594
        %v3693 = vunpack.c.l.b16 %v3595
        %v3694 = vunpack.c.l.b16 %v3596
        %v3695 = vunpack.c.l.b16 %v3597
        %v3696 = vunpack.c.l.b16 %v3598
        %v3697 = vunpack.c.l.b16 %v3599
        %v3698 = vunpack.c.l.b16 %v3600
        %v3699 = vunpack.c.l.b16 %v3601
        %v3700 = vunpack.c.l.b16 %v3602
        %v3701 = vunpack.c.l.b16 %v3603
        %v3702 = vunpack.c.l.b16 %v3604
        %v3703 = vunpack.c.l.b16 %v3605
        %v3704 = vunpack.c.l.b16 %v3606
        %v3705 = vunpack.c.l.b16 %v3607
        %v3706 = vunpack.c.l.b16 %v3608
        %v3707 = vunpack.c.l.b16 %v3609
        %v3708 = vunpack.c.l.b16 %v3610
        %v3709 = vunpack.c.l.b16 %v3611
        %v3710 = vunpack.c.l.b16 %v3612
        %v3711 = vunpack.c.l.b16 %v3613
        %v3712 = vunpack.c.l.b16 %v3614
        %v3713 = vunpack.c.l.b16 %v3615
        %v3714 = vunpack.c.l.b16 %v3616
        %v3715 = vunpack.c.l.b16 %v3617
        %v3716 = vunpack.c.l.b16 %v3618
        %v3717 = vunpack.c.l.b16 %v3619
        %v3718 = vunpack.c.l.b16 %v3620
        %v3719 = vunpack.c.l.b16 %v3621
        %v3720 = vunpack.c.l.b16 %v3622
        %v3721 = vunpack.c.l.b16 %v3623
        %v3722 = vunpack.c.l.b16 %v3624
        %v3723 = vpack.c.b16 %v3676, %v3675
        %v3724 = vpack.c.b16 %v3678, %v3677
        %v3725 = vpack.c.b16 %v3680, %v3679
        %v3726 = vpack.c.b16 %v3682, %v3681
        %v3727 = vpack.c.b16 %v3684, %v3683
        %v3728 = vpack.c.b16 %v3686, %v3685
        %v3729 = vpack.c.b16 %v3688, %v3687
        %v3730 = vpack.c.b16 %v3690, %v3689
        %v3731 = vpack.c.b16 %v3692, %v3691
        %v3732 = vpack.c.b16 %v3694, %v3693
        %v3733 = vpack.c.b16 %v3696, %v3695
        %v3734 = vpack.c.b16 %v3698, %v3697
        %v3735 = vpack.c.b16 %v3700, %v3699
        %v3736 = vpack.c.b16 %v3702, %v3701
        %v3737 = vpack.c.b16 %v3704, %v3703
        %v3738 = vpack.c.b16 %v3706, %v3705
        %v3739 = vpack.c.b16 %v3708, %v3707
        %v3740 = vpack.c.b16 %v3710, %v3709
        %v3741 = vpack.c.b16 %v3712, %v3711
        %v3742 = vpack.c.b16 %v3714, %v3713
        %v3743 = vpack.c.b16 %v3716, %v3715
        %v3744 = vpack.c.b16 %v3718, %v3717
        %v3745 = vpack.c.b16 %v3720, %v3719
        %v3746 = vpack.c.b16 %v3722, %v3721
        %v3748 = vsel %vm956, %v3723, 0
        %v3751 = vsel %vm956, %v3724, 0
        %v3754 = vsel %vm956, %v3725, 0
        %v3757 = vsel %vm956, %v3726, 0
        %v3760 = vsel %vm956, %v3727, 0
        %v3763 = vsel %vm956, %v3728, 0
        %v3766 = vsel %vm956, %v3729, 0
        %v3769 = vsel %vm956, %v3730, 0
        %v3772 = vsel %vm956, %v3731, 0
        %v3775 = vsel %vm956, %v3732, 0
        %v3778 = vsel %vm956, %v3733, 0
        %v3781 = vsel %vm956, %v3734, 0
        %v3784 = vsel %vm956, %v3735, 0
        %v3787 = vsel %vm956, %v3736, 0
        %v3790 = vsel %vm956, %v3737, 0
        %v3793 = vsel %vm956, %v3738, 0
        %v3796 = vsel %vm956, %v3739, 0
        %v3799 = vsel %vm956, %v3740, 0
        %v3802 = vsel %vm956, %v3741, 0
        %v3805 = vsel %vm956, %v3742, 0
        %v3808 = vsel %vm956, %v3743, 0
        %v3811 = vsel %vm956, %v3744, 0
        %v3814 = vsel %vm956, %v3745, 0
        %v3817 = vsel %vm956, %v3746, 0
        %v3820 = vsel %vm1029, %v3626, 0
        %3822 = vmatprep.subr.bf16.mxu0 0
        %3823 = vmatpush1.bf16.msra.mxu0 %v3820
        %3824 = vmatprep.subr.bf16.mxu0 0
        %3825 = vmatpush1.bf16.msra.mxu0 0
        %3826 = vmatprep.subr.bf16.mxu0 0
        %3827 = vmatpush1.bf16.msra.mxu0 0
        %3828 = vmatprep.subr.bf16.mxu0 0
        %3829 = vmatpush1.bf16.msra.mxu0 0
        %3830 = vmatprep.subr.bf16.mxu0 0
        %3831 = vmatpush1.bf16.msra.mxu0 0
        %3832 = vmatprep.subr.bf16.mxu0 0
        %3833 = vmatpush1.bf16.msra.mxu0 0
        %3834 = vmatprep.subr.bf16.mxu0 0
        %3835 = vmatpush1.bf16.msra.mxu0 0
        %3836 = vmatprep.subr.bf16.mxu0 0
        %3837 = vmatpush1.bf16.msra.mxu0 0
        %3838 = vmatprep.subr.bf16.mxu0 0
        %3839 = vmatpush1.bf16.msra.mxu0 0
        %3840 = vmatprep.subr.bf16.mxu0 0
        %3841 = vmatpush1.bf16.msra.mxu0 0
        %3842 = vmatprep.subr.bf16.mxu0 0
        %3843 = vmatpush1.bf16.msra.mxu0 0
        %3844 = vmatprep.subr.bf16.mxu0 0
        %3845 = vmatpush1.bf16.msra.mxu0 0
        %3846 = vmatprep.subr.bf16.mxu0 0
        %3847 = vmatpush1.bf16.msra.mxu0 0
        %3848 = vmatprep.subr.bf16.mxu0 0
        %3849 = vmatpush1.bf16.msra.mxu0 0
        %3850 = vmatprep.subr.bf16.mxu0 0
        %3851 = vmatpush1.bf16.msra.mxu0 0
        %3852 = vmatprep.subr.bf16.mxu0 0
        %3853 = vmatpush1.bf16.msra.mxu0 0
        %3854 = vmatprep.mubr.bf16.mxu0 0
        %3855 = vmatmul.mubr.bf16.gmra.mrb[0].mxu0 %v3748
        %v3856 = vpop.f32.mrb[0].mxu0
        %v3857 = vadd.f32 0.0, %v3856
        %v3858 = vpop.f32.mrb[0].mxu0
        %v3859 = vpop.f32.mrb[0].mxu0
        %v3860 = vadd.f32 0.0, %v3859
        %v3861 = vpop.f32.mrb[0].mxu0
        %3862 = vmatprep.mubr.bf16.mxu0 0
        %3863 = vmatmul.mubr.bf16.gmra.mrb[0].mxu0 %v3751
        %v3864 = vpop.f32.mrb[0].mxu0
        %v3865 = vadd.f32 0.0, %v3864
        %v3866 = vpop.f32.mrb[0].mxu0
        %v3867 = vpop.f32.mrb[0].mxu0
        %v3868 = vadd.f32 0.0, %v3867
        %v3869 = vpop.f32.mrb[0].mxu0
        %3870 = vmatprep.mubr.bf16.mxu0 0
        %3871 = vmatmul.mubr.bf16.gmra.mrb[0].mxu0 %v3754
        %v3872 = vpop.f32.mrb[0].mxu0
        %v3873 = vadd.f32 0.0, %v3872
        %v3874 = vpop.f32.mrb[0].mxu0
        %v3875 = vpop.f32.mrb[0].mxu0
        %v3876 = vadd.f32 0.0, %v3875
        %v3877 = vpop.f32.mrb[0].mxu0
        %3878 = vmatprep.mubr.bf16.mxu0 0
        %3879 = vmatmul.mubr.bf16.gmra.mrb[0].mxu0 %v3757
        %v3880 = vpop.f32.mrb[0].mxu0
        %v3881 = vadd.f32 0.0, %v3880
        %v3882 = vpop.f32.mrb[0].mxu0
        %v3883 = vpop.f32.mrb[0].mxu0
        %v3884 = vadd.f32 0.0, %v3883
        %v3885 = vpop.f32.mrb[0].mxu0
        %3886 = vmatprep.mubr.bf16.mxu0 0
        %3887 = vmatmul.mubr.bf16.gmra.mrb[0].mxu0 %v3760
        %v3888 = vpop.f32.mrb[0].mxu0
        %v3889 = vadd.f32 0.0, %v3888
        %v3890 = vpop.f32.mrb[0].mxu0
        %v3891 = vpop.f32.mrb[0].mxu0
        %v3892 = vadd.f32 0.0, %v3891
        %v3893 = vpop.f32.mrb[0].mxu0
        %3894 = vmatprep.mubr.bf16.mxu0 0
        %3895 = vmatmul.mubr.bf16.gmra.mrb[0].mxu0 %v3763
        %v3896 = vpop.f32.mrb[0].mxu0
        %v3897 = vadd.f32 0.0, %v3896
        %v3898 = vpop.f32.mrb[0].mxu0
        %v3899 = vpop.f32.mrb[0].mxu0
        %v3900 = vadd.f32 0.0, %v3899
        %v3901 = vpop.f32.mrb[0].mxu0
        %3902 = vmatprep.mubr.bf16.mxu0 0
        %3903 = vmatmul.mubr.bf16.gmra.mrb[0].mxu0 %v3766
        %v3904 = vpop.f32.mrb[0].mxu0
        %v3905 = vadd.f32 0.0, %v3904
        %v3906 = vpop.f32.mrb[0].mxu0
        %v3907 = vpop.f32.mrb[0].mxu0
        %v3908 = vadd.f32 0.0, %v3907
        %v3909 = vpop.f32.mrb[0].mxu0
        %3910 = vmatprep.mubr.bf16.mxu0 0
        %3911 = vmatmul.mubr.bf16.gmra.mrb[0].mxu0 %v3769
        %v3912 = vpop.f32.mrb[0].mxu0
        %v3913 = vadd.f32 0.0, %v3912
        %v3914 = vpop.f32.mrb[0].mxu0
        %v3915 = vpop.f32.mrb[0].mxu0
        %v3916 = vadd.f32 0.0, %v3915
        %v3917 = vpop.f32.mrb[0].mxu0
        %3918 = vmatprep.mubr.bf16.mxu0 0
        %3919 = vmatmul.mubr.bf16.gmra.mrb[0].mxu0 %v3772
        %v3920 = vpop.f32.mrb[0].mxu0
        %v3921 = vadd.f32 0.0, %v3920
        %v3922 = vpop.f32.mrb[0].mxu0
        %v3923 = vpop.f32.mrb[0].mxu0
        %v3924 = vadd.f32 0.0, %v3923
        %v3925 = vpop.f32.mrb[0].mxu0
        %3926 = vmatprep.mubr.bf16.mxu0 0
        %3927 = vmatmul.mubr.bf16.gmra.mrb[0].mxu0 %v3775
        %v3928 = vpop.f32.mrb[0].mxu0
        %v3929 = vadd.f32 0.0, %v3928
        %v3930 = vpop.f32.mrb[0].mxu0
        %v3931 = vpop.f32.mrb[0].mxu0
        %v3932 = vadd.f32 0.0, %v3931
        %v3933 = vpop.f32.mrb[0].mxu0
        %3934 = vmatprep.mubr.bf16.mxu0 0
        %3935 = vmatmul.mubr.bf16.gmra.mrb[0].mxu0 %v3778
        %v3936 = vpop.f32.mrb[0].mxu0
        %v3937 = vadd.f32 0.0, %v3936
        %v3938 = vpop.f32.mrb[0].mxu0
        %v3939 = vpop.f32.mrb[0].mxu0
        %v3940 = vadd.f32 0.0, %v3939
        %v3941 = vpop.f32.mrb[0].mxu0
        %3942 = vmatprep.mubr.bf16.mxu0 0
        %3943 = vmatmul.mubr.bf16.gmra.mrb[0].mxu0 %v3781
        %v3944 = vpop.f32.mrb[0].mxu0
        %v3945 = vadd.f32 0.0, %v3944
        %v3946 = vpop.f32.mrb[0].mxu0
        %v3947 = vpop.f32.mrb[0].mxu0
        %v3948 = vadd.f32 0.0, %v3947
        %v3949 = vpop.f32.mrb[0].mxu0
        %3950 = vmatprep.mubr.bf16.mxu0 0
        %3951 = vmatmul.mubr.bf16.gmra.mrb[0].mxu0 %v3784
        %v3952 = vpop.f32.mrb[0].mxu0
        %v3953 = vadd.f32 0.0, %v3952
        %v3954 = vpop.f32.mrb[0].mxu0
        %v3955 = vpop.f32.mrb[0].mxu0
        %v3956 = vadd.f32 0.0, %v3955
        %v3957 = vpop.f32.mrb[0].mxu0
        %3958 = vmatprep.mubr.bf16.mxu0 0
        %3959 = vmatmul.mubr.bf16.gmra.mrb[0].mxu0 %v3787
        %v3960 = vpop.f32.mrb[0].mxu0
        %v3961 = vadd.f32 0.0, %v3960
        %v3962 = vpop.f32.mrb[0].mxu0
        %v3963 = vpop.f32.mrb[0].mxu0
        %v3964 = vadd.f32 0.0, %v3963
        %v3965 = vpop.f32.mrb[0].mxu0
        %3966 = vmatprep.mubr.bf16.mxu0 0
        %3967 = vmatmul.mubr.bf16.gmra.mrb[0].mxu0 %v3790
        %v3968 = vpop.f32.mrb[0].mxu0
        %v3969 = vadd.f32 0.0, %v3968
        %v3970 = vpop.f32.mrb[0].mxu0
        %v3971 = vpop.f32.mrb[0].mxu0
        %v3972 = vadd.f32 0.0, %v3971
        %v3973 = vpop.f32.mrb[0].mxu0
        %3974 = vmatprep.mubr.bf16.mxu0 0
        %3975 = vmatmul.mubr.bf16.gmra.mrb[0].mxu0 %v3793
        %v3976 = vpop.f32.mrb[0].mxu0
        %v3977 = vadd.f32 0.0, %v3976
        %v3978 = vpop.f32.mrb[0].mxu0
        %v3979 = vpop.f32.mrb[0].mxu0
        %v3980 = vadd.f32 0.0, %v3979
        %v3981 = vpop.f32.mrb[0].mxu0
        %3982 = vmatprep.mubr.bf16.mxu0 0
        %3983 = vmatmul.mubr.bf16.gmra.mrb[0].mxu0 %v3796
        %v3984 = vpop.f32.mrb[0].mxu0
        %v3985 = vadd.f32 0.0, %v3984
        %v3986 = vpop.f32.mrb[0].mxu0
        %v3987 = vpop.f32.mrb[0].mxu0
        %v3988 = vadd.f32 0.0, %v3987
        %v3989 = vpop.f32.mrb[0].mxu0
        %3990 = vmatprep.mubr.bf16.mxu0 0
        %3991 = vmatmul.mubr.bf16.gmra.mrb[0].mxu0 %v3799
        %v3992 = vpop.f32.mrb[0].mxu0
        %v3993 = vadd.f32 0.0, %v3992
        %v3994 = vpop.f32.mrb[0].mxu0
        %v3995 = vpop.f32.mrb[0].mxu0
        %v3996 = vadd.f32 0.0, %v3995
        %v3997 = vpop.f32.mrb[0].mxu0
        %3998 = vmatprep.mubr.bf16.mxu0 0
        %3999 = vmatmul.mubr.bf16.gmra.mrb[0].mxu0 %v3802
        %v4000 = vpop.f32.mrb[0].mxu0
        %v4001 = vadd.f32 0.0, %v4000
        %v4002 = vpop.f32.mrb[0].mxu0
        %v4003 = vpop.f32.mrb[0].mxu0
        %v4004 = vadd.f32 0.0, %v4003
        %v4005 = vpop.f32.mrb[0].mxu0
        %4006 = vmatprep.mubr.bf16.mxu0 0
        %4007 = vmatmul.mubr.bf16.gmra.mrb[0].mxu0 %v3805
        %v4008 = vpop.f32.mrb[0].mxu0
        %v4009 = vadd.f32 0.0, %v4008
        %v4010 = vpop.f32.mrb[0].mxu0
        %v4011 = vpop.f32.mrb[0].mxu0
        %v4012 = vadd.f32 0.0, %v4011
        %v4013 = vpop.f32.mrb[0].mxu0
        %4014 = vmatprep.mubr.bf16.mxu0 0
        %4015 = vmatmul.mubr.bf16.gmra.mrb[0].mxu0 %v3808
        %v4016 = vpop.f32.mrb[0].mxu0
        %v4017 = vadd.f32 0.0, %v4016
        %v4018 = vpop.f32.mrb[0].mxu0
        %v4019 = vpop.f32.mrb[0].mxu0
        %v4020 = vadd.f32 0.0, %v4019
        %v4021 = vpop.f32.mrb[0].mxu0
        %4022 = vmatprep.mubr.bf16.mxu0 0
        %4023 = vmatmul.mubr.bf16.gmra.mrb[0].mxu0 %v3811
        %v4024 = vpop.f32.mrb[0].mxu0
        %v4025 = vadd.f32 0.0, %v4024
        %v4026 = vpop.f32.mrb[0].mxu0
        %v4027 = vpop.f32.mrb[0].mxu0
        %v4028 = vadd.f32 0.0, %v4027
        %v4029 = vpop.f32.mrb[0].mxu0
        %4030 = vmatprep.mubr.bf16.mxu0 0
        %4031 = vmatmul.mubr.bf16.gmra.mrb[0].mxu0 %v3814
        %v4032 = vpop.f32.mrb[0].mxu0
        %v4033 = vadd.f32 0.0, %v4032
        %v4034 = vpop.f32.mrb[0].mxu0
        %v4035 = vpop.f32.mrb[0].mxu0
        %v4036 = vadd.f32 0.0, %v4035
        %v4037 = vpop.f32.mrb[0].mxu0
        %4038 = vmatprep.mubr.bf16.mxu0 0
        %4039 = vmatmul.mubr.bf16.gmra.mrb[0].mxu0 %v3817
        %v4040 = vpop.f32.mrb[0].mxu0
        %v4041 = vadd.f32 0.0, %v4040
        %v4042 = vpop.f32.mrb[0].mxu0
        %v4043 = vpop.f32.mrb[0].mxu0
        %v4044 = vadd.f32 0.0, %v4043
        %v4045 = vpop.f32.mrb[0].mxu0
        %4046 = vdwg.mxu0
        %v4047 = vadd.f32 %v3529, %v3857
        %v4048 = vadd.f32 %v3530, %v3860
        %v4049 = vadd.f32 %v3531, %v3865
        %v4050 = vadd.f32 %v3532, %v3868
        %v4051 = vadd.f32 %v3533, %v3873
        %v4052 = vadd.f32 %v3534, %v3876
        %v4053 = vadd.f32 %v3535, %v3881
        %v4054 = vadd.f32 %v3536, %v3884
        %v4055 = vadd.f32 %v3537, %v3889
        %v4056 = vadd.f32 %v3538, %v3892
        %v4057 = vadd.f32 %v3539, %v3897
        %v4058 = vadd.f32 %v3540, %v3900
        %v4059 = vadd.f32 %v3541, %v3905
        %v4060 = vadd.f32 %v3542, %v3908
        %v4061 = vadd.f32 %v3543, %v3913
        %v4062 = vadd.f32 %v3544, %v3916
        %v4063 = vadd.f32 %v3545, %v3921
        %v4064 = vadd.f32 %v3546, %v3924
        %v4065 = vadd.f32 %v3547, %v3929
        %v4066 = vadd.f32 %v3548, %v3932
        %v4067 = vadd.f32 %v3549, %v3937
        %v4068 = vadd.f32 %v3550, %v3940
        %v4069 = vadd.f32 %v3551, %v3945
        %v4070 = vadd.f32 %v3552, %v3948
        %v4071 = vadd.f32 %v3553, %v3953
        %v4072 = vadd.f32 %v3554, %v3956
        %v4073 = vadd.f32 %v3555, %v3961
        %v4074 = vadd.f32 %v3556, %v3964
        %v4075 = vadd.f32 %v3557, %v3969
        %v4076 = vadd.f32 %v3558, %v3972
        %v4077 = vadd.f32 %v3559, %v3977
        %v4078 = vadd.f32 %v3560, %v3980
        %v4079 = vadd.f32 %v3561, %v3985
        %v4080 = vadd.f32 %v3562, %v3988
        %v4081 = vadd.f32 %v3563, %v3993
        %v4082 = vadd.f32 %v3564, %v3996
        %v4083 = vadd.f32 %v3565, %v4001
        %v4084 = vadd.f32 %v3566, %v4004
        %v4085 = vadd.f32 %v3567, %v4009
        %v4086 = vadd.f32 %v3568, %v4012
        %v4087 = vadd.f32 %v3569, %v4017
        %v4088 = vadd.f32 %v3570, %v4020
        %v4089 = vadd.f32 %v3571, %v4025
        %v4090 = vadd.f32 %v3572, %v4028
        %v4091 = vadd.f32 %v3573, %v4033
        %v4092 = vadd.f32 %v3574, %v4036
        %v4093 = vadd.f32 %v3575, %v4041
        %v4094 = vadd.f32 %v3576, %v4044
        %v4095 = vld [vmem:[%s562 + $0x18] sm:$0xf]
        %v4096 = vld [vmem:[%s562 + $0x1c] sm:$0xf]
        %v4097 = vld [vmem:[%s562 + $0x20] sm:$0xf]
        %v4098 = vld [vmem:[%s562 + $0x24] sm:$0xf]
        %v4099 = vld [vmem:[%s562 + $0x28] sm:$0xf]
        %v4100 = vld [vmem:[%s562 + $0x2c] sm:$0xf]
        %v4101 = vld [vmem:[%s562 + $0x30] sm:$0xf]
        %v4102 = vld [vmem:[%s562 + $0x34] sm:$0xf]
        %v4103 = vld [vmem:[%s562 + $0x38] sm:$0xf]
        %v4104 = vld [vmem:[%s562 + $0x3c] sm:$0xf]
        %v4105 = vld [vmem:[%s562 + $0x40] sm:$0xf]
        %v4106 = vld [vmem:[%s562 + $0x44] sm:$0xf]
        %v4107 = vld [vmem:[%s562 + $0x48] sm:$0xf]
        %v4108 = vld [vmem:[%s562 + $0x4c] sm:$0xf]
        %v4109 = vld [vmem:[%s562 + $0x50] sm:$0xf]
        %v4110 = vld [vmem:[%s562 + $0x54] sm:$0xf]
        %v4111 = vld [vmem:[%s562 + $0x58] sm:$0xf]
        %v4112 = vld [vmem:[%s562 + $0x5c] sm:$0xf]
        %v4113 = vld [vmem:[%s562 + $0x60] sm:$0xf]
        %v4114 = vld [vmem:[%s562 + $0x64] sm:$0xf]
        %v4115 = vld [vmem:[%s562 + $0x68] sm:$0xf]
        %v4116 = vld [vmem:[%s562 + $0x6c] sm:$0xf]
        %v4117 = vld [vmem:[%s562 + $0x70] sm:$0xf]
        %v4118 = vld [vmem:[%s562 + $0x74] sm:$0xf]
        %v4119 = vld [vmem:[%s562 + $0x78] sm:$0xf]
        %v4120 = vld [vmem:[%s562 + $0x7c] sm:$0xf]
        %v4121 = vld [vmem:[%s562 + $0x80] sm:$0xf]
        %v4122 = vld [vmem:[%s562 + $0x84] sm:$0xf]
        %v4123 = vld [vmem:[%s562 + $0x88] sm:$0xf]
        %v4124 = vld [vmem:[%s562 + $0x8c] sm:$0xf]
        %v4125 = vld [vmem:[%s562 + $0x90] sm:$0xf]
        %v4126 = vld [vmem:[%s562 + $0x94] sm:$0xf]
        %v4127 = vld [vmem:[%s562 + $0x98] sm:$0xf]
        %v4128 = vld [vmem:[%s562 + $0x9c] sm:$0xf]
        %v4129 = vld [vmem:[%s562 + $0xa0] sm:$0xf]
        %v4130 = vld [vmem:[%s562 + $0xa4] sm:$0xf]
        %v4131 = vld [vmem:[%s562 + $0xa8] sm:$0xf]
        %v4132 = vld [vmem:[%s562 + $0xac] sm:$0xf]
        %v4133 = vld [vmem:[%s562 + $0xb0] sm:$0xf]
        %v4134 = vld [vmem:[%s562 + $0xb4] sm:$0xf]
        %v4135 = vld [vmem:[%s562 + $0xb8] sm:$0xf]
        %v4136 = vld [vmem:[%s562 + $0xbc] sm:$0xf]
        %v4137 = vld [vmem:[%s562 + $0xc0] sm:$0xf]
        %v4138 = vld [vmem:[%s562 + $0xc4] sm:$0xf]
        %v4139 = vld [vmem:[%s562 + $0xc8] sm:$0xf]
        %v4140 = vld [vmem:[%s562 + $0xcc] sm:$0xf]
        %v4141 = vld [vmem:[%s562 + $0xd0] sm:$0xf]
        %v4142 = vld [vmem:[%s562 + $0xd4] sm:$0xf]
        %v4143 = vld [vmem:[%s562 + $0xd8] sm:$0x1]
        %s4144 = scalar_lea.vmem %s4, 28
        %v4145 = vld [vmem:[%s4144] sm:$0xf]
        %v4195 = vunpack.c.l.b16 %v4095
        %v4196 = vunpack.c.l.b16 %v4096
        %v4197 = vunpack.c.l.b16 %v4097
        %v4198 = vunpack.c.l.b16 %v4098
        %v4199 = vunpack.c.l.b16 %v4099
        %v4200 = vunpack.c.l.b16 %v4100
        %v4201 = vunpack.c.l.b16 %v4101
        %v4202 = vunpack.c.l.b16 %v4102
        %v4203 = vunpack.c.l.b16 %v4103
        %v4204 = vunpack.c.l.b16 %v4104
        %v4205 = vunpack.c.l.b16 %v4105
        %v4206 = vunpack.c.l.b16 %v4106
        %v4207 = vunpack.c.l.b16 %v4107
        %v4208 = vunpack.c.l.b16 %v4108
        %v4209 = vunpack.c.l.b16 %v4109
        %v4210 = vunpack.c.l.b16 %v4110
        %v4211 = vunpack.c.l.b16 %v4111
        %v4212 = vunpack.c.l.b16 %v4112
        %v4213 = vunpack.c.l.b16 %v4113
        %v4214 = vunpack.c.l.b16 %v4114
        %v4215 = vunpack.c.l.b16 %v4115
        %v4216 = vunpack.c.l.b16 %v4116
        %v4217 = vunpack.c.l.b16 %v4117
        %v4218 = vunpack.c.l.b16 %v4118
        %v4219 = vunpack.c.l.b16 %v4119
        %v4220 = vunpack.c.l.b16 %v4120
        %v4221 = vunpack.c.l.b16 %v4121
        %v4222 = vunpack.c.l.b16 %v4122
        %v4223 = vunpack.c.l.b16 %v4123
        %v4224 = vunpack.c.l.b16 %v4124
        %v4225 = vunpack.c.l.b16 %v4125
        %v4226 = vunpack.c.l.b16 %v4126
        %v4227 = vunpack.c.l.b16 %v4127
        %v4228 = vunpack.c.l.b16 %v4128
        %v4229 = vunpack.c.l.b16 %v4129
        %v4230 = vunpack.c.l.b16 %v4130
        %v4231 = vunpack.c.l.b16 %v4131
        %v4232 = vunpack.c.l.b16 %v4132
        %v4233 = vunpack.c.l.b16 %v4133
        %v4234 = vunpack.c.l.b16 %v4134
        %v4235 = vunpack.c.l.b16 %v4135
        %v4236 = vunpack.c.l.b16 %v4136
        %v4237 = vunpack.c.l.b16 %v4137
        %v4238 = vunpack.c.l.b16 %v4138
        %v4239 = vunpack.c.l.b16 %v4139
        %v4240 = vunpack.c.l.b16 %v4140
        %v4241 = vunpack.c.l.b16 %v4141
        %v4242 = vunpack.c.l.b16 %v4142
        %v4243 = vunpack.c.l.b16 %v4143
        %v4244 = vpack.c.b16 %v4196, %v4195
        %v4245 = vpack.c.b16 %v4198, %v4197
        %v4246 = vpack.c.b16 %v4200, %v4199
        %v4247 = vpack.c.b16 %v4202, %v4201
        %v4248 = vpack.c.b16 %v4204, %v4203
        %v4249 = vpack.c.b16 %v4206, %v4205
        %v4250 = vpack.c.b16 %v4208, %v4207
        %v4251 = vpack.c.b16 %v4210, %v4209
        %v4252 = vpack.c.b16 %v4212, %v4211
        %v4253 = vpack.c.b16 %v4214, %v4213
        %v4254 = vpack.c.b16 %v4216, %v4215
        %v4255 = vpack.c.b16 %v4218, %v4217
        %v4256 = vpack.c.b16 %v4220, %v4219
        %v4257 = vpack.c.b16 %v4222, %v4221
        %v4258 = vpack.c.b16 %v4224, %v4223
        %v4259 = vpack.c.b16 %v4226, %v4225
        %v4260 = vpack.c.b16 %v4228, %v4227
        %v4261 = vpack.c.b16 %v4230, %v4229
        %v4262 = vpack.c.b16 %v4232, %v4231
        %v4263 = vpack.c.b16 %v4234, %v4233
        %v4264 = vpack.c.b16 %v4236, %v4235
        %v4265 = vpack.c.b16 %v4238, %v4237
        %v4266 = vpack.c.b16 %v4240, %v4239
        %v4267 = vpack.c.b16 %v4242, %v4241
        %v4268 = vpack.c.b16 %v4243, %v4243
        %v4270 = vshrl.u32 %v4244, 16
        %v4272 = vshll.u32 %v4244, 16
        %v4274 = vrot.slane %v4272, 1
        %v4275 = vor.u32 %v4270, %v4274
        %v4277 = vshll.u32 %v4245, 16
        %v4279 = vrot.slane %v4277, 1
        %v4280 = vsel %vm759, %v4275, %v4279
        %v4281 = vshrl.u32 %v4245, 16
        %v4283 = vor.u32 %v4281, %v4279
        %v4285 = vshll.u32 %v4246, 16
        %v4287 = vrot.slane %v4285, 1
        %v4288 = vsel %vm759, %v4283, %v4287
        %v4289 = vshrl.u32 %v4246, 16
        %v4291 = vor.u32 %v4289, %v4287
        %v4293 = vshll.u32 %v4247, 16
        %v4295 = vrot.slane %v4293, 1
        %v4296 = vsel %vm759, %v4291, %v4295
        %v4297 = vshrl.u32 %v4247, 16
        %v4299 = vor.u32 %v4297, %v4295
        %v4301 = vshll.u32 %v4248, 16
        %v4303 = vrot.slane %v4301, 1
        %v4304 = vsel %vm759, %v4299, %v4303
        %v4305 = vshrl.u32 %v4248, 16
        %v4307 = vor.u32 %v4305, %v4303
        %v4309 = vshll.u32 %v4249, 16
        %v4311 = vrot.slane %v4309, 1
        %v4312 = vsel %vm759, %v4307, %v4311
        %v4313 = vshrl.u32 %v4249, 16
        %v4315 = vor.u32 %v4313, %v4311
        %v4317 = vshll.u32 %v4250, 16
        %v4319 = vrot.slane %v4317, 1
        %v4320 = vsel %vm759, %v4315, %v4319
        %v4321 = vshrl.u32 %v4250, 16
        %v4323 = vor.u32 %v4321, %v4319
        %v4325 = vshll.u32 %v4251, 16
        %v4327 = vrot.slane %v4325, 1
        %v4328 = vsel %vm759, %v4323, %v4327
        %v4329 = vshrl.u32 %v4251, 16
        %v4331 = vor.u32 %v4329, %v4327
        %v4333 = vshll.u32 %v4252, 16
        %v4335 = vrot.slane %v4333, 1
        %v4336 = vsel %vm759, %v4331, %v4335
        %v4337 = vshrl.u32 %v4252, 16
        %v4339 = vor.u32 %v4337, %v4335
        %v4341 = vshll.u32 %v4253, 16
        %v4343 = vrot.slane %v4341, 1
        %v4344 = vsel %vm759, %v4339, %v4343
        %v4345 = vshrl.u32 %v4253, 16
        %v4347 = vor.u32 %v4345, %v4343
        %v4349 = vshll.u32 %v4254, 16
        %v4351 = vrot.slane %v4349, 1
        %v4352 = vsel %vm759, %v4347, %v4351
        %v4353 = vshrl.u32 %v4254, 16
        %v4355 = vor.u32 %v4353, %v4351
        %v4357 = vshll.u32 %v4255, 16
        %v4359 = vrot.slane %v4357, 1
        %v4360 = vsel %vm759, %v4355, %v4359
        %v4361 = vshrl.u32 %v4255, 16
        %v4363 = vor.u32 %v4361, %v4359
        %v4365 = vshll.u32 %v4256, 16
        %v4367 = vrot.slane %v4365, 1
        %v4368 = vsel %vm759, %v4363, %v4367
        %v4369 = vshrl.u32 %v4256, 16
        %v4371 = vor.u32 %v4369, %v4367
        %v4373 = vshll.u32 %v4257, 16
        %v4375 = vrot.slane %v4373, 1
        %v4376 = vsel %vm759, %v4371, %v4375
        %v4377 = vshrl.u32 %v4257, 16
        %v4379 = vor.u32 %v4377, %v4375
        %v4381 = vshll.u32 %v4258, 16
        %v4383 = vrot.slane %v4381, 1
        %v4384 = vsel %vm759, %v4379, %v4383
        %v4385 = vshrl.u32 %v4258, 16
        %v4387 = vor.u32 %v4385, %v4383
        %v4389 = vshll.u32 %v4259, 16
        %v4391 = vrot.slane %v4389, 1
        %v4392 = vsel %vm759, %v4387, %v4391
        %v4393 = vshrl.u32 %v4259, 16
        %v4395 = vor.u32 %v4393, %v4391
        %v4397 = vshll.u32 %v4260, 16
        %v4399 = vrot.slane %v4397, 1
        %v4400 = vsel %vm759, %v4395, %v4399
        %v4401 = vshrl.u32 %v4260, 16
        %v4403 = vor.u32 %v4401, %v4399
        %v4405 = vshll.u32 %v4261, 16
        %v4407 = vrot.slane %v4405, 1
        %v4408 = vsel %vm759, %v4403, %v4407
        %v4409 = vshrl.u32 %v4261, 16
        %v4411 = vor.u32 %v4409, %v4407
        %v4413 = vshll.u32 %v4262, 16
        %v4415 = vrot.slane %v4413, 1
        %v4416 = vsel %vm759, %v4411, %v4415
        %v4417 = vshrl.u32 %v4262, 16
        %v4419 = vor.u32 %v4417, %v4415
        %v4421 = vshll.u32 %v4263, 16
        %v4423 = vrot.slane %v4421, 1
        %v4424 = vsel %vm759, %v4419, %v4423
        %v4425 = vshrl.u32 %v4263, 16
        %v4427 = vor.u32 %v4425, %v4423
        %v4429 = vshll.u32 %v4264, 16
        %v4431 = vrot.slane %v4429, 1
        %v4432 = vsel %vm759, %v4427, %v4431
        %v4433 = vshrl.u32 %v4264, 16
        %v4435 = vor.u32 %v4433, %v4431
        %v4437 = vshll.u32 %v4265, 16
        %v4439 = vrot.slane %v4437, 1
        %v4440 = vsel %vm759, %v4435, %v4439
        %v4441 = vshrl.u32 %v4265, 16
        %v4443 = vor.u32 %v4441, %v4439
        %v4445 = vshll.u32 %v4266, 16
        %v4447 = vrot.slane %v4445, 1
        %v4448 = vsel %vm759, %v4443, %v4447
        %v4449 = vshrl.u32 %v4266, 16
        %v4451 = vor.u32 %v4449, %v4447
        %v4453 = vshll.u32 %v4267, 16
        %v4455 = vrot.slane %v4453, 1
        %v4456 = vsel %vm759, %v4451, %v4455
        %v4457 = vshrl.u32 %v4267, 16
        %v4459 = vor.u32 %v4457, %v4455
        %v4461 = vshll.u32 %v4268, 16
        %v4463 = vrot.slane %v4461, 1
        %v4464 = vsel %vm759, %v4459, %v4463
        %v4466 = vsel %vm956, %v4280, 0
        %v4469 = vsel %vm956, %v4288, 0
        %v4472 = vsel %vm956, %v4296, 0
        %v4475 = vsel %vm956, %v4304, 0
        %v4478 = vsel %vm956, %v4312, 0
        %v4481 = vsel %vm956, %v4320, 0
        %v4484 = vsel %vm956, %v4328, 0
        %v4487 = vsel %vm956, %v4336, 0
        %v4490 = vsel %vm956, %v4344, 0
        %v4493 = vsel %vm956, %v4352, 0
        %v4496 = vsel %vm956, %v4360, 0
        %v4499 = vsel %vm956, %v4368, 0
        %v4502 = vsel %vm956, %v4376, 0
        %v4505 = vsel %vm956, %v4384, 0
        %v4508 = vsel %vm956, %v4392, 0
        %v4511 = vsel %vm956, %v4400, 0
        %v4514 = vsel %vm956, %v4408, 0
        %v4517 = vsel %vm956, %v4416, 0
        %v4520 = vsel %vm956, %v4424, 0
        %v4523 = vsel %vm956, %v4432, 0
        %v4526 = vsel %vm956, %v4440, 0
        %v4529 = vsel %vm956, %v4448, 0
        %v4532 = vsel %vm956, %v4456, 0
        %v4535 = vsel %vm956, %v4464, 0
        %v4538 = vsel %vm1029, %v4145, 0
        %4540 = vmatprep.subr.bf16.mxu0 0
        %4541 = vmatpush1.bf16.msra.mxu0 %v4538
        %4542 = vmatprep.subr.bf16.mxu0 0
        %4543 = vmatpush1.bf16.msra.mxu0 0
        %4544 = vmatprep.subr.bf16.mxu0 0
        %4545 = vmatpush1.bf16.msra.mxu0 0
        %4546 = vmatprep.subr.bf16.mxu0 0
        %4547 = vmatpush1.bf16.msra.mxu0 0
        %4548 = vmatprep.subr.bf16.mxu0 0
        %4549 = vmatpush1.bf16.msra.mxu0 0
        %4550 = vmatprep.subr.bf16.mxu0 0
        %4551 = vmatpush1.bf16.msra.mxu0 0
        %4552 = vmatprep.subr.bf16.mxu0 0
        %4553 = vmatpush1.bf16.msra.mxu0 0
        %4554 = vmatprep.subr.bf16.mxu0 0
        %4555 = vmatpush1.bf16.msra.mxu0 0
        %4556 = vmatprep.subr.bf16.mxu0 0
        %4557 = vmatpush1.bf16.msra.mxu0 0
        %4558 = vmatprep.subr.bf16.mxu0 0
        %4559 = vmatpush1.bf16.msra.mxu0 0
        %4560 = vmatprep.subr.bf16.mxu0 0
        %4561 = vmatpush1.bf16.msra.mxu0 0
        %4562 = vmatprep.subr.bf16.mxu0 0
        %4563 = vmatpush1.bf16.msra.mxu0 0
        %4564 = vmatprep.subr.bf16.mxu0 0
        %4565 = vmatpush1.bf16.msra.mxu0 0
        %4566 = vmatprep.subr.bf16.mxu0 0
        %4567 = vmatpush1.bf16.msra.mxu0 0
        %4568 = vmatprep.subr.bf16.mxu0 0
        %4569 = vmatpush1.bf16.msra.mxu0 0
        %4570 = vmatprep.subr.bf16.mxu0 0
        %4571 = vmatpush1.bf16.msra.mxu0 0
        %4572 = vmatprep.mubr.bf16.mxu0 0
        %4573 = vmatmul.mubr.bf16.gmra.mrb[0].mxu0 %v4466
        %v4574 = vpop.f32.mrb[0].mxu0
        %v4575 = vadd.f32 0.0, %v4574
        %v4576 = vpop.f32.mrb[0].mxu0
        %v4577 = vpop.f32.mrb[0].mxu0
        %v4578 = vadd.f32 0.0, %v4577
        %v4579 = vpop.f32.mrb[0].mxu0
        %4580 = vmatprep.mubr.bf16.mxu0 0
        %4581 = vmatmul.mubr.bf16.gmra.mrb[0].mxu0 %v4469
        %v4582 = vpop.f32.mrb[0].mxu0
        %v4583 = vadd.f32 0.0, %v4582
        %v4584 = vpop.f32.mrb[0].mxu0
        %v4585 = vpop.f32.mrb[0].mxu0
        %v4586 = vadd.f32 0.0, %v4585
        %v4587 = vpop.f32.mrb[0].mxu0
        %4588 = vmatprep.mubr.bf16.mxu0 0
        %4589 = vmatmul.mubr.bf16.gmra.mrb[0].mxu0 %v4472
        %v4590 = vpop.f32.mrb[0].mxu0
        %v4591 = vadd.f32 0.0, %v4590
        %v4592 = vpop.f32.mrb[0].mxu0
        %v4593 = vpop.f32.mrb[0].mxu0
        %v4594 = vadd.f32 0.0, %v4593
        %v4595 = vpop.f32.mrb[0].mxu0
        %4596 = vmatprep.mubr.bf16.mxu0 0
        %4597 = vmatmul.mubr.bf16.gmra.mrb[0].mxu0 %v4475
        %v4598 = vpop.f32.mrb[0].mxu0
        %v4599 = vadd.f32 0.0, %v4598
        %v4600 = vpop.f32.mrb[0].mxu0
        %v4601 = vpop.f32.mrb[0].mxu0
        %v4602 = vadd.f32 0.0, %v4601
        %v4603 = vpop.f32.mrb[0].mxu0
        %4604 = vmatprep.mubr.bf16.mxu0 0
        %4605 = vmatmul.mubr.bf16.gmra.mrb[0].mxu0 %v4478
        %v4606 = vpop.f32.mrb[0].mxu0
        %v4607 = vadd.f32 0.0, %v4606
        %v4608 = vpop.f32.mrb[0].mxu0
        %v4609 = vpop.f32.mrb[0].mxu0
        %v4610 = vadd.f32 0.0, %v4609
        %v4611 = vpop.f32.mrb[0].mxu0
        %4612 = vmatprep.mubr.bf16.mxu0 0
        %4613 = vmatmul.mubr.bf16.gmra.mrb[0].mxu0 %v4481
        %v4614 = vpop.f32.mrb[0].mxu0
        %v4615 = vadd.f32 0.0, %v4614
        %v4616 = vpop.f32.mrb[0].mxu0
        %v4617 = vpop.f32.mrb[0].mxu0
        %v4618 = vadd.f32 0.0, %v4617
        %v4619 = vpop.f32.mrb[0].mxu0
        %4620 = vmatprep.mubr.bf16.mxu0 0
        %4621 = vmatmul.mubr.bf16.gmra.mrb[0].mxu0 %v4484
        %v4622 = vpop.f32.mrb[0].mxu0
        %v4623 = vadd.f32 0.0, %v4622
        %v4624 = vpop.f32.mrb[0].mxu0
        %v4625 = vpop.f32.mrb[0].mxu0
        %v4626 = vadd.f32 0.0, %v4625
        %v4627 = vpop.f32.mrb[0].mxu0
        %4628 = vmatprep.mubr.bf16.mxu0 0
        %4629 = vmatmul.mubr.bf16.gmra.mrb[0].mxu0 %v4487
        %v4630 = vpop.f32.mrb[0].mxu0
        %v4631 = vadd.f32 0.0, %v4630
        %v4632 = vpop.f32.mrb[0].mxu0
        %v4633 = vpop.f32.mrb[0].mxu0
        %v4634 = vadd.f32 0.0, %v4633
        %v4635 = vpop.f32.mrb[0].mxu0
        %4636 = vmatprep.mubr.bf16.mxu0 0
        %4637 = vmatmul.mubr.bf16.gmra.mrb[0].mxu0 %v4490
        %v4638 = vpop.f32.mrb[0].mxu0
        %v4639 = vadd.f32 0.0, %v4638
        %v4640 = vpop.f32.mrb[0].mxu0
        %v4641 = vpop.f32.mrb[0].mxu0
        %v4642 = vadd.f32 0.0, %v4641
        %v4643 = vpop.f32.mrb[0].mxu0
        %4644 = vmatprep.mubr.bf16.mxu0 0
        %4645 = vmatmul.mubr.bf16.gmra.mrb[0].mxu0 %v4493
        %v4646 = vpop.f32.mrb[0].mxu0
        %v4647 = vadd.f32 0.0, %v4646
        %v4648 = vpop.f32.mrb[0].mxu0
        %v4649 = vpop.f32.mrb[0].mxu0
        %v4650 = vadd.f32 0.0, %v4649
        %v4651 = vpop.f32.mrb[0].mxu0
        %4652 = vmatprep.mubr.bf16.mxu0 0
        %4653 = vmatmul.mubr.bf16.gmra.mrb[0].mxu0 %v4496
        %v4654 = vpop.f32.mrb[0].mxu0
        %v4655 = vadd.f32 0.0, %v4654
        %v4656 = vpop.f32.mrb[0].mxu0
        %v4657 = vpop.f32.mrb[0].mxu0
        %v4658 = vadd.f32 0.0, %v4657
        %v4659 = vpop.f32.mrb[0].mxu0
        %4660 = vmatprep.mubr.bf16.mxu0 0
        %4661 = vmatmul.mubr.bf16.gmra.mrb[0].mxu0 %v4499
        %v4662 = vpop.f32.mrb[0].mxu0
        %v4663 = vadd.f32 0.0, %v4662
        %v4664 = vpop.f32.mrb[0].mxu0
        %v4665 = vpop.f32.mrb[0].mxu0
        %v4666 = vadd.f32 0.0, %v4665
        %v4667 = vpop.f32.mrb[0].mxu0
        %4668 = vmatprep.mubr.bf16.mxu0 0
        %4669 = vmatmul.mubr.bf16.gmra.mrb[0].mxu0 %v4502
        %v4670 = vpop.f32.mrb[0].mxu0
        %v4671 = vadd.f32 0.0, %v4670
        %v4672 = vpop.f32.mrb[0].mxu0
        %v4673 = vpop.f32.mrb[0].mxu0
        %v4674 = vadd.f32 0.0, %v4673
        %v4675 = vpop.f32.mrb[0].mxu0
        %4676 = vmatprep.mubr.bf16.mxu0 0
        %4677 = vmatmul.mubr.bf16.gmra.mrb[0].mxu0 %v4505
        %v4678 = vpop.f32.mrb[0].mxu0
        %v4679 = vadd.f32 0.0, %v4678
        %v4680 = vpop.f32.mrb[0].mxu0
        %v4681 = vpop.f32.mrb[0].mxu0
        %v4682 = vadd.f32 0.0, %v4681
        %v4683 = vpop.f32.mrb[0].mxu0
        %4684 = vmatprep.mubr.bf16.mxu0 0
        %4685 = vmatmul.mubr.bf16.gmra.mrb[0].mxu0 %v4508
        %v4686 = vpop.f32.mrb[0].mxu0
        %v4687 = vadd.f32 0.0, %v4686
        %v4688 = vpop.f32.mrb[0].mxu0
        %v4689 = vpop.f32.mrb[0].mxu0
        %v4690 = vadd.f32 0.0, %v4689
        %v4691 = vpop.f32.mrb[0].mxu0
        %4692 = vmatprep.mubr.bf16.mxu0 0
        %4693 = vmatmul.mubr.bf16.gmra.mrb[0].mxu0 %v4511
        %v4694 = vpop.f32.mrb[0].mxu0
        %v4695 = vadd.f32 0.0, %v4694
        %v4696 = vpop.f32.mrb[0].mxu0
        %v4697 = vpop.f32.mrb[0].mxu0
        %v4698 = vadd.f32 0.0, %v4697
        %v4699 = vpop.f32.mrb[0].mxu0
        %4700 = vmatprep.mubr.bf16.mxu0 0
        %4701 = vmatmul.mubr.bf16.gmra.mrb[0].mxu0 %v4514
        %v4702 = vpop.f32.mrb[0].mxu0
        %v4703 = vadd.f32 0.0, %v4702
        %v4704 = vpop.f32.mrb[0].mxu0
        %v4705 = vpop.f32.mrb[0].mxu0
        %v4706 = vadd.f32 0.0, %v4705
        %v4707 = vpop.f32.mrb[0].mxu0
        %4708 = vmatprep.mubr.bf16.mxu0 0
        %4709 = vmatmul.mubr.bf16.gmra.mrb[0].mxu0 %v4517
        %v4710 = vpop.f32.mrb[0].mxu0
        %v4711 = vadd.f32 0.0, %v4710
        %v4712 = vpop.f32.mrb[0].mxu0
        %v4713 = vpop.f32.mrb[0].mxu0
        %v4714 = vadd.f32 0.0, %v4713
        %v4715 = vpop.f32.mrb[0].mxu0
        %4716 = vmatprep.mubr.bf16.mxu0 0
        %4717 = vmatmul.mubr.bf16.gmra.mrb[0].mxu0 %v4520
        %v4718 = vpop.f32.mrb[0].mxu0
        %v4719 = vadd.f32 0.0, %v4718
        %v4720 = vpop.f32.mrb[0].mxu0
        %v4721 = vpop.f32.mrb[0].mxu0
        %v4722 = vadd.f32 0.0, %v4721
        %v4723 = vpop.f32.mrb[0].mxu0
        %4724 = vmatprep.mubr.bf16.mxu0 0
        %4725 = vmatmul.mubr.bf16.gmra.mrb[0].mxu0 %v4523
        %v4726 = vpop.f32.mrb[0].mxu0
        %v4727 = vadd.f32 0.0, %v4726
        %v4728 = vpop.f32.mrb[0].mxu0
        %v4729 = vpop.f32.mrb[0].mxu0
        %v4730 = vadd.f32 0.0, %v4729
        %v4731 = vpop.f32.mrb[0].mxu0
        %4732 = vmatprep.mubr.bf16.mxu0 0
        %4733 = vmatmul.mubr.bf16.gmra.mrb[0].mxu0 %v4526
        %v4734 = vpop.f32.mrb[0].mxu0
        %v4735 = vadd.f32 0.0, %v4734
        %v4736 = vpop.f32.mrb[0].mxu0
        %v4737 = vpop.f32.mrb[0].mxu0
        %v4738 = vadd.f32 0.0, %v4737
        %v4739 = vpop.f32.mrb[0].mxu0
        %4740 = vmatprep.mubr.bf16.mxu0 0
        %4741 = vmatmul.mubr.bf16.gmra.mrb[0].mxu0 %v4529
        %v4742 = vpop.f32.mrb[0].mxu0
        %v4743 = vadd.f32 0.0, %v4742
        %v4744 = vpop.f32.mrb[0].mxu0
        %v4745 = vpop.f32.mrb[0].mxu0
        %v4746 = vadd.f32 0.0, %v4745
        %v4747 = vpop.f32.mrb[0].mxu0
        %4748 = vmatprep.mubr.bf16.mxu0 0
        %4749 = vmatmul.mubr.bf16.gmra.mrb[0].mxu0 %v4532
        %v4750 = vpop.f32.mrb[0].mxu0
        %v4751 = vadd.f32 0.0, %v4750
        %v4752 = vpop.f32.mrb[0].mxu0
        %v4753 = vpop.f32.mrb[0].mxu0
        %v4754 = vadd.f32 0.0, %v4753
        %v4755 = vpop.f32.mrb[0].mxu0
        %4756 = vmatprep.mubr.bf16.mxu0 0
        %4757 = vmatmul.mubr.bf16.gmra.mrb[0].mxu0 %v4535
        %v4758 = vpop.f32.mrb[0].mxu0
        %v4759 = vadd.f32 0.0, %v4758
        %v4760 = vpop.f32.mrb[0].mxu0
        %v4761 = vpop.f32.mrb[0].mxu0
        %v4762 = vadd.f32 0.0, %v4761
        %v4763 = vpop.f32.mrb[0].mxu0
        %4764 = vdwg.mxu0
        %v4765 = vadd.f32 %v4047, %v4575
        %v4766 = vadd.f32 %v4048, %v4578
        %v4767 = vadd.f32 %v4049, %v4583
        %v4768 = vadd.f32 %v4050, %v4586
        %v4769 = vadd.f32 %v4051, %v4591
        %v4770 = vadd.f32 %v4052, %v4594
        %v4771 = vadd.f32 %v4053, %v4599
        %v4772 = vadd.f32 %v4054, %v4602
        %v4773 = vadd.f32 %v4055, %v4607
        %v4774 = vadd.f32 %v4056, %v4610
        %v4775 = vadd.f32 %v4057, %v4615
        %v4776 = vadd.f32 %v4058, %v4618
        %v4777 = vadd.f32 %v4059, %v4623
        %v4778 = vadd.f32 %v4060, %v4626
        %v4779 = vadd.f32 %v4061, %v4631
        %v4780 = vadd.f32 %v4062, %v4634
        %v4781 = vadd.f32 %v4063, %v4639
        %v4782 = vadd.f32 %v4064, %v4642
        %v4783 = vadd.f32 %v4065, %v4647
        %v4784 = vadd.f32 %v4066, %v4650
        %v4785 = vadd.f32 %v4067, %v4655
        %v4786 = vadd.f32 %v4068, %v4658
        %v4787 = vadd.f32 %v4069, %v4663
        %v4788 = vadd.f32 %v4070, %v4666
        %v4789 = vadd.f32 %v4071, %v4671
        %v4790 = vadd.f32 %v4072, %v4674
        %v4791 = vadd.f32 %v4073, %v4679
        %v4792 = vadd.f32 %v4074, %v4682
        %v4793 = vadd.f32 %v4075, %v4687
        %v4794 = vadd.f32 %v4076, %v4690
        %v4795 = vadd.f32 %v4077, %v4695
        %v4796 = vadd.f32 %v4078, %v4698
        %v4797 = vadd.f32 %v4079, %v4703
        %v4798 = vadd.f32 %v4080, %v4706
        %v4799 = vadd.f32 %v4081, %v4711
        %v4800 = vadd.f32 %v4082, %v4714
        %v4801 = vadd.f32 %v4083, %v4719
        %v4802 = vadd.f32 %v4084, %v4722
        %v4803 = vadd.f32 %v4085, %v4727
        %v4804 = vadd.f32 %v4086, %v4730
        %v4805 = vadd.f32 %v4087, %v4735
        %v4806 = vadd.f32 %v4088, %v4738
        %v4807 = vadd.f32 %v4089, %v4743
        %v4808 = vadd.f32 %v4090, %v4746
        %v4809 = vadd.f32 %v4091, %v4751
        %v4810 = vadd.f32 %v4092, %v4754
        %v4811 = vadd.f32 %v4093, %v4759
        %v4812 = vadd.f32 %v4094, %v4762
        %v4813 = vld [vmem:[%s562 + $0x18] sm:$0xe]
        %s4814 = scalar_lea.vmem %s4, 32
        %v4815 = vld [vmem:[%s4814] sm:$0xf]
        %v4817 = vunpack.c.l.b16 %v4813
        %v4818 = vpack.c.b16 %v4196, %v4817
        %v4819 = vrot.slane %v4818, 1
        %v4820 = vrot.slane %v4245, 1
        %v4821 = vsel %vm1540, %v4819, %v4820
        %v4822 = vrot.slane %v4246, 1
        %v4823 = vsel %vm1540, %v4820, %v4822
        %v4824 = vrot.slane %v4247, 1
        %v4825 = vsel %vm1540, %v4822, %v4824
        %v4826 = vrot.slane %v4248, 1
        %v4827 = vsel %vm1540, %v4824, %v4826
        %v4828 = vrot.slane %v4249, 1
        %v4829 = vsel %vm1540, %v4826, %v4828
        %v4830 = vrot.slane %v4250, 1
        %v4831 = vsel %vm1540, %v4828, %v4830
        %v4832 = vrot.slane %v4251, 1
        %v4833 = vsel %vm1540, %v4830, %v4832
        %v4834 = vrot.slane %v4252, 1
        %v4835 = vsel %vm1540, %v4832, %v4834
        %v4836 = vrot.slane %v4253, 1
        %v4837 = vsel %vm1540, %v4834, %v4836
        %v4838 = vrot.slane %v4254, 1
        %v4839 = vsel %vm1540, %v4836, %v4838
        %v4840 = vrot.slane %v4255, 1
        %v4841 = vsel %vm1540, %v4838, %v4840
        %v4842 = vrot.slane %v4256, 1
        %v4843 = vsel %vm1540, %v4840, %v4842
        %v4844 = vrot.slane %v4257, 1
        %v4845 = vsel %vm1540, %v4842, %v4844
        %v4846 = vrot.slane %v4258, 1
        %v4847 = vsel %vm1540, %v4844, %v4846
        %v4848 = vrot.slane %v4259, 1
        %v4849 = vsel %vm1540, %v4846, %v4848
        %v4850 = vrot.slane %v4260, 1
        %v4851 = vsel %vm1540, %v4848, %v4850
        %v4852 = vrot.slane %v4261, 1
        %v4853 = vsel %vm1540, %v4850, %v4852
        %v4854 = vrot.slane %v4262, 1
        %v4855 = vsel %vm1540, %v4852, %v4854
        %v4856 = vrot.slane %v4263, 1
        %v4857 = vsel %vm1540, %v4854, %v4856
        %v4858 = vrot.slane %v4264, 1
        %v4859 = vsel %vm1540, %v4856, %v4858
        %v4860 = vrot.slane %v4265, 1
        %v4861 = vsel %vm1540, %v4858, %v4860
        %v4862 = vrot.slane %v4266, 1
        %v4863 = vsel %vm1540, %v4860, %v4862
        %v4864 = vrot.slane %v4267, 1
        %v4865 = vsel %vm1540, %v4862, %v4864
        %v4866 = vrot.slane %v4268, 1
        %v4867 = vsel %vm1540, %v4864, %v4866
        %v4869 = vsel %vm956, %v4821, 0
        %v4872 = vsel %vm956, %v4823, 0
        %v4875 = vsel %vm956, %v4825, 0
        %v4878 = vsel %vm956, %v4827, 0
        %v4881 = vsel %vm956, %v4829, 0
        %v4884 = vsel %vm956, %v4831, 0
        %v4887 = vsel %vm956, %v4833, 0
        %v4890 = vsel %vm956, %v4835, 0
        %v4893 = vsel %vm956, %v4837, 0
        %v4896 = vsel %vm956, %v4839, 0
        %v4899 = vsel %vm956, %v4841, 0
        %v4902 = vsel %vm956, %v4843, 0
        %v4905 = vsel %vm956, %v4845, 0
        %v4908 = vsel %vm956, %v4847, 0
        %v4911 = vsel %vm956, %v4849, 0
        %v4914 = vsel %vm956, %v4851, 0
        %v4917 = vsel %vm956, %v4853, 0
        %v4920 = vsel %vm956, %v4855, 0
        %v4923 = vsel %vm956, %v4857, 0
        %v4926 = vsel %vm956, %v4859, 0
        %v4929 = vsel %vm956, %v4861, 0
        %v4932 = vsel %vm956, %v4863, 0
        %v4935 = vsel %vm956, %v4865, 0
        %v4938 = vsel %vm956, %v4867, 0
        %v4941 = vsel %vm1029, %v4815, 0
        %4943 = vmatprep.subr.bf16.mxu0 0
        %4944 = vmatpush1.bf16.msra.mxu0 %v4941
        %4945 = vmatprep.subr.bf16.mxu0 0
        %4946 = vmatpush1.bf16.msra.mxu0 0
        %4947 = vmatprep.subr.bf16.mxu0 0
        %4948 = vmatpush1.bf16.msra.mxu0 0
        %4949 = vmatprep.subr.bf16.mxu0 0
        %4950 = vmatpush1.bf16.msra.mxu0 0
        %4951 = vmatprep.subr.bf16.mxu0 0
        %4952 = vmatpush1.bf16.msra.mxu0 0
        %4953 = vmatprep.subr.bf16.mxu0 0
        %4954 = vmatpush1.bf16.msra.mxu0 0
        %4955 = vmatprep.subr.bf16.mxu0 0
        %4956 = vmatpush1.bf16.msra.mxu0 0
        %4957 = vmatprep.subr.bf16.mxu0 0
        %4958 = vmatpush1.bf16.msra.mxu0 0
        %4959 = vmatprep.subr.bf16.mxu0 0
        %4960 = vmatpush1.bf16.msra.mxu0 0
        %4961 = vmatprep.subr.bf16.mxu0 0
        %4962 = vmatpush1.bf16.msra.mxu0 0
        %4963 = vmatprep.subr.bf16.mxu0 0
        %4964 = vmatpush1.bf16.msra.mxu0 0
        %4965 = vmatprep.subr.bf16.mxu0 0
        %4966 = vmatpush1.bf16.msra.mxu0 0
        %4967 = vmatprep.subr.bf16.mxu0 0
        %4968 = vmatpush1.bf16.msra.mxu0 0
        %4969 = vmatprep.subr.bf16.mxu0 0
        %4970 = vmatpush1.bf16.msra.mxu0 0
        %4971 = vmatprep.subr.bf16.mxu0 0
        %4972 = vmatpush1.bf16.msra.mxu0 0
        %4973 = vmatprep.subr.bf16.mxu0 0
        %4974 = vmatpush1.bf16.msra.mxu0 0
        %4975 = vmatprep.mubr.bf16.mxu0 0
        %4976 = vmatmul.mubr.bf16.gmra.mrb[0].mxu0 %v4869
        %v4977 = vpop.f32.mrb[0].mxu0
        %v4978 = vadd.f32 0.0, %v4977
        %v4979 = vpop.f32.mrb[0].mxu0
        %v4980 = vpop.f32.mrb[0].mxu0
        %v4981 = vadd.f32 0.0, %v4980
        %v4982 = vpop.f32.mrb[0].mxu0
        %4983 = vmatprep.mubr.bf16.mxu0 0
        %4984 = vmatmul.mubr.bf16.gmra.mrb[0].mxu0 %v4872
        %v4985 = vpop.f32.mrb[0].mxu0
        %v4986 = vadd.f32 0.0, %v4985
        %v4987 = vpop.f32.mrb[0].mxu0
        %v4988 = vpop.f32.mrb[0].mxu0
        %v4989 = vadd.f32 0.0, %v4988
        %v4990 = vpop.f32.mrb[0].mxu0
        %4991 = vmatprep.mubr.bf16.mxu0 0
        %4992 = vmatmul.mubr.bf16.gmra.mrb[0].mxu0 %v4875
        %v4993 = vpop.f32.mrb[0].mxu0
        %v4994 = vadd.f32 0.0, %v4993
        %v4995 = vpop.f32.mrb[0].mxu0
        %v4996 = vpop.f32.mrb[0].mxu0
        %v4997 = vadd.f32 0.0, %v4996
        %v4998 = vpop.f32.mrb[0].mxu0
        %4999 = vmatprep.mubr.bf16.mxu0 0
        %5000 = vmatmul.mubr.bf16.gmra.mrb[0].mxu0 %v4878
        %v5001 = vpop.f32.mrb[0].mxu0
        %v5002 = vadd.f32 0.0, %v5001
        %v5003 = vpop.f32.mrb[0].mxu0
        %v5004 = vpop.f32.mrb[0].mxu0
        %v5005 = vadd.f32 0.0, %v5004
        %v5006 = vpop.f32.mrb[0].mxu0
        %5007 = vmatprep.mubr.bf16.mxu0 0
        %5008 = vmatmul.mubr.bf16.gmra.mrb[0].mxu0 %v4881
        %v5009 = vpop.f32.mrb[0].mxu0
        %v5010 = vadd.f32 0.0, %v5009
        %v5011 = vpop.f32.mrb[0].mxu0
        %v5012 = vpop.f32.mrb[0].mxu0
        %v5013 = vadd.f32 0.0, %v5012
        %v5014 = vpop.f32.mrb[0].mxu0
        %5015 = vmatprep.mubr.bf16.mxu0 0
        %5016 = vmatmul.mubr.bf16.gmra.mrb[0].mxu0 %v4884
        %v5017 = vpop.f32.mrb[0].mxu0
        %v5018 = vadd.f32 0.0, %v5017
        %v5019 = vpop.f32.mrb[0].mxu0
        %v5020 = vpop.f32.mrb[0].mxu0
        %v5021 = vadd.f32 0.0, %v5020
        %v5022 = vpop.f32.mrb[0].mxu0
        %5023 = vmatprep.mubr.bf16.mxu0 0
        %5024 = vmatmul.mubr.bf16.gmra.mrb[0].mxu0 %v4887
        %v5025 = vpop.f32.mrb[0].mxu0
        %v5026 = vadd.f32 0.0, %v5025
        %v5027 = vpop.f32.mrb[0].mxu0
        %v5028 = vpop.f32.mrb[0].mxu0
        %v5029 = vadd.f32 0.0, %v5028
        %v5030 = vpop.f32.mrb[0].mxu0
        %5031 = vmatprep.mubr.bf16.mxu0 0
        %5032 = vmatmul.mubr.bf16.gmra.mrb[0].mxu0 %v4890
        %v5033 = vpop.f32.mrb[0].mxu0
        %v5034 = vadd.f32 0.0, %v5033
        %v5035 = vpop.f32.mrb[0].mxu0
        %v5036 = vpop.f32.mrb[0].mxu0
        %v5037 = vadd.f32 0.0, %v5036
        %v5038 = vpop.f32.mrb[0].mxu0
        %5039 = vmatprep.mubr.bf16.mxu0 0
        %5040 = vmatmul.mubr.bf16.gmra.mrb[0].mxu0 %v4893
        %v5041 = vpop.f32.mrb[0].mxu0
        %v5042 = vadd.f32 0.0, %v5041
        %v5043 = vpop.f32.mrb[0].mxu0
        %v5044 = vpop.f32.mrb[0].mxu0
        %v5045 = vadd.f32 0.0, %v5044
        %v5046 = vpop.f32.mrb[0].mxu0
        %5047 = vmatprep.mubr.bf16.mxu0 0
        %5048 = vmatmul.mubr.bf16.gmra.mrb[0].mxu0 %v4896
        %v5049 = vpop.f32.mrb[0].mxu0
        %v5050 = vadd.f32 0.0, %v5049
        %v5051 = vpop.f32.mrb[0].mxu0
        %v5052 = vpop.f32.mrb[0].mxu0
        %v5053 = vadd.f32 0.0, %v5052
        %v5054 = vpop.f32.mrb[0].mxu0
        %5055 = vmatprep.mubr.bf16.mxu0 0
        %5056 = vmatmul.mubr.bf16.gmra.mrb[0].mxu0 %v4899
        %v5057 = vpop.f32.mrb[0].mxu0
        %v5058 = vadd.f32 0.0, %v5057
        %v5059 = vpop.f32.mrb[0].mxu0
        %v5060 = vpop.f32.mrb[0].mxu0
        %v5061 = vadd.f32 0.0, %v5060
        %v5062 = vpop.f32.mrb[0].mxu0
        %5063 = vmatprep.mubr.bf16.mxu0 0
        %5064 = vmatmul.mubr.bf16.gmra.mrb[0].mxu0 %v4902
        %v5065 = vpop.f32.mrb[0].mxu0
        %v5066 = vadd.f32 0.0, %v5065
        %v5067 = vpop.f32.mrb[0].mxu0
        %v5068 = vpop.f32.mrb[0].mxu0
        %v5069 = vadd.f32 0.0, %v5068
        %v5070 = vpop.f32.mrb[0].mxu0
        %5071 = vmatprep.mubr.bf16.mxu0 0
        %5072 = vmatmul.mubr.bf16.gmra.mrb[0].mxu0 %v4905
        %v5073 = vpop.f32.mrb[0].mxu0
        %v5074 = vadd.f32 0.0, %v5073
        %v5075 = vpop.f32.mrb[0].mxu0
        %v5076 = vpop.f32.mrb[0].mxu0
        %v5077 = vadd.f32 0.0, %v5076
        %v5078 = vpop.f32.mrb[0].mxu0
        %5079 = vmatprep.mubr.bf16.mxu0 0
        %5080 = vmatmul.mubr.bf16.gmra.mrb[0].mxu0 %v4908
        %v5081 = vpop.f32.mrb[0].mxu0
        %v5082 = vadd.f32 0.0, %v5081
        %v5083 = vpop.f32.mrb[0].mxu0
        %v5084 = vpop.f32.mrb[0].mxu0
        %v5085 = vadd.f32 0.0, %v5084
        %v5086 = vpop.f32.mrb[0].mxu0
        %5087 = vmatprep.mubr.bf16.mxu0 0
        %5088 = vmatmul.mubr.bf16.gmra.mrb[0].mxu0 %v4911
        %v5089 = vpop.f32.mrb[0].mxu0
        %v5090 = vadd.f32 0.0, %v5089
        %v5091 = vpop.f32.mrb[0].mxu0
        %v5092 = vpop.f32.mrb[0].mxu0
        %v5093 = vadd.f32 0.0, %v5092
        %v5094 = vpop.f32.mrb[0].mxu0
        %5095 = vmatprep.mubr.bf16.mxu0 0
        %5096 = vmatmul.mubr.bf16.gmra.mrb[0].mxu0 %v4914
        %v5097 = vpop.f32.mrb[0].mxu0
        %v5098 = vadd.f32 0.0, %v5097
        %v5099 = vpop.f32.mrb[0].mxu0
        %v5100 = vpop.f32.mrb[0].mxu0
        %v5101 = vadd.f32 0.0, %v5100
        %v5102 = vpop.f32.mrb[0].mxu0
        %5103 = vmatprep.mubr.bf16.mxu0 0
        %5104 = vmatmul.mubr.bf16.gmra.mrb[0].mxu0 %v4917
        %v5105 = vpop.f32.mrb[0].mxu0
        %v5106 = vadd.f32 0.0, %v5105
        %v5107 = vpop.f32.mrb[0].mxu0
        %v5108 = vpop.f32.mrb[0].mxu0
        %v5109 = vadd.f32 0.0, %v5108
        %v5110 = vpop.f32.mrb[0].mxu0
        %5111 = vmatprep.mubr.bf16.mxu0 0
        %5112 = vmatmul.mubr.bf16.gmra.mrb[0].mxu0 %v4920
        %v5113 = vpop.f32.mrb[0].mxu0
        %v5114 = vadd.f32 0.0, %v5113
        %v5115 = vpop.f32.mrb[0].mxu0
        %v5116 = vpop.f32.mrb[0].mxu0
        %v5117 = vadd.f32 0.0, %v5116
        %v5118 = vpop.f32.mrb[0].mxu0
        %5119 = vmatprep.mubr.bf16.mxu0 0
        %5120 = vmatmul.mubr.bf16.gmra.mrb[0].mxu0 %v4923
        %v5121 = vpop.f32.mrb[0].mxu0
        %v5122 = vadd.f32 0.0, %v5121
        %v5123 = vpop.f32.mrb[0].mxu0
        %v5124 = vpop.f32.mrb[0].mxu0
        %v5125 = vadd.f32 0.0, %v5124
        %v5126 = vpop.f32.mrb[0].mxu0
        %5127 = vmatprep.mubr.bf16.mxu0 0
        %5128 = vmatmul.mubr.bf16.gmra.mrb[0].mxu0 %v4926
        %v5129 = vpop.f32.mrb[0].mxu0
        %v5130 = vadd.f32 0.0, %v5129
        %v5131 = vpop.f32.mrb[0].mxu0
        %v5132 = vpop.f32.mrb[0].mxu0
        %v5133 = vadd.f32 0.0, %v5132
        %v5134 = vpop.f32.mrb[0].mxu0
        %5135 = vmatprep.mubr.bf16.mxu0 0
        %5136 = vmatmul.mubr.bf16.gmra.mrb[0].mxu0 %v4929
        %v5137 = vpop.f32.mrb[0].mxu0
        %v5138 = vadd.f32 0.0, %v5137
        %v5139 = vpop.f32.mrb[0].mxu0
        %v5140 = vpop.f32.mrb[0].mxu0
        %v5141 = vadd.f32 0.0, %v5140
        %v5142 = vpop.f32.mrb[0].mxu0
        %5143 = vmatprep.mubr.bf16.mxu0 0
        %5144 = vmatmul.mubr.bf16.gmra.mrb[0].mxu0 %v4932
        %v5145 = vpop.f32.mrb[0].mxu0
        %v5146 = vadd.f32 0.0, %v5145
        %v5147 = vpop.f32.mrb[0].mxu0
        %v5148 = vpop.f32.mrb[0].mxu0
        %v5149 = vadd.f32 0.0, %v5148
        %v5150 = vpop.f32.mrb[0].mxu0
        %5151 = vmatprep.mubr.bf16.mxu0 0
        %5152 = vmatmul.mubr.bf16.gmra.mrb[0].mxu0 %v4935
        %v5153 = vpop.f32.mrb[0].mxu0
        %v5154 = vadd.f32 0.0, %v5153
        %v5155 = vpop.f32.mrb[0].mxu0
        %v5156 = vpop.f32.mrb[0].mxu0
        %v5157 = vadd.f32 0.0, %v5156
        %v5158 = vpop.f32.mrb[0].mxu0
        %5159 = vmatprep.mubr.bf16.mxu0 0
        %5160 = vmatmul.mubr.bf16.gmra.mrb[0].mxu0 %v4938
        %v5161 = vpop.f32.mrb[0].mxu0
        %v5162 = vadd.f32 0.0, %v5161
        %v5163 = vpop.f32.mrb[0].mxu0
        %v5164 = vpop.f32.mrb[0].mxu0
        %v5165 = vadd.f32 0.0, %v5164
        %v5166 = vpop.f32.mrb[0].mxu0
        %5167 = vdwg.mxu0
        %v5168 = vadd.f32 %v4765, %v4978
        %v5169 = vadd.f32 %v4766, %v4981
        %v5170 = vadd.f32 %v4767, %v4986
        %v5171 = vadd.f32 %v4768, %v4989
        %v5172 = vadd.f32 %v4769, %v4994
        %v5173 = vadd.f32 %v4770, %v4997
        %v5174 = vadd.f32 %v4771, %v5002
        %v5175 = vadd.f32 %v4772, %v5005
        %v5176 = vadd.f32 %v4773, %v5010
        %v5177 = vadd.f32 %v4774, %v5013
        %v5178 = vadd.f32 %v4775, %v5018
        %v5179 = vadd.f32 %v4776, %v5021
        %v5180 = vadd.f32 %v4777, %v5026
        %v5181 = vadd.f32 %v4778, %v5029
        %v5182 = vadd.f32 %v4779, %v5034
        %v5183 = vadd.f32 %v4780, %v5037
        %v5184 = vadd.f32 %v4781, %v5042
        %v5185 = vadd.f32 %v4782, %v5045
        %v5186 = vadd.f32 %v4783, %v5050
        %v5187 = vadd.f32 %v4784, %v5053
        %v5188 = vadd.f32 %v4785, %v5058
        %v5189 = vadd.f32 %v4786, %v5061
        %v5190 = vadd.f32 %v4787, %v5066
        %v5191 = vadd.f32 %v4788, %v5069
        %v5192 = vadd.f32 %v4789, %v5074
        %v5193 = vadd.f32 %v4790, %v5077
        %v5194 = vadd.f32 %v4791, %v5082
        %v5195 = vadd.f32 %v4792, %v5085
        %v5196 = vadd.f32 %v4793, %v5090
        %v5197 = vadd.f32 %v4794, %v5093
        %v5198 = vadd.f32 %v4795, %v5098
        %v5199 = vadd.f32 %v4796, %v5101
        %v5200 = vadd.f32 %v4797, %v5106
        %v5201 = vadd.f32 %v4798, %v5109
        %v5202 = vadd.f32 %v4799, %v5114
        %v5203 = vadd.f32 %v4800, %v5117
        %v5204 = vadd.f32 %v4801, %v5122
        %v5205 = vadd.f32 %v4802, %v5125
        %v5206 = vadd.f32 %v4803, %v5130
        %v5207 = vadd.f32 %v4804, %v5133
        %v5208 = vadd.f32 %v4805, %v5138
        %v5209 = vadd.f32 %v4806, %v5141
        %v5210 = vadd.f32 %v4807, %v5146
        %v5211 = vadd.f32 %v4808, %v5149
        %v5212 = vadd.f32 %v4809, %v5154
        %v5213 = vadd.f32 %v4810, %v5157
        %v5214 = vadd.f32 %v4811, %v5162
        %v5215 = vadd.f32 %v4812, %v5165
        %v5216 = vld [vmem:[%s7] sm:$0x1]
        %v5217 = vlaneseq
        %v5218 = vshrl.u32 %v5217, 7
        %v5219 = vsub.s32 0, %v5218
        %v5220 = vrot.slane %v5216, %v5219
        %v5221 = vadd.f32 %v5168, %v5220
        %v5222 = vadd.f32 %v5169, %v5220
        %v5223 = vadd.f32 %v5170, %v5220
        %v5224 = vadd.f32 %v5171, %v5220
        %v5225 = vadd.f32 %v5172, %v5220
        %v5226 = vadd.f32 %v5173, %v5220
        %v5227 = vadd.f32 %v5174, %v5220
        %v5228 = vadd.f32 %v5175, %v5220
        %v5229 = vadd.f32 %v5176, %v5220
        %v5230 = vadd.f32 %v5177, %v5220
        %v5231 = vadd.f32 %v5178, %v5220
        %v5232 = vadd.f32 %v5179, %v5220
        %v5233 = vadd.f32 %v5180, %v5220
        %v5234 = vadd.f32 %v5181, %v5220
        %v5235 = vadd.f32 %v5182, %v5220
        %v5236 = vadd.f32 %v5183, %v5220
        %v5237 = vadd.f32 %v5184, %v5220
        %v5238 = vadd.f32 %v5185, %v5220
        %v5239 = vadd.f32 %v5186, %v5220
        %v5240 = vadd.f32 %v5187, %v5220
        %v5241 = vadd.f32 %v5188, %v5220
        %v5242 = vadd.f32 %v5189, %v5220
        %v5243 = vadd.f32 %v5190, %v5220
        %v5244 = vadd.f32 %v5191, %v5220
        %v5245 = vadd.f32 %v5192, %v5220
        %v5246 = vadd.f32 %v5193, %v5220
        %v5247 = vadd.f32 %v5194, %v5220
        %v5248 = vadd.f32 %v5195, %v5220
        %v5249 = vadd.f32 %v5196, %v5220
        %v5250 = vadd.f32 %v5197, %v5220
        %v5251 = vadd.f32 %v5198, %v5220
        %v5252 = vadd.f32 %v5199, %v5220
        %v5253 = vadd.f32 %v5200, %v5220
        %v5254 = vadd.f32 %v5201, %v5220
        %v5255 = vadd.f32 %v5202, %v5220
        %v5256 = vadd.f32 %v5203, %v5220
        %v5257 = vadd.f32 %v5204, %v5220
        %v5258 = vadd.f32 %v5205, %v5220
        %v5259 = vadd.f32 %v5206, %v5220
        %v5260 = vadd.f32 %v5207, %v5220
        %v5261 = vadd.f32 %v5208, %v5220
        %v5262 = vadd.f32 %v5209, %v5220
        %v5263 = vadd.f32 %v5210, %v5220
        %v5264 = vadd.f32 %v5211, %v5220
        %v5265 = vadd.f32 %v5212, %v5220
        %v5266 = vadd.f32 %v5213, %v5220
        %v5267 = vadd.f32 %v5214, %v5220
        %v5268 = vadd.f32 %v5215, %v5220
        %v5269 = vmax.f32 %v5221, 0.0
        %v5270 = vmax.f32 %v5222, 0.0
        %v5271 = vmax.f32 %v5223, 0.0
        %v5272 = vmax.f32 %v5224, 0.0
        %v5273 = vmax.f32 %v5225, 0.0
        %v5274 = vmax.f32 %v5226, 0.0
        %v5275 = vmax.f32 %v5227, 0.0
        %v5276 = vmax.f32 %v5228, 0.0
        %v5277 = vmax.f32 %v5229, 0.0
        %v5278 = vmax.f32 %v5230, 0.0
        %v5279 = vmax.f32 %v5231, 0.0
        %v5280 = vmax.f32 %v5232, 0.0
        %v5281 = vmax.f32 %v5233, 0.0
        %v5282 = vmax.f32 %v5234, 0.0
        %v5283 = vmax.f32 %v5235, 0.0
        %v5284 = vmax.f32 %v5236, 0.0
        %v5285 = vmax.f32 %v5237, 0.0
        %v5286 = vmax.f32 %v5238, 0.0
        %v5287 = vmax.f32 %v5239, 0.0
        %v5288 = vmax.f32 %v5240, 0.0
        %v5289 = vmax.f32 %v5241, 0.0
        %v5290 = vmax.f32 %v5242, 0.0
        %v5291 = vmax.f32 %v5243, 0.0
        %v5292 = vmax.f32 %v5244, 0.0
        %v5293 = vmax.f32 %v5245, 0.0
        %v5294 = vmax.f32 %v5246, 0.0
        %v5295 = vmax.f32 %v5247, 0.0
        %v5296 = vmax.f32 %v5248, 0.0
        %v5297 = vmax.f32 %v5249, 0.0
        %v5298 = vmax.f32 %v5250, 0.0
        %v5299 = vmax.f32 %v5251, 0.0
        %v5300 = vmax.f32 %v5252, 0.0
        %v5301 = vmax.f32 %v5253, 0.0
        %v5302 = vmax.f32 %v5254, 0.0
        %v5303 = vmax.f32 %v5255, 0.0
        %v5304 = vmax.f32 %v5256, 0.0
        %v5305 = vmax.f32 %v5257, 0.0
        %v5306 = vmax.f32 %v5258, 0.0
        %v5307 = vmax.f32 %v5259, 0.0
        %v5308 = vmax.f32 %v5260, 0.0
        %v5309 = vmax.f32 %v5261, 0.0
        %v5310 = vmax.f32 %v5262, 0.0
        %v5311 = vmax.f32 %v5263, 0.0
        %v5312 = vmax.f32 %v5264, 0.0
        %v5313 = vmax.f32 %v5265, 0.0
        %v5314 = vmax.f32 %v5266, 0.0
        %v5315 = vmax.f32 %v5267, 0.0
        %v5316 = vmax.f32 %v5268, 0.0
        %5317 = vxpose.xlu0.b32.start [1/16] %v5269, 128
        %5318 = vxpose.xlu0.b32.cont [2/16] %v5270, 128
        %5319 = vxpose.xlu0.b32.cont [3/16] %v5271, 128
        %5320 = vxpose.xlu0.b32.cont [4/16] 0.0, 128
        %5321 = vxpose.xlu0.b32.cont [5/16] 0.0, 128
        %5322 = vxpose.xlu0.b32.cont [6/16] 0.0, 128
        %5323 = vxpose.xlu0.b32.cont [7/16] 0.0, 128
        %5324 = vxpose.xlu0.b32.cont [8/16] 0.0, 128
        %5325 = vxpose.xlu0.b32.cont [9/16] 0.0, 128
        %5326 = vxpose.xlu0.b32.cont [10/16] 0.0, 128
        %5327 = vxpose.xlu0.b32.cont [11/16] 0.0, 128
        %5328 = vxpose.xlu0.b32.cont [12/16] 0.0, 128
        %5329 = vxpose.xlu0.b32.cont [13/16] 0.0, 128
        %5330 = vxpose.xlu0.b32.cont [14/16] 0.0, 128
        %5331 = vxpose.xlu0.b32.cont [15/16] 0.0, 128
        %5332 = vxpose.xlu0.b32.end [16/16] 0.0, 128
        %v5333 = vpop.trf.xlu0
        %v5334 = vpop.trf.xlu0
        %v5335 = vpop.trf.xlu0
        %v5336 = vpop.trf.xlu0
        %v5337 = vpop.trf.xlu0
        %v5338 = vpop.trf.xlu0
        %v5339 = vpop.trf.xlu0
        %v5340 = vpop.trf.xlu0
        %v5341 = vpop.trf.xlu0
        %v5342 = vpop.trf.xlu0
        %v5343 = vpop.trf.xlu0
        %v5344 = vpop.trf.xlu0
        %v5345 = vpop.trf.xlu0
        %v5346 = vpop.trf.xlu0
        %v5347 = vpop.trf.xlu0
        %v5348 = vpop.trf.xlu0
        %5349 = vxpose.xlu0.b32.start [1/16] %v5272, 128
        %5350 = vxpose.xlu0.b32.cont [2/16] %v5273, 128
        %5351 = vxpose.xlu0.b32.cont [3/16] %v5274, 128
        %5352 = vxpose.xlu0.b32.cont [4/16] 0.0, 128
        %5353 = vxpose.xlu0.b32.cont [5/16] 0.0, 128
        %5354 = vxpose.xlu0.b32.cont [6/16] 0.0, 128
        %5355 = vxpose.xlu0.b32.cont [7/16] 0.0, 128
        %5356 = vxpose.xlu0.b32.cont [8/16] 0.0, 128
        %5357 = vxpose.xlu0.b32.cont [9/16] 0.0, 128
        %5358 = vxpose.xlu0.b32.cont [10/16] 0.0, 128
        %5359 = vxpose.xlu0.b32.cont [11/16] 0.0, 128
        %5360 = vxpose.xlu0.b32.cont [12/16] 0.0, 128
        %5361 = vxpose.xlu0.b32.cont [13/16] 0.0, 128
        %5362 = vxpose.xlu0.b32.cont [14/16] 0.0, 128
        %5363 = vxpose.xlu0.b32.cont [15/16] 0.0, 128
        %5364 = vxpose.xlu0.b32.end [16/16] 0.0, 128
        %v5365 = vpop.trf.xlu0
        %v5366 = vpop.trf.xlu0
        %v5367 = vpop.trf.xlu0
        %v5368 = vpop.trf.xlu0
        %v5369 = vpop.trf.xlu0
        %v5370 = vpop.trf.xlu0
        %v5371 = vpop.trf.xlu0
        %v5372 = vpop.trf.xlu0
        %v5373 = vpop.trf.xlu0
        %v5374 = vpop.trf.xlu0
        %v5375 = vpop.trf.xlu0
        %v5376 = vpop.trf.xlu0
        %v5377 = vpop.trf.xlu0
        %v5378 = vpop.trf.xlu0
        %v5379 = vpop.trf.xlu0
        %v5380 = vpop.trf.xlu0
        %5381 = vxpose.xlu0.b32.start [1/16] %v5275, 128
        %5382 = vxpose.xlu0.b32.cont [2/16] %v5276, 128
        %5383 = vxpose.xlu0.b32.cont [3/16] %v5277, 128
        %5384 = vxpose.xlu0.b32.cont [4/16] 0.0, 128
        %5385 = vxpose.xlu0.b32.cont [5/16] 0.0, 128
        %5386 = vxpose.xlu0.b32.cont [6/16] 0.0, 128
        %5387 = vxpose.xlu0.b32.cont [7/16] 0.0, 128
        %5388 = vxpose.xlu0.b32.cont [8/16] 0.0, 128
        %5389 = vxpose.xlu0.b32.cont [9/16] 0.0, 128
        %5390 = vxpose.xlu0.b32.cont [10/16] 0.0, 128
        %5391 = vxpose.xlu0.b32.cont [11/16] 0.0, 128
        %5392 = vxpose.xlu0.b32.cont [12/16] 0.0, 128
        %5393 = vxpose.xlu0.b32.cont [13/16] 0.0, 128
        %5394 = vxpose.xlu0.b32.cont [14/16] 0.0, 128
        %5395 = vxpose.xlu0.b32.cont [15/16] 0.0, 128
        %5396 = vxpose.xlu0.b32.end [16/16] 0.0, 128
        %v5397 = vpop.trf.xlu0
        %v5398 = vpop.trf.xlu0
        %v5399 = vpop.trf.xlu0
        %v5400 = vpop.trf.xlu0
        %v5401 = vpop.trf.xlu0
        %v5402 = vpop.trf.xlu0
        %v5403 = vpop.trf.xlu0
        %v5404 = vpop.trf.xlu0
        %v5405 = vpop.trf.xlu0
        %v5406 = vpop.trf.xlu0
        %v5407 = vpop.trf.xlu0
        %v5408 = vpop.trf.xlu0
        %v5409 = vpop.trf.xlu0
        %v5410 = vpop.trf.xlu0
        %v5411 = vpop.trf.xlu0
        %v5412 = vpop.trf.xlu0
        %5413 = vxpose.xlu0.b32.start [1/16] %v5278, 128
        %5414 = vxpose.xlu0.b32.cont [2/16] %v5279, 128
        %5415 = vxpose.xlu0.b32.cont [3/16] %v5280, 128
        %5416 = vxpose.xlu0.b32.cont [4/16] 0.0, 128
        %5417 = vxpose.xlu0.b32.cont [5/16] 0.0, 128
        %5418 = vxpose.xlu0.b32.cont [6/16] 0.0, 128
        %5419 = vxpose.xlu0.b32.cont [7/16] 0.0, 128
        %5420 = vxpose.xlu0.b32.cont [8/16] 0.0, 128
        %5421 = vxpose.xlu0.b32.cont [9/16] 0.0, 128
        %5422 = vxpose.xlu0.b32.cont [10/16] 0.0, 128
        %5423 = vxpose.xlu0.b32.cont [11/16] 0.0, 128
        %5424 = vxpose.xlu0.b32.cont [12/16] 0.0, 128
        %5425 = vxpose.xlu0.b32.cont [13/16] 0.0, 128
        %5426 = vxpose.xlu0.b32.cont [14/16] 0.0, 128
        %5427 = vxpose.xlu0.b32.cont [15/16] 0.0, 128
        %5428 = vxpose.xlu0.b32.end [16/16] 0.0, 128
        %v5429 = vpop.trf.xlu0
        %v5430 = vpop.trf.xlu0
        %v5431 = vpop.trf.xlu0
        %v5432 = vpop.trf.xlu0
        %v5433 = vpop.trf.xlu0
        %v5434 = vpop.trf.xlu0
        %v5435 = vpop.trf.xlu0
        %v5436 = vpop.trf.xlu0
        %v5437 = vpop.trf.xlu0
        %v5438 = vpop.trf.xlu0
        %v5439 = vpop.trf.xlu0
        %v5440 = vpop.trf.xlu0
        %v5441 = vpop.trf.xlu0
        %v5442 = vpop.trf.xlu0
        %v5443 = vpop.trf.xlu0
        %v5444 = vpop.trf.xlu0
        %5445 = vxpose.xlu0.b32.start [1/16] %v5281, 128
        %5446 = vxpose.xlu0.b32.cont [2/16] %v5282, 128
        %5447 = vxpose.xlu0.b32.cont [3/16] %v5283, 128
        %5448 = vxpose.xlu0.b32.cont [4/16] 0.0, 128
        %5449 = vxpose.xlu0.b32.cont [5/16] 0.0, 128
        %5450 = vxpose.xlu0.b32.cont [6/16] 0.0, 128
        %5451 = vxpose.xlu0.b32.cont [7/16] 0.0, 128
        %5452 = vxpose.xlu0.b32.cont [8/16] 0.0, 128
        %5453 = vxpose.xlu0.b32.cont [9/16] 0.0, 128
        %5454 = vxpose.xlu0.b32.cont [10/16] 0.0, 128
        %5455 = vxpose.xlu0.b32.cont [11/16] 0.0, 128
        %5456 = vxpose.xlu0.b32.cont [12/16] 0.0, 128
        %5457 = vxpose.xlu0.b32.cont [13/16] 0.0, 128
        %5458 = vxpose.xlu0.b32.cont [14/16] 0.0, 128
        %5459 = vxpose.xlu0.b32.cont [15/16] 0.0, 128
        %5460 = vxpose.xlu0.b32.end [16/16] 0.0, 128
        %v5461 = vpop.trf.xlu0
        %v5462 = vpop.trf.xlu0
        %v5463 = vpop.trf.xlu0
        %v5464 = vpop.trf.xlu0
        %v5465 = vpop.trf.xlu0
        %v5466 = vpop.trf.xlu0
        %v5467 = vpop.trf.xlu0
        %v5468 = vpop.trf.xlu0
        %v5469 = vpop.trf.xlu0
        %v5470 = vpop.trf.xlu0
        %v5471 = vpop.trf.xlu0
        %v5472 = vpop.trf.xlu0
        %v5473 = vpop.trf.xlu0
        %v5474 = vpop.trf.xlu0
        %v5475 = vpop.trf.xlu0
        %v5476 = vpop.trf.xlu0
        %5477 = vxpose.xlu0.b32.start [1/16] %v5284, 128
        %5478 = vxpose.xlu0.b32.cont [2/16] %v5285, 128
        %5479 = vxpose.xlu0.b32.cont [3/16] %v5286, 128
        %5480 = vxpose.xlu0.b32.cont [4/16] 0.0, 128
        %5481 = vxpose.xlu0.b32.cont [5/16] 0.0, 128
        %5482 = vxpose.xlu0.b32.cont [6/16] 0.0, 128
        %5483 = vxpose.xlu0.b32.cont [7/16] 0.0, 128
        %5484 = vxpose.xlu0.b32.cont [8/16] 0.0, 128
        %5485 = vxpose.xlu0.b32.cont [9/16] 0.0, 128
        %5486 = vxpose.xlu0.b32.cont [10/16] 0.0, 128
        %5487 = vxpose.xlu0.b32.cont [11/16] 0.0, 128
        %5488 = vxpose.xlu0.b32.cont [12/16] 0.0, 128
        %5489 = vxpose.xlu0.b32.cont [13/16] 0.0, 128
        %5490 = vxpose.xlu0.b32.cont [14/16] 0.0, 128
        %5491 = vxpose.xlu0.b32.cont [15/16] 0.0, 128
        %5492 = vxpose.xlu0.b32.end [16/16] 0.0, 128
        %v5493 = vpop.trf.xlu0
        %v5494 = vpop.trf.xlu0
        %v5495 = vpop.trf.xlu0
        %v5496 = vpop.trf.xlu0
        %v5497 = vpop.trf.xlu0
        %v5498 = vpop.trf.xlu0
        %v5499 = vpop.trf.xlu0
        %v5500 = vpop.trf.xlu0
        %v5501 = vpop.trf.xlu0
        %v5502 = vpop.trf.xlu0
        %v5503 = vpop.trf.xlu0
        %v5504 = vpop.trf.xlu0
        %v5505 = vpop.trf.xlu0
        %v5506 = vpop.trf.xlu0
        %v5507 = vpop.trf.xlu0
        %v5508 = vpop.trf.xlu0
        %5509 = vxpose.xlu0.b32.start [1/16] %v5287, 128
        %5510 = vxpose.xlu0.b32.cont [2/16] %v5288, 128
        %5511 = vxpose.xlu0.b32.cont [3/16] %v5289, 128
        %5512 = vxpose.xlu0.b32.cont [4/16] 0.0, 128
        %5513 = vxpose.xlu0.b32.cont [5/16] 0.0, 128
        %5514 = vxpose.xlu0.b32.cont [6/16] 0.0, 128
        %5515 = vxpose.xlu0.b32.cont [7/16] 0.0, 128
        %5516 = vxpose.xlu0.b32.cont [8/16] 0.0, 128
        %5517 = vxpose.xlu0.b32.cont [9/16] 0.0, 128
        %5518 = vxpose.xlu0.b32.cont [10/16] 0.0, 128
        %5519 = vxpose.xlu0.b32.cont [11/16] 0.0, 128
        %5520 = vxpose.xlu0.b32.cont [12/16] 0.0, 128
        %5521 = vxpose.xlu0.b32.cont [13/16] 0.0, 128
        %5522 = vxpose.xlu0.b32.cont [14/16] 0.0, 128
        %5523 = vxpose.xlu0.b32.cont [15/16] 0.0, 128
        %5524 = vxpose.xlu0.b32.end [16/16] 0.0, 128
        %v5525 = vpop.trf.xlu0
        %v5526 = vpop.trf.xlu0
        %v5527 = vpop.trf.xlu0
        %v5528 = vpop.trf.xlu0
        %v5529 = vpop.trf.xlu0
        %v5530 = vpop.trf.xlu0
        %v5531 = vpop.trf.xlu0
        %v5532 = vpop.trf.xlu0
        %v5533 = vpop.trf.xlu0
        %v5534 = vpop.trf.xlu0
        %v5535 = vpop.trf.xlu0
        %v5536 = vpop.trf.xlu0
        %v5537 = vpop.trf.xlu0
        %v5538 = vpop.trf.xlu0
        %v5539 = vpop.trf.xlu0
        %v5540 = vpop.trf.xlu0
        %5541 = vxpose.xlu0.b32.start [1/16] %v5290, 128
        %5542 = vxpose.xlu0.b32.cont [2/16] %v5291, 128
        %5543 = vxpose.xlu0.b32.cont [3/16] %v5292, 128
        %5544 = vxpose.xlu0.b32.cont [4/16] 0.0, 128
        %5545 = vxpose.xlu0.b32.cont [5/16] 0.0, 128
        %5546 = vxpose.xlu0.b32.cont [6/16] 0.0, 128
        %5547 = vxpose.xlu0.b32.cont [7/16] 0.0, 128
        %5548 = vxpose.xlu0.b32.cont [8/16] 0.0, 128
        %5549 = vxpose.xlu0.b32.cont [9/16] 0.0, 128
        %5550 = vxpose.xlu0.b32.cont [10/16] 0.0, 128
        %5551 = vxpose.xlu0.b32.cont [11/16] 0.0, 128
        %5552 = vxpose.xlu0.b32.cont [12/16] 0.0, 128
        %5553 = vxpose.xlu0.b32.cont [13/16] 0.0, 128
        %5554 = vxpose.xlu0.b32.cont [14/16] 0.0, 128
        %5555 = vxpose.xlu0.b32.cont [15/16] 0.0, 128
        %5556 = vxpose.xlu0.b32.end [16/16] 0.0, 128
        %v5557 = vpop.trf.xlu0
        %v5558 = vpop.trf.xlu0
        %v5559 = vpop.trf.xlu0
        %v5560 = vpop.trf.xlu0
        %v5561 = vpop.trf.xlu0
        %v5562 = vpop.trf.xlu0
        %v5563 = vpop.trf.xlu0
        %v5564 = vpop.trf.xlu0
        %v5565 = vpop.trf.xlu0
        %v5566 = vpop.trf.xlu0
        %v5567 = vpop.trf.xlu0
        %v5568 = vpop.trf.xlu0
        %v5569 = vpop.trf.xlu0
        %v5570 = vpop.trf.xlu0
        %v5571 = vpop.trf.xlu0
        %v5572 = vpop.trf.xlu0
        %5573 = vxpose.xlu0.b32.start [1/16] %v5293, 128
        %5574 = vxpose.xlu0.b32.cont [2/16] %v5294, 128
        %5575 = vxpose.xlu0.b32.cont [3/16] %v5295, 128
        %5576 = vxpose.xlu0.b32.cont [4/16] 0.0, 128
        %5577 = vxpose.xlu0.b32.cont [5/16] 0.0, 128
        %5578 = vxpose.xlu0.b32.cont [6/16] 0.0, 128
        %5579 = vxpose.xlu0.b32.cont [7/16] 0.0, 128
        %5580 = vxpose.xlu0.b32.cont [8/16] 0.0, 128
        %5581 = vxpose.xlu0.b32.cont [9/16] 0.0, 128
        %5582 = vxpose.xlu0.b32.cont [10/16] 0.0, 128
        %5583 = vxpose.xlu0.b32.cont [11/16] 0.0, 128
        %5584 = vxpose.xlu0.b32.cont [12/16] 0.0, 128
        %5585 = vxpose.xlu0.b32.cont [13/16] 0.0, 128
        %5586 = vxpose.xlu0.b32.cont [14/16] 0.0, 128
        %5587 = vxpose.xlu0.b32.cont [15/16] 0.0, 128
        %5588 = vxpose.xlu0.b32.end [16/16] 0.0, 128
        %v5589 = vpop.trf.xlu0
        %v5590 = vpop.trf.xlu0
        %v5591 = vpop.trf.xlu0
        %v5592 = vpop.trf.xlu0
        %v5593 = vpop.trf.xlu0
        %v5594 = vpop.trf.xlu0
        %v5595 = vpop.trf.xlu0
        %v5596 = vpop.trf.xlu0
        %v5597 = vpop.trf.xlu0
        %v5598 = vpop.trf.xlu0
        %v5599 = vpop.trf.xlu0
        %v5600 = vpop.trf.xlu0
        %v5601 = vpop.trf.xlu0
        %v5602 = vpop.trf.xlu0
        %v5603 = vpop.trf.xlu0
        %v5604 = vpop.trf.xlu0
        %5605 = vxpose.xlu0.b32.start [1/16] %v5296, 128
        %5606 = vxpose.xlu0.b32.cont [2/16] %v5297, 128
        %5607 = vxpose.xlu0.b32.cont [3/16] %v5298, 128
        %5608 = vxpose.xlu0.b32.cont [4/16] 0.0, 128
        %5609 = vxpose.xlu0.b32.cont [5/16] 0.0, 128
        %5610 = vxpose.xlu0.b32.cont [6/16] 0.0, 128
        %5611 = vxpose.xlu0.b32.cont [7/16] 0.0, 128
        %5612 = vxpose.xlu0.b32.cont [8/16] 0.0, 128
        %5613 = vxpose.xlu0.b32.cont [9/16] 0.0, 128
        %5614 = vxpose.xlu0.b32.cont [10/16] 0.0, 128
        %5615 = vxpose.xlu0.b32.cont [11/16] 0.0, 128
        %5616 = vxpose.xlu0.b32.cont [12/16] 0.0, 128
        %5617 = vxpose.xlu0.b32.cont [13/16] 0.0, 128
        %5618 = vxpose.xlu0.b32.cont [14/16] 0.0, 128
        %5619 = vxpose.xlu0.b32.cont [15/16] 0.0, 128
        %5620 = vxpose.xlu0.b32.end [16/16] 0.0, 128
        %v5621 = vpop.trf.xlu0
        %v5622 = vpop.trf.xlu0
        %v5623 = vpop.trf.xlu0
        %v5624 = vpop.trf.xlu0
        %v5625 = vpop.trf.xlu0
        %v5626 = vpop.trf.xlu0
        %v5627 = vpop.trf.xlu0
        %v5628 = vpop.trf.xlu0
        %v5629 = vpop.trf.xlu0
        %v5630 = vpop.trf.xlu0
        %v5631 = vpop.trf.xlu0
        %v5632 = vpop.trf.xlu0
        %v5633 = vpop.trf.xlu0
        %v5634 = vpop.trf.xlu0
        %v5635 = vpop.trf.xlu0
        %v5636 = vpop.trf.xlu0
        %5637 = vxpose.xlu0.b32.start [1/16] %v5299, 128
        %5638 = vxpose.xlu0.b32.cont [2/16] %v5300, 128
        %5639 = vxpose.xlu0.b32.cont [3/16] %v5301, 128
        %5640 = vxpose.xlu0.b32.cont [4/16] 0.0, 128
        %5641 = vxpose.xlu0.b32.cont [5/16] 0.0, 128
        %5642 = vxpose.xlu0.b32.cont [6/16] 0.0, 128
        %5643 = vxpose.xlu0.b32.cont [7/16] 0.0, 128
        %5644 = vxpose.xlu0.b32.cont [8/16] 0.0, 128
        %5645 = vxpose.xlu0.b32.cont [9/16] 0.0, 128
        %5646 = vxpose.xlu0.b32.cont [10/16] 0.0, 128
        %5647 = vxpose.xlu0.b32.cont [11/16] 0.0, 128
        %5648 = vxpose.xlu0.b32.cont [12/16] 0.0, 128
        %5649 = vxpose.xlu0.b32.cont [13/16] 0.0, 128
        %5650 = vxpose.xlu0.b32.cont [14/16] 0.0, 128
        %5651 = vxpose.xlu0.b32.cont [15/16] 0.0, 128
        %5652 = vxpose.xlu0.b32.end [16/16] 0.0, 128
        %v5653 = vpop.trf.xlu0
        %v5654 = vpop.trf.xlu0
        %v5655 = vpop.trf.xlu0
        %v5656 = vpop.trf.xlu0
        %v5657 = vpop.trf.xlu0
        %v5658 = vpop.trf.xlu0
        %v5659 = vpop.trf.xlu0
        %v5660 = vpop.trf.xlu0
        %v5661 = vpop.trf.xlu0
        %v5662 = vpop.trf.xlu0
        %v5663 = vpop.trf.xlu0
        %v5664 = vpop.trf.xlu0
        %v5665 = vpop.trf.xlu0
        %v5666 = vpop.trf.xlu0
        %v5667 = vpop.trf.xlu0
        %v5668 = vpop.trf.xlu0
        %5669 = vxpose.xlu0.b32.start [1/16] %v5302, 128
        %5670 = vxpose.xlu0.b32.cont [2/16] %v5303, 128
        %5671 = vxpose.xlu0.b32.cont [3/16] %v5304, 128
        %5672 = vxpose.xlu0.b32.cont [4/16] 0.0, 128
        %5673 = vxpose.xlu0.b32.cont [5/16] 0.0, 128
        %5674 = vxpose.xlu0.b32.cont [6/16] 0.0, 128
        %5675 = vxpose.xlu0.b32.cont [7/16] 0.0, 128
        %5676 = vxpose.xlu0.b32.cont [8/16] 0.0, 128
        %5677 = vxpose.xlu0.b32.cont [9/16] 0.0, 128
        %5678 = vxpose.xlu0.b32.cont [10/16] 0.0, 128
        %5679 = vxpose.xlu0.b32.cont [11/16] 0.0, 128
        %5680 = vxpose.xlu0.b32.cont [12/16] 0.0, 128
        %5681 = vxpose.xlu0.b32.cont [13/16] 0.0, 128
        %5682 = vxpose.xlu0.b32.cont [14/16] 0.0, 128
        %5683 = vxpose.xlu0.b32.cont [15/16] 0.0, 128
        %5684 = vxpose.xlu0.b32.end [16/16] 0.0, 128
        %v5685 = vpop.trf.xlu0
        %v5686 = vpop.trf.xlu0
        %v5687 = vpop.trf.xlu0
        %v5688 = vpop.trf.xlu0
        %v5689 = vpop.trf.xlu0
        %v5690 = vpop.trf.xlu0
        %v5691 = vpop.trf.xlu0
        %v5692 = vpop.trf.xlu0
        %v5693 = vpop.trf.xlu0
        %v5694 = vpop.trf.xlu0
        %v5695 = vpop.trf.xlu0
        %v5696 = vpop.trf.xlu0
        %v5697 = vpop.trf.xlu0
        %v5698 = vpop.trf.xlu0
        %v5699 = vpop.trf.xlu0
        %v5700 = vpop.trf.xlu0
        %5701 = vxpose.xlu0.b32.start [1/16] %v5305, 128
        %5702 = vxpose.xlu0.b32.cont [2/16] %v5306, 128
        %5703 = vxpose.xlu0.b32.cont [3/16] %v5307, 128
        %5704 = vxpose.xlu0.b32.cont [4/16] 0.0, 128
        %5705 = vxpose.xlu0.b32.cont [5/16] 0.0, 128
        %5706 = vxpose.xlu0.b32.cont [6/16] 0.0, 128
        %5707 = vxpose.xlu0.b32.cont [7/16] 0.0, 128
        %5708 = vxpose.xlu0.b32.cont [8/16] 0.0, 128
        %5709 = vxpose.xlu0.b32.cont [9/16] 0.0, 128
        %5710 = vxpose.xlu0.b32.cont [10/16] 0.0, 128
        %5711 = vxpose.xlu0.b32.cont [11/16] 0.0, 128
        %5712 = vxpose.xlu0.b32.cont [12/16] 0.0, 128
        %5713 = vxpose.xlu0.b32.cont [13/16] 0.0, 128
        %5714 = vxpose.xlu0.b32.cont [14/16] 0.0, 128
        %5715 = vxpose.xlu0.b32.cont [15/16] 0.0, 128
        %5716 = vxpose.xlu0.b32.end [16/16] 0.0, 128
        %v5717 = vpop.trf.xlu0
        %v5718 = vpop.trf.xlu0
        %v5719 = vpop.trf.xlu0
        %v5720 = vpop.trf.xlu0
        %v5721 = vpop.trf.xlu0
        %v5722 = vpop.trf.xlu0
        %v5723 = vpop.trf.xlu0
        %v5724 = vpop.trf.xlu0
        %v5725 = vpop.trf.xlu0
        %v5726 = vpop.trf.xlu0
        %v5727 = vpop.trf.xlu0
        %v5728 = vpop.trf.xlu0
        %v5729 = vpop.trf.xlu0
        %v5730 = vpop.trf.xlu0
        %v5731 = vpop.trf.xlu0
        %v5732 = vpop.trf.xlu0
        %5733 = vxpose.xlu0.b32.start [1/16] %v5308, 128
        %5734 = vxpose.xlu0.b32.cont [2/16] %v5309, 128
        %5735 = vxpose.xlu0.b32.cont [3/16] %v5310, 128
        %5736 = vxpose.xlu0.b32.cont [4/16] 0.0, 128
        %5737 = vxpose.xlu0.b32.cont [5/16] 0.0, 128
        %5738 = vxpose.xlu0.b32.cont [6/16] 0.0, 128
        %5739 = vxpose.xlu0.b32.cont [7/16] 0.0, 128
        %5740 = vxpose.xlu0.b32.cont [8/16] 0.0, 128
        %5741 = vxpose.xlu0.b32.cont [9/16] 0.0, 128
        %5742 = vxpose.xlu0.b32.cont [10/16] 0.0, 128
        %5743 = vxpose.xlu0.b32.cont [11/16] 0.0, 128
        %5744 = vxpose.xlu0.b32.cont [12/16] 0.0, 128
        %5745 = vxpose.xlu0.b32.cont [13/16] 0.0, 128
        %5746 = vxpose.xlu0.b32.cont [14/16] 0.0, 128
        %5747 = vxpose.xlu0.b32.cont [15/16] 0.0, 128
        %5748 = vxpose.xlu0.b32.end [16/16] 0.0, 128
        %v5749 = vpop.trf.xlu0
        %v5750 = vpop.trf.xlu0
        %v5751 = vpop.trf.xlu0
        %v5752 = vpop.trf.xlu0
        %v5753 = vpop.trf.xlu0
        %v5754 = vpop.trf.xlu0
        %v5755 = vpop.trf.xlu0
        %v5756 = vpop.trf.xlu0
        %v5757 = vpop.trf.xlu0
        %v5758 = vpop.trf.xlu0
        %v5759 = vpop.trf.xlu0
        %v5760 = vpop.trf.xlu0
        %v5761 = vpop.trf.xlu0
        %v5762 = vpop.trf.xlu0
        %v5763 = vpop.trf.xlu0
        %v5764 = vpop.trf.xlu0
        %5765 = vxpose.xlu0.b32.start [1/16] %v5311, 128
        %5766 = vxpose.xlu0.b32.cont [2/16] %v5312, 128
        %5767 = vxpose.xlu0.b32.cont [3/16] %v5313, 128
        %5768 = vxpose.xlu0.b32.cont [4/16] 0.0, 128
        %5769 = vxpose.xlu0.b32.cont [5/16] 0.0, 128
        %5770 = vxpose.xlu0.b32.cont [6/16] 0.0, 128
        %5771 = vxpose.xlu0.b32.cont [7/16] 0.0, 128
        %5772 = vxpose.xlu0.b32.cont [8/16] 0.0, 128
        %5773 = vxpose.xlu0.b32.cont [9/16] 0.0, 128
        %5774 = vxpose.xlu0.b32.cont [10/16] 0.0, 128
        %5775 = vxpose.xlu0.b32.cont [11/16] 0.0, 128
        %5776 = vxpose.xlu0.b32.cont [12/16] 0.0, 128
        %5777 = vxpose.xlu0.b32.cont [13/16] 0.0, 128
        %5778 = vxpose.xlu0.b32.cont [14/16] 0.0, 128
        %5779 = vxpose.xlu0.b32.cont [15/16] 0.0, 128
        %5780 = vxpose.xlu0.b32.end [16/16] 0.0, 128
        %v5781 = vpop.trf.xlu0
        %v5782 = vpop.trf.xlu0
        %v5783 = vpop.trf.xlu0
        %v5784 = vpop.trf.xlu0
        %v5785 = vpop.trf.xlu0
        %v5786 = vpop.trf.xlu0
        %v5787 = vpop.trf.xlu0
        %v5788 = vpop.trf.xlu0
        %v5789 = vpop.trf.xlu0
        %v5790 = vpop.trf.xlu0
        %v5791 = vpop.trf.xlu0
        %v5792 = vpop.trf.xlu0
        %v5793 = vpop.trf.xlu0
        %v5794 = vpop.trf.xlu0
        %v5795 = vpop.trf.xlu0
        %v5796 = vpop.trf.xlu0
        %5797 = vxpose.xlu0.b32.start [1/16] %v5314, 128
        %5798 = vxpose.xlu0.b32.cont [2/16] %v5315, 128
        %5799 = vxpose.xlu0.b32.cont [3/16] %v5316, 128
        %5800 = vxpose.xlu0.b32.cont [4/16] 0.0, 128
        %5801 = vxpose.xlu0.b32.cont [5/16] 0.0, 128
        %5802 = vxpose.xlu0.b32.cont [6/16] 0.0, 128
        %5803 = vxpose.xlu0.b32.cont [7/16] 0.0, 128
        %5804 = vxpose.xlu0.b32.cont [8/16] 0.0, 128
        %5805 = vxpose.xlu0.b32.cont [9/16] 0.0, 128
        %5806 = vxpose.xlu0.b32.cont [10/16] 0.0, 128
        %5807 = vxpose.xlu0.b32.cont [11/16] 0.0, 128
        %5808 = vxpose.xlu0.b32.cont [12/16] 0.0, 128
        %5809 = vxpose.xlu0.b32.cont [13/16] 0.0, 128
        %5810 = vxpose.xlu0.b32.cont [14/16] 0.0, 128
        %5811 = vxpose.xlu0.b32.cont [15/16] 0.0, 128
        %5812 = vxpose.xlu0.b32.end [16/16] 0.0, 128
        %v5813 = vpop.trf.xlu0
        %v5814 = vpop.trf.xlu0
        %v5815 = vpop.trf.xlu0
        %v5816 = vpop.trf.xlu0
        %v5817 = vpop.trf.xlu0
        %v5818 = vpop.trf.xlu0
        %v5819 = vpop.trf.xlu0
        %v5820 = vpop.trf.xlu0
        %v5821 = vpop.trf.xlu0
        %v5822 = vpop.trf.xlu0
        %v5823 = vpop.trf.xlu0
        %v5824 = vpop.trf.xlu0
        %v5825 = vpop.trf.xlu0
        %v5826 = vpop.trf.xlu0
        %v5827 = vpop.trf.xlu0
        %v5828 = vpop.trf.xlu0
        %v5829 = vpack.c.bf16 %v5365, %v5333
        %v5830 = vpack.c.bf16 %v5429, %v5397
        %v5831 = vpack.c.bf16 %v5493, %v5461
        %v5832 = vpack.c.bf16 %v5557, %v5525
        %v5833 = vpack.c.bf16 %v5621, %v5589
        %v5834 = vpack.c.bf16 %v5685, %v5653
        %v5835 = vpack.c.bf16 %v5749, %v5717
        %v5836 = vpack.c.bf16 %v5813, %v5781
        %v5837 = vld [vmem:[%s8] sm:$0xf]
        %v5838 = vld [vmem:[%s8 + $0x4] sm:$0xf]
        %v5839 = vld [vmem:[%s8 + $0x8] sm:$0xf]
        %v5843 = vunpack.c.l.b16 %v5837
        %v5844 = vunpack.c.l.b16 %v5838
        %v5845 = vunpack.c.l.b16 %v5839
        %v5846 = vpack.c.b16 %v5844, %v5843
        %v5847 = vpack.c.b16 %v5845, %v5845
        %vm5849 = vcmask 195584
        %v5851 = vsel %vm5849, %v5829, 0
        %v5854 = vsel %vm5849, %v5830, 0
        %v5857 = vsel %vm5849, %v5831, 0
        %v5860 = vsel %vm5849, %v5832, 0
        %v5863 = vsel %vm5849, %v5833, 0
        %v5866 = vsel %vm5849, %v5834, 0
        %v5869 = vsel %vm5849, %v5835, 0
        %v5872 = vsel %vm5849, %v5836, 0
        %v5875 = vsel %vm1029, %v5847, 0
        %5877 = vmatprep.subr.bf16.mxu0 0
        %5878 = vmatpush1.bf16.msra.mxu0 %v5846
        %5879 = vmatprep.subr.bf16.mxu0 0
        %5880 = vmatpush1.bf16.msra.mxu0 %v5875
        %5881 = vmatprep.subr.bf16.mxu0 0
        %5882 = vmatpush1.bf16.msra.mxu0 0
        %5883 = vmatprep.subr.bf16.mxu0 0
        %5884 = vmatpush1.bf16.msra.mxu0 0
        %5885 = vmatprep.subr.bf16.mxu0 0
        %5886 = vmatpush1.bf16.msra.mxu0 0
        %5887 = vmatprep.subr.bf16.mxu0 0
        %5888 = vmatpush1.bf16.msra.mxu0 0
        %5889 = vmatprep.subr.bf16.mxu0 0
        %5890 = vmatpush1.bf16.msra.mxu0 0
        %5891 = vmatprep.subr.bf16.mxu0 0
        %5892 = vmatpush1.bf16.msra.mxu0 0
        %5893 = vmatprep.subr.bf16.mxu0 0
        %5894 = vmatpush1.bf16.msra.mxu0 0
        %5895 = vmatprep.subr.bf16.mxu0 0
        %5896 = vmatpush1.bf16.msra.mxu0 0
        %5897 = vmatprep.subr.bf16.mxu0 0
        %5898 = vmatpush1.bf16.msra.mxu0 0
        %5899 = vmatprep.subr.bf16.mxu0 0
        %5900 = vmatpush1.bf16.msra.mxu0 0
        %5901 = vmatprep.subr.bf16.mxu0 0
        %5902 = vmatpush1.bf16.msra.mxu0 0
        %5903 = vmatprep.subr.bf16.mxu0 0
        %5904 = vmatpush1.bf16.msra.mxu0 0
        %5905 = vmatprep.subr.bf16.mxu0 0
        %5906 = vmatpush1.bf16.msra.mxu0 0
        %5907 = vmatprep.subr.bf16.mxu0 0
        %5908 = vmatpush1.bf16.msra.mxu0 0
        %5909 = vmatprep.mubr.bf16.mxu0 0
        %5910 = vmatmul.mubr.bf16.gmra.mrb[0].mxu0 %v5851
        %v5911 = vpop.f32.mrb[0].mxu0
        %v5912 = vadd.f32 0.0, %v5911
        %v5913 = vpop.f32.mrb[0].mxu0
        %v5914 = vpop.f32.mrb[0].mxu0
        %v5915 = vadd.f32 0.0, %v5914
        %v5916 = vpop.f32.mrb[0].mxu0
        %5917 = vmatprep.mubr.bf16.mxu0 0
        %5918 = vmatmul.mubr.bf16.gmra.mrb[0].mxu0 %v5854
        %v5919 = vpop.f32.mrb[0].mxu0
        %v5920 = vadd.f32 0.0, %v5919
        %v5921 = vpop.f32.mrb[0].mxu0
        %v5922 = vpop.f32.mrb[0].mxu0
        %v5923 = vadd.f32 0.0, %v5922
        %v5924 = vpop.f32.mrb[0].mxu0
        %5925 = vmatprep.mubr.bf16.mxu0 0
        %5926 = vmatmul.mubr.bf16.gmra.mrb[0].mxu0 %v5857
        %v5927 = vpop.f32.mrb[0].mxu0
        %v5928 = vadd.f32 0.0, %v5927
        %v5929 = vpop.f32.mrb[0].mxu0
        %v5930 = vpop.f32.mrb[0].mxu0
        %v5931 = vadd.f32 0.0, %v5930
        %v5932 = vpop.f32.mrb[0].mxu0
        %5933 = vmatprep.mubr.bf16.mxu0 0
        %5934 = vmatmul.mubr.bf16.gmra.mrb[0].mxu0 %v5860
        %v5935 = vpop.f32.mrb[0].mxu0
        %v5936 = vadd.f32 0.0, %v5935
        %v5937 = vpop.f32.mrb[0].mxu0
        %v5938 = vpop.f32.mrb[0].mxu0
        %v5939 = vadd.f32 0.0, %v5938
        %v5940 = vpop.f32.mrb[0].mxu0
        %5941 = vmatprep.mubr.bf16.mxu0 0
        %5942 = vmatmul.mubr.bf16.gmra.mrb[0].mxu0 %v5863
        %v5943 = vpop.f32.mrb[0].mxu0
        %v5944 = vadd.f32 0.0, %v5943
        %v5945 = vpop.f32.mrb[0].mxu0
        %v5946 = vpop.f32.mrb[0].mxu0
        %v5947 = vadd.f32 0.0, %v5946
        %v5948 = vpop.f32.mrb[0].mxu0
        %5949 = vmatprep.mubr.bf16.mxu0 0
        %5950 = vmatmul.mubr.bf16.gmra.mrb[0].mxu0 %v5866
        %v5951 = vpop.f32.mrb[0].mxu0
        %v5952 = vadd.f32 0.0, %v5951
        %v5953 = vpop.f32.mrb[0].mxu0
        %v5954 = vpop.f32.mrb[0].mxu0
        %v5955 = vadd.f32 0.0, %v5954
        %v5956 = vpop.f32.mrb[0].mxu0
        %5957 = vmatprep.mubr.bf16.mxu0 0
        %5958 = vmatmul.mubr.bf16.gmra.mrb[0].mxu0 %v5869
        %v5959 = vpop.f32.mrb[0].mxu0
        %v5960 = vadd.f32 0.0, %v5959
        %v5961 = vpop.f32.mrb[0].mxu0
        %v5962 = vpop.f32.mrb[0].mxu0
        %v5963 = vadd.f32 0.0, %v5962
        %v5964 = vpop.f32.mrb[0].mxu0
        %5965 = vmatprep.mubr.bf16.mxu0 0
        %5966 = vmatmul.mubr.bf16.gmra.mrb[0].mxu0 %v5872
        %v5967 = vpop.f32.mrb[0].mxu0
        %v5968 = vadd.f32 0.0, %v5967
        %v5969 = vpop.f32.mrb[0].mxu0
        %v5970 = vpop.f32.mrb[0].mxu0
        %v5971 = vadd.f32 0.0, %v5970
        %v5972 = vpop.f32.mrb[0].mxu0
        %5973 = vdwg.mxu0
        %v5974 = vpack.c.bf16 %v5915, %v5912
        %v5975 = vpack.c.bf16 %v5923, %v5920
        %v5976 = vpack.c.bf16 %v5931, %v5928
        %v5977 = vpack.c.bf16 %v5939, %v5936
        %v5978 = vpack.c.bf16 %v5947, %v5944
        %v5979 = vpack.c.bf16 %v5955, %v5952
        %v5980 = vpack.c.bf16 %v5963, %v5960
        %v5981 = vpack.c.bf16 %v5971, %v5968
        %v5990 = vunpack.c.l.b16 %v5974
        %v5991 = vunpack.c.h.b16 %v5974
        %v5992 = vunpack.c.l.b16 %v5975
        %v5993 = vunpack.c.h.b16 %v5975
        %v5994 = vunpack.c.l.b16 %v5976
        %v5995 = vunpack.c.h.b16 %v5976
        %v5996 = vunpack.c.l.b16 %v5977
        %v5997 = vunpack.c.h.b16 %v5977
        %v5998 = vunpack.c.l.b16 %v5978
        %v5999 = vunpack.c.h.b16 %v5978
        %v6000 = vunpack.c.l.b16 %v5979
        %v6001 = vunpack.c.h.b16 %v5979
        %v6002 = vunpack.c.l.b16 %v5980
        %v6003 = vunpack.c.h.b16 %v5980
        %v6004 = vunpack.c.l.b16 %v5981
        %v6005 = vunpack.c.h.b16 %v5981
        %v6006 = vpack.c.b16 %v5990, %v5990
        %v6007 = vpack.c.b16 %v5991, %v5991
        %v6008 = vpack.c.b16 %v5992, %v5992
        %v6009 = vpack.c.b16 %v5993, %v5993
        %v6010 = vpack.c.b16 %v5994, %v5994
        %v6011 = vpack.c.b16 %v5995, %v5995
        %v6012 = vpack.c.b16 %v5996, %v5996
        %v6013 = vpack.c.b16 %v5997, %v5997
        %v6014 = vpack.c.b16 %v5998, %v5998
        %v6015 = vpack.c.b16 %v5999, %v5999
        %v6016 = vpack.c.b16 %v6000, %v6000
        %v6017 = vpack.c.b16 %v6001, %v6001
        %v6018 = vpack.c.b16 %v6002, %v6002
        %v6019 = vpack.c.b16 %v6003, %v6003
        %v6020 = vpack.c.b16 %v6004, %v6004
        %v6021 = vpack.c.b16 %v6005, %v6005
        %vm6038 = vcmask 519168
        %6039 = vst.msk [vmem:[%s582] sm:$0xf] %vm6038, %v6006
        %6040 = vst.msk [vmem:[%s582 + $0x4] sm:$0xf] %vm6038, %v6007
        %6041 = vst.msk [vmem:[%s582 + $0x8] sm:$0xf] %vm6038, %v6008
        %6042 = vst.msk [vmem:[%s582 + $0xc] sm:$0xf] %vm6038, %v6009
        %6043 = vst.msk [vmem:[%s582 + $0x10] sm:$0xf] %vm6038, %v6010
        %6044 = vst.msk [vmem:[%s582 + $0x14] sm:$0xf] %vm6038, %v6011
        %6045 = vst.msk [vmem:[%s582 + $0x18] sm:$0xf] %vm6038, %v6012
        %6046 = vst.msk [vmem:[%s582 + $0x1c] sm:$0xf] %vm6038, %v6013
        %6047 = vst.msk [vmem:[%s582 + $0x20] sm:$0xf] %vm6038, %v6014
        %6048 = vst.msk [vmem:[%s582 + $0x24] sm:$0xf] %vm6038, %v6015
        %6049 = vst.msk [vmem:[%s582 + $0x28] sm:$0xf] %vm6038, %v6016
        %6050 = vst.msk [vmem:[%s582 + $0x2c] sm:$0xf] %vm6038, %v6017
        %6051 = vst.msk [vmem:[%s582 + $0x30] sm:$0xf] %vm6038, %v6018
        %6052 = vst.msk [vmem:[%s582 + $0x34] sm:$0xf] %vm6038, %v6019
        %6053 = vst.msk [vmem:[%s582 + $0x38] sm:$0xf] %vm6038, %v6020
        %6054 = vst.msk [vmem:[%s582 + $0x3c] sm:$0xf] %vm6038, %v6021
        %v6055 = vld [vmem:[%s567] sm:$0xf]
        %v6056 = vld [vmem:[%s567 + $0x4] sm:$0xf]
        %v6057 = vld [vmem:[%s567 + $0x8] sm:$0xf]
        %v6058 = vld [vmem:[%s567 + $0xc] sm:$0xf]
        %v6059 = vld [vmem:[%s567 + $0x10] sm:$0xf]
        %v6060 = vld [vmem:[%s567 + $0x14] sm:$0xf]
        %v6061 = vld [vmem:[%s567 + $0x18] sm:$0xf]
        %v6062 = vld [vmem:[%s567 + $0x1c] sm:$0xf]
        %v6063 = vld [vmem:[%s567 + $0x20] sm:$0xf]
        %v6064 = vld [vmem:[%s567 + $0x24] sm:$0xf]
        %v6065 = vld [vmem:[%s567 + $0x28] sm:$0xf]
        %v6066 = vld [vmem:[%s567 + $0x2c] sm:$0xf]
        %v6067 = vld [vmem:[%s567 + $0x30] sm:$0xf]
        %v6068 = vld [vmem:[%s567 + $0x34] sm:$0xf]
        %v6069 = vld [vmem:[%s567 + $0x38] sm:$0xf]
        %v6070 = vld [vmem:[%s567 + $0x3c] sm:$0xf]
        %v6071 = vld [vmem:[%s5] sm:$0xf]
        %v6072 = vld [vmem:[%s567 + $0x40] sm:$0x1]
        %s6073 = scalar_lea.vmem %s5, 4
        %v6074 = vld [vmem:[%s6073] sm:$0xf]
        %v6092 = vunpack.c.l.b16 %v6055
        %v6093 = vunpack.c.l.b16 %v6056
        %v6094 = vunpack.c.l.b16 %v6057
        %v6095 = vunpack.c.l.b16 %v6058
        %v6096 = vunpack.c.l.b16 %v6059
        %v6097 = vunpack.c.l.b16 %v6060
        %v6098 = vunpack.c.l.b16 %v6061
        %v6099 = vunpack.c.l.b16 %v6062
        %v6100 = vunpack.c.l.b16 %v6063
        %v6101 = vunpack.c.l.b16 %v6064
        %v6102 = vunpack.c.l.b16 %v6065
        %v6103 = vunpack.c.l.b16 %v6066
        %v6104 = vunpack.c.l.b16 %v6067
        %v6105 = vunpack.c.l.b16 %v6068
        %v6106 = vunpack.c.l.b16 %v6069
        %v6107 = vunpack.c.l.b16 %v6070
        %v6108 = vunpack.c.l.b16 %v6072
        %v6109 = vpack.c.b16 %v6093, %v6092
        %v6110 = vpack.c.b16 %v6095, %v6094
        %v6111 = vpack.c.b16 %v6097, %v6096
        %v6112 = vpack.c.b16 %v6099, %v6098
        %v6113 = vpack.c.b16 %v6101, %v6100
        %v6114 = vpack.c.b16 %v6103, %v6102
        %v6115 = vpack.c.b16 %v6105, %v6104
        %v6116 = vpack.c.b16 %v6107, %v6106
        %v6117 = vpack.c.b16 %v6108, %v6108
        %v6119 = vshrl.u32 %v6109, 16
        %v6121 = vshll.u32 %v6109, 16
        %v6123 = vrot.slane %v6121, 1
        %v6124 = vor.u32 %v6119, %v6123
        %v6126 = vshll.u32 %v6110, 16
        %v6128 = vrot.slane %v6126, 1
        %v6129 = vsel %vm759, %v6124, %v6128
        %v6130 = vshrl.u32 %v6110, 16
        %v6132 = vor.u32 %v6130, %v6128
        %v6134 = vshll.u32 %v6111, 16
        %v6136 = vrot.slane %v6134, 1
        %v6137 = vsel %vm759, %v6132, %v6136
        %v6138 = vshrl.u32 %v6111, 16
        %v6140 = vor.u32 %v6138, %v6136
        %v6142 = vshll.u32 %v6112, 16
        %v6144 = vrot.slane %v6142, 1
        %v6145 = vsel %vm759, %v6140, %v6144
        %v6146 = vshrl.u32 %v6112, 16
        %v6148 = vor.u32 %v6146, %v6144
        %v6150 = vshll.u32 %v6113, 16
        %v6152 = vrot.slane %v6150, 1
        %v6153 = vsel %vm759, %v6148, %v6152
        %v6154 = vshrl.u32 %v6113, 16
        %v6156 = vor.u32 %v6154, %v6152
        %v6158 = vshll.u32 %v6114, 16
        %v6160 = vrot.slane %v6158, 1
        %v6161 = vsel %vm759, %v6156, %v6160
        %v6162 = vshrl.u32 %v6114, 16
        %v6164 = vor.u32 %v6162, %v6160
        %v6166 = vshll.u32 %v6115, 16
        %v6168 = vrot.slane %v6166, 1
        %v6169 = vsel %vm759, %v6164, %v6168
        %v6170 = vshrl.u32 %v6115, 16
        %v6172 = vor.u32 %v6170, %v6168
        %v6174 = vshll.u32 %v6116, 16
        %v6176 = vrot.slane %v6174, 1
        %v6177 = vsel %vm759, %v6172, %v6176
        %v6178 = vshrl.u32 %v6116, 16
        %v6180 = vor.u32 %v6178, %v6176
        %v6182 = vshll.u32 %v6117, 16
        %v6184 = vrot.slane %v6182, 1
        %v6185 = vsel %vm759, %v6180, %v6184
        %v6187 = vsel %vm956, %v6129, 0
        %v6190 = vsel %vm956, %v6137, 0
        %v6193 = vsel %vm956, %v6145, 0
        %v6196 = vsel %vm956, %v6153, 0
        %v6199 = vsel %vm956, %v6161, 0
        %v6202 = vsel %vm956, %v6169, 0
        %v6205 = vsel %vm956, %v6177, 0
        %v6208 = vsel %vm956, %v6185, 0
        %v6211 = vsel %vm1029, %v6074, 0
        %6213 = vmatprep.subr.bf16.mxu0 0
        %6214 = vmatpush1.bf16.msra.mxu0 %v6211
        %6215 = vmatprep.subr.bf16.mxu0 0
        %6216 = vmatpush1.bf16.msra.mxu0 0
        %6217 = vmatprep.subr.bf16.mxu0 0
        %6218 = vmatpush1.bf16.msra.mxu0 0
        %6219 = vmatprep.subr.bf16.mxu0 0
        %6220 = vmatpush1.bf16.msra.mxu0 0
        %6221 = vmatprep.subr.bf16.mxu0 0
        %6222 = vmatpush1.bf16.msra.mxu0 0
        %6223 = vmatprep.subr.bf16.mxu0 0
        %6224 = vmatpush1.bf16.msra.mxu0 0
        %6225 = vmatprep.subr.bf16.mxu0 0
        %6226 = vmatpush1.bf16.msra.mxu0 0
        %6227 = vmatprep.subr.bf16.mxu0 0
        %6228 = vmatpush1.bf16.msra.mxu0 0
        %6229 = vmatprep.subr.bf16.mxu0 0
        %6230 = vmatpush1.bf16.msra.mxu0 0
        %6231 = vmatprep.subr.bf16.mxu0 0
        %6232 = vmatpush1.bf16.msra.mxu0 0
        %6233 = vmatprep.subr.bf16.mxu0 0
        %6234 = vmatpush1.bf16.msra.mxu0 0
        %6235 = vmatprep.subr.bf16.mxu0 0
        %6236 = vmatpush1.bf16.msra.mxu0 0
        %6237 = vmatprep.subr.bf16.mxu0 0
        %6238 = vmatpush1.bf16.msra.mxu0 0
        %6239 = vmatprep.subr.bf16.mxu0 0
        %6240 = vmatpush1.bf16.msra.mxu0 0
        %6241 = vmatprep.subr.bf16.mxu0 0
        %6242 = vmatpush1.bf16.msra.mxu0 0
        %6243 = vmatprep.subr.bf16.mxu0 0
        %6244 = vmatpush1.bf16.msra.mxu0 0
        %6245 = vmatprep.mubr.bf16.mxu0 0
        %6246 = vmatmul.mubr.bf16.gmra.mrb[0].mxu0 %v6187
        %v6247 = vpop.f32.mrb[0].mxu0
        %v6248 = vadd.f32 0.0, %v6247
        %v6249 = vpop.f32.mrb[0].mxu0
        %v6250 = vpop.f32.mrb[0].mxu0
        %v6251 = vadd.f32 0.0, %v6250
        %v6252 = vpop.f32.mrb[0].mxu0
        %6253 = vmatprep.mubr.bf16.mxu0 0
        %6254 = vmatmul.mubr.bf16.gmra.mrb[0].mxu0 %v6190
        %v6255 = vpop.f32.mrb[0].mxu0
        %v6256 = vadd.f32 0.0, %v6255
        %v6257 = vpop.f32.mrb[0].mxu0
        %v6258 = vpop.f32.mrb[0].mxu0
        %v6259 = vadd.f32 0.0, %v6258
        %v6260 = vpop.f32.mrb[0].mxu0
        %6261 = vmatprep.mubr.bf16.mxu0 0
        %6262 = vmatmul.mubr.bf16.gmra.mrb[0].mxu0 %v6193
        %v6263 = vpop.f32.mrb[0].mxu0
        %v6264 = vadd.f32 0.0, %v6263
        %v6265 = vpop.f32.mrb[0].mxu0
        %v6266 = vpop.f32.mrb[0].mxu0
        %v6267 = vadd.f32 0.0, %v6266
        %v6268 = vpop.f32.mrb[0].mxu0
        %6269 = vmatprep.mubr.bf16.mxu0 0
        %6270 = vmatmul.mubr.bf16.gmra.mrb[0].mxu0 %v6196
        %v6271 = vpop.f32.mrb[0].mxu0
        %v6272 = vadd.f32 0.0, %v6271
        %v6273 = vpop.f32.mrb[0].mxu0
        %v6274 = vpop.f32.mrb[0].mxu0
        %v6275 = vadd.f32 0.0, %v6274
        %v6276 = vpop.f32.mrb[0].mxu0
        %6277 = vmatprep.mubr.bf16.mxu0 0
        %6278 = vmatmul.mubr.bf16.gmra.mrb[0].mxu0 %v6199
        %v6279 = vpop.f32.mrb[0].mxu0
        %v6280 = vadd.f32 0.0, %v6279
        %v6281 = vpop.f32.mrb[0].mxu0
        %v6282 = vpop.f32.mrb[0].mxu0
        %v6283 = vadd.f32 0.0, %v6282
        %v6284 = vpop.f32.mrb[0].mxu0
        %6285 = vmatprep.mubr.bf16.mxu0 0
        %6286 = vmatmul.mubr.bf16.gmra.mrb[0].mxu0 %v6202
        %v6287 = vpop.f32.mrb[0].mxu0
        %v6288 = vadd.f32 0.0, %v6287
        %v6289 = vpop.f32.mrb[0].mxu0
        %v6290 = vpop.f32.mrb[0].mxu0
        %v6291 = vadd.f32 0.0, %v6290
        %v6292 = vpop.f32.mrb[0].mxu0
        %6293 = vmatprep.mubr.bf16.mxu0 0
        %6294 = vmatmul.mubr.bf16.gmra.mrb[0].mxu0 %v6205
        %v6295 = vpop.f32.mrb[0].mxu0
        %v6296 = vadd.f32 0.0, %v6295
        %v6297 = vpop.f32.mrb[0].mxu0
        %v6298 = vpop.f32.mrb[0].mxu0
        %v6299 = vadd.f32 0.0, %v6298
        %v6300 = vpop.f32.mrb[0].mxu0
        %6301 = vmatprep.mubr.bf16.mxu0 0
        %6302 = vmatmul.mubr.bf16.gmra.mrb[0].mxu0 %v6208
        %v6303 = vpop.f32.mrb[0].mxu0
        %v6304 = vadd.f32 0.0, %v6303
        %v6305 = vpop.f32.mrb[0].mxu0
        %v6306 = vpop.f32.mrb[0].mxu0
        %v6307 = vadd.f32 0.0, %v6306
        %v6308 = vpop.f32.mrb[0].mxu0
        %6309 = vdwg.mxu0
        %v6310 = vsel %vm956, %v6109, 0
        %v6312 = vsel %vm956, %v6110, 0
        %v6314 = vsel %vm956, %v6111, 0
        %v6316 = vsel %vm956, %v6112, 0
        %v6318 = vsel %vm956, %v6113, 0
        %v6320 = vsel %vm956, %v6114, 0
        %v6322 = vsel %vm956, %v6115, 0
        %v6324 = vsel %vm956, %v6116, 0
        %v6327 = vsel %vm1029, %v6071, 0
        %6329 = vmatprep.subr.bf16.mxu0 0
        %6330 = vmatpush1.bf16.msra.mxu0 %v6327
        %6331 = vmatprep.subr.bf16.mxu0 0
        %6332 = vmatpush1.bf16.msra.mxu0 0
        %6333 = vmatprep.subr.bf16.mxu0 0
        %6334 = vmatpush1.bf16.msra.mxu0 0
        %6335 = vmatprep.subr.bf16.mxu0 0
        %6336 = vmatpush1.bf16.msra.mxu0 0
        %6337 = vmatprep.subr.bf16.mxu0 0
        %6338 = vmatpush1.bf16.msra.mxu0 0
        %6339 = vmatprep.subr.bf16.mxu0 0
        %6340 = vmatpush1.bf16.msra.mxu0 0
        %6341 = vmatprep.subr.bf16.mxu0 0
        %6342 = vmatpush1.bf16.msra.mxu0 0
        %6343 = vmatprep.subr.bf16.mxu0 0
        %6344 = vmatpush1.bf16.msra.mxu0 0
        %6345 = vmatprep.subr.bf16.mxu0 0
        %6346 = vmatpush1.bf16.msra.mxu0 0
        %6347 = vmatprep.subr.bf16.mxu0 0
        %6348 = vmatpush1.bf16.msra.mxu0 0
        %6349 = vmatprep.subr.bf16.mxu0 0
        %6350 = vmatpush1.bf16.msra.mxu0 0
        %6351 = vmatprep.subr.bf16.mxu0 0
        %6352 = vmatpush1.bf16.msra.mxu0 0
        %6353 = vmatprep.subr.bf16.mxu0 0
        %6354 = vmatpush1.bf16.msra.mxu0 0
        %6355 = vmatprep.subr.bf16.mxu0 0
        %6356 = vmatpush1.bf16.msra.mxu0 0
        %6357 = vmatprep.subr.bf16.mxu0 0
        %6358 = vmatpush1.bf16.msra.mxu0 0
        %6359 = vmatprep.subr.bf16.mxu0 0
        %6360 = vmatpush1.bf16.msra.mxu0 0
        %6361 = vmatprep.mubr.bf16.mxu0 0
        %6362 = vmatmul.mubr.bf16.gmra.mrb[0].mxu0 %v6310
        %v6363 = vpop.f32.mrb[0].mxu0
        %v6364 = vadd.f32 %v6248, %v6363
        %v6365 = vpop.f32.mrb[0].mxu0
        %v6366 = vpop.f32.mrb[0].mxu0
        %v6367 = vadd.f32 %v6251, %v6366
        %v6368 = vpop.f32.mrb[0].mxu0
        %6369 = vmatprep.mubr.bf16.mxu0 0
        %6370 = vmatmul.mubr.bf16.gmra.mrb[0].mxu0 %v6312
        %v6371 = vpop.f32.mrb[0].mxu0
        %v6372 = vadd.f32 %v6256, %v6371
        %v6373 = vpop.f32.mrb[0].mxu0
        %v6374 = vpop.f32.mrb[0].mxu0
        %v6375 = vadd.f32 %v6259, %v6374
        %v6376 = vpop.f32.mrb[0].mxu0
        %6377 = vmatprep.mubr.bf16.mxu0 0
        %6378 = vmatmul.mubr.bf16.gmra.mrb[0].mxu0 %v6314
        %v6379 = vpop.f32.mrb[0].mxu0
        %v6380 = vadd.f32 %v6264, %v6379
        %v6381 = vpop.f32.mrb[0].mxu0
        %v6382 = vpop.f32.mrb[0].mxu0
        %v6383 = vadd.f32 %v6267, %v6382
        %v6384 = vpop.f32.mrb[0].mxu0
        %6385 = vmatprep.mubr.bf16.mxu0 0
        %6386 = vmatmul.mubr.bf16.gmra.mrb[0].mxu0 %v6316
        %v6387 = vpop.f32.mrb[0].mxu0
        %v6388 = vadd.f32 %v6272, %v6387
        %v6389 = vpop.f32.mrb[0].mxu0
        %v6390 = vpop.f32.mrb[0].mxu0
        %v6391 = vadd.f32 %v6275, %v6390
        %v6392 = vpop.f32.mrb[0].mxu0
        %6393 = vmatprep.mubr.bf16.mxu0 0
        %6394 = vmatmul.mubr.bf16.gmra.mrb[0].mxu0 %v6318
        %v6395 = vpop.f32.mrb[0].mxu0
        %v6396 = vadd.f32 %v6280, %v6395
        %v6397 = vpop.f32.mrb[0].mxu0
        %v6398 = vpop.f32.mrb[0].mxu0
        %v6399 = vadd.f32 %v6283, %v6398
        %v6400 = vpop.f32.mrb[0].mxu0
        %6401 = vmatprep.mubr.bf16.mxu0 0
        %6402 = vmatmul.mubr.bf16.gmra.mrb[0].mxu0 %v6320
        %v6403 = vpop.f32.mrb[0].mxu0
        %v6404 = vadd.f32 %v6288, %v6403
        %v6405 = vpop.f32.mrb[0].mxu0
        %v6406 = vpop.f32.mrb[0].mxu0
        %v6407 = vadd.f32 %v6291, %v6406
        %v6408 = vpop.f32.mrb[0].mxu0
        %6409 = vmatprep.mubr.bf16.mxu0 0
        %6410 = vmatmul.mubr.bf16.gmra.mrb[0].mxu0 %v6322
        %v6411 = vpop.f32.mrb[0].mxu0
        %v6412 = vadd.f32 %v6296, %v6411
        %v6413 = vpop.f32.mrb[0].mxu0
        %v6414 = vpop.f32.mrb[0].mxu0
        %v6415 = vadd.f32 %v6299, %v6414
        %v6416 = vpop.f32.mrb[0].mxu0
        %6417 = vmatprep.mubr.bf16.mxu0 0
        %6418 = vmatmul.mubr.bf16.gmra.mrb[0].mxu0 %v6324
        %v6419 = vpop.f32.mrb[0].mxu0
        %v6420 = vadd.f32 %v6304, %v6419
        %v6421 = vpop.f32.mrb[0].mxu0
        %v6422 = vpop.f32.mrb[0].mxu0
        %v6423 = vadd.f32 %v6307, %v6422
        %v6424 = vpop.f32.mrb[0].mxu0
        %6425 = vdwg.mxu0
        %v6426 = vld [vmem:[%s567] sm:$0xe]
        %s6427 = scalar_lea.vmem %s5, 8
        %v6428 = vld [vmem:[%s6427] sm:$0xf]
        %v6430 = vunpack.c.l.b16 %v6426
        %v6431 = vpack.c.b16 %v6093, %v6430
        %v6432 = vrot.slane %v6431, 1
        %v6433 = vrot.slane %v6110, 1
        %v6434 = vsel %vm1540, %v6432, %v6433
        %v6435 = vrot.slane %v6111, 1
        %v6436 = vsel %vm1540, %v6433, %v6435
        %v6437 = vrot.slane %v6112, 1
        %v6438 = vsel %vm1540, %v6435, %v6437
        %v6439 = vrot.slane %v6113, 1
        %v6440 = vsel %vm1540, %v6437, %v6439
        %v6441 = vrot.slane %v6114, 1
        %v6442 = vsel %vm1540, %v6439, %v6441
        %v6443 = vrot.slane %v6115, 1
        %v6444 = vsel %vm1540, %v6441, %v6443
        %v6445 = vrot.slane %v6116, 1
        %v6446 = vsel %vm1540, %v6443, %v6445
        %v6447 = vrot.slane %v6117, 1
        %v6448 = vsel %vm1540, %v6445, %v6447
        %v6450 = vsel %vm956, %v6434, 0
        %v6453 = vsel %vm956, %v6436, 0
        %v6456 = vsel %vm956, %v6438, 0
        %v6459 = vsel %vm956, %v6440, 0
        %v6462 = vsel %vm956, %v6442, 0
        %v6465 = vsel %vm956, %v6444, 0
        %v6468 = vsel %vm956, %v6446, 0
        %v6471 = vsel %vm956, %v6448, 0
        %v6474 = vsel %vm1029, %v6428, 0
        %6476 = vmatprep.subr.bf16.mxu0 0
        %6477 = vmatpush1.bf16.msra.mxu0 %v6474
        %6478 = vmatprep.subr.bf16.mxu0 0
        %6479 = vmatpush1.bf16.msra.mxu0 0
        %6480 = vmatprep.subr.bf16.mxu0 0
        %6481 = vmatpush1.bf16.msra.mxu0 0
        %6482 = vmatprep.subr.bf16.mxu0 0
        %6483 = vmatpush1.bf16.msra.mxu0 0
        %6484 = vmatprep.subr.bf16.mxu0 0
        %6485 = vmatpush1.bf16.msra.mxu0 0
        %6486 = vmatprep.subr.bf16.mxu0 0
        %6487 = vmatpush1.bf16.msra.mxu0 0
        %6488 = vmatprep.subr.bf16.mxu0 0
        %6489 = vmatpush1.bf16.msra.mxu0 0
        %6490 = vmatprep.subr.bf16.mxu0 0
        %6491 = vmatpush1.bf16.msra.mxu0 0
        %6492 = vmatprep.subr.bf16.mxu0 0
        %6493 = vmatpush1.bf16.msra.mxu0 0
        %6494 = vmatprep.subr.bf16.mxu0 0
        %6495 = vmatpush1.bf16.msra.mxu0 0
        %6496 = vmatprep.subr.bf16.mxu0 0
        %6497 = vmatpush1.bf16.msra.mxu0 0
        %6498 = vmatprep.subr.bf16.mxu0 0
        %6499 = vmatpush1.bf16.msra.mxu0 0
        %6500 = vmatprep.subr.bf16.mxu0 0
        %6501 = vmatpush1.bf16.msra.mxu0 0
        %6502 = vmatprep.subr.bf16.mxu0 0
        %6503 = vmatpush1.bf16.msra.mxu0 0
        %6504 = vmatprep.subr.bf16.mxu0 0
        %6505 = vmatpush1.bf16.msra.mxu0 0
        %6506 = vmatprep.subr.bf16.mxu0 0
        %6507 = vmatpush1.bf16.msra.mxu0 0
        %6508 = vmatprep.mubr.bf16.mxu0 0
        %6509 = vmatmul.mubr.bf16.gmra.mrb[0].mxu0 %v6450
        %v6510 = vpop.f32.mrb[0].mxu0
        %v6511 = vadd.f32 0.0, %v6510
        %v6512 = vpop.f32.mrb[0].mxu0
        %v6513 = vpop.f32.mrb[0].mxu0
        %v6514 = vadd.f32 0.0, %v6513
        %v6515 = vpop.f32.mrb[0].mxu0
        %6516 = vmatprep.mubr.bf16.mxu0 0
        %6517 = vmatmul.mubr.bf16.gmra.mrb[0].mxu0 %v6453
        %v6518 = vpop.f32.mrb[0].mxu0
        %v6519 = vadd.f32 0.0, %v6518
        %v6520 = vpop.f32.mrb[0].mxu0
        %v6521 = vpop.f32.mrb[0].mxu0
        %v6522 = vadd.f32 0.0, %v6521
        %v6523 = vpop.f32.mrb[0].mxu0
        %6524 = vmatprep.mubr.bf16.mxu0 0
        %6525 = vmatmul.mubr.bf16.gmra.mrb[0].mxu0 %v6456
        %v6526 = vpop.f32.mrb[0].mxu0
        %v6527 = vadd.f32 0.0, %v6526
        %v6528 = vpop.f32.mrb[0].mxu0
        %v6529 = vpop.f32.mrb[0].mxu0
        %v6530 = vadd.f32 0.0, %v6529
        %v6531 = vpop.f32.mrb[0].mxu0
        %6532 = vmatprep.mubr.bf16.mxu0 0
        %6533 = vmatmul.mubr.bf16.gmra.mrb[0].mxu0 %v6459
        %v6534 = vpop.f32.mrb[0].mxu0
        %v6535 = vadd.f32 0.0, %v6534
        %v6536 = vpop.f32.mrb[0].mxu0
        %v6537 = vpop.f32.mrb[0].mxu0
        %v6538 = vadd.f32 0.0, %v6537
        %v6539 = vpop.f32.mrb[0].mxu0
        %6540 = vmatprep.mubr.bf16.mxu0 0
        %6541 = vmatmul.mubr.bf16.gmra.mrb[0].mxu0 %v6462
        %v6542 = vpop.f32.mrb[0].mxu0
        %v6543 = vadd.f32 0.0, %v6542
        %v6544 = vpop.f32.mrb[0].mxu0
        %v6545 = vpop.f32.mrb[0].mxu0
        %v6546 = vadd.f32 0.0, %v6545
        %v6547 = vpop.f32.mrb[0].mxu0
        %6548 = vmatprep.mubr.bf16.mxu0 0
        %6549 = vmatmul.mubr.bf16.gmra.mrb[0].mxu0 %v6465
        %v6550 = vpop.f32.mrb[0].mxu0
        %v6551 = vadd.f32 0.0, %v6550
        %v6552 = vpop.f32.mrb[0].mxu0
        %v6553 = vpop.f32.mrb[0].mxu0
        %v6554 = vadd.f32 0.0, %v6553
        %v6555 = vpop.f32.mrb[0].mxu0
        %6556 = vmatprep.mubr.bf16.mxu0 0
        %6557 = vmatmul.mubr.bf16.gmra.mrb[0].mxu0 %v6468
        %v6558 = vpop.f32.mrb[0].mxu0
        %v6559 = vadd.f32 0.0, %v6558
        %v6560 = vpop.f32.mrb[0].mxu0
        %v6561 = vpop.f32.mrb[0].mxu0
        %v6562 = vadd.f32 0.0, %v6561
        %v6563 = vpop.f32.mrb[0].mxu0
        %6564 = vmatprep.mubr.bf16.mxu0 0
        %6565 = vmatmul.mubr.bf16.gmra.mrb[0].mxu0 %v6471
        %v6566 = vpop.f32.mrb[0].mxu0
        %v6567 = vadd.f32 0.0, %v6566
        %v6568 = vpop.f32.mrb[0].mxu0
        %v6569 = vpop.f32.mrb[0].mxu0
        %v6570 = vadd.f32 0.0, %v6569
        %v6571 = vpop.f32.mrb[0].mxu0
        %6572 = vdwg.mxu0
        %v6573 = vadd.f32 %v6364, %v6511
        %v6574 = vadd.f32 %v6367, %v6514
        %v6575 = vadd.f32 %v6372, %v6519
        %v6576 = vadd.f32 %v6375, %v6522
        %v6577 = vadd.f32 %v6380, %v6527
        %v6578 = vadd.f32 %v6383, %v6530
        %v6579 = vadd.f32 %v6388, %v6535
        %v6580 = vadd.f32 %v6391, %v6538
        %v6581 = vadd.f32 %v6396, %v6543
        %v6582 = vadd.f32 %v6399, %v6546
        %v6583 = vadd.f32 %v6404, %v6551
        %v6584 = vadd.f32 %v6407, %v6554
        %v6585 = vadd.f32 %v6412, %v6559
        %v6586 = vadd.f32 %v6415, %v6562
        %v6587 = vadd.f32 %v6420, %v6567
        %v6588 = vadd.f32 %v6423, %v6570
        %v6589 = vld [vmem:[%s567 + $0x8] sm:$0xf]
        %v6590 = vld [vmem:[%s567 + $0xc] sm:$0xf]
        %v6591 = vld [vmem:[%s567 + $0x10] sm:$0xf]
        %v6592 = vld [vmem:[%s567 + $0x14] sm:$0xf]
        %v6593 = vld [vmem:[%s567 + $0x18] sm:$0xf]
        %v6594 = vld [vmem:[%s567 + $0x1c] sm:$0xf]
        %v6595 = vld [vmem:[%s567 + $0x20] sm:$0xf]
        %v6596 = vld [vmem:[%s567 + $0x24] sm:$0xf]
        %v6597 = vld [vmem:[%s567 + $0x28] sm:$0xf]
        %v6598 = vld [vmem:[%s567 + $0x2c] sm:$0xf]
        %v6599 = vld [vmem:[%s567 + $0x30] sm:$0xf]
        %v6600 = vld [vmem:[%s567 + $0x34] sm:$0xf]
        %v6601 = vld [vmem:[%s567 + $0x38] sm:$0xf]
        %v6602 = vld [vmem:[%s567 + $0x3c] sm:$0xf]
        %v6603 = vld [vmem:[%s567 + $0x40] sm:$0xf]
        %v6604 = vld [vmem:[%s567 + $0x44] sm:$0xf]
        %s6605 = scalar_lea.vmem %s5, 12
        %v6606 = vld [vmem:[%s6605] sm:$0xf]
        %v6623 = vunpack.c.l.b16 %v6589
        %v6624 = vunpack.c.l.b16 %v6590
        %v6625 = vunpack.c.l.b16 %v6591
        %v6626 = vunpack.c.l.b16 %v6592
        %v6627 = vunpack.c.l.b16 %v6593
        %v6628 = vunpack.c.l.b16 %v6594
        %v6629 = vunpack.c.l.b16 %v6595
        %v6630 = vunpack.c.l.b16 %v6596
        %v6631 = vunpack.c.l.b16 %v6597
        %v6632 = vunpack.c.l.b16 %v6598
        %v6633 = vunpack.c.l.b16 %v6599
        %v6634 = vunpack.c.l.b16 %v6600
        %v6635 = vunpack.c.l.b16 %v6601
        %v6636 = vunpack.c.l.b16 %v6602
        %v6637 = vunpack.c.l.b16 %v6603
        %v6638 = vunpack.c.l.b16 %v6604
        %v6639 = vpack.c.b16 %v6624, %v6623
        %v6640 = vpack.c.b16 %v6626, %v6625
        %v6641 = vpack.c.b16 %v6628, %v6627
        %v6642 = vpack.c.b16 %v6630, %v6629
        %v6643 = vpack.c.b16 %v6632, %v6631
        %v6644 = vpack.c.b16 %v6634, %v6633
        %v6645 = vpack.c.b16 %v6636, %v6635
        %v6646 = vpack.c.b16 %v6638, %v6637
        %v6648 = vsel %vm956, %v6639, 0
        %v6651 = vsel %vm956, %v6640, 0
        %v6654 = vsel %vm956, %v6641, 0
        %v6657 = vsel %vm956, %v6642, 0
        %v6660 = vsel %vm956, %v6643, 0
        %v6663 = vsel %vm956, %v6644, 0
        %v6666 = vsel %vm956, %v6645, 0
        %v6669 = vsel %vm956, %v6646, 0
        %v6672 = vsel %vm1029, %v6606, 0
        %6674 = vmatprep.subr.bf16.mxu0 0
        %6675 = vmatpush1.bf16.msra.mxu0 %v6672
        %6676 = vmatprep.subr.bf16.mxu0 0
        %6677 = vmatpush1.bf16.msra.mxu0 0
        %6678 = vmatprep.subr.bf16.mxu0 0
        %6679 = vmatpush1.bf16.msra.mxu0 0
        %6680 = vmatprep.subr.bf16.mxu0 0
        %6681 = vmatpush1.bf16.msra.mxu0 0
        %6682 = vmatprep.subr.bf16.mxu0 0
        %6683 = vmatpush1.bf16.msra.mxu0 0
        %6684 = vmatprep.subr.bf16.mxu0 0
        %6685 = vmatpush1.bf16.msra.mxu0 0
        %6686 = vmatprep.subr.bf16.mxu0 0
        %6687 = vmatpush1.bf16.msra.mxu0 0
        %6688 = vmatprep.subr.bf16.mxu0 0
        %6689 = vmatpush1.bf16.msra.mxu0 0
        %6690 = vmatprep.subr.bf16.mxu0 0
        %6691 = vmatpush1.bf16.msra.mxu0 0
        %6692 = vmatprep.subr.bf16.mxu0 0
        %6693 = vmatpush1.bf16.msra.mxu0 0
        %6694 = vmatprep.subr.bf16.mxu0 0
        %6695 = vmatpush1.bf16.msra.mxu0 0
        %6696 = vmatprep.subr.bf16.mxu0 0
        %6697 = vmatpush1.bf16.msra.mxu0 0
        %6698 = vmatprep.subr.bf16.mxu0 0
        %6699 = vmatpush1.bf16.msra.mxu0 0
        %6700 = vmatprep.subr.bf16.mxu0 0
        %6701 = vmatpush1.bf16.msra.mxu0 0
        %6702 = vmatprep.subr.bf16.mxu0 0
        %6703 = vmatpush1.bf16.msra.mxu0 0
        %6704 = vmatprep.subr.bf16.mxu0 0
        %6705 = vmatpush1.bf16.msra.mxu0 0
        %6706 = vmatprep.mubr.bf16.mxu0 0
        %6707 = vmatmul.mubr.bf16.gmra.mrb[0].mxu0 %v6648
        %v6708 = vpop.f32.mrb[0].mxu0
        %v6709 = vadd.f32 0.0, %v6708
        %v6710 = vpop.f32.mrb[0].mxu0
        %v6711 = vpop.f32.mrb[0].mxu0
        %v6712 = vadd.f32 0.0, %v6711
        %v6713 = vpop.f32.mrb[0].mxu0
        %6714 = vmatprep.mubr.bf16.mxu0 0
        %6715 = vmatmul.mubr.bf16.gmra.mrb[0].mxu0 %v6651
        %v6716 = vpop.f32.mrb[0].mxu0
        %v6717 = vadd.f32 0.0, %v6716
        %v6718 = vpop.f32.mrb[0].mxu0
        %v6719 = vpop.f32.mrb[0].mxu0
        %v6720 = vadd.f32 0.0, %v6719
        %v6721 = vpop.f32.mrb[0].mxu0
        %6722 = vmatprep.mubr.bf16.mxu0 0
        %6723 = vmatmul.mubr.bf16.gmra.mrb[0].mxu0 %v6654
        %v6724 = vpop.f32.mrb[0].mxu0
        %v6725 = vadd.f32 0.0, %v6724
        %v6726 = vpop.f32.mrb[0].mxu0
        %v6727 = vpop.f32.mrb[0].mxu0
        %v6728 = vadd.f32 0.0, %v6727
        %v6729 = vpop.f32.mrb[0].mxu0
        %6730 = vmatprep.mubr.bf16.mxu0 0
        %6731 = vmatmul.mubr.bf16.gmra.mrb[0].mxu0 %v6657
        %v6732 = vpop.f32.mrb[0].mxu0
        %v6733 = vadd.f32 0.0, %v6732
        %v6734 = vpop.f32.mrb[0].mxu0
        %v6735 = vpop.f32.mrb[0].mxu0
        %v6736 = vadd.f32 0.0, %v6735
        %v6737 = vpop.f32.mrb[0].mxu0
        %6738 = vmatprep.mubr.bf16.mxu0 0
        %6739 = vmatmul.mubr.bf16.gmra.mrb[0].mxu0 %v6660
        %v6740 = vpop.f32.mrb[0].mxu0
        %v6741 = vadd.f32 0.0, %v6740
        %v6742 = vpop.f32.mrb[0].mxu0
        %v6743 = vpop.f32.mrb[0].mxu0
        %v6744 = vadd.f32 0.0, %v6743
        %v6745 = vpop.f32.mrb[0].mxu0
        %6746 = vmatprep.mubr.bf16.mxu0 0
        %6747 = vmatmul.mubr.bf16.gmra.mrb[0].mxu0 %v6663
        %v6748 = vpop.f32.mrb[0].mxu0
        %v6749 = vadd.f32 0.0, %v6748
        %v6750 = vpop.f32.mrb[0].mxu0
        %v6751 = vpop.f32.mrb[0].mxu0
        %v6752 = vadd.f32 0.0, %v6751
        %v6753 = vpop.f32.mrb[0].mxu0
        %6754 = vmatprep.mubr.bf16.mxu0 0
        %6755 = vmatmul.mubr.bf16.gmra.mrb[0].mxu0 %v6666
        %v6756 = vpop.f32.mrb[0].mxu0
        %v6757 = vadd.f32 0.0, %v6756
        %v6758 = vpop.f32.mrb[0].mxu0
        %v6759 = vpop.f32.mrb[0].mxu0
        %v6760 = vadd.f32 0.0, %v6759
        %v6761 = vpop.f32.mrb[0].mxu0
        %6762 = vmatprep.mubr.bf16.mxu0 0
        %6763 = vmatmul.mubr.bf16.gmra.mrb[0].mxu0 %v6669
        %v6764 = vpop.f32.mrb[0].mxu0
        %v6765 = vadd.f32 0.0, %v6764
        %v6766 = vpop.f32.mrb[0].mxu0
        %v6767 = vpop.f32.mrb[0].mxu0
        %v6768 = vadd.f32 0.0, %v6767
        %v6769 = vpop.f32.mrb[0].mxu0
        %6770 = vdwg.mxu0
        %v6771 = vadd.f32 %v6573, %v6709
        %v6772 = vadd.f32 %v6574, %v6712
        %v6773 = vadd.f32 %v6575, %v6717
        %v6774 = vadd.f32 %v6576, %v6720
        %v6775 = vadd.f32 %v6577, %v6725
        %v6776 = vadd.f32 %v6578, %v6728
        %v6777 = vadd.f32 %v6579, %v6733
        %v6778 = vadd.f32 %v6580, %v6736
        %v6779 = vadd.f32 %v6581, %v6741
        %v6780 = vadd.f32 %v6582, %v6744
        %v6781 = vadd.f32 %v6583, %v6749
        %v6782 = vadd.f32 %v6584, %v6752
        %v6783 = vadd.f32 %v6585, %v6757
        %v6784 = vadd.f32 %v6586, %v6760
        %v6785 = vadd.f32 %v6587, %v6765
        %v6786 = vadd.f32 %v6588, %v6768
        %v6787 = vld [vmem:[%s567 + $0x8] sm:$0xf]
        %v6788 = vld [vmem:[%s567 + $0xc] sm:$0xf]
        %v6789 = vld [vmem:[%s567 + $0x10] sm:$0xf]
        %v6790 = vld [vmem:[%s567 + $0x14] sm:$0xf]
        %v6791 = vld [vmem:[%s567 + $0x18] sm:$0xf]
        %v6792 = vld [vmem:[%s567 + $0x1c] sm:$0xf]
        %v6793 = vld [vmem:[%s567 + $0x20] sm:$0xf]
        %v6794 = vld [vmem:[%s567 + $0x24] sm:$0xf]
        %v6795 = vld [vmem:[%s567 + $0x28] sm:$0xf]
        %v6796 = vld [vmem:[%s567 + $0x2c] sm:$0xf]
        %v6797 = vld [vmem:[%s567 + $0x30] sm:$0xf]
        %v6798 = vld [vmem:[%s567 + $0x34] sm:$0xf]
        %v6799 = vld [vmem:[%s567 + $0x38] sm:$0xf]
        %v6800 = vld [vmem:[%s567 + $0x3c] sm:$0xf]
        %v6801 = vld [vmem:[%s567 + $0x40] sm:$0xf]
        %v6802 = vld [vmem:[%s567 + $0x44] sm:$0xf]
        %v6803 = vld [vmem:[%s567 + $0x48] sm:$0x1]
        %s6804 = scalar_lea.vmem %s5, 16
        %v6805 = vld [vmem:[%s6804] sm:$0xf]
        %v6823 = vunpack.c.l.b16 %v6787
        %v6824 = vunpack.c.l.b16 %v6788
        %v6825 = vunpack.c.l.b16 %v6789
        %v6826 = vunpack.c.l.b16 %v6790
        %v6827 = vunpack.c.l.b16 %v6791
        %v6828 = vunpack.c.l.b16 %v6792
        %v6829 = vunpack.c.l.b16 %v6793
        %v6830 = vunpack.c.l.b16 %v6794
        %v6831 = vunpack.c.l.b16 %v6795
        %v6832 = vunpack.c.l.b16 %v6796
        %v6833 = vunpack.c.l.b16 %v6797
        %v6834 = vunpack.c.l.b16 %v6798
        %v6835 = vunpack.c.l.b16 %v6799
        %v6836 = vunpack.c.l.b16 %v6800
        %v6837 = vunpack.c.l.b16 %v6801
        %v6838 = vunpack.c.l.b16 %v6802
        %v6839 = vunpack.c.l.b16 %v6803
        %v6840 = vpack.c.b16 %v6824, %v6823
        %v6841 = vpack.c.b16 %v6826, %v6825
        %v6842 = vpack.c.b16 %v6828, %v6827
        %v6843 = vpack.c.b16 %v6830, %v6829
        %v6844 = vpack.c.b16 %v6832, %v6831
        %v6845 = vpack.c.b16 %v6834, %v6833
        %v6846 = vpack.c.b16 %v6836, %v6835
        %v6847 = vpack.c.b16 %v6838, %v6837
        %v6848 = vpack.c.b16 %v6839, %v6839
        %v6850 = vshrl.u32 %v6840, 16
        %v6852 = vshll.u32 %v6840, 16
        %v6854 = vrot.slane %v6852, 1
        %v6855 = vor.u32 %v6850, %v6854
        %v6857 = vshll.u32 %v6841, 16
        %v6859 = vrot.slane %v6857, 1
        %v6860 = vsel %vm759, %v6855, %v6859
        %v6861 = vshrl.u32 %v6841, 16
        %v6863 = vor.u32 %v6861, %v6859
        %v6865 = vshll.u32 %v6842, 16
        %v6867 = vrot.slane %v6865, 1
        %v6868 = vsel %vm759, %v6863, %v6867
        %v6869 = vshrl.u32 %v6842, 16
        %v6871 = vor.u32 %v6869, %v6867
        %v6873 = vshll.u32 %v6843, 16
        %v6875 = vrot.slane %v6873, 1
        %v6876 = vsel %vm759, %v6871, %v6875
        %v6877 = vshrl.u32 %v6843, 16
        %v6879 = vor.u32 %v6877, %v6875
        %v6881 = vshll.u32 %v6844, 16
        %v6883 = vrot.slane %v6881, 1
        %v6884 = vsel %vm759, %v6879, %v6883
        %v6885 = vshrl.u32 %v6844, 16
        %v6887 = vor.u32 %v6885, %v6883
        %v6889 = vshll.u32 %v6845, 16
        %v6891 = vrot.slane %v6889, 1
        %v6892 = vsel %vm759, %v6887, %v6891
        %v6893 = vshrl.u32 %v6845, 16
        %v6895 = vor.u32 %v6893, %v6891
        %v6897 = vshll.u32 %v6846, 16
        %v6899 = vrot.slane %v6897, 1
        %v6900 = vsel %vm759, %v6895, %v6899
        %v6901 = vshrl.u32 %v6846, 16
        %v6903 = vor.u32 %v6901, %v6899
        %v6905 = vshll.u32 %v6847, 16
        %v6907 = vrot.slane %v6905, 1
        %v6908 = vsel %vm759, %v6903, %v6907
        %v6909 = vshrl.u32 %v6847, 16
        %v6911 = vor.u32 %v6909, %v6907
        %v6913 = vshll.u32 %v6848, 16
        %v6915 = vrot.slane %v6913, 1
        %v6916 = vsel %vm759, %v6911, %v6915
        %v6918 = vsel %vm956, %v6860, 0
        %v6921 = vsel %vm956, %v6868, 0
        %v6924 = vsel %vm956, %v6876, 0
        %v6927 = vsel %vm956, %v6884, 0
        %v6930 = vsel %vm956, %v6892, 0
        %v6933 = vsel %vm956, %v6900, 0
        %v6936 = vsel %vm956, %v6908, 0
        %v6939 = vsel %vm956, %v6916, 0
        %v6942 = vsel %vm1029, %v6805, 0
        %6944 = vmatprep.subr.bf16.mxu0 0
        %6945 = vmatpush1.bf16.msra.mxu0 %v6942
        %6946 = vmatprep.subr.bf16.mxu0 0
        %6947 = vmatpush1.bf16.msra.mxu0 0
        %6948 = vmatprep.subr.bf16.mxu0 0
        %6949 = vmatpush1.bf16.msra.mxu0 0
        %6950 = vmatprep.subr.bf16.mxu0 0
        %6951 = vmatpush1.bf16.msra.mxu0 0
        %6952 = vmatprep.subr.bf16.mxu0 0
        %6953 = vmatpush1.bf16.msra.mxu0 0
        %6954 = vmatprep.subr.bf16.mxu0 0
        %6955 = vmatpush1.bf16.msra.mxu0 0
        %6956 = vmatprep.subr.bf16.mxu0 0
        %6957 = vmatpush1.bf16.msra.mxu0 0
        %6958 = vmatprep.subr.bf16.mxu0 0
        %6959 = vmatpush1.bf16.msra.mxu0 0
        %6960 = vmatprep.subr.bf16.mxu0 0
        %6961 = vmatpush1.bf16.msra.mxu0 0
        %6962 = vmatprep.subr.bf16.mxu0 0
        %6963 = vmatpush1.bf16.msra.mxu0 0
        %6964 = vmatprep.subr.bf16.mxu0 0
        %6965 = vmatpush1.bf16.msra.mxu0 0
        %6966 = vmatprep.subr.bf16.mxu0 0
        %6967 = vmatpush1.bf16.msra.mxu0 0
        %6968 = vmatprep.subr.bf16.mxu0 0
        %6969 = vmatpush1.bf16.msra.mxu0 0
        %6970 = vmatprep.subr.bf16.mxu0 0
        %6971 = vmatpush1.bf16.msra.mxu0 0
        %6972 = vmatprep.subr.bf16.mxu0 0
        %6973 = vmatpush1.bf16.msra.mxu0 0
        %6974 = vmatprep.subr.bf16.mxu0 0
        %6975 = vmatpush1.bf16.msra.mxu0 0
        %6976 = vmatprep.mubr.bf16.mxu0 0
        %6977 = vmatmul.mubr.bf16.gmra.mrb[0].mxu0 %v6918
        %v6978 = vpop.f32.mrb[0].mxu0
        %v6979 = vadd.f32 0.0, %v6978
        %v6980 = vpop.f32.mrb[0].mxu0
        %v6981 = vpop.f32.mrb[0].mxu0
        %v6982 = vadd.f32 0.0, %v6981
        %v6983 = vpop.f32.mrb[0].mxu0
        %6984 = vmatprep.mubr.bf16.mxu0 0
        %6985 = vmatmul.mubr.bf16.gmra.mrb[0].mxu0 %v6921
        %v6986 = vpop.f32.mrb[0].mxu0
        %v6987 = vadd.f32 0.0, %v6986
        %v6988 = vpop.f32.mrb[0].mxu0
        %v6989 = vpop.f32.mrb[0].mxu0
        %v6990 = vadd.f32 0.0, %v6989
        %v6991 = vpop.f32.mrb[0].mxu0
        %6992 = vmatprep.mubr.bf16.mxu0 0
        %6993 = vmatmul.mubr.bf16.gmra.mrb[0].mxu0 %v6924
        %v6994 = vpop.f32.mrb[0].mxu0
        %v6995 = vadd.f32 0.0, %v6994
        %v6996 = vpop.f32.mrb[0].mxu0
        %v6997 = vpop.f32.mrb[0].mxu0
        %v6998 = vadd.f32 0.0, %v6997
        %v6999 = vpop.f32.mrb[0].mxu0
        %7000 = vmatprep.mubr.bf16.mxu0 0
        %7001 = vmatmul.mubr.bf16.gmra.mrb[0].mxu0 %v6927
        %v7002 = vpop.f32.mrb[0].mxu0
        %v7003 = vadd.f32 0.0, %v7002
        %v7004 = vpop.f32.mrb[0].mxu0
        %v7005 = vpop.f32.mrb[0].mxu0
        %v7006 = vadd.f32 0.0, %v7005
        %v7007 = vpop.f32.mrb[0].mxu0
        %7008 = vmatprep.mubr.bf16.mxu0 0
        %7009 = vmatmul.mubr.bf16.gmra.mrb[0].mxu0 %v6930
        %v7010 = vpop.f32.mrb[0].mxu0
        %v7011 = vadd.f32 0.0, %v7010
        %v7012 = vpop.f32.mrb[0].mxu0
        %v7013 = vpop.f32.mrb[0].mxu0
        %v7014 = vadd.f32 0.0, %v7013
        %v7015 = vpop.f32.mrb[0].mxu0
        %7016 = vmatprep.mubr.bf16.mxu0 0
        %7017 = vmatmul.mubr.bf16.gmra.mrb[0].mxu0 %v6933
        %v7018 = vpop.f32.mrb[0].mxu0
        %v7019 = vadd.f32 0.0, %v7018
        %v7020 = vpop.f32.mrb[0].mxu0
        %v7021 = vpop.f32.mrb[0].mxu0
        %v7022 = vadd.f32 0.0, %v7021
        %v7023 = vpop.f32.mrb[0].mxu0
        %7024 = vmatprep.mubr.bf16.mxu0 0
        %7025 = vmatmul.mubr.bf16.gmra.mrb[0].mxu0 %v6936
        %v7026 = vpop.f32.mrb[0].mxu0
        %v7027 = vadd.f32 0.0, %v7026
        %v7028 = vpop.f32.mrb[0].mxu0
        %v7029 = vpop.f32.mrb[0].mxu0
        %v7030 = vadd.f32 0.0, %v7029
        %v7031 = vpop.f32.mrb[0].mxu0
        %7032 = vmatprep.mubr.bf16.mxu0 0
        %7033 = vmatmul.mubr.bf16.gmra.mrb[0].mxu0 %v6939
        %v7034 = vpop.f32.mrb[0].mxu0
        %v7035 = vadd.f32 0.0, %v7034
        %v7036 = vpop.f32.mrb[0].mxu0
        %v7037 = vpop.f32.mrb[0].mxu0
        %v7038 = vadd.f32 0.0, %v7037
        %v7039 = vpop.f32.mrb[0].mxu0
        %7040 = vdwg.mxu0
        %v7041 = vadd.f32 %v6771, %v6979
        %v7042 = vadd.f32 %v6772, %v6982
        %v7043 = vadd.f32 %v6773, %v6987
        %v7044 = vadd.f32 %v6774, %v6990
        %v7045 = vadd.f32 %v6775, %v6995
        %v7046 = vadd.f32 %v6776, %v6998
        %v7047 = vadd.f32 %v6777, %v7003
        %v7048 = vadd.f32 %v6778, %v7006
        %v7049 = vadd.f32 %v6779, %v7011
        %v7050 = vadd.f32 %v6780, %v7014
        %v7051 = vadd.f32 %v6781, %v7019
        %v7052 = vadd.f32 %v6782, %v7022
        %v7053 = vadd.f32 %v6783, %v7027
        %v7054 = vadd.f32 %v6784, %v7030
        %v7055 = vadd.f32 %v6785, %v7035
        %v7056 = vadd.f32 %v6786, %v7038
        %v7057 = vld [vmem:[%s567 + $0x8] sm:$0xe]
        %s7058 = scalar_lea.vmem %s5, 20
        %v7059 = vld [vmem:[%s7058] sm:$0xf]
        %v7061 = vunpack.c.l.b16 %v7057
        %v7062 = vpack.c.b16 %v6824, %v7061
        %v7063 = vrot.slane %v7062, 1
        %v7064 = vrot.slane %v6841, 1
        %v7065 = vsel %vm1540, %v7063, %v7064
        %v7066 = vrot.slane %v6842, 1
        %v7067 = vsel %vm1540, %v7064, %v7066
        %v7068 = vrot.slane %v6843, 1
        %v7069 = vsel %vm1540, %v7066, %v7068
        %v7070 = vrot.slane %v6844, 1
        %v7071 = vsel %vm1540, %v7068, %v7070
        %v7072 = vrot.slane %v6845, 1
        %v7073 = vsel %vm1540, %v7070, %v7072
        %v7074 = vrot.slane %v6846, 1
        %v7075 = vsel %vm1540, %v7072, %v7074
        %v7076 = vrot.slane %v6847, 1
        %v7077 = vsel %vm1540, %v7074, %v7076
        %v7078 = vrot.slane %v6848, 1
        %v7079 = vsel %vm1540, %v7076, %v7078
        %v7081 = vsel %vm956, %v7065, 0
        %v7084 = vsel %vm956, %v7067, 0
        %v7087 = vsel %vm956, %v7069, 0
        %v7090 = vsel %vm956, %v7071, 0
        %v7093 = vsel %vm956, %v7073, 0
        %v7096 = vsel %vm956, %v7075, 0
        %v7099 = vsel %vm956, %v7077, 0
        %v7102 = vsel %vm956, %v7079, 0
        %v7105 = vsel %vm1029, %v7059, 0
        %7107 = vmatprep.subr.bf16.mxu0 0
        %7108 = vmatpush1.bf16.msra.mxu0 %v7105
        %7109 = vmatprep.subr.bf16.mxu0 0
        %7110 = vmatpush1.bf16.msra.mxu0 0
        %7111 = vmatprep.subr.bf16.mxu0 0
        %7112 = vmatpush1.bf16.msra.mxu0 0
        %7113 = vmatprep.subr.bf16.mxu0 0
        %7114 = vmatpush1.bf16.msra.mxu0 0
        %7115 = vmatprep.subr.bf16.mxu0 0
        %7116 = vmatpush1.bf16.msra.mxu0 0
        %7117 = vmatprep.subr.bf16.mxu0 0
        %7118 = vmatpush1.bf16.msra.mxu0 0
        %7119 = vmatprep.subr.bf16.mxu0 0
        %7120 = vmatpush1.bf16.msra.mxu0 0
        %7121 = vmatprep.subr.bf16.mxu0 0
        %7122 = vmatpush1.bf16.msra.mxu0 0
        %7123 = vmatprep.subr.bf16.mxu0 0
        %7124 = vmatpush1.bf16.msra.mxu0 0
        %7125 = vmatprep.subr.bf16.mxu0 0
        %7126 = vmatpush1.bf16.msra.mxu0 0
        %7127 = vmatprep.subr.bf16.mxu0 0
        %7128 = vmatpush1.bf16.msra.mxu0 0
        %7129 = vmatprep.subr.bf16.mxu0 0
        %7130 = vmatpush1.bf16.msra.mxu0 0
        %7131 = vmatprep.subr.bf16.mxu0 0
        %7132 = vmatpush1.bf16.msra.mxu0 0
        %7133 = vmatprep.subr.bf16.mxu0 0
        %7134 = vmatpush1.bf16.msra.mxu0 0
        %7135 = vmatprep.subr.bf16.mxu0 0
        %7136 = vmatpush1.bf16.msra.mxu0 0
        %7137 = vmatprep.subr.bf16.mxu0 0
        %7138 = vmatpush1.bf16.msra.mxu0 0
        %7139 = vmatprep.mubr.bf16.mxu0 0
        %7140 = vmatmul.mubr.bf16.gmra.mrb[0].mxu0 %v7081
        %v7141 = vpop.f32.mrb[0].mxu0
        %v7142 = vadd.f32 0.0, %v7141
        %v7143 = vpop.f32.mrb[0].mxu0
        %v7144 = vpop.f32.mrb[0].mxu0
        %v7145 = vadd.f32 0.0, %v7144
        %v7146 = vpop.f32.mrb[0].mxu0
        %7147 = vmatprep.mubr.bf16.mxu0 0
        %7148 = vmatmul.mubr.bf16.gmra.mrb[0].mxu0 %v7084
        %v7149 = vpop.f32.mrb[0].mxu0
        %v7150 = vadd.f32 0.0, %v7149
        %v7151 = vpop.f32.mrb[0].mxu0
        %v7152 = vpop.f32.mrb[0].mxu0
        %v7153 = vadd.f32 0.0, %v7152
        %v7154 = vpop.f32.mrb[0].mxu0
        %7155 = vmatprep.mubr.bf16.mxu0 0
        %7156 = vmatmul.mubr.bf16.gmra.mrb[0].mxu0 %v7087
        %v7157 = vpop.f32.mrb[0].mxu0
        %v7158 = vadd.f32 0.0, %v7157
        %v7159 = vpop.f32.mrb[0].mxu0
        %v7160 = vpop.f32.mrb[0].mxu0
        %v7161 = vadd.f32 0.0, %v7160
        %v7162 = vpop.f32.mrb[0].mxu0
        %7163 = vmatprep.mubr.bf16.mxu0 0
        %7164 = vmatmul.mubr.bf16.gmra.mrb[0].mxu0 %v7090
        %v7165 = vpop.f32.mrb[0].mxu0
        %v7166 = vadd.f32 0.0, %v7165
        %v7167 = vpop.f32.mrb[0].mxu0
        %v7168 = vpop.f32.mrb[0].mxu0
        %v7169 = vadd.f32 0.0, %v7168
        %v7170 = vpop.f32.mrb[0].mxu0
        %7171 = vmatprep.mubr.bf16.mxu0 0
        %7172 = vmatmul.mubr.bf16.gmra.mrb[0].mxu0 %v7093
        %v7173 = vpop.f32.mrb[0].mxu0
        %v7174 = vadd.f32 0.0, %v7173
        %v7175 = vpop.f32.mrb[0].mxu0
        %v7176 = vpop.f32.mrb[0].mxu0
        %v7177 = vadd.f32 0.0, %v7176
        %v7178 = vpop.f32.mrb[0].mxu0
        %7179 = vmatprep.mubr.bf16.mxu0 0
        %7180 = vmatmul.mubr.bf16.gmra.mrb[0].mxu0 %v7096
        %v7181 = vpop.f32.mrb[0].mxu0
        %v7182 = vadd.f32 0.0, %v7181
        %v7183 = vpop.f32.mrb[0].mxu0
        %v7184 = vpop.f32.mrb[0].mxu0
        %v7185 = vadd.f32 0.0, %v7184
        %v7186 = vpop.f32.mrb[0].mxu0
        %7187 = vmatprep.mubr.bf16.mxu0 0
        %7188 = vmatmul.mubr.bf16.gmra.mrb[0].mxu0 %v7099
        %v7189 = vpop.f32.mrb[0].mxu0
        %v7190 = vadd.f32 0.0, %v7189
        %v7191 = vpop.f32.mrb[0].mxu0
        %v7192 = vpop.f32.mrb[0].mxu0
        %v7193 = vadd.f32 0.0, %v7192
        %v7194 = vpop.f32.mrb[0].mxu0
        %7195 = vmatprep.mubr.bf16.mxu0 0
        %7196 = vmatmul.mubr.bf16.gmra.mrb[0].mxu0 %v7102
        %v7197 = vpop.f32.mrb[0].mxu0
        %v7198 = vadd.f32 0.0, %v7197
        %v7199 = vpop.f32.mrb[0].mxu0
        %v7200 = vpop.f32.mrb[0].mxu0
        %v7201 = vadd.f32 0.0, %v7200
        %v7202 = vpop.f32.mrb[0].mxu0
        %7203 = vdwg.mxu0
        %v7204 = vadd.f32 %v7041, %v7142
        %v7205 = vadd.f32 %v7042, %v7145
        %v7206 = vadd.f32 %v7043, %v7150
        %v7207 = vadd.f32 %v7044, %v7153
        %v7208 = vadd.f32 %v7045, %v7158
        %v7209 = vadd.f32 %v7046, %v7161
        %v7210 = vadd.f32 %v7047, %v7166
        %v7211 = vadd.f32 %v7048, %v7169
        %v7212 = vadd.f32 %v7049, %v7174
        %v7213 = vadd.f32 %v7050, %v7177
        %v7214 = vadd.f32 %v7051, %v7182
        %v7215 = vadd.f32 %v7052, %v7185
        %v7216 = vadd.f32 %v7053, %v7190
        %v7217 = vadd.f32 %v7054, %v7193
        %v7218 = vadd.f32 %v7055, %v7198
        %v7219 = vadd.f32 %v7056, %v7201
        %v7220 = vld [vmem:[%s567 + $0x10] sm:$0xf]
        %v7221 = vld [vmem:[%s567 + $0x14] sm:$0xf]
        %v7222 = vld [vmem:[%s567 + $0x18] sm:$0xf]
        %v7223 = vld [vmem:[%s567 + $0x1c] sm:$0xf]
        %v7224 = vld [vmem:[%s567 + $0x20] sm:$0xf]
        %v7225 = vld [vmem:[%s567 + $0x24] sm:$0xf]
        %v7226 = vld [vmem:[%s567 + $0x28] sm:$0xf]
        %v7227 = vld [vmem:[%s567 + $0x2c] sm:$0xf]
        %v7228 = vld [vmem:[%s567 + $0x30] sm:$0xf]
        %v7229 = vld [vmem:[%s567 + $0x34] sm:$0xf]
        %v7230 = vld [vmem:[%s567 + $0x38] sm:$0xf]
        %v7231 = vld [vmem:[%s567 + $0x3c] sm:$0xf]
        %v7232 = vld [vmem:[%s567 + $0x40] sm:$0xf]
        %v7233 = vld [vmem:[%s567 + $0x44] sm:$0xf]
        %v7234 = vld [vmem:[%s567 + $0x48] sm:$0xf]
        %v7235 = vld [vmem:[%s567 + $0x4c] sm:$0xf]
        %s7236 = scalar_lea.vmem %s5, 24
        %v7237 = vld [vmem:[%s7236] sm:$0xf]
        %v7254 = vunpack.c.l.b16 %v7220
        %v7255 = vunpack.c.l.b16 %v7221
        %v7256 = vunpack.c.l.b16 %v7222
        %v7257 = vunpack.c.l.b16 %v7223
        %v7258 = vunpack.c.l.b16 %v7224
        %v7259 = vunpack.c.l.b16 %v7225
        %v7260 = vunpack.c.l.b16 %v7226
        %v7261 = vunpack.c.l.b16 %v7227
        %v7262 = vunpack.c.l.b16 %v7228
        %v7263 = vunpack.c.l.b16 %v7229
        %v7264 = vunpack.c.l.b16 %v7230
        %v7265 = vunpack.c.l.b16 %v7231
        %v7266 = vunpack.c.l.b16 %v7232
        %v7267 = vunpack.c.l.b16 %v7233
        %v7268 = vunpack.c.l.b16 %v7234
        %v7269 = vunpack.c.l.b16 %v7235
        %v7270 = vpack.c.b16 %v7255, %v7254
        %v7271 = vpack.c.b16 %v7257, %v7256
        %v7272 = vpack.c.b16 %v7259, %v7258
        %v7273 = vpack.c.b16 %v7261, %v7260
        %v7274 = vpack.c.b16 %v7263, %v7262
        %v7275 = vpack.c.b16 %v7265, %v7264
        %v7276 = vpack.c.b16 %v7267, %v7266
        %v7277 = vpack.c.b16 %v7269, %v7268
        %v7279 = vsel %vm956, %v7270, 0
        %v7282 = vsel %vm956, %v7271, 0
        %v7285 = vsel %vm956, %v7272, 0
        %v7288 = vsel %vm956, %v7273, 0
        %v7291 = vsel %vm956, %v7274, 0
        %v7294 = vsel %vm956, %v7275, 0
        %v7297 = vsel %vm956, %v7276, 0
        %v7300 = vsel %vm956, %v7277, 0
        %v7303 = vsel %vm1029, %v7237, 0
        %7305 = vmatprep.subr.bf16.mxu0 0
        %7306 = vmatpush1.bf16.msra.mxu0 %v7303
        %7307 = vmatprep.subr.bf16.mxu0 0
        %7308 = vmatpush1.bf16.msra.mxu0 0
        %7309 = vmatprep.subr.bf16.mxu0 0
        %7310 = vmatpush1.bf16.msra.mxu0 0
        %7311 = vmatprep.subr.bf16.mxu0 0
        %7312 = vmatpush1.bf16.msra.mxu0 0
        %7313 = vmatprep.subr.bf16.mxu0 0
        %7314 = vmatpush1.bf16.msra.mxu0 0
        %7315 = vmatprep.subr.bf16.mxu0 0
        %7316 = vmatpush1.bf16.msra.mxu0 0
        %7317 = vmatprep.subr.bf16.mxu0 0
        %7318 = vmatpush1.bf16.msra.mxu0 0
        %7319 = vmatprep.subr.bf16.mxu0 0
        %7320 = vmatpush1.bf16.msra.mxu0 0
        %7321 = vmatprep.subr.bf16.mxu0 0
        %7322 = vmatpush1.bf16.msra.mxu0 0
        %7323 = vmatprep.subr.bf16.mxu0 0
        %7324 = vmatpush1.bf16.msra.mxu0 0
        %7325 = vmatprep.subr.bf16.mxu0 0
        %7326 = vmatpush1.bf16.msra.mxu0 0
        %7327 = vmatprep.subr.bf16.mxu0 0
        %7328 = vmatpush1.bf16.msra.mxu0 0
        %7329 = vmatprep.subr.bf16.mxu0 0
        %7330 = vmatpush1.bf16.msra.mxu0 0
        %7331 = vmatprep.subr.bf16.mxu0 0
        %7332 = vmatpush1.bf16.msra.mxu0 0
        %7333 = vmatprep.subr.bf16.mxu0 0
        %7334 = vmatpush1.bf16.msra.mxu0 0
        %7335 = vmatprep.subr.bf16.mxu0 0
        %7336 = vmatpush1.bf16.msra.mxu0 0
        %7337 = vmatprep.mubr.bf16.mxu0 0
        %7338 = vmatmul.mubr.bf16.gmra.mrb[0].mxu0 %v7279
        %v7339 = vpop.f32.mrb[0].mxu0
        %v7340 = vadd.f32 0.0, %v7339
        %v7341 = vpop.f32.mrb[0].mxu0
        %v7342 = vpop.f32.mrb[0].mxu0
        %v7343 = vadd.f32 0.0, %v7342
        %v7344 = vpop.f32.mrb[0].mxu0
        %7345 = vmatprep.mubr.bf16.mxu0 0
        %7346 = vmatmul.mubr.bf16.gmra.mrb[0].mxu0 %v7282
        %v7347 = vpop.f32.mrb[0].mxu0
        %v7348 = vadd.f32 0.0, %v7347
        %v7349 = vpop.f32.mrb[0].mxu0
        %v7350 = vpop.f32.mrb[0].mxu0
        %v7351 = vadd.f32 0.0, %v7350
        %v7352 = vpop.f32.mrb[0].mxu0
        %7353 = vmatprep.mubr.bf16.mxu0 0
        %7354 = vmatmul.mubr.bf16.gmra.mrb[0].mxu0 %v7285
        %v7355 = vpop.f32.mrb[0].mxu0
        %v7356 = vadd.f32 0.0, %v7355
        %v7357 = vpop.f32.mrb[0].mxu0
        %v7358 = vpop.f32.mrb[0].mxu0
        %v7359 = vadd.f32 0.0, %v7358
        %v7360 = vpop.f32.mrb[0].mxu0
        %7361 = vmatprep.mubr.bf16.mxu0 0
        %7362 = vmatmul.mubr.bf16.gmra.mrb[0].mxu0 %v7288
        %v7363 = vpop.f32.mrb[0].mxu0
        %v7364 = vadd.f32 0.0, %v7363
        %v7365 = vpop.f32.mrb[0].mxu0
        %v7366 = vpop.f32.mrb[0].mxu0
        %v7367 = vadd.f32 0.0, %v7366
        %v7368 = vpop.f32.mrb[0].mxu0
        %7369 = vmatprep.mubr.bf16.mxu0 0
        %7370 = vmatmul.mubr.bf16.gmra.mrb[0].mxu0 %v7291
        %v7371 = vpop.f32.mrb[0].mxu0
        %v7372 = vadd.f32 0.0, %v7371
        %v7373 = vpop.f32.mrb[0].mxu0
        %v7374 = vpop.f32.mrb[0].mxu0
        %v7375 = vadd.f32 0.0, %v7374
        %v7376 = vpop.f32.mrb[0].mxu0
        %7377 = vmatprep.mubr.bf16.mxu0 0
        %7378 = vmatmul.mubr.bf16.gmra.mrb[0].mxu0 %v7294
        %v7379 = vpop.f32.mrb[0].mxu0
        %v7380 = vadd.f32 0.0, %v7379
        %v7381 = vpop.f32.mrb[0].mxu0
        %v7382 = vpop.f32.mrb[0].mxu0
        %v7383 = vadd.f32 0.0, %v7382
        %v7384 = vpop.f32.mrb[0].mxu0
        %7385 = vmatprep.mubr.bf16.mxu0 0
        %7386 = vmatmul.mubr.bf16.gmra.mrb[0].mxu0 %v7297
        %v7387 = vpop.f32.mrb[0].mxu0
        %v7388 = vadd.f32 0.0, %v7387
        %v7389 = vpop.f32.mrb[0].mxu0
        %v7390 = vpop.f32.mrb[0].mxu0
        %v7391 = vadd.f32 0.0, %v7390
        %v7392 = vpop.f32.mrb[0].mxu0
        %7393 = vmatprep.mubr.bf16.mxu0 0
        %7394 = vmatmul.mubr.bf16.gmra.mrb[0].mxu0 %v7300
        %v7395 = vpop.f32.mrb[0].mxu0
        %v7396 = vadd.f32 0.0, %v7395
        %v7397 = vpop.f32.mrb[0].mxu0
        %v7398 = vpop.f32.mrb[0].mxu0
        %v7399 = vadd.f32 0.0, %v7398
        %v7400 = vpop.f32.mrb[0].mxu0
        %7401 = vdwg.mxu0
        %v7402 = vadd.f32 %v7204, %v7340
        %v7403 = vadd.f32 %v7205, %v7343
        %v7404 = vadd.f32 %v7206, %v7348
        %v7405 = vadd.f32 %v7207, %v7351
        %v7406 = vadd.f32 %v7208, %v7356
        %v7407 = vadd.f32 %v7209, %v7359
        %v7408 = vadd.f32 %v7210, %v7364
        %v7409 = vadd.f32 %v7211, %v7367
        %v7410 = vadd.f32 %v7212, %v7372
        %v7411 = vadd.f32 %v7213, %v7375
        %v7412 = vadd.f32 %v7214, %v7380
        %v7413 = vadd.f32 %v7215, %v7383
        %v7414 = vadd.f32 %v7216, %v7388
        %v7415 = vadd.f32 %v7217, %v7391
        %v7416 = vadd.f32 %v7218, %v7396
        %v7417 = vadd.f32 %v7219, %v7399
        %v7418 = vld [vmem:[%s567 + $0x10] sm:$0xf]
        %v7419 = vld [vmem:[%s567 + $0x14] sm:$0xf]
        %v7420 = vld [vmem:[%s567 + $0x18] sm:$0xf]
        %v7421 = vld [vmem:[%s567 + $0x1c] sm:$0xf]
        %v7422 = vld [vmem:[%s567 + $0x20] sm:$0xf]
        %v7423 = vld [vmem:[%s567 + $0x24] sm:$0xf]
        %v7424 = vld [vmem:[%s567 + $0x28] sm:$0xf]
        %v7425 = vld [vmem:[%s567 + $0x2c] sm:$0xf]
        %v7426 = vld [vmem:[%s567 + $0x30] sm:$0xf]
        %v7427 = vld [vmem:[%s567 + $0x34] sm:$0xf]
        %v7428 = vld [vmem:[%s567 + $0x38] sm:$0xf]
        %v7429 = vld [vmem:[%s567 + $0x3c] sm:$0xf]
        %v7430 = vld [vmem:[%s567 + $0x40] sm:$0xf]
        %v7431 = vld [vmem:[%s567 + $0x44] sm:$0xf]
        %v7432 = vld [vmem:[%s567 + $0x48] sm:$0xf]
        %v7433 = vld [vmem:[%s567 + $0x4c] sm:$0xf]
        %v7434 = vld [vmem:[%s567 + $0x50] sm:$0x1]
        %s7435 = scalar_lea.vmem %s5, 28
        %v7436 = vld [vmem:[%s7435] sm:$0xf]
        %v7454 = vunpack.c.l.b16 %v7418
        %v7455 = vunpack.c.l.b16 %v7419
        %v7456 = vunpack.c.l.b16 %v7420
        %v7457 = vunpack.c.l.b16 %v7421
        %v7458 = vunpack.c.l.b16 %v7422
        %v7459 = vunpack.c.l.b16 %v7423
        %v7460 = vunpack.c.l.b16 %v7424
        %v7461 = vunpack.c.l.b16 %v7425
        %v7462 = vunpack.c.l.b16 %v7426
        %v7463 = vunpack.c.l.b16 %v7427
        %v7464 = vunpack.c.l.b16 %v7428
        %v7465 = vunpack.c.l.b16 %v7429
        %v7466 = vunpack.c.l.b16 %v7430
        %v7467 = vunpack.c.l.b16 %v7431
        %v7468 = vunpack.c.l.b16 %v7432
        %v7469 = vunpack.c.l.b16 %v7433
        %v7470 = vunpack.c.l.b16 %v7434
        %v7471 = vpack.c.b16 %v7455, %v7454
        %v7472 = vpack.c.b16 %v7457, %v7456
        %v7473 = vpack.c.b16 %v7459, %v7458
        %v7474 = vpack.c.b16 %v7461, %v7460
        %v7475 = vpack.c.b16 %v7463, %v7462
        %v7476 = vpack.c.b16 %v7465, %v7464
        %v7477 = vpack.c.b16 %v7467, %v7466
        %v7478 = vpack.c.b16 %v7469, %v7468
        %v7479 = vpack.c.b16 %v7470, %v7470
        %v7481 = vshrl.u32 %v7471, 16
        %v7483 = vshll.u32 %v7471, 16
        %v7485 = vrot.slane %v7483, 1
        %v7486 = vor.u32 %v7481, %v7485
        %v7488 = vshll.u32 %v7472, 16
        %v7490 = vrot.slane %v7488, 1
        %v7491 = vsel %vm759, %v7486, %v7490
        %v7492 = vshrl.u32 %v7472, 16
        %v7494 = vor.u32 %v7492, %v7490
        %v7496 = vshll.u32 %v7473, 16
        %v7498 = vrot.slane %v7496, 1
        %v7499 = vsel %vm759, %v7494, %v7498
        %v7500 = vshrl.u32 %v7473, 16
        %v7502 = vor.u32 %v7500, %v7498
        %v7504 = vshll.u32 %v7474, 16
        %v7506 = vrot.slane %v7504, 1
        %v7507 = vsel %vm759, %v7502, %v7506
        %v7508 = vshrl.u32 %v7474, 16
        %v7510 = vor.u32 %v7508, %v7506
        %v7512 = vshll.u32 %v7475, 16
        %v7514 = vrot.slane %v7512, 1
        %v7515 = vsel %vm759, %v7510, %v7514
        %v7516 = vshrl.u32 %v7475, 16
        %v7518 = vor.u32 %v7516, %v7514
        %v7520 = vshll.u32 %v7476, 16
        %v7522 = vrot.slane %v7520, 1
        %v7523 = vsel %vm759, %v7518, %v7522
        %v7524 = vshrl.u32 %v7476, 16
        %v7526 = vor.u32 %v7524, %v7522
        %v7528 = vshll.u32 %v7477, 16
        %v7530 = vrot.slane %v7528, 1
        %v7531 = vsel %vm759, %v7526, %v7530
        %v7532 = vshrl.u32 %v7477, 16
        %v7534 = vor.u32 %v7532, %v7530
        %v7536 = vshll.u32 %v7478, 16
        %v7538 = vrot.slane %v7536, 1
        %v7539 = vsel %vm759, %v7534, %v7538
        %v7540 = vshrl.u32 %v7478, 16
        %v7542 = vor.u32 %v7540, %v7538
        %v7544 = vshll.u32 %v7479, 16
        %v7546 = vrot.slane %v7544, 1
        %v7547 = vsel %vm759, %v7542, %v7546
        %v7549 = vsel %vm956, %v7491, 0
        %v7552 = vsel %vm956, %v7499, 0
        %v7555 = vsel %vm956, %v7507, 0
        %v7558 = vsel %vm956, %v7515, 0
        %v7561 = vsel %vm956, %v7523, 0
        %v7564 = vsel %vm956, %v7531, 0
        %v7567 = vsel %vm956, %v7539, 0
        %v7570 = vsel %vm956, %v7547, 0
        %v7573 = vsel %vm1029, %v7436, 0
        %7575 = vmatprep.subr.bf16.mxu0 0
        %7576 = vmatpush1.bf16.msra.mxu0 %v7573
        %7577 = vmatprep.subr.bf16.mxu0 0
        %7578 = vmatpush1.bf16.msra.mxu0 0
        %7579 = vmatprep.subr.bf16.mxu0 0
        %7580 = vmatpush1.bf16.msra.mxu0 0
        %7581 = vmatprep.subr.bf16.mxu0 0
        %7582 = vmatpush1.bf16.msra.mxu0 0
        %7583 = vmatprep.subr.bf16.mxu0 0
        %7584 = vmatpush1.bf16.msra.mxu0 0
        %7585 = vmatprep.subr.bf16.mxu0 0
        %7586 = vmatpush1.bf16.msra.mxu0 0
        %7587 = vmatprep.subr.bf16.mxu0 0
        %7588 = vmatpush1.bf16.msra.mxu0 0
        %7589 = vmatprep.subr.bf16.mxu0 0
        %7590 = vmatpush1.bf16.msra.mxu0 0
        %7591 = vmatprep.subr.bf16.mxu0 0
        %7592 = vmatpush1.bf16.msra.mxu0 0
        %7593 = vmatprep.subr.bf16.mxu0 0
        %7594 = vmatpush1.bf16.msra.mxu0 0
        %7595 = vmatprep.subr.bf16.mxu0 0
        %7596 = vmatpush1.bf16.msra.mxu0 0
        %7597 = vmatprep.subr.bf16.mxu0 0
        %7598 = vmatpush1.bf16.msra.mxu0 0
        %7599 = vmatprep.subr.bf16.mxu0 0
        %7600 = vmatpush1.bf16.msra.mxu0 0
        %7601 = vmatprep.subr.bf16.mxu0 0
        %7602 = vmatpush1.bf16.msra.mxu0 0
        %7603 = vmatprep.subr.bf16.mxu0 0
        %7604 = vmatpush1.bf16.msra.mxu0 0
        %7605 = vmatprep.subr.bf16.mxu0 0
        %7606 = vmatpush1.bf16.msra.mxu0 0
        %7607 = vmatprep.mubr.bf16.mxu0 0
        %7608 = vmatmul.mubr.bf16.gmra.mrb[0].mxu0 %v7549
        %v7609 = vpop.f32.mrb[0].mxu0
        %v7610 = vadd.f32 0.0, %v7609
        %v7611 = vpop.f32.mrb[0].mxu0
        %v7612 = vpop.f32.mrb[0].mxu0
        %v7613 = vadd.f32 0.0, %v7612
        %v7614 = vpop.f32.mrb[0].mxu0
        %7615 = vmatprep.mubr.bf16.mxu0 0
        %7616 = vmatmul.mubr.bf16.gmra.mrb[0].mxu0 %v7552
        %v7617 = vpop.f32.mrb[0].mxu0
        %v7618 = vadd.f32 0.0, %v7617
        %v7619 = vpop.f32.mrb[0].mxu0
        %v7620 = vpop.f32.mrb[0].mxu0
        %v7621 = vadd.f32 0.0, %v7620
        %v7622 = vpop.f32.mrb[0].mxu0
        %7623 = vmatprep.mubr.bf16.mxu0 0
        %7624 = vmatmul.mubr.bf16.gmra.mrb[0].mxu0 %v7555
        %v7625 = vpop.f32.mrb[0].mxu0
        %v7626 = vadd.f32 0.0, %v7625
        %v7627 = vpop.f32.mrb[0].mxu0
        %v7628 = vpop.f32.mrb[0].mxu0
        %v7629 = vadd.f32 0.0, %v7628
        %v7630 = vpop.f32.mrb[0].mxu0
        %7631 = vmatprep.mubr.bf16.mxu0 0
        %7632 = vmatmul.mubr.bf16.gmra.mrb[0].mxu0 %v7558
        %v7633 = vpop.f32.mrb[0].mxu0
        %v7634 = vadd.f32 0.0, %v7633
        %v7635 = vpop.f32.mrb[0].mxu0
        %v7636 = vpop.f32.mrb[0].mxu0
        %v7637 = vadd.f32 0.0, %v7636
        %v7638 = vpop.f32.mrb[0].mxu0
        %7639 = vmatprep.mubr.bf16.mxu0 0
        %7640 = vmatmul.mubr.bf16.gmra.mrb[0].mxu0 %v7561
        %v7641 = vpop.f32.mrb[0].mxu0
        %v7642 = vadd.f32 0.0, %v7641
        %v7643 = vpop.f32.mrb[0].mxu0
        %v7644 = vpop.f32.mrb[0].mxu0
        %v7645 = vadd.f32 0.0, %v7644
        %v7646 = vpop.f32.mrb[0].mxu0
        %7647 = vmatprep.mubr.bf16.mxu0 0
        %7648 = vmatmul.mubr.bf16.gmra.mrb[0].mxu0 %v7564
        %v7649 = vpop.f32.mrb[0].mxu0
        %v7650 = vadd.f32 0.0, %v7649
        %v7651 = vpop.f32.mrb[0].mxu0
        %v7652 = vpop.f32.mrb[0].mxu0
        %v7653 = vadd.f32 0.0, %v7652
        %v7654 = vpop.f32.mrb[0].mxu0
        %7655 = vmatprep.mubr.bf16.mxu0 0
        %7656 = vmatmul.mubr.bf16.gmra.mrb[0].mxu0 %v7567
        %v7657 = vpop.f32.mrb[0].mxu0
        %v7658 = vadd.f32 0.0, %v7657
        %v7659 = vpop.f32.mrb[0].mxu0
        %v7660 = vpop.f32.mrb[0].mxu0
        %v7661 = vadd.f32 0.0, %v7660
        %v7662 = vpop.f32.mrb[0].mxu0
        %7663 = vmatprep.mubr.bf16.mxu0 0
        %7664 = vmatmul.mubr.bf16.gmra.mrb[0].mxu0 %v7570
        %v7665 = vpop.f32.mrb[0].mxu0
        %v7666 = vadd.f32 0.0, %v7665
        %v7667 = vpop.f32.mrb[0].mxu0
        %v7668 = vpop.f32.mrb[0].mxu0
        %v7669 = vadd.f32 0.0, %v7668
        %v7670 = vpop.f32.mrb[0].mxu0
        %7671 = vdwg.mxu0
        %v7672 = vadd.f32 %v7402, %v7610
        %v7673 = vadd.f32 %v7403, %v7613
        %v7674 = vadd.f32 %v7404, %v7618
        %v7675 = vadd.f32 %v7405, %v7621
        %v7676 = vadd.f32 %v7406, %v7626
        %v7677 = vadd.f32 %v7407, %v7629
        %v7678 = vadd.f32 %v7408, %v7634
        %v7679 = vadd.f32 %v7409, %v7637
        %v7680 = vadd.f32 %v7410, %v7642
        %v7681 = vadd.f32 %v7411, %v7645
        %v7682 = vadd.f32 %v7412, %v7650
        %v7683 = vadd.f32 %v7413, %v7653
        %v7684 = vadd.f32 %v7414, %v7658
        %v7685 = vadd.f32 %v7415, %v7661
        %v7686 = vadd.f32 %v7416, %v7666
        %v7687 = vadd.f32 %v7417, %v7669
        %v7688 = vld [vmem:[%s567 + $0x10] sm:$0xe]
        %s7689 = scalar_lea.vmem %s5, 32
        %v7690 = vld [vmem:[%s7689] sm:$0xf]
        %v7692 = vunpack.c.l.b16 %v7688
        %v7693 = vpack.c.b16 %v7455, %v7692
        %v7694 = vrot.slane %v7693, 1
        %v7695 = vrot.slane %v7472, 1
        %v7696 = vsel %vm1540, %v7694, %v7695
        %v7697 = vrot.slane %v7473, 1
        %v7698 = vsel %vm1540, %v7695, %v7697
        %v7699 = vrot.slane %v7474, 1
        %v7700 = vsel %vm1540, %v7697, %v7699
        %v7701 = vrot.slane %v7475, 1
        %v7702 = vsel %vm1540, %v7699, %v7701
        %v7703 = vrot.slane %v7476, 1
        %v7704 = vsel %vm1540, %v7701, %v7703
        %v7705 = vrot.slane %v7477, 1
        %v7706 = vsel %vm1540, %v7703, %v7705
        %v7707 = vrot.slane %v7478, 1
        %v7708 = vsel %vm1540, %v7705, %v7707
        %v7709 = vrot.slane %v7479, 1
        %v7710 = vsel %vm1540, %v7707, %v7709
        %v7712 = vsel %vm956, %v7696, 0
        %v7715 = vsel %vm956, %v7698, 0
        %v7718 = vsel %vm956, %v7700, 0
        %v7721 = vsel %vm956, %v7702, 0
        %v7724 = vsel %vm956, %v7704, 0
        %v7727 = vsel %vm956, %v7706, 0
        %v7730 = vsel %vm956, %v7708, 0
        %v7733 = vsel %vm956, %v7710, 0
        %v7736 = vsel %vm1029, %v7690, 0
        %7738 = vmatprep.subr.bf16.mxu0 0
        %7739 = vmatpush1.bf16.msra.mxu0 %v7736
        %7740 = vmatprep.subr.bf16.mxu0 0
        %7741 = vmatpush1.bf16.msra.mxu0 0
        %7742 = vmatprep.subr.bf16.mxu0 0
        %7743 = vmatpush1.bf16.msra.mxu0 0
        %7744 = vmatprep.subr.bf16.mxu0 0
        %7745 = vmatpush1.bf16.msra.mxu0 0
        %7746 = vmatprep.subr.bf16.mxu0 0
        %7747 = vmatpush1.bf16.msra.mxu0 0
        %7748 = vmatprep.subr.bf16.mxu0 0
        %7749 = vmatpush1.bf16.msra.mxu0 0
        %7750 = vmatprep.subr.bf16.mxu0 0
        %7751 = vmatpush1.bf16.msra.mxu0 0
        %7752 = vmatprep.subr.bf16.mxu0 0
        %7753 = vmatpush1.bf16.msra.mxu0 0
        %7754 = vmatprep.subr.bf16.mxu0 0
        %7755 = vmatpush1.bf16.msra.mxu0 0
        %7756 = vmatprep.subr.bf16.mxu0 0
        %7757 = vmatpush1.bf16.msra.mxu0 0
        %7758 = vmatprep.subr.bf16.mxu0 0
        %7759 = vmatpush1.bf16.msra.mxu0 0
        %7760 = vmatprep.subr.bf16.mxu0 0
        %7761 = vmatpush1.bf16.msra.mxu0 0
        %7762 = vmatprep.subr.bf16.mxu0 0
        %7763 = vmatpush1.bf16.msra.mxu0 0
        %7764 = vmatprep.subr.bf16.mxu0 0
        %7765 = vmatpush1.bf16.msra.mxu0 0
        %7766 = vmatprep.subr.bf16.mxu0 0
        %7767 = vmatpush1.bf16.msra.mxu0 0
        %7768 = vmatprep.subr.bf16.mxu0 0
        %7769 = vmatpush1.bf16.msra.mxu0 0
        %7770 = vmatprep.mubr.bf16.mxu0 0
        %7771 = vmatmul.mubr.bf16.gmra.mrb[0].mxu0 %v7712
        %v7772 = vpop.f32.mrb[0].mxu0
        %v7773 = vadd.f32 0.0, %v7772
        %v7774 = vpop.f32.mrb[0].mxu0
        %v7775 = vpop.f32.mrb[0].mxu0
        %v7776 = vadd.f32 0.0, %v7775
        %v7777 = vpop.f32.mrb[0].mxu0
        %7778 = vmatprep.mubr.bf16.mxu0 0
        %7779 = vmatmul.mubr.bf16.gmra.mrb[0].mxu0 %v7715
        %v7780 = vpop.f32.mrb[0].mxu0
        %v7781 = vadd.f32 0.0, %v7780
        %v7782 = vpop.f32.mrb[0].mxu0
        %v7783 = vpop.f32.mrb[0].mxu0
        %v7784 = vadd.f32 0.0, %v7783
        %v7785 = vpop.f32.mrb[0].mxu0
        %7786 = vmatprep.mubr.bf16.mxu0 0
        %7787 = vmatmul.mubr.bf16.gmra.mrb[0].mxu0 %v7718
        %v7788 = vpop.f32.mrb[0].mxu0
        %v7789 = vadd.f32 0.0, %v7788
        %v7790 = vpop.f32.mrb[0].mxu0
        %v7791 = vpop.f32.mrb[0].mxu0
        %v7792 = vadd.f32 0.0, %v7791
        %v7793 = vpop.f32.mrb[0].mxu0
        %7794 = vmatprep.mubr.bf16.mxu0 0
        %7795 = vmatmul.mubr.bf16.gmra.mrb[0].mxu0 %v7721
        %v7796 = vpop.f32.mrb[0].mxu0
        %v7797 = vadd.f32 0.0, %v7796
        %v7798 = vpop.f32.mrb[0].mxu0
        %v7799 = vpop.f32.mrb[0].mxu0
        %v7800 = vadd.f32 0.0, %v7799
        %v7801 = vpop.f32.mrb[0].mxu0
        %7802 = vmatprep.mubr.bf16.mxu0 0
        %7803 = vmatmul.mubr.bf16.gmra.mrb[0].mxu0 %v7724
        %v7804 = vpop.f32.mrb[0].mxu0
        %v7805 = vadd.f32 0.0, %v7804
        %v7806 = vpop.f32.mrb[0].mxu0
        %v7807 = vpop.f32.mrb[0].mxu0
        %v7808 = vadd.f32 0.0, %v7807
        %v7809 = vpop.f32.mrb[0].mxu0
        %7810 = vmatprep.mubr.bf16.mxu0 0
        %7811 = vmatmul.mubr.bf16.gmra.mrb[0].mxu0 %v7727
        %v7812 = vpop.f32.mrb[0].mxu0
        %v7813 = vadd.f32 0.0, %v7812
        %v7814 = vpop.f32.mrb[0].mxu0
        %v7815 = vpop.f32.mrb[0].mxu0
        %v7816 = vadd.f32 0.0, %v7815
        %v7817 = vpop.f32.mrb[0].mxu0
        %7818 = vmatprep.mubr.bf16.mxu0 0
        %7819 = vmatmul.mubr.bf16.gmra.mrb[0].mxu0 %v7730
        %v7820 = vpop.f32.mrb[0].mxu0
        %v7821 = vadd.f32 0.0, %v7820
        %v7822 = vpop.f32.mrb[0].mxu0
        %v7823 = vpop.f32.mrb[0].mxu0
        %v7824 = vadd.f32 0.0, %v7823
        %v7825 = vpop.f32.mrb[0].mxu0
        %7826 = vmatprep.mubr.bf16.mxu0 0
        %7827 = vmatmul.mubr.bf16.gmra.mrb[0].mxu0 %v7733
        %v7828 = vpop.f32.mrb[0].mxu0
        %v7829 = vadd.f32 0.0, %v7828
        %v7830 = vpop.f32.mrb[0].mxu0
        %v7831 = vpop.f32.mrb[0].mxu0
        %v7832 = vadd.f32 0.0, %v7831
        %v7833 = vpop.f32.mrb[0].mxu0
        %7834 = vdwg.mxu0
        %v7835 = vadd.f32 %v7672, %v7773
        %v7836 = vadd.f32 %v7673, %v7776
        %v7837 = vadd.f32 %v7674, %v7781
        %v7838 = vadd.f32 %v7675, %v7784
        %v7839 = vadd.f32 %v7676, %v7789
        %v7840 = vadd.f32 %v7677, %v7792
        %v7841 = vadd.f32 %v7678, %v7797
        %v7842 = vadd.f32 %v7679, %v7800
        %v7843 = vadd.f32 %v7680, %v7805
        %v7844 = vadd.f32 %v7681, %v7808
        %v7845 = vadd.f32 %v7682, %v7813
        %v7846 = vadd.f32 %v7683, %v7816
        %v7847 = vadd.f32 %v7684, %v7821
        %v7848 = vadd.f32 %v7685, %v7824
        %v7849 = vadd.f32 %v7686, %v7829
        %v7850 = vadd.f32 %v7687, %v7832
        %v7851 = vld [vmem:[%s7 + $0x1] sm:$0x1]
        %v7852 = vlaneseq
        %v7853 = vshrl.u32 %v7852, 7
        %v7854 = vsub.s32 0, %v7853
        %v7855 = vrot.slane %v7851, %v7854
        %v7856 = vadd.f32 %v7835, %v7855
        %v7857 = vadd.f32 %v7836, %v7855
        %v7858 = vadd.f32 %v7837, %v7855
        %v7859 = vadd.f32 %v7838, %v7855
        %v7860 = vadd.f32 %v7839, %v7855
        %v7861 = vadd.f32 %v7840, %v7855
        %v7862 = vadd.f32 %v7841, %v7855
        %v7863 = vadd.f32 %v7842, %v7855
        %v7864 = vadd.f32 %v7843, %v7855
        %v7865 = vadd.f32 %v7844, %v7855
        %v7866 = vadd.f32 %v7845, %v7855
        %v7867 = vadd.f32 %v7846, %v7855
        %v7868 = vadd.f32 %v7847, %v7855
        %v7869 = vadd.f32 %v7848, %v7855
        %v7870 = vadd.f32 %v7849, %v7855
        %v7871 = vadd.f32 %v7850, %v7855
        %v7872 = vmax.f32 %v7856, 0.0
        %v7873 = vmax.f32 %v7857, 0.0
        %v7874 = vmax.f32 %v7858, 0.0
        %v7875 = vmax.f32 %v7859, 0.0
        %v7876 = vmax.f32 %v7860, 0.0
        %v7877 = vmax.f32 %v7861, 0.0
        %v7878 = vmax.f32 %v7862, 0.0
        %v7879 = vmax.f32 %v7863, 0.0
        %v7880 = vmax.f32 %v7864, 0.0
        %v7881 = vmax.f32 %v7865, 0.0
        %v7882 = vmax.f32 %v7866, 0.0
        %v7883 = vmax.f32 %v7867, 0.0
        %v7884 = vmax.f32 %v7868, 0.0
        %v7885 = vmax.f32 %v7869, 0.0
        %v7886 = vmax.f32 %v7870, 0.0
        %v7887 = vmax.f32 %v7871, 0.0
        %7888 = vxpose.xlu0.b32.start [1/16] %v7872, 128
        %7889 = vxpose.xlu0.b32.cont [2/16] %v7873, 128
        %7890 = vxpose.xlu0.b32.cont [3/16] 0.0, 128
        %7891 = vxpose.xlu0.b32.cont [4/16] 0.0, 128
        %7892 = vxpose.xlu0.b32.cont [5/16] 0.0, 128
        %7893 = vxpose.xlu0.b32.cont [6/16] 0.0, 128
        %7894 = vxpose.xlu0.b32.cont [7/16] 0.0, 128
        %7895 = vxpose.xlu0.b32.cont [8/16] 0.0, 128
        %7896 = vxpose.xlu0.b32.cont [9/16] 0.0, 128
        %7897 = vxpose.xlu0.b32.cont [10/16] 0.0, 128
        %7898 = vxpose.xlu0.b32.cont [11/16] 0.0, 128
        %7899 = vxpose.xlu0.b32.cont [12/16] 0.0, 128
        %7900 = vxpose.xlu0.b32.cont [13/16] 0.0, 128
        %7901 = vxpose.xlu0.b32.cont [14/16] 0.0, 128
        %7902 = vxpose.xlu0.b32.cont [15/16] 0.0, 128
        %7903 = vxpose.xlu0.b32.end [16/16] 0.0, 128
        %v7904 = vpop.trf.xlu0
        %v7905 = vpop.trf.xlu0
        %v7906 = vpop.trf.xlu0
        %v7907 = vpop.trf.xlu0
        %v7908 = vpop.trf.xlu0
        %v7909 = vpop.trf.xlu0
        %v7910 = vpop.trf.xlu0
        %v7911 = vpop.trf.xlu0
        %v7912 = vpop.trf.xlu0
        %v7913 = vpop.trf.xlu0
        %v7914 = vpop.trf.xlu0
        %v7915 = vpop.trf.xlu0
        %v7916 = vpop.trf.xlu0
        %v7917 = vpop.trf.xlu0
        %v7918 = vpop.trf.xlu0
        %v7919 = vpop.trf.xlu0
        %7920 = vxpose.xlu0.b32.start [1/16] %v7874, 128
        %7921 = vxpose.xlu0.b32.cont [2/16] %v7875, 128
        %7922 = vxpose.xlu0.b32.cont [3/16] 0.0, 128
        %7923 = vxpose.xlu0.b32.cont [4/16] 0.0, 128
        %7924 = vxpose.xlu0.b32.cont [5/16] 0.0, 128
        %7925 = vxpose.xlu0.b32.cont [6/16] 0.0, 128
        %7926 = vxpose.xlu0.b32.cont [7/16] 0.0, 128
        %7927 = vxpose.xlu0.b32.cont [8/16] 0.0, 128
        %7928 = vxpose.xlu0.b32.cont [9/16] 0.0, 128
        %7929 = vxpose.xlu0.b32.cont [10/16] 0.0, 128
        %7930 = vxpose.xlu0.b32.cont [11/16] 0.0, 128
        %7931 = vxpose.xlu0.b32.cont [12/16] 0.0, 128
        %7932 = vxpose.xlu0.b32.cont [13/16] 0.0, 128
        %7933 = vxpose.xlu0.b32.cont [14/16] 0.0, 128
        %7934 = vxpose.xlu0.b32.cont [15/16] 0.0, 128
        %7935 = vxpose.xlu0.b32.end [16/16] 0.0, 128
        %v7936 = vpop.trf.xlu0
        %v7937 = vpop.trf.xlu0
        %v7938 = vpop.trf.xlu0
        %v7939 = vpop.trf.xlu0
        %v7940 = vpop.trf.xlu0
        %v7941 = vpop.trf.xlu0
        %v7942 = vpop.trf.xlu0
        %v7943 = vpop.trf.xlu0
        %v7944 = vpop.trf.xlu0
        %v7945 = vpop.trf.xlu0
        %v7946 = vpop.trf.xlu0
        %v7947 = vpop.trf.xlu0
        %v7948 = vpop.trf.xlu0
        %v7949 = vpop.trf.xlu0
        %v7950 = vpop.trf.xlu0
        %v7951 = vpop.trf.xlu0
        %7952 = vxpose.xlu0.b32.start [1/16] %v7876, 128
        %7953 = vxpose.xlu0.b32.cont [2/16] %v7877, 128
        %7954 = vxpose.xlu0.b32.cont [3/16] 0.0, 128
        %7955 = vxpose.xlu0.b32.cont [4/16] 0.0, 128
        %7956 = vxpose.xlu0.b32.cont [5/16] 0.0, 128
        %7957 = vxpose.xlu0.b32.cont [6/16] 0.0, 128
        %7958 = vxpose.xlu0.b32.cont [7/16] 0.0, 128
        %7959 = vxpose.xlu0.b32.cont [8/16] 0.0, 128
        %7960 = vxpose.xlu0.b32.cont [9/16] 0.0, 128
        %7961 = vxpose.xlu0.b32.cont [10/16] 0.0, 128
        %7962 = vxpose.xlu0.b32.cont [11/16] 0.0, 128
        %7963 = vxpose.xlu0.b32.cont [12/16] 0.0, 128
        %7964 = vxpose.xlu0.b32.cont [13/16] 0.0, 128
        %7965 = vxpose.xlu0.b32.cont [14/16] 0.0, 128
        %7966 = vxpose.xlu0.b32.cont [15/16] 0.0, 128
        %7967 = vxpose.xlu0.b32.end [16/16] 0.0, 128
        %v7968 = vpop.trf.xlu0
        %v7969 = vpop.trf.xlu0
        %v7970 = vpop.trf.xlu0
        %v7971 = vpop.trf.xlu0
        %v7972 = vpop.trf.xlu0
        %v7973 = vpop.trf.xlu0
        %v7974 = vpop.trf.xlu0
        %v7975 = vpop.trf.xlu0
        %v7976 = vpop.trf.xlu0
        %v7977 = vpop.trf.xlu0
        %v7978 = vpop.trf.xlu0
        %v7979 = vpop.trf.xlu0
        %v7980 = vpop.trf.xlu0
        %v7981 = vpop.trf.xlu0
        %v7982 = vpop.trf.xlu0
        %v7983 = vpop.trf.xlu0
        %7984 = vxpose.xlu0.b32.start [1/16] %v7878, 128
        %7985 = vxpose.xlu0.b32.cont [2/16] %v7879, 128
        %7986 = vxpose.xlu0.b32.cont [3/16] 0.0, 128
        %7987 = vxpose.xlu0.b32.cont [4/16] 0.0, 128
        %7988 = vxpose.xlu0.b32.cont [5/16] 0.0, 128
        %7989 = vxpose.xlu0.b32.cont [6/16] 0.0, 128
        %7990 = vxpose.xlu0.b32.cont [7/16] 0.0, 128
        %7991 = vxpose.xlu0.b32.cont [8/16] 0.0, 128
        %7992 = vxpose.xlu0.b32.cont [9/16] 0.0, 128
        %7993 = vxpose.xlu0.b32.cont [10/16] 0.0, 128
        %7994 = vxpose.xlu0.b32.cont [11/16] 0.0, 128
        %7995 = vxpose.xlu0.b32.cont [12/16] 0.0, 128
        %7996 = vxpose.xlu0.b32.cont [13/16] 0.0, 128
        %7997 = vxpose.xlu0.b32.cont [14/16] 0.0, 128
        %7998 = vxpose.xlu0.b32.cont [15/16] 0.0, 128
        %7999 = vxpose.xlu0.b32.end [16/16] 0.0, 128
        %v8000 = vpop.trf.xlu0
        %v8001 = vpop.trf.xlu0
        %v8002 = vpop.trf.xlu0
        %v8003 = vpop.trf.xlu0
        %v8004 = vpop.trf.xlu0
        %v8005 = vpop.trf.xlu0
        %v8006 = vpop.trf.xlu0
        %v8007 = vpop.trf.xlu0
        %v8008 = vpop.trf.xlu0
        %v8009 = vpop.trf.xlu0
        %v8010 = vpop.trf.xlu0
        %v8011 = vpop.trf.xlu0
        %v8012 = vpop.trf.xlu0
        %v8013 = vpop.trf.xlu0
        %v8014 = vpop.trf.xlu0
        %v8015 = vpop.trf.xlu0
        %8016 = vxpose.xlu0.b32.start [1/16] %v7880, 128
        %8017 = vxpose.xlu0.b32.cont [2/16] %v7881, 128
        %8018 = vxpose.xlu0.b32.cont [3/16] 0.0, 128
        %8019 = vxpose.xlu0.b32.cont [4/16] 0.0, 128
        %8020 = vxpose.xlu0.b32.cont [5/16] 0.0, 128
        %8021 = vxpose.xlu0.b32.cont [6/16] 0.0, 128
        %8022 = vxpose.xlu0.b32.cont [7/16] 0.0, 128
        %8023 = vxpose.xlu0.b32.cont [8/16] 0.0, 128
        %8024 = vxpose.xlu0.b32.cont [9/16] 0.0, 128
        %8025 = vxpose.xlu0.b32.cont [10/16] 0.0, 128
        %8026 = vxpose.xlu0.b32.cont [11/16] 0.0, 128
        %8027 = vxpose.xlu0.b32.cont [12/16] 0.0, 128
        %8028 = vxpose.xlu0.b32.cont [13/16] 0.0, 128
        %8029 = vxpose.xlu0.b32.cont [14/16] 0.0, 128
        %8030 = vxpose.xlu0.b32.cont [15/16] 0.0, 128
        %8031 = vxpose.xlu0.b32.end [16/16] 0.0, 128
        %v8032 = vpop.trf.xlu0
        %v8033 = vpop.trf.xlu0
        %v8034 = vpop.trf.xlu0
        %v8035 = vpop.trf.xlu0
        %v8036 = vpop.trf.xlu0
        %v8037 = vpop.trf.xlu0
        %v8038 = vpop.trf.xlu0
        %v8039 = vpop.trf.xlu0
        %v8040 = vpop.trf.xlu0
        %v8041 = vpop.trf.xlu0
        %v8042 = vpop.trf.xlu0
        %v8043 = vpop.trf.xlu0
        %v8044 = vpop.trf.xlu0
        %v8045 = vpop.trf.xlu0
        %v8046 = vpop.trf.xlu0
        %v8047 = vpop.trf.xlu0
        %8048 = vxpose.xlu0.b32.start [1/16] %v7882, 128
        %8049 = vxpose.xlu0.b32.cont [2/16] %v7883, 128
        %8050 = vxpose.xlu0.b32.cont [3/16] 0.0, 128
        %8051 = vxpose.xlu0.b32.cont [4/16] 0.0, 128
        %8052 = vxpose.xlu0.b32.cont [5/16] 0.0, 128
        %8053 = vxpose.xlu0.b32.cont [6/16] 0.0, 128
        %8054 = vxpose.xlu0.b32.cont [7/16] 0.0, 128
        %8055 = vxpose.xlu0.b32.cont [8/16] 0.0, 128
        %8056 = vxpose.xlu0.b32.cont [9/16] 0.0, 128
        %8057 = vxpose.xlu0.b32.cont [10/16] 0.0, 128
        %8058 = vxpose.xlu0.b32.cont [11/16] 0.0, 128
        %8059 = vxpose.xlu0.b32.cont [12/16] 0.0, 128
        %8060 = vxpose.xlu0.b32.cont [13/16] 0.0, 128
        %8061 = vxpose.xlu0.b32.cont [14/16] 0.0, 128
        %8062 = vxpose.xlu0.b32.cont [15/16] 0.0, 128
        %8063 = vxpose.xlu0.b32.end [16/16] 0.0, 128
        %v8064 = vpop.trf.xlu0
        %v8065 = vpop.trf.xlu0
        %v8066 = vpop.trf.xlu0
        %v8067 = vpop.trf.xlu0
        %v8068 = vpop.trf.xlu0
        %v8069 = vpop.trf.xlu0
        %v8070 = vpop.trf.xlu0
        %v8071 = vpop.trf.xlu0
        %v8072 = vpop.trf.xlu0
        %v8073 = vpop.trf.xlu0
        %v8074 = vpop.trf.xlu0
        %v8075 = vpop.trf.xlu0
        %v8076 = vpop.trf.xlu0
        %v8077 = vpop.trf.xlu0
        %v8078 = vpop.trf.xlu0
        %v8079 = vpop.trf.xlu0
        %8080 = vxpose.xlu0.b32.start [1/16] %v7884, 128
        %8081 = vxpose.xlu0.b32.cont [2/16] %v7885, 128
        %8082 = vxpose.xlu0.b32.cont [3/16] 0.0, 128
        %8083 = vxpose.xlu0.b32.cont [4/16] 0.0, 128
        %8084 = vxpose.xlu0.b32.cont [5/16] 0.0, 128
        %8085 = vxpose.xlu0.b32.cont [6/16] 0.0, 128
        %8086 = vxpose.xlu0.b32.cont [7/16] 0.0, 128
        %8087 = vxpose.xlu0.b32.cont [8/16] 0.0, 128
        %8088 = vxpose.xlu0.b32.cont [9/16] 0.0, 128
        %8089 = vxpose.xlu0.b32.cont [10/16] 0.0, 128
        %8090 = vxpose.xlu0.b32.cont [11/16] 0.0, 128
        %8091 = vxpose.xlu0.b32.cont [12/16] 0.0, 128
        %8092 = vxpose.xlu0.b32.cont [13/16] 0.0, 128
        %8093 = vxpose.xlu0.b32.cont [14/16] 0.0, 128
        %8094 = vxpose.xlu0.b32.cont [15/16] 0.0, 128
        %8095 = vxpose.xlu0.b32.end [16/16] 0.0, 128
        %v8096 = vpop.trf.xlu0
        %v8097 = vpop.trf.xlu0
        %v8098 = vpop.trf.xlu0
        %v8099 = vpop.trf.xlu0
        %v8100 = vpop.trf.xlu0
        %v8101 = vpop.trf.xlu0
        %v8102 = vpop.trf.xlu0
        %v8103 = vpop.trf.xlu0
        %v8104 = vpop.trf.xlu0
        %v8105 = vpop.trf.xlu0
        %v8106 = vpop.trf.xlu0
        %v8107 = vpop.trf.xlu0
        %v8108 = vpop.trf.xlu0
        %v8109 = vpop.trf.xlu0
        %v8110 = vpop.trf.xlu0
        %v8111 = vpop.trf.xlu0
        %8112 = vxpose.xlu0.b32.start [1/16] %v7886, 128
        %8113 = vxpose.xlu0.b32.cont [2/16] %v7887, 128
        %8114 = vxpose.xlu0.b32.cont [3/16] 0.0, 128
        %8115 = vxpose.xlu0.b32.cont [4/16] 0.0, 128
        %8116 = vxpose.xlu0.b32.cont [5/16] 0.0, 128
        %8117 = vxpose.xlu0.b32.cont [6/16] 0.0, 128
        %8118 = vxpose.xlu0.b32.cont [7/16] 0.0, 128
        %8119 = vxpose.xlu0.b32.cont [8/16] 0.0, 128
        %8120 = vxpose.xlu0.b32.cont [9/16] 0.0, 128
        %8121 = vxpose.xlu0.b32.cont [10/16] 0.0, 128
        %8122 = vxpose.xlu0.b32.cont [11/16] 0.0, 128
        %8123 = vxpose.xlu0.b32.cont [12/16] 0.0, 128
        %8124 = vxpose.xlu0.b32.cont [13/16] 0.0, 128
        %8125 = vxpose.xlu0.b32.cont [14/16] 0.0, 128
        %8126 = vxpose.xlu0.b32.cont [15/16] 0.0, 128
        %8127 = vxpose.xlu0.b32.end [16/16] 0.0, 128
        %v8128 = vpop.trf.xlu0
        %v8129 = vpop.trf.xlu0
        %v8130 = vpop.trf.xlu0
        %v8131 = vpop.trf.xlu0
        %v8132 = vpop.trf.xlu0
        %v8133 = vpop.trf.xlu0
        %v8134 = vpop.trf.xlu0
        %v8135 = vpop.trf.xlu0
        %v8136 = vpop.trf.xlu0
        %v8137 = vpop.trf.xlu0
        %v8138 = vpop.trf.xlu0
        %v8139 = vpop.trf.xlu0
        %v8140 = vpop.trf.xlu0
        %v8141 = vpop.trf.xlu0
        %v8142 = vpop.trf.xlu0
        %v8143 = vpop.trf.xlu0
        %v8144 = vpack.c.bf16 %v7936, %v7904
        %v8145 = vpack.c.bf16 %v8000, %v7968
        %v8146 = vpack.c.bf16 %v8064, %v8032
        %v8147 = vpack.c.bf16 %v8128, %v8096
        %v8148 = vld [vmem:[%s9] sm:$0xf]
        %v8149 = vld [vmem:[%s9 + $0x4] sm:$0xf]
        %v8152 = vunpack.c.l.b16 %v8148
        %v8153 = vunpack.c.l.b16 %v8149
        %v8154 = vpack.c.b16 %v8153, %v8152
        %vm8156 = vcmask 130048
        %v8158 = vsel %vm8156, %v8144, 0
        %v8161 = vsel %vm8156, %v8145, 0
        %v8164 = vsel %vm8156, %v8146, 0
        %v8167 = vsel %vm8156, %v8147, 0
        %8169 = vmatprep.subr.bf16.mxu0 0
        %8170 = vmatpush1.bf16.msra.mxu0 %v8154
        %8171 = vmatprep.subr.bf16.mxu0 0
        %8172 = vmatpush1.bf16.msra.mxu0 0
        %8173 = vmatprep.subr.bf16.mxu0 0
        %8174 = vmatpush1.bf16.msra.mxu0 0
        %8175 = vmatprep.subr.bf16.mxu0 0
        %8176 = vmatpush1.bf16.msra.mxu0 0
        %8177 = vmatprep.subr.bf16.mxu0 0
        %8178 = vmatpush1.bf16.msra.mxu0 0
        %8179 = vmatprep.subr.bf16.mxu0 0
        %8180 = vmatpush1.bf16.msra.mxu0 0
        %8181 = vmatprep.subr.bf16.mxu0 0
        %8182 = vmatpush1.bf16.msra.mxu0 0
        %8183 = vmatprep.subr.bf16.mxu0 0
        %8184 = vmatpush1.bf16.msra.mxu0 0
        %8185 = vmatprep.subr.bf16.mxu0 0
        %8186 = vmatpush1.bf16.msra.mxu0 0
        %8187 = vmatprep.subr.bf16.mxu0 0
        %8188 = vmatpush1.bf16.msra.mxu0 0
        %8189 = vmatprep.subr.bf16.mxu0 0
        %8190 = vmatpush1.bf16.msra.mxu0 0
        %8191 = vmatprep.subr.bf16.mxu0 0
        %8192 = vmatpush1.bf16.msra.mxu0 0
        %8193 = vmatprep.subr.bf16.mxu0 0
        %8194 = vmatpush1.bf16.msra.mxu0 0
        %8195 = vmatprep.subr.bf16.mxu0 0
        %8196 = vmatpush1.bf16.msra.mxu0 0
        %8197 = vmatprep.subr.bf16.mxu0 0
        %8198 = vmatpush1.bf16.msra.mxu0 0
        %8199 = vmatprep.subr.bf16.mxu0 0
        %8200 = vmatpush1.bf16.msra.mxu0 0
        %8201 = vmatprep.mubr.bf16.mxu0 0
        %8202 = vmatmul.mubr.bf16.gmra.mrb[0].mxu0 %v8158
        %v8203 = vpop.f32.mrb[0].mxu0
        %v8204 = vadd.f32 0.0, %v8203
        %v8205 = vpop.f32.mrb[0].mxu0
        %v8206 = vpop.f32.mrb[0].mxu0
        %v8207 = vadd.f32 0.0, %v8206
        %v8208 = vpop.f32.mrb[0].mxu0
        %8209 = vmatprep.mubr.bf16.mxu0 0
        %8210 = vmatmul.mubr.bf16.gmra.mrb[0].mxu0 %v8161
        %v8211 = vpop.f32.mrb[0].mxu0
        %v8212 = vadd.f32 0.0, %v8211
        %v8213 = vpop.f32.mrb[0].mxu0
        %v8214 = vpop.f32.mrb[0].mxu0
        %v8215 = vadd.f32 0.0, %v8214
        %v8216 = vpop.f32.mrb[0].mxu0
        %8217 = vmatprep.mubr.bf16.mxu0 0
        %8218 = vmatmul.mubr.bf16.gmra.mrb[0].mxu0 %v8164
        %v8219 = vpop.f32.mrb[0].mxu0
        %v8220 = vadd.f32 0.0, %v8219
        %v8221 = vpop.f32.mrb[0].mxu0
        %v8222 = vpop.f32.mrb[0].mxu0
        %v8223 = vadd.f32 0.0, %v8222
        %v8224 = vpop.f32.mrb[0].mxu0
        %8225 = vmatprep.mubr.bf16.mxu0 0
        %8226 = vmatmul.mubr.bf16.gmra.mrb[0].mxu0 %v8167
        %v8227 = vpop.f32.mrb[0].mxu0
        %v8228 = vadd.f32 0.0, %v8227
        %v8229 = vpop.f32.mrb[0].mxu0
        %v8230 = vpop.f32.mrb[0].mxu0
        %v8231 = vadd.f32 0.0, %v8230
        %v8232 = vpop.f32.mrb[0].mxu0
        %8233 = vdwg.mxu0
        %v8234 = vpack.c.bf16 %v8207, %v8204
        %v8235 = vpack.c.bf16 %v8215, %v8212
        %v8236 = vpack.c.bf16 %v8223, %v8220
        %v8237 = vpack.c.bf16 %v8231, %v8228
        %v8242 = vunpack.c.l.b16 %v8234
        %v8243 = vunpack.c.h.b16 %v8234
        %v8244 = vunpack.c.l.b16 %v8235
        %v8245 = vunpack.c.h.b16 %v8235
        %v8246 = vunpack.c.l.b16 %v8236
        %v8247 = vunpack.c.h.b16 %v8236
        %v8248 = vunpack.c.l.b16 %v8237
        %v8249 = vunpack.c.h.b16 %v8237
        %v8250 = vpack.c.b16 %v8242, %v8242
        %v8251 = vpack.c.b16 %v8243, %v8243
        %v8252 = vpack.c.b16 %v8244, %v8244
        %v8253 = vpack.c.b16 %v8245, %v8245
        %v8254 = vpack.c.b16 %v8246, %v8246
        %v8255 = vpack.c.b16 %v8247, %v8247
        %v8256 = vpack.c.b16 %v8248, %v8248
        %v8257 = vpack.c.b16 %v8249, %v8249
        %8266 = vst.msk [vmem:[%s543] sm:$0xf] %vm6038, %v8250
        %8267 = vst.msk [vmem:[%s543 + $0x4] sm:$0xf] %vm6038, %v8251
        %8268 = vst.msk [vmem:[%s543 + $0x8] sm:$0xf] %vm6038, %v8252
        %8269 = vst.msk [vmem:[%s543 + $0xc] sm:$0xf] %vm6038, %v8253
        %8270 = vst.msk [vmem:[%s543 + $0x10] sm:$0xf] %vm6038, %v8254
        %8271 = vst.msk [vmem:[%s543 + $0x14] sm:$0xf] %vm6038, %v8255
        %8272 = vst.msk [vmem:[%s543 + $0x18] sm:$0xf] %vm6038, %v8256
        %8273 = vst.msk [vmem:[%s543 + $0x1c] sm:$0xf] %vm6038, %v8257
        %v8274 = vld [vmem:[%s572] sm:$0xf]
        %v8275 = vld [vmem:[%s572 + $0x4] sm:$0xf]
        %v8276 = vld [vmem:[%s572 + $0x8] sm:$0xf]
        %v8277 = vld [vmem:[%s572 + $0xc] sm:$0xf]
        %v8278 = vld [vmem:[%s6] sm:$0xf]
        %v8279 = vld [vmem:[%s572 + $0x10] sm:$0x1]
        %s8280 = scalar_lea.vmem %s6, 4
        %v8281 = vld [vmem:[%s8280] sm:$0xf]
        %v8287 = vunpack.c.l.b16 %v8274
        %v8288 = vunpack.c.l.b16 %v8275
        %v8289 = vunpack.c.l.b16 %v8276
        %v8290 = vunpack.c.l.b16 %v8277
        %v8291 = vunpack.c.l.b16 %v8279
        %v8292 = vpack.c.b16 %v8288, %v8287
        %v8293 = vpack.c.b16 %v8290, %v8289
        %v8294 = vpack.c.b16 %v8291, %v8291
        %v8296 = vshrl.u32 %v8292, 16
        %v8298 = vshll.u32 %v8292, 16
        %v8300 = vrot.slane %v8298, 1
        %v8301 = vor.u32 %v8296, %v8300
        %v8303 = vshll.u32 %v8293, 16
        %v8305 = vrot.slane %v8303, 1
        %v8306 = vsel %vm759, %v8301, %v8305
        %v8307 = vshrl.u32 %v8293, 16
        %v8309 = vor.u32 %v8307, %v8305
        %v8311 = vshll.u32 %v8294, 16
        %v8313 = vrot.slane %v8311, 1
        %v8314 = vsel %vm759, %v8309, %v8313
        %v8316 = vsel %vm956, %v8306, 0
        %v8319 = vsel %vm956, %v8314, 0
        %v8322 = vsel %vm1029, %v8281, 0
        %8324 = vmatprep.subr.bf16.mxu0 0
        %8325 = vmatpush1.bf16.msra.mxu0 %v8322
        %8326 = vmatprep.subr.bf16.mxu0 0
        %8327 = vmatpush1.bf16.msra.mxu0 0
        %8328 = vmatprep.subr.bf16.mxu0 0
        %8329 = vmatpush1.bf16.msra.mxu0 0
        %8330 = vmatprep.subr.bf16.mxu0 0
        %8331 = vmatpush1.bf16.msra.mxu0 0
        %8332 = vmatprep.subr.bf16.mxu0 0
        %8333 = vmatpush1.bf16.msra.mxu0 0
        %8334 = vmatprep.subr.bf16.mxu0 0
        %8335 = vmatpush1.bf16.msra.mxu0 0
        %8336 = vmatprep.subr.bf16.mxu0 0
        %8337 = vmatpush1.bf16.msra.mxu0 0
        %8338 = vmatprep.subr.bf16.mxu0 0
        %8339 = vmatpush1.bf16.msra.mxu0 0
        %8340 = vmatprep.subr.bf16.mxu0 0
        %8341 = vmatpush1.bf16.msra.mxu0 0
        %8342 = vmatprep.subr.bf16.mxu0 0
        %8343 = vmatpush1.bf16.msra.mxu0 0
        %8344 = vmatprep.subr.bf16.mxu0 0
        %8345 = vmatpush1.bf16.msra.mxu0 0
        %8346 = vmatprep.subr.bf16.mxu0 0
        %8347 = vmatpush1.bf16.msra.mxu0 0
        %8348 = vmatprep.subr.bf16.mxu0 0
        %8349 = vmatpush1.bf16.msra.mxu0 0
        %8350 = vmatprep.subr.bf16.mxu0 0
        %8351 = vmatpush1.bf16.msra.mxu0 0
        %8352 = vmatprep.subr.bf16.mxu0 0
        %8353 = vmatpush1.bf16.msra.mxu0 0
        %8354 = vmatprep.subr.bf16.mxu0 0
        %8355 = vmatpush1.bf16.msra.mxu0 0
        %8356 = vmatprep.mubr.bf16.mxu0 0
        %8357 = vmatmul.mubr.bf16.gmra.mrb[0].mxu0 %v8316
        %v8358 = vpop.f32.mrb[0].mxu0
        %v8359 = vadd.f32 0.0, %v8358
        %v8360 = vpop.f32.mrb[0].mxu0
        %v8361 = vpop.f32.mrb[0].mxu0
        %v8362 = vadd.f32 0.0, %v8361
        %v8363 = vpop.f32.mrb[0].mxu0
        %8364 = vmatprep.mubr.bf16.mxu0 0
        %8365 = vmatmul.mubr.bf16.gmra.mrb[0].mxu0 %v8319
        %v8366 = vpop.f32.mrb[0].mxu0
        %v8367 = vadd.f32 0.0, %v8366
        %v8368 = vpop.f32.mrb[0].mxu0
        %v8369 = vpop.f32.mrb[0].mxu0
        %v8370 = vadd.f32 0.0, %v8369
        %v8371 = vpop.f32.mrb[0].mxu0
        %8372 = vdwg.mxu0
        %v8373 = vsel %vm956, %v8292, 0
        %v8375 = vsel %vm956, %v8293, 0
        %v8378 = vsel %vm1029, %v8278, 0
        %8380 = vmatprep.subr.bf16.mxu0 0
        %8381 = vmatpush1.bf16.msra.mxu0 %v8378
        %8382 = vmatprep.subr.bf16.mxu0 0
        %8383 = vmatpush1.bf16.msra.mxu0 0
        %8384 = vmatprep.subr.bf16.mxu0 0
        %8385 = vmatpush1.bf16.msra.mxu0 0
        %8386 = vmatprep.subr.bf16.mxu0 0
        %8387 = vmatpush1.bf16.msra.mxu0 0
        %8388 = vmatprep.subr.bf16.mxu0 0
        %8389 = vmatpush1.bf16.msra.mxu0 0
        %8390 = vmatprep.subr.bf16.mxu0 0
        %8391 = vmatpush1.bf16.msra.mxu0 0
        %8392 = vmatprep.subr.bf16.mxu0 0
        %8393 = vmatpush1.bf16.msra.mxu0 0
        %8394 = vmatprep.subr.bf16.mxu0 0
        %8395 = vmatpush1.bf16.msra.mxu0 0
        %8396 = vmatprep.subr.bf16.mxu0 0
        %8397 = vmatpush1.bf16.msra.mxu0 0
        %8398 = vmatprep.subr.bf16.mxu0 0
        %8399 = vmatpush1.bf16.msra.mxu0 0
        %8400 = vmatprep.subr.bf16.mxu0 0
        %8401 = vmatpush1.bf16.msra.mxu0 0
        %8402 = vmatprep.subr.bf16.mxu0 0
        %8403 = vmatpush1.bf16.msra.mxu0 0
        %8404 = vmatprep.subr.bf16.mxu0 0
        %8405 = vmatpush1.bf16.msra.mxu0 0
        %8406 = vmatprep.subr.bf16.mxu0 0
        %8407 = vmatpush1.bf16.msra.mxu0 0
        %8408 = vmatprep.subr.bf16.mxu0 0
        %8409 = vmatpush1.bf16.msra.mxu0 0
        %8410 = vmatprep.subr.bf16.mxu0 0
        %8411 = vmatpush1.bf16.msra.mxu0 0
        %8412 = vmatprep.mubr.bf16.mxu0 0
        %8413 = vmatmul.mubr.bf16.gmra.mrb[0].mxu0 %v8373
        %v8414 = vpop.f32.mrb[0].mxu0
        %v8415 = vadd.f32 %v8359, %v8414
        %v8416 = vpop.f32.mrb[0].mxu0
        %v8417 = vpop.f32.mrb[0].mxu0
        %v8418 = vadd.f32 %v8362, %v8417
        %v8419 = vpop.f32.mrb[0].mxu0
        %8420 = vmatprep.mubr.bf16.mxu0 0
        %8421 = vmatmul.mubr.bf16.gmra.mrb[0].mxu0 %v8375
        %v8422 = vpop.f32.mrb[0].mxu0
        %v8423 = vadd.f32 %v8367, %v8422
        %v8424 = vpop.f32.mrb[0].mxu0
        %v8425 = vpop.f32.mrb[0].mxu0
        %v8426 = vadd.f32 %v8370, %v8425
        %v8427 = vpop.f32.mrb[0].mxu0
        %8428 = vdwg.mxu0
        %v8429 = vld [vmem:[%s572] sm:$0xe]
        %s8430 = scalar_lea.vmem %s6, 8
        %v8431 = vld [vmem:[%s8430] sm:$0xf]
        %v8433 = vunpack.c.l.b16 %v8429
        %v8434 = vpack.c.b16 %v8288, %v8433
        %v8435 = vrot.slane %v8434, 1
        %v8436 = vrot.slane %v8293, 1
        %v8437 = vsel %vm1540, %v8435, %v8436
        %v8438 = vrot.slane %v8294, 1
        %v8439 = vsel %vm1540, %v8436, %v8438
        %v8441 = vsel %vm956, %v8437, 0
        %v8444 = vsel %vm956, %v8439, 0
        %v8447 = vsel %vm1029, %v8431, 0
        %8449 = vmatprep.subr.bf16.mxu0 0
        %8450 = vmatpush1.bf16.msra.mxu0 %v8447
        %8451 = vmatprep.subr.bf16.mxu0 0
        %8452 = vmatpush1.bf16.msra.mxu0 0
        %8453 = vmatprep.subr.bf16.mxu0 0
        %8454 = vmatpush1.bf16.msra.mxu0 0
        %8455 = vmatprep.subr.bf16.mxu0 0
        %8456 = vmatpush1.bf16.msra.mxu0 0
        %8457 = vmatprep.subr.bf16.mxu0 0
        %8458 = vmatpush1.bf16.msra.mxu0 0
        %8459 = vmatprep.subr.bf16.mxu0 0
        %8460 = vmatpush1.bf16.msra.mxu0 0
        %8461 = vmatprep.subr.bf16.mxu0 0
        %8462 = vmatpush1.bf16.msra.mxu0 0
        %8463 = vmatprep.subr.bf16.mxu0 0
        %8464 = vmatpush1.bf16.msra.mxu0 0
        %8465 = vmatprep.subr.bf16.mxu0 0
        %8466 = vmatpush1.bf16.msra.mxu0 0
        %8467 = vmatprep.subr.bf16.mxu0 0
        %8468 = vmatpush1.bf16.msra.mxu0 0
        %8469 = vmatprep.subr.bf16.mxu0 0
        %8470 = vmatpush1.bf16.msra.mxu0 0
        %8471 = vmatprep.subr.bf16.mxu0 0
        %8472 = vmatpush1.bf16.msra.mxu0 0
        %8473 = vmatprep.subr.bf16.mxu0 0
        %8474 = vmatpush1.bf16.msra.mxu0 0
        %8475 = vmatprep.subr.bf16.mxu0 0
        %8476 = vmatpush1.bf16.msra.mxu0 0
        %8477 = vmatprep.subr.bf16.mxu0 0
        %8478 = vmatpush1.bf16.msra.mxu0 0
        %8479 = vmatprep.subr.bf16.mxu0 0
        %8480 = vmatpush1.bf16.msra.mxu0 0
        %8481 = vmatprep.mubr.bf16.mxu0 0
        %8482 = vmatmul.mubr.bf16.gmra.mrb[0].mxu0 %v8441
        %v8483 = vpop.f32.mrb[0].mxu0
        %v8484 = vadd.f32 0.0, %v8483
        %v8485 = vpop.f32.mrb[0].mxu0
        %v8486 = vpop.f32.mrb[0].mxu0
        %v8487 = vadd.f32 0.0, %v8486
        %v8488 = vpop.f32.mrb[0].mxu0
        %8489 = vmatprep.mubr.bf16.mxu0 0
        %8490 = vmatmul.mubr.bf16.gmra.mrb[0].mxu0 %v8444
        %v8491 = vpop.f32.mrb[0].mxu0
        %v8492 = vadd.f32 0.0, %v8491
        %v8493 = vpop.f32.mrb[0].mxu0
        %v8494 = vpop.f32.mrb[0].mxu0
        %v8495 = vadd.f32 0.0, %v8494
        %v8496 = vpop.f32.mrb[0].mxu0
        %8497 = vdwg.mxu0
        %v8498 = vadd.f32 %v8415, %v8484
        %v8499 = vadd.f32 %v8418, %v8487
        %v8500 = vadd.f32 %v8423, %v8492
        %v8501 = vadd.f32 %v8426, %v8495
        %v8502 = vld [vmem:[%s572 + $0x10] sm:$0xf]
        %s8503 = scalar_lea.vmem %s6, 12
        %v8504 = vld [vmem:[%s8503] sm:$0xf]
        %v8506 = vunpack.c.l.b16 %v8502
        %v8507 = vpack.c.b16 %v8289, %v8288
        %v8508 = vpack.c.b16 %v8506, %v8290
        %v8510 = vsel %vm956, %v8507, 0
        %v8513 = vsel %vm956, %v8508, 0
        %v8516 = vsel %vm1029, %v8504, 0
        %8518 = vmatprep.subr.bf16.mxu0 0
        %8519 = vmatpush1.bf16.msra.mxu0 %v8516
        %8520 = vmatprep.subr.bf16.mxu0 0
        %8521 = vmatpush1.bf16.msra.mxu0 0
        %8522 = vmatprep.subr.bf16.mxu0 0
        %8523 = vmatpush1.bf16.msra.mxu0 0
        %8524 = vmatprep.subr.bf16.mxu0 0
        %8525 = vmatpush1.bf16.msra.mxu0 0
        %8526 = vmatprep.subr.bf16.mxu0 0
        %8527 = vmatpush1.bf16.msra.mxu0 0
        %8528 = vmatprep.subr.bf16.mxu0 0
        %8529 = vmatpush1.bf16.msra.mxu0 0
        %8530 = vmatprep.subr.bf16.mxu0 0
        %8531 = vmatpush1.bf16.msra.mxu0 0
        %8532 = vmatprep.subr.bf16.mxu0 0
        %8533 = vmatpush1.bf16.msra.mxu0 0
        %8534 = vmatprep.subr.bf16.mxu0 0
        %8535 = vmatpush1.bf16.msra.mxu0 0
        %8536 = vmatprep.subr.bf16.mxu0 0
        %8537 = vmatpush1.bf16.msra.mxu0 0
        %8538 = vmatprep.subr.bf16.mxu0 0
        %8539 = vmatpush1.bf16.msra.mxu0 0
        %8540 = vmatprep.subr.bf16.mxu0 0
        %8541 = vmatpush1.bf16.msra.mxu0 0
        %8542 = vmatprep.subr.bf16.mxu0 0
        %8543 = vmatpush1.bf16.msra.mxu0 0
        %8544 = vmatprep.subr.bf16.mxu0 0
        %8545 = vmatpush1.bf16.msra.mxu0 0
        %8546 = vmatprep.subr.bf16.mxu0 0
        %8547 = vmatpush1.bf16.msra.mxu0 0
        %8548 = vmatprep.subr.bf16.mxu0 0
        %8549 = vmatpush1.bf16.msra.mxu0 0
        %8550 = vmatprep.mubr.bf16.mxu0 0
        %8551 = vmatmul.mubr.bf16.gmra.mrb[0].mxu0 %v8510
        %v8552 = vpop.f32.mrb[0].mxu0
        %v8553 = vadd.f32 0.0, %v8552
        %v8554 = vpop.f32.mrb[0].mxu0
        %v8555 = vpop.f32.mrb[0].mxu0
        %v8556 = vadd.f32 0.0, %v8555
        %v8557 = vpop.f32.mrb[0].mxu0
        %8558 = vmatprep.mubr.bf16.mxu0 0
        %8559 = vmatmul.mubr.bf16.gmra.mrb[0].mxu0 %v8513
        %v8560 = vpop.f32.mrb[0].mxu0
        %v8561 = vadd.f32 0.0, %v8560
        %v8562 = vpop.f32.mrb[0].mxu0
        %v8563 = vpop.f32.mrb[0].mxu0
        %v8564 = vadd.f32 0.0, %v8563
        %v8565 = vpop.f32.mrb[0].mxu0
        %8566 = vdwg.mxu0
        %v8567 = vadd.f32 %v8498, %v8553
        %v8568 = vadd.f32 %v8499, %v8556
        %v8569 = vadd.f32 %v8500, %v8561
        %v8570 = vadd.f32 %v8501, %v8564
        %v8571 = vld [vmem:[%s572 + $0x4] sm:$0xf]
        %v8572 = vld [vmem:[%s572 + $0x8] sm:$0xf]
        %v8573 = vld [vmem:[%s572 + $0xc] sm:$0xf]
        %v8574 = vld [vmem:[%s572 + $0x10] sm:$0xf]
        %v8575 = vld [vmem:[%s572 + $0x14] sm:$0x1]
        %s8576 = scalar_lea.vmem %s6, 16
        %v8577 = vld [vmem:[%s8576] sm:$0xf]
        %v8583 = vunpack.c.l.b16 %v8571
        %v8584 = vunpack.c.l.b16 %v8572
        %v8585 = vunpack.c.l.b16 %v8573
        %v8586 = vunpack.c.l.b16 %v8574
        %v8587 = vunpack.c.l.b16 %v8575
        %v8588 = vpack.c.b16 %v8584, %v8583
        %v8589 = vpack.c.b16 %v8586, %v8585
        %v8590 = vpack.c.b16 %v8587, %v8587
        %v8592 = vshrl.u32 %v8588, 16
        %v8594 = vshll.u32 %v8588, 16
        %v8596 = vrot.slane %v8594, 1
        %v8597 = vor.u32 %v8592, %v8596
        %v8599 = vshll.u32 %v8589, 16
        %v8601 = vrot.slane %v8599, 1
        %v8602 = vsel %vm759, %v8597, %v8601
        %v8603 = vshrl.u32 %v8589, 16
        %v8605 = vor.u32 %v8603, %v8601
        %v8607 = vshll.u32 %v8590, 16
        %v8609 = vrot.slane %v8607, 1
        %v8610 = vsel %vm759, %v8605, %v8609
        %v8612 = vsel %vm956, %v8602, 0
        %v8615 = vsel %vm956, %v8610, 0
        %v8618 = vsel %vm1029, %v8577, 0
        %8620 = vmatprep.subr.bf16.mxu0 0
        %8621 = vmatpush1.bf16.msra.mxu0 %v8618
        %8622 = vmatprep.subr.bf16.mxu0 0
        %8623 = vmatpush1.bf16.msra.mxu0 0
        %8624 = vmatprep.subr.bf16.mxu0 0
        %8625 = vmatpush1.bf16.msra.mxu0 0
        %8626 = vmatprep.subr.bf16.mxu0 0
        %8627 = vmatpush1.bf16.msra.mxu0 0
        %8628 = vmatprep.subr.bf16.mxu0 0
        %8629 = vmatpush1.bf16.msra.mxu0 0
        %8630 = vmatprep.subr.bf16.mxu0 0
        %8631 = vmatpush1.bf16.msra.mxu0 0
        %8632 = vmatprep.subr.bf16.mxu0 0
        %8633 = vmatpush1.bf16.msra.mxu0 0
        %8634 = vmatprep.subr.bf16.mxu0 0
        %8635 = vmatpush1.bf16.msra.mxu0 0
        %8636 = vmatprep.subr.bf16.mxu0 0
        %8637 = vmatpush1.bf16.msra.mxu0 0
        %8638 = vmatprep.subr.bf16.mxu0 0
        %8639 = vmatpush1.bf16.msra.mxu0 0
        %8640 = vmatprep.subr.bf16.mxu0 0
        %8641 = vmatpush1.bf16.msra.mxu0 0
        %8642 = vmatprep.subr.bf16.mxu0 0
        %8643 = vmatpush1.bf16.msra.mxu0 0
        %8644 = vmatprep.subr.bf16.mxu0 0
        %8645 = vmatpush1.bf16.msra.mxu0 0
        %8646 = vmatprep.subr.bf16.mxu0 0
        %8647 = vmatpush1.bf16.msra.mxu0 0
        %8648 = vmatprep.subr.bf16.mxu0 0
        %8649 = vmatpush1.bf16.msra.mxu0 0
        %8650 = vmatprep.subr.bf16.mxu0 0
        %8651 = vmatpush1.bf16.msra.mxu0 0
        %8652 = vmatprep.mubr.bf16.mxu0 0
        %8653 = vmatmul.mubr.bf16.gmra.mrb[0].mxu0 %v8612
        %v8654 = vpop.f32.mrb[0].mxu0
        %v8655 = vadd.f32 0.0, %v8654
        %v8656 = vpop.f32.mrb[0].mxu0
        %v8657 = vpop.f32.mrb[0].mxu0
        %v8658 = vadd.f32 0.0, %v8657
        %v8659 = vpop.f32.mrb[0].mxu0
        %8660 = vmatprep.mubr.bf16.mxu0 0
        %8661 = vmatmul.mubr.bf16.gmra.mrb[0].mxu0 %v8615
        %v8662 = vpop.f32.mrb[0].mxu0
        %v8663 = vadd.f32 0.0, %v8662
        %v8664 = vpop.f32.mrb[0].mxu0
        %v8665 = vpop.f32.mrb[0].mxu0
        %v8666 = vadd.f32 0.0, %v8665
        %v8667 = vpop.f32.mrb[0].mxu0
        %8668 = vdwg.mxu0
        %v8669 = vadd.f32 %v8567, %v8655
        %v8670 = vadd.f32 %v8568, %v8658
        %v8671 = vadd.f32 %v8569, %v8663
        %v8672 = vadd.f32 %v8570, %v8666
        %v8673 = vld [vmem:[%s572 + $0x4] sm:$0xe]
        %s8674 = scalar_lea.vmem %s6, 20
        %v8675 = vld [vmem:[%s8674] sm:$0xf]
        %v8677 = vunpack.c.l.b16 %v8673
        %v8678 = vpack.c.b16 %v8584, %v8677
        %v8679 = vrot.slane %v8678, 1
        %v8680 = vrot.slane %v8589, 1
        %v8681 = vsel %vm1540, %v8679, %v8680
        %v8682 = vrot.slane %v8590, 1
        %v8683 = vsel %vm1540, %v8680, %v8682
        %v8685 = vsel %vm956, %v8681, 0
        %v8688 = vsel %vm956, %v8683, 0
        %v8691 = vsel %vm1029, %v8675, 0
        %8693 = vmatprep.subr.bf16.mxu0 0
        %8694 = vmatpush1.bf16.msra.mxu0 %v8691
        %8695 = vmatprep.subr.bf16.mxu0 0
        %8696 = vmatpush1.bf16.msra.mxu0 0
        %8697 = vmatprep.subr.bf16.mxu0 0
        %8698 = vmatpush1.bf16.msra.mxu0 0
        %8699 = vmatprep.subr.bf16.mxu0 0
        %8700 = vmatpush1.bf16.msra.mxu0 0
        %8701 = vmatprep.subr.bf16.mxu0 0
        %8702 = vmatpush1.bf16.msra.mxu0 0
        %8703 = vmatprep.subr.bf16.mxu0 0
        %8704 = vmatpush1.bf16.msra.mxu0 0
        %8705 = vmatprep.subr.bf16.mxu0 0
        %8706 = vmatpush1.bf16.msra.mxu0 0
        %8707 = vmatprep.subr.bf16.mxu0 0
        %8708 = vmatpush1.bf16.msra.mxu0 0
        %8709 = vmatprep.subr.bf16.mxu0 0
        %8710 = vmatpush1.bf16.msra.mxu0 0
        %8711 = vmatprep.subr.bf16.mxu0 0
        %8712 = vmatpush1.bf16.msra.mxu0 0
        %8713 = vmatprep.subr.bf16.mxu0 0
        %8714 = vmatpush1.bf16.msra.mxu0 0
        %8715 = vmatprep.subr.bf16.mxu0 0
        %8716 = vmatpush1.bf16.msra.mxu0 0
        %8717 = vmatprep.subr.bf16.mxu0 0
        %8718 = vmatpush1.bf16.msra.mxu0 0
        %8719 = vmatprep.subr.bf16.mxu0 0
        %8720 = vmatpush1.bf16.msra.mxu0 0
        %8721 = vmatprep.subr.bf16.mxu0 0
        %8722 = vmatpush1.bf16.msra.mxu0 0
        %8723 = vmatprep.subr.bf16.mxu0 0
        %8724 = vmatpush1.bf16.msra.mxu0 0
        %8725 = vmatprep.mubr.bf16.mxu0 0
        %8726 = vmatmul.mubr.bf16.gmra.mrb[0].mxu0 %v8685
        %v8727 = vpop.f32.mrb[0].mxu0
        %v8728 = vadd.f32 0.0, %v8727
        %v8729 = vpop.f32.mrb[0].mxu0
        %v8730 = vpop.f32.mrb[0].mxu0
        %v8731 = vadd.f32 0.0, %v8730
        %v8732 = vpop.f32.mrb[0].mxu0
        %8733 = vmatprep.mubr.bf16.mxu0 0
        %8734 = vmatmul.mubr.bf16.gmra.mrb[0].mxu0 %v8688
        %v8735 = vpop.f32.mrb[0].mxu0
        %v8736 = vadd.f32 0.0, %v8735
        %v8737 = vpop.f32.mrb[0].mxu0
        %v8738 = vpop.f32.mrb[0].mxu0
        %v8739 = vadd.f32 0.0, %v8738
        %v8740 = vpop.f32.mrb[0].mxu0
        %8741 = vdwg.mxu0
        %v8742 = vadd.f32 %v8669, %v8728
        %v8743 = vadd.f32 %v8670, %v8731
        %v8744 = vadd.f32 %v8671, %v8736
        %v8745 = vadd.f32 %v8672, %v8739
        %v8746 = vld [vmem:[%s572 + $0x14] sm:$0xf]
        %s8747 = scalar_lea.vmem %s6, 24
        %v8748 = vld [vmem:[%s8747] sm:$0xf]
        %v8750 = vunpack.c.l.b16 %v8746
        %v8751 = vpack.c.b16 %v8585, %v8584
        %v8752 = vpack.c.b16 %v8750, %v8586
        %v8754 = vsel %vm956, %v8751, 0
        %v8757 = vsel %vm956, %v8752, 0
        %v8760 = vsel %vm1029, %v8748, 0
        %8762 = vmatprep.subr.bf16.mxu0 0
        %8763 = vmatpush1.bf16.msra.mxu0 %v8760
        %8764 = vmatprep.subr.bf16.mxu0 0
        %8765 = vmatpush1.bf16.msra.mxu0 0
        %8766 = vmatprep.subr.bf16.mxu0 0
        %8767 = vmatpush1.bf16.msra.mxu0 0
        %8768 = vmatprep.subr.bf16.mxu0 0
        %8769 = vmatpush1.bf16.msra.mxu0 0
        %8770 = vmatprep.subr.bf16.mxu0 0
        %8771 = vmatpush1.bf16.msra.mxu0 0
        %8772 = vmatprep.subr.bf16.mxu0 0
        %8773 = vmatpush1.bf16.msra.mxu0 0
        %8774 = vmatprep.subr.bf16.mxu0 0
        %8775 = vmatpush1.bf16.msra.mxu0 0
        %8776 = vmatprep.subr.bf16.mxu0 0
        %8777 = vmatpush1.bf16.msra.mxu0 0
        %8778 = vmatprep.subr.bf16.mxu0 0
        %8779 = vmatpush1.bf16.msra.mxu0 0
        %8780 = vmatprep.subr.bf16.mxu0 0
        %8781 = vmatpush1.bf16.msra.mxu0 0
        %8782 = vmatprep.subr.bf16.mxu0 0
        %8783 = vmatpush1.bf16.msra.mxu0 0
        %8784 = vmatprep.subr.bf16.mxu0 0
        %8785 = vmatpush1.bf16.msra.mxu0 0
        %8786 = vmatprep.subr.bf16.mxu0 0
        %8787 = vmatpush1.bf16.msra.mxu0 0
        %8788 = vmatprep.subr.bf16.mxu0 0
        %8789 = vmatpush1.bf16.msra.mxu0 0
        %8790 = vmatprep.subr.bf16.mxu0 0
        %8791 = vmatpush1.bf16.msra.mxu0 0
        %8792 = vmatprep.subr.bf16.mxu0 0
        %8793 = vmatpush1.bf16.msra.mxu0 0
        %8794 = vmatprep.mubr.bf16.mxu0 0
        %8795 = vmatmul.mubr.bf16.gmra.mrb[0].mxu0 %v8754
        %v8796 = vpop.f32.mrb[0].mxu0
        %v8797 = vadd.f32 0.0, %v8796
        %v8798 = vpop.f32.mrb[0].mxu0
        %v8799 = vpop.f32.mrb[0].mxu0
        %v8800 = vadd.f32 0.0, %v8799
        %v8801 = vpop.f32.mrb[0].mxu0
        %8802 = vmatprep.mubr.bf16.mxu0 0
        %8803 = vmatmul.mubr.bf16.gmra.mrb[0].mxu0 %v8757
        %v8804 = vpop.f32.mrb[0].mxu0
        %v8805 = vadd.f32 0.0, %v8804
        %v8806 = vpop.f32.mrb[0].mxu0
        %v8807 = vpop.f32.mrb[0].mxu0
        %v8808 = vadd.f32 0.0, %v8807
        %v8809 = vpop.f32.mrb[0].mxu0
        %8810 = vdwg.mxu0
        %v8811 = vadd.f32 %v8742, %v8797
        %v8812 = vadd.f32 %v8743, %v8800
        %v8813 = vadd.f32 %v8744, %v8805
        %v8814 = vadd.f32 %v8745, %v8808
        %v8815 = vld [vmem:[%s572 + $0x8] sm:$0xf]
        %v8816 = vld [vmem:[%s572 + $0xc] sm:$0xf]
        %v8817 = vld [vmem:[%s572 + $0x10] sm:$0xf]
        %v8818 = vld [vmem:[%s572 + $0x14] sm:$0xf]
        %v8819 = vld [vmem:[%s572 + $0x18] sm:$0x1]
        %s8820 = scalar_lea.vmem %s6, 28
        %v8821 = vld [vmem:[%s8820] sm:$0xf]
        %v8827 = vunpack.c.l.b16 %v8815
        %v8828 = vunpack.c.l.b16 %v8816
        %v8829 = vunpack.c.l.b16 %v8817
        %v8830 = vunpack.c.l.b16 %v8818
        %v8831 = vunpack.c.l.b16 %v8819
        %v8832 = vpack.c.b16 %v8828, %v8827
        %v8833 = vpack.c.b16 %v8830, %v8829
        %v8834 = vpack.c.b16 %v8831, %v8831
        %v8836 = vshrl.u32 %v8832, 16
        %v8838 = vshll.u32 %v8832, 16
        %v8840 = vrot.slane %v8838, 1
        %v8841 = vor.u32 %v8836, %v8840
        %v8843 = vshll.u32 %v8833, 16
        %v8845 = vrot.slane %v8843, 1
        %v8846 = vsel %vm759, %v8841, %v8845
        %v8847 = vshrl.u32 %v8833, 16
        %v8849 = vor.u32 %v8847, %v8845
        %v8851 = vshll.u32 %v8834, 16
        %v8853 = vrot.slane %v8851, 1
        %v8854 = vsel %vm759, %v8849, %v8853
        %v8856 = vsel %vm956, %v8846, 0
        %v8859 = vsel %vm956, %v8854, 0
        %v8862 = vsel %vm1029, %v8821, 0
        %8864 = vmatprep.subr.bf16.mxu0 0
        %8865 = vmatpush1.bf16.msra.mxu0 %v8862
        %8866 = vmatprep.subr.bf16.mxu0 0
        %8867 = vmatpush1.bf16.msra.mxu0 0
        %8868 = vmatprep.subr.bf16.mxu0 0
        %8869 = vmatpush1.bf16.msra.mxu0 0
        %8870 = vmatprep.subr.bf16.mxu0 0
        %8871 = vmatpush1.bf16.msra.mxu0 0
        %8872 = vmatprep.subr.bf16.mxu0 0
        %8873 = vmatpush1.bf16.msra.mxu0 0
        %8874 = vmatprep.subr.bf16.mxu0 0
        %8875 = vmatpush1.bf16.msra.mxu0 0
        %8876 = vmatprep.subr.bf16.mxu0 0
        %8877 = vmatpush1.bf16.msra.mxu0 0
        %8878 = vmatprep.subr.bf16.mxu0 0
        %8879 = vmatpush1.bf16.msra.mxu0 0
        %8880 = vmatprep.subr.bf16.mxu0 0
        %8881 = vmatpush1.bf16.msra.mxu0 0
        %8882 = vmatprep.subr.bf16.mxu0 0
        %8883 = vmatpush1.bf16.msra.mxu0 0
        %8884 = vmatprep.subr.bf16.mxu0 0
        %8885 = vmatpush1.bf16.msra.mxu0 0
        %8886 = vmatprep.subr.bf16.mxu0 0
        %8887 = vmatpush1.bf16.msra.mxu0 0
        %8888 = vmatprep.subr.bf16.mxu0 0
        %8889 = vmatpush1.bf16.msra.mxu0 0
        %8890 = vmatprep.subr.bf16.mxu0 0
        %8891 = vmatpush1.bf16.msra.mxu0 0
        %8892 = vmatprep.subr.bf16.mxu0 0
        %8893 = vmatpush1.bf16.msra.mxu0 0
        %8894 = vmatprep.subr.bf16.mxu0 0
        %8895 = vmatpush1.bf16.msra.mxu0 0
        %8896 = vmatprep.mubr.bf16.mxu0 0
        %8897 = vmatmul.mubr.bf16.gmra.mrb[0].mxu0 %v8856
        %v8898 = vpop.f32.mrb[0].mxu0
        %v8899 = vadd.f32 0.0, %v8898
        %v8900 = vpop.f32.mrb[0].mxu0
        %v8901 = vpop.f32.mrb[0].mxu0
        %v8902 = vadd.f32 0.0, %v8901
        %v8903 = vpop.f32.mrb[0].mxu0
        %8904 = vmatprep.mubr.bf16.mxu0 0
        %8905 = vmatmul.mubr.bf16.gmra.mrb[0].mxu0 %v8859
        %v8906 = vpop.f32.mrb[0].mxu0
        %v8907 = vadd.f32 0.0, %v8906
        %v8908 = vpop.f32.mrb[0].mxu0
        %v8909 = vpop.f32.mrb[0].mxu0
        %v8910 = vadd.f32 0.0, %v8909
        %v8911 = vpop.f32.mrb[0].mxu0
        %8912 = vdwg.mxu0
        %v8913 = vadd.f32 %v8811, %v8899
        %v8914 = vadd.f32 %v8812, %v8902
        %v8915 = vadd.f32 %v8813, %v8907
        %v8916 = vadd.f32 %v8814, %v8910
        %v8917 = vld [vmem:[%s572 + $0x8] sm:$0xe]
        %s8918 = scalar_lea.vmem %s6, 32
        %v8919 = vld [vmem:[%s8918] sm:$0xf]
        %v8921 = vunpack.c.l.b16 %v8917
        %v8922 = vpack.c.b16 %v8828, %v8921
        %v8923 = vrot.slane %v8922, 1
        %v8924 = vrot.slane %v8833, 1
        %v8925 = vsel %vm1540, %v8923, %v8924
        %v8926 = vrot.slane %v8834, 1
        %v8927 = vsel %vm1540, %v8924, %v8926
        %v8929 = vsel %vm956, %v8925, 0
        %v8932 = vsel %vm956, %v8927, 0
        %v8935 = vsel %vm1029, %v8919, 0
        %8937 = vmatprep.subr.bf16.mxu0 0
        %8938 = vmatpush1.bf16.msra.mxu0 %v8935
        %8939 = vmatprep.subr.bf16.mxu0 0
        %8940 = vmatpush1.bf16.msra.mxu0 0
        %8941 = vmatprep.subr.bf16.mxu0 0
        %8942 = vmatpush1.bf16.msra.mxu0 0
        %8943 = vmatprep.subr.bf16.mxu0 0
        %8944 = vmatpush1.bf16.msra.mxu0 0
        %8945 = vmatprep.subr.bf16.mxu0 0
        %8946 = vmatpush1.bf16.msra.mxu0 0
        %8947 = vmatprep.subr.bf16.mxu0 0
        %8948 = vmatpush1.bf16.msra.mxu0 0
        %8949 = vmatprep.subr.bf16.mxu0 0
        %8950 = vmatpush1.bf16.msra.mxu0 0
        %8951 = vmatprep.subr.bf16.mxu0 0
        %8952 = vmatpush1.bf16.msra.mxu0 0
        %8953 = vmatprep.subr.bf16.mxu0 0
        %8954 = vmatpush1.bf16.msra.mxu0 0
        %8955 = vmatprep.subr.bf16.mxu0 0
        %8956 = vmatpush1.bf16.msra.mxu0 0
        %8957 = vmatprep.subr.bf16.mxu0 0
        %8958 = vmatpush1.bf16.msra.mxu0 0
        %8959 = vmatprep.subr.bf16.mxu0 0
        %8960 = vmatpush1.bf16.msra.mxu0 0
        %8961 = vmatprep.subr.bf16.mxu0 0
        %8962 = vmatpush1.bf16.msra.mxu0 0
        %8963 = vmatprep.subr.bf16.mxu0 0
        %8964 = vmatpush1.bf16.msra.mxu0 0
        %8965 = vmatprep.subr.bf16.mxu0 0
        %8966 = vmatpush1.bf16.msra.mxu0 0
        %8967 = vmatprep.subr.bf16.mxu0 0
        %8968 = vmatpush1.bf16.msra.mxu0 0
        %8969 = vmatprep.mubr.bf16.mxu0 0
        %8970 = vmatmul.mubr.bf16.gmra.mrb[0].mxu0 %v8929
        %v8971 = vpop.f32.mrb[0].mxu0
        %v8972 = vadd.f32 0.0, %v8971
        %v8973 = vpop.f32.mrb[0].mxu0
        %v8974 = vpop.f32.mrb[0].mxu0
        %v8975 = vadd.f32 0.0, %v8974
        %v8976 = vpop.f32.mrb[0].mxu0
        %8977 = vmatprep.mubr.bf16.mxu0 0
        %8978 = vmatmul.mubr.bf16.gmra.mrb[0].mxu0 %v8932
        %v8979 = vpop.f32.mrb[0].mxu0
        %v8980 = vadd.f32 0.0, %v8979
        %v8981 = vpop.f32.mrb[0].mxu0
        %v8982 = vpop.f32.mrb[0].mxu0
        %v8983 = vadd.f32 0.0, %v8982
        %v8984 = vpop.f32.mrb[0].mxu0
        %8985 = vdwg.mxu0
        %v8986 = vadd.f32 %v8913, %v8972
        %v8987 = vadd.f32 %v8914, %v8975
        %v8988 = vadd.f32 %v8915, %v8980
        %v8989 = vadd.f32 %v8916, %v8983
        %v8990 = vld [vmem:[%s7 + $0x2] sm:$0x1]
        %v8991 = vlaneseq
        %v8992 = vshrl.u32 %v8991, 7
        %v8993 = vsub.s32 0, %v8992
        %v8994 = vrot.slane %v8990, %v8993
        %v8995 = vadd.f32 %v8986, %v8994
        %v8996 = vadd.f32 %v8987, %v8994
        %v8997 = vadd.f32 %v8988, %v8994
        %v8998 = vadd.f32 %v8989, %v8994
        %v8999 = vmax.f32 %v8995, 0.0
        %v9000 = vmax.f32 %v8996, 0.0
        %v9001 = vmax.f32 %v8997, 0.0
        %v9002 = vmax.f32 %v8998, 0.0
        %9003 = vxpose.xlu0.b32.start [1/16] %v8999, 128
        %9004 = vxpose.xlu0.b32.cont [2/16] 0.0, 128
        %9005 = vxpose.xlu0.b32.cont [3/16] 0.0, 128
        %9006 = vxpose.xlu0.b32.cont [4/16] 0.0, 128
        %9007 = vxpose.xlu0.b32.cont [5/16] 0.0, 128
        %9008 = vxpose.xlu0.b32.cont [6/16] 0.0, 128
        %9009 = vxpose.xlu0.b32.cont [7/16] 0.0, 128
        %9010 = vxpose.xlu0.b32.cont [8/16] 0.0, 128
        %9011 = vxpose.xlu0.b32.cont [9/16] 0.0, 128
        %9012 = vxpose.xlu0.b32.cont [10/16] 0.0, 128
        %9013 = vxpose.xlu0.b32.cont [11/16] 0.0, 128
        %9014 = vxpose.xlu0.b32.cont [12/16] 0.0, 128
        %9015 = vxpose.xlu0.b32.cont [13/16] 0.0, 128
        %9016 = vxpose.xlu0.b32.cont [14/16] 0.0, 128
        %9017 = vxpose.xlu0.b32.cont [15/16] 0.0, 128
        %9018 = vxpose.xlu0.b32.end [16/16] 0.0, 128
        %v9019 = vpop.trf.xlu0
        %v9020 = vpop.trf.xlu0
        %v9021 = vpop.trf.xlu0
        %v9022 = vpop.trf.xlu0
        %v9023 = vpop.trf.xlu0
        %v9024 = vpop.trf.xlu0
        %v9025 = vpop.trf.xlu0
        %v9026 = vpop.trf.xlu0
        %v9027 = vpop.trf.xlu0
        %v9028 = vpop.trf.xlu0
        %v9029 = vpop.trf.xlu0
        %v9030 = vpop.trf.xlu0
        %v9031 = vpop.trf.xlu0
        %v9032 = vpop.trf.xlu0
        %v9033 = vpop.trf.xlu0
        %v9034 = vpop.trf.xlu0
        %9035 = vxpose.xlu0.b32.start [1/16] %v9000, 128
        %9036 = vxpose.xlu0.b32.cont [2/16] 0.0, 128
        %9037 = vxpose.xlu0.b32.cont [3/16] 0.0, 128
        %9038 = vxpose.xlu0.b32.cont [4/16] 0.0, 128
        %9039 = vxpose.xlu0.b32.cont [5/16] 0.0, 128
        %9040 = vxpose.xlu0.b32.cont [6/16] 0.0, 128
        %9041 = vxpose.xlu0.b32.cont [7/16] 0.0, 128
        %9042 = vxpose.xlu0.b32.cont [8/16] 0.0, 128
        %9043 = vxpose.xlu0.b32.cont [9/16] 0.0, 128
        %9044 = vxpose.xlu0.b32.cont [10/16] 0.0, 128
        %9045 = vxpose.xlu0.b32.cont [11/16] 0.0, 128
        %9046 = vxpose.xlu0.b32.cont [12/16] 0.0, 128
        %9047 = vxpose.xlu0.b32.cont [13/16] 0.0, 128
        %9048 = vxpose.xlu0.b32.cont [14/16] 0.0, 128
        %9049 = vxpose.xlu0.b32.cont [15/16] 0.0, 128
        %9050 = vxpose.xlu0.b32.end [16/16] 0.0, 128
        %v9051 = vpop.trf.xlu0
        %v9052 = vpop.trf.xlu0
        %v9053 = vpop.trf.xlu0
        %v9054 = vpop.trf.xlu0
        %v9055 = vpop.trf.xlu0
        %v9056 = vpop.trf.xlu0
        %v9057 = vpop.trf.xlu0
        %v9058 = vpop.trf.xlu0
        %v9059 = vpop.trf.xlu0
        %v9060 = vpop.trf.xlu0
        %v9061 = vpop.trf.xlu0
        %v9062 = vpop.trf.xlu0
        %v9063 = vpop.trf.xlu0
        %v9064 = vpop.trf.xlu0
        %v9065 = vpop.trf.xlu0
        %v9066 = vpop.trf.xlu0
        %9067 = vxpose.xlu0.b32.start [1/16] %v9001, 128
        %9068 = vxpose.xlu0.b32.cont [2/16] 0.0, 128
        %9069 = vxpose.xlu0.b32.cont [3/16] 0.0, 128
        %9070 = vxpose.xlu0.b32.cont [4/16] 0.0, 128
        %9071 = vxpose.xlu0.b32.cont [5/16] 0.0, 128
        %9072 = vxpose.xlu0.b32.cont [6/16] 0.0, 128
        %9073 = vxpose.xlu0.b32.cont [7/16] 0.0, 128
        %9074 = vxpose.xlu0.b32.cont [8/16] 0.0, 128
        %9075 = vxpose.xlu0.b32.cont [9/16] 0.0, 128
        %9076 = vxpose.xlu0.b32.cont [10/16] 0.0, 128
        %9077 = vxpose.xlu0.b32.cont [11/16] 0.0, 128
        %9078 = vxpose.xlu0.b32.cont [12/16] 0.0, 128
        %9079 = vxpose.xlu0.b32.cont [13/16] 0.0, 128
        %9080 = vxpose.xlu0.b32.cont [14/16] 0.0, 128
        %9081 = vxpose.xlu0.b32.cont [15/16] 0.0, 128
        %9082 = vxpose.xlu0.b32.end [16/16] 0.0, 128
        %v9083 = vpop.trf.xlu0
        %v9084 = vpop.trf.xlu0
        %v9085 = vpop.trf.xlu0
        %v9086 = vpop.trf.xlu0
        %v9087 = vpop.trf.xlu0
        %v9088 = vpop.trf.xlu0
        %v9089 = vpop.trf.xlu0
        %v9090 = vpop.trf.xlu0
        %v9091 = vpop.trf.xlu0
        %v9092 = vpop.trf.xlu0
        %v9093 = vpop.trf.xlu0
        %v9094 = vpop.trf.xlu0
        %v9095 = vpop.trf.xlu0
        %v9096 = vpop.trf.xlu0
        %v9097 = vpop.trf.xlu0
        %v9098 = vpop.trf.xlu0
        %9099 = vxpose.xlu0.b32.start [1/16] %v9002, 128
        %9100 = vxpose.xlu0.b32.cont [2/16] 0.0, 128
        %9101 = vxpose.xlu0.b32.cont [3/16] 0.0, 128
        %9102 = vxpose.xlu0.b32.cont [4/16] 0.0, 128
        %9103 = vxpose.xlu0.b32.cont [5/16] 0.0, 128
        %9104 = vxpose.xlu0.b32.cont [6/16] 0.0, 128
        %9105 = vxpose.xlu0.b32.cont [7/16] 0.0, 128
        %9106 = vxpose.xlu0.b32.cont [8/16] 0.0, 128
        %9107 = vxpose.xlu0.b32.cont [9/16] 0.0, 128
        %9108 = vxpose.xlu0.b32.cont [10/16] 0.0, 128
        %9109 = vxpose.xlu0.b32.cont [11/16] 0.0, 128
        %9110 = vxpose.xlu0.b32.cont [12/16] 0.0, 128
        %9111 = vxpose.xlu0.b32.cont [13/16] 0.0, 128
        %9112 = vxpose.xlu0.b32.cont [14/16] 0.0, 128
        %9113 = vxpose.xlu0.b32.cont [15/16] 0.0, 128
        %9114 = vxpose.xlu0.b32.end [16/16] 0.0, 128
        %v9115 = vpop.trf.xlu0
        %v9116 = vpop.trf.xlu0
        %v9117 = vpop.trf.xlu0
        %v9118 = vpop.trf.xlu0
        %v9119 = vpop.trf.xlu0
        %v9120 = vpop.trf.xlu0
        %v9121 = vpop.trf.xlu0
        %v9122 = vpop.trf.xlu0
        %v9123 = vpop.trf.xlu0
        %v9124 = vpop.trf.xlu0
        %v9125 = vpop.trf.xlu0
        %v9126 = vpop.trf.xlu0
        %v9127 = vpop.trf.xlu0
        %v9128 = vpop.trf.xlu0
        %v9129 = vpop.trf.xlu0
        %v9130 = vpop.trf.xlu0
        %v9131 = vpack.c.bf16 %v9051, %v9019
        %v9132 = vpack.c.bf16 %v9115, %v9083
        %v9133 = vld [vmem:[%s10] sm:$0xf]
        %v9135 = vsel %vm956, %v9131, 0
        %v9138 = vsel %vm956, %v9132, 0
        %v9141 = vsel %vm1029, %v9133, 0
        %9143 = vmatprep.subr.bf16.mxu0 0
        %9144 = vmatpush1.bf16.msra.mxu0 %v9141
        %9145 = vmatprep.subr.bf16.mxu0 0
        %9146 = vmatpush1.bf16.msra.mxu0 0
        %9147 = vmatprep.subr.bf16.mxu0 0
        %9148 = vmatpush1.bf16.msra.mxu0 0
        %9149 = vmatprep.subr.bf16.mxu0 0
        %9150 = vmatpush1.bf16.msra.mxu0 0
        %9151 = vmatprep.subr.bf16.mxu0 0
        %9152 = vmatpush1.bf16.msra.mxu0 0
        %9153 = vmatprep.subr.bf16.mxu0 0
        %9154 = vmatpush1.bf16.msra.mxu0 0
        %9155 = vmatprep.subr.bf16.mxu0 0
        %9156 = vmatpush1.bf16.msra.mxu0 0
        %9157 = vmatprep.subr.bf16.mxu0 0
        %9158 = vmatpush1.bf16.msra.mxu0 0
        %9159 = vmatprep.subr.bf16.mxu0 0
        %9160 = vmatpush1.bf16.msra.mxu0 0
        %9161 = vmatprep.subr.bf16.mxu0 0
        %9162 = vmatpush1.bf16.msra.mxu0 0
        %9163 = vmatprep.subr.bf16.mxu0 0
        %9164 = vmatpush1.bf16.msra.mxu0 0
        %9165 = vmatprep.subr.bf16.mxu0 0
        %9166 = vmatpush1.bf16.msra.mxu0 0
        %9167 = vmatprep.subr.bf16.mxu0 0
        %9168 = vmatpush1.bf16.msra.mxu0 0
        %9169 = vmatprep.subr.bf16.mxu0 0
        %9170 = vmatpush1.bf16.msra.mxu0 0
        %9171 = vmatprep.subr.bf16.mxu0 0
        %9172 = vmatpush1.bf16.msra.mxu0 0
        %9173 = vmatprep.subr.bf16.mxu0 0
        %9174 = vmatpush1.bf16.msra.mxu0 0
        %9175 = vmatprep.mubr.bf16.mxu0 0
        %9176 = vmatmul.mubr.bf16.gmra.mrb[0].mxu0 %v9135
        %v9177 = vpop.f32.mrb[0].mxu0
        %v9178 = vadd.f32 0.0, %v9177
        %v9179 = vpop.f32.mrb[0].mxu0
        %v9180 = vpop.f32.mrb[0].mxu0
        %v9181 = vadd.f32 0.0, %v9180
        %v9182 = vpop.f32.mrb[0].mxu0
        %9183 = vmatprep.mubr.bf16.mxu0 0
        %9184 = vmatmul.mubr.bf16.gmra.mrb[0].mxu0 %v9138
        %v9185 = vpop.f32.mrb[0].mxu0
        %v9186 = vadd.f32 0.0, %v9185
        %v9187 = vpop.f32.mrb[0].mxu0
        %v9188 = vpop.f32.mrb[0].mxu0
        %v9189 = vadd.f32 0.0, %v9188
        %v9190 = vpop.f32.mrb[0].mxu0
        %9191 = vdwg.mxu0
        %v9192 = vpack.c.bf16 %v9181, %v9178
        %v9193 = vpack.c.bf16 %v9189, %v9186
        %v9196 = vunpack.c.l.b16 %v9192
        %v9197 = vunpack.c.h.b16 %v9192
        %v9198 = vunpack.c.l.b16 %v9193
        %v9199 = vunpack.c.h.b16 %v9193
        %v9200 = vpack.c.b16 %v9196, %v9196
        %v9201 = vpack.c.b16 %v9197, %v9197
        %v9202 = vpack.c.b16 %v9198, %v9198
        %v9203 = vpack.c.b16 %v9199, %v9199
        %9208 = vst.msk [vmem:[%s550] sm:$0xf] %vm6038, %v9200
        %9209 = vst.msk [vmem:[%s550 + $0x4] sm:$0xf] %vm6038, %v9201
        %9210 = vst.msk [vmem:[%s550 + $0x8] sm:$0xf] %vm6038, %v9202
        %9211 = vst.msk [vmem:[%s550 + $0xc] sm:$0xf] %vm6038, %v9203
        %v9212 = vld [vmem:[%s577] sm:$0xf]
        %v9213 = vld [vmem:[%s577 + $0x4] sm:$0xf]
        %v9214 = vld [vmem:[%s4] sm:$0xf]
        %v9215 = vld [vmem:[%s577 + $0x8] sm:$0x1]
        %v9216 = vld [vmem:[%s634] sm:$0xf]
        %v9220 = vunpack.c.l.b16 %v9212
        %v9221 = vunpack.c.l.b16 %v9213
        %v9222 = vunpack.c.l.b16 %v9215
        %v9223 = vpack.c.b16 %v9221, %v9220
        %v9224 = vpack.c.b16 %v9222, %v9222
        %v9226 = vshrl.u32 %v9223, 16
        %v9228 = vshll.u32 %v9223, 16
        %v9230 = vrot.slane %v9228, 1
        %v9231 = vor.u32 %v9226, %v9230
        %v9233 = vshll.u32 %v9224, 16
        %v9235 = vrot.slane %v9233, 1
        %v9236 = vsel %vm759, %v9231, %v9235
        %v9238 = vsel %vm956, %v9236, 0
        %v9241 = vsel %vm1029, %v9216, 0
        %9243 = vmatprep.subr.bf16.mxu0 0
        %9244 = vmatpush1.bf16.msra.mxu0 %v9241
        %9245 = vmatprep.subr.bf16.mxu0 0
        %9246 = vmatpush1.bf16.msra.mxu0 0
        %9247 = vmatprep.subr.bf16.mxu0 0
        %9248 = vmatpush1.bf16.msra.mxu0 0
        %9249 = vmatprep.subr.bf16.mxu0 0
        %9250 = vmatpush1.bf16.msra.mxu0 0
        %9251 = vmatprep.subr.bf16.mxu0 0
        %9252 = vmatpush1.bf16.msra.mxu0 0
        %9253 = vmatprep.subr.bf16.mxu0 0
        %9254 = vmatpush1.bf16.msra.mxu0 0
        %9255 = vmatprep.subr.bf16.mxu0 0
        %9256 = vmatpush1.bf16.msra.mxu0 0
        %9257 = vmatprep.subr.bf16.mxu0 0
        %9258 = vmatpush1.bf16.msra.mxu0 0
        %9259 = vmatprep.subr.bf16.mxu0 0
        %9260 = vmatpush1.bf16.msra.mxu0 0
        %9261 = vmatprep.subr.bf16.mxu0 0
        %9262 = vmatpush1.bf16.msra.mxu0 0
        %9263 = vmatprep.subr.bf16.mxu0 0
        %9264 = vmatpush1.bf16.msra.mxu0 0
        %9265 = vmatprep.subr.bf16.mxu0 0
        %9266 = vmatpush1.bf16.msra.mxu0 0
        %9267 = vmatprep.subr.bf16.mxu0 0
        %9268 = vmatpush1.bf16.msra.mxu0 0
        %9269 = vmatprep.subr.bf16.mxu0 0
        %9270 = vmatpush1.bf16.msra.mxu0 0
        %9271 = vmatprep.subr.bf16.mxu0 0
        %9272 = vmatpush1.bf16.msra.mxu0 0
        %9273 = vmatprep.subr.bf16.mxu0 0
        %9274 = vmatpush1.bf16.msra.mxu0 0
        %9275 = vmatprep.mubr.bf16.mxu0 0
        %9276 = vmatmul.mubr.bf16.gmra.mrb[0].mxu0 %v9238
        %v9277 = vpop.f32.mrb[0].mxu0
        %v9278 = vadd.f32 0.0, %v9277
        %v9279 = vpop.f32.mrb[0].mxu0
        %v9280 = vpop.f32.mrb[0].mxu0
        %v9281 = vadd.f32 0.0, %v9280
        %v9282 = vpop.f32.mrb[0].mxu0
        %9283 = vdwg.mxu0
        %v9284 = vsel %vm956, %v9223, 0
        %v9287 = vsel %vm1029, %v9214, 0
        %9289 = vmatprep.subr.bf16.mxu0 0
        %9290 = vmatpush1.bf16.msra.mxu0 %v9287
        %9291 = vmatprep.subr.bf16.mxu0 0
        %9292 = vmatpush1.bf16.msra.mxu0 0
        %9293 = vmatprep.subr.bf16.mxu0 0
        %9294 = vmatpush1.bf16.msra.mxu0 0
        %9295 = vmatprep.subr.bf16.mxu0 0
        %9296 = vmatpush1.bf16.msra.mxu0 0
        %9297 = vmatprep.subr.bf16.mxu0 0
        %9298 = vmatpush1.bf16.msra.mxu0 0
        %9299 = vmatprep.subr.bf16.mxu0 0
        %9300 = vmatpush1.bf16.msra.mxu0 0
        %9301 = vmatprep.subr.bf16.mxu0 0
        %9302 = vmatpush1.bf16.msra.mxu0 0
        %9303 = vmatprep.subr.bf16.mxu0 0
        %9304 = vmatpush1.bf16.msra.mxu0 0
        %9305 = vmatprep.subr.bf16.mxu0 0
        %9306 = vmatpush1.bf16.msra.mxu0 0
        %9307 = vmatprep.subr.bf16.mxu0 0
        %9308 = vmatpush1.bf16.msra.mxu0 0
        %9309 = vmatprep.subr.bf16.mxu0 0
        %9310 = vmatpush1.bf16.msra.mxu0 0
        %9311 = vmatprep.subr.bf16.mxu0 0
        %9312 = vmatpush1.bf16.msra.mxu0 0
        %9313 = vmatprep.subr.bf16.mxu0 0
        %9314 = vmatpush1.bf16.msra.mxu0 0
        %9315 = vmatprep.subr.bf16.mxu0 0
        %9316 = vmatpush1.bf16.msra.mxu0 0
        %9317 = vmatprep.subr.bf16.mxu0 0
        %9318 = vmatpush1.bf16.msra.mxu0 0
        %9319 = vmatprep.subr.bf16.mxu0 0
        %9320 = vmatpush1.bf16.msra.mxu0 0
        %9321 = vmatprep.mubr.bf16.mxu0 0
        %9322 = vmatmul.mubr.bf16.gmra.mrb[0].mxu0 %v9284
        %v9323 = vpop.f32.mrb[0].mxu0
        %v9324 = vadd.f32 %v9278, %v9323
        %v9325 = vpop.f32.mrb[0].mxu0
        %v9326 = vpop.f32.mrb[0].mxu0
        %v9327 = vadd.f32 %v9281, %v9326
        %v9328 = vpop.f32.mrb[0].mxu0
        %9329 = vdwg.mxu0
        %v9330 = vld [vmem:[%s577] sm:$0xe]
        %v9331 = vld [vmem:[%s1535] sm:$0xf]
        %v9333 = vunpack.c.l.b16 %v9330
        %v9334 = vpack.c.b16 %v9221, %v9333
        %v9335 = vrot.slane %v9334, 1
        %v9336 = vrot.slane %v9224, 1
        %v9337 = vsel %vm1540, %v9335, %v9336
        %v9339 = vsel %vm956, %v9337, 0
        %v9342 = vsel %vm1029, %v9331, 0
        %9344 = vmatprep.subr.bf16.mxu0 0
        %9345 = vmatpush1.bf16.msra.mxu0 %v9342
        %9346 = vmatprep.subr.bf16.mxu0 0
        %9347 = vmatpush1.bf16.msra.mxu0 0
        %9348 = vmatprep.subr.bf16.mxu0 0
        %9349 = vmatpush1.bf16.msra.mxu0 0
        %9350 = vmatprep.subr.bf16.mxu0 0
        %9351 = vmatpush1.bf16.msra.mxu0 0
        %9352 = vmatprep.subr.bf16.mxu0 0
        %9353 = vmatpush1.bf16.msra.mxu0 0
        %9354 = vmatprep.subr.bf16.mxu0 0
        %9355 = vmatpush1.bf16.msra.mxu0 0
        %9356 = vmatprep.subr.bf16.mxu0 0
        %9357 = vmatpush1.bf16.msra.mxu0 0
        %9358 = vmatprep.subr.bf16.mxu0 0
        %9359 = vmatpush1.bf16.msra.mxu0 0
        %9360 = vmatprep.subr.bf16.mxu0 0
        %9361 = vmatpush1.bf16.msra.mxu0 0
        %9362 = vmatprep.subr.bf16.mxu0 0
        %9363 = vmatpush1.bf16.msra.mxu0 0
        %9364 = vmatprep.subr.bf16.mxu0 0
        %9365 = vmatpush1.bf16.msra.mxu0 0
        %9366 = vmatprep.subr.bf16.mxu0 0
        %9367 = vmatpush1.bf16.msra.mxu0 0
        %9368 = vmatprep.subr.bf16.mxu0 0
        %9369 = vmatpush1.bf16.msra.mxu0 0
        %9370 = vmatprep.subr.bf16.mxu0 0
        %9371 = vmatpush1.bf16.msra.mxu0 0
        %9372 = vmatprep.subr.bf16.mxu0 0
        %9373 = vmatpush1.bf16.msra.mxu0 0
        %9374 = vmatprep.subr.bf16.mxu0 0
        %9375 = vmatpush1.bf16.msra.mxu0 0
        %9376 = vmatprep.mubr.bf16.mxu0 0
        %9377 = vmatmul.mubr.bf16.gmra.mrb[0].mxu0 %v9339
        %v9378 = vpop.f32.mrb[0].mxu0
        %v9379 = vadd.f32 0.0, %v9378
        %v9380 = vpop.f32.mrb[0].mxu0
        %v9381 = vpop.f32.mrb[0].mxu0
        %v9382 = vadd.f32 0.0, %v9381
        %v9383 = vpop.f32.mrb[0].mxu0
        %9384 = vdwg.mxu0
        %v9385 = vadd.f32 %v9324, %v9379
        %v9386 = vadd.f32 %v9327, %v9382
        %v9387 = vld [vmem:[%s577 + $0x8] sm:$0xf]
        %v9388 = vld [vmem:[%s1986] sm:$0xf]
        %v9390 = vunpack.c.l.b16 %v9387
        %v9391 = vpack.c.b16 %v9390, %v9221
        %v9393 = vsel %vm956, %v9391, 0
        %v9396 = vsel %vm1029, %v9388, 0
        %9398 = vmatprep.subr.bf16.mxu0 0
        %9399 = vmatpush1.bf16.msra.mxu0 %v9396
        %9400 = vmatprep.subr.bf16.mxu0 0
        %9401 = vmatpush1.bf16.msra.mxu0 0
        %9402 = vmatprep.subr.bf16.mxu0 0
        %9403 = vmatpush1.bf16.msra.mxu0 0
        %9404 = vmatprep.subr.bf16.mxu0 0
        %9405 = vmatpush1.bf16.msra.mxu0 0
        %9406 = vmatprep.subr.bf16.mxu0 0
        %9407 = vmatpush1.bf16.msra.mxu0 0
        %9408 = vmatprep.subr.bf16.mxu0 0
        %9409 = vmatpush1.bf16.msra.mxu0 0
        %9410 = vmatprep.subr.bf16.mxu0 0
        %9411 = vmatpush1.bf16.msra.mxu0 0
        %9412 = vmatprep.subr.bf16.mxu0 0
        %9413 = vmatpush1.bf16.msra.mxu0 0
        %9414 = vmatprep.subr.bf16.mxu0 0
        %9415 = vmatpush1.bf16.msra.mxu0 0
        %9416 = vmatprep.subr.bf16.mxu0 0
        %9417 = vmatpush1.bf16.msra.mxu0 0
        %9418 = vmatprep.subr.bf16.mxu0 0
        %9419 = vmatpush1.bf16.msra.mxu0 0
        %9420 = vmatprep.subr.bf16.mxu0 0
        %9421 = vmatpush1.bf16.msra.mxu0 0
        %9422 = vmatprep.subr.bf16.mxu0 0
        %9423 = vmatpush1.bf16.msra.mxu0 0
        %9424 = vmatprep.subr.bf16.mxu0 0
        %9425 = vmatpush1.bf16.msra.mxu0 0
        %9426 = vmatprep.subr.bf16.mxu0 0
        %9427 = vmatpush1.bf16.msra.mxu0 0
        %9428 = vmatprep.subr.bf16.mxu0 0
        %9429 = vmatpush1.bf16.msra.mxu0 0
        %9430 = vmatprep.mubr.bf16.mxu0 0
        %9431 = vmatmul.mubr.bf16.gmra.mrb[0].mxu0 %v9393
        %v9432 = vpop.f32.mrb[0].mxu0
        %v9433 = vadd.f32 0.0, %v9432
        %v9434 = vpop.f32.mrb[0].mxu0
        %v9435 = vpop.f32.mrb[0].mxu0
        %v9436 = vadd.f32 0.0, %v9435
        %v9437 = vpop.f32.mrb[0].mxu0
        %9438 = vdwg.mxu0
        %v9439 = vadd.f32 %v9385, %v9433
        %v9440 = vadd.f32 %v9386, %v9436
        %v9441 = vld [vmem:[%s577 + $0x4] sm:$0xf]
        %v9442 = vld [vmem:[%s577 + $0x8] sm:$0xf]
        %v9443 = vld [vmem:[%s577 + $0xc] sm:$0x1]
        %v9444 = vld [vmem:[%s2505] sm:$0xf]
        %v9448 = vunpack.c.l.b16 %v9441
        %v9449 = vunpack.c.l.b16 %v9442
        %v9450 = vunpack.c.l.b16 %v9443
        %v9451 = vpack.c.b16 %v9449, %v9448
        %v9452 = vpack.c.b16 %v9450, %v9450
        %v9454 = vshrl.u32 %v9451, 16
        %v9456 = vshll.u32 %v9451, 16
        %v9458 = vrot.slane %v9456, 1
        %v9459 = vor.u32 %v9454, %v9458
        %v9461 = vshll.u32 %v9452, 16
        %v9463 = vrot.slane %v9461, 1
        %v9464 = vsel %vm759, %v9459, %v9463
        %v9466 = vsel %vm956, %v9464, 0
        %v9469 = vsel %vm1029, %v9444, 0
        %9471 = vmatprep.subr.bf16.mxu0 0
        %9472 = vmatpush1.bf16.msra.mxu0 %v9469
        %9473 = vmatprep.subr.bf16.mxu0 0
        %9474 = vmatpush1.bf16.msra.mxu0 0
        %9475 = vmatprep.subr.bf16.mxu0 0
        %9476 = vmatpush1.bf16.msra.mxu0 0
        %9477 = vmatprep.subr.bf16.mxu0 0
        %9478 = vmatpush1.bf16.msra.mxu0 0
        %9479 = vmatprep.subr.bf16.mxu0 0
        %9480 = vmatpush1.bf16.msra.mxu0 0
        %9481 = vmatprep.subr.bf16.mxu0 0
        %9482 = vmatpush1.bf16.msra.mxu0 0
        %9483 = vmatprep.subr.bf16.mxu0 0
        %9484 = vmatpush1.bf16.msra.mxu0 0
        %9485 = vmatprep.subr.bf16.mxu0 0
        %9486 = vmatpush1.bf16.msra.mxu0 0
        %9487 = vmatprep.subr.bf16.mxu0 0
        %9488 = vmatpush1.bf16.msra.mxu0 0
        %9489 = vmatprep.subr.bf16.mxu0 0
        %9490 = vmatpush1.bf16.msra.mxu0 0
        %9491 = vmatprep.subr.bf16.mxu0 0
        %9492 = vmatpush1.bf16.msra.mxu0 0
        %9493 = vmatprep.subr.bf16.mxu0 0
        %9494 = vmatpush1.bf16.msra.mxu0 0
        %9495 = vmatprep.subr.bf16.mxu0 0
        %9496 = vmatpush1.bf16.msra.mxu0 0
        %9497 = vmatprep.subr.bf16.mxu0 0
        %9498 = vmatpush1.bf16.msra.mxu0 0
        %9499 = vmatprep.subr.bf16.mxu0 0
        %9500 = vmatpush1.bf16.msra.mxu0 0
        %9501 = vmatprep.subr.bf16.mxu0 0
        %9502 = vmatpush1.bf16.msra.mxu0 0
        %9503 = vmatprep.mubr.bf16.mxu0 0
        %9504 = vmatmul.mubr.bf16.gmra.mrb[0].mxu0 %v9466
        %v9505 = vpop.f32.mrb[0].mxu0
        %v9506 = vadd.f32 0.0, %v9505
        %v9507 = vpop.f32.mrb[0].mxu0
        %v9508 = vpop.f32.mrb[0].mxu0
        %v9509 = vadd.f32 0.0, %v9508
        %v9510 = vpop.f32.mrb[0].mxu0
        %9511 = vdwg.mxu0
        %v9512 = vadd.f32 %v9439, %v9506
        %v9513 = vadd.f32 %v9440, %v9509
        %v9514 = vld [vmem:[%s577 + $0x4] sm:$0xe]
        %v9515 = vld [vmem:[%s3175] sm:$0xf]
        %v9517 = vunpack.c.l.b16 %v9514
        %v9518 = vpack.c.b16 %v9449, %v9517
        %v9519 = vrot.slane %v9518, 1
        %v9520 = vrot.slane %v9452, 1
        %v9521 = vsel %vm1540, %v9519, %v9520
        %v9523 = vsel %vm956, %v9521, 0
        %v9526 = vsel %vm1029, %v9515, 0
        %9528 = vmatprep.subr.bf16.mxu0 0
        %9529 = vmatpush1.bf16.msra.mxu0 %v9526
        %9530 = vmatprep.subr.bf16.mxu0 0
        %9531 = vmatpush1.bf16.msra.mxu0 0
        %9532 = vmatprep.subr.bf16.mxu0 0
        %9533 = vmatpush1.bf16.msra.mxu0 0
        %9534 = vmatprep.subr.bf16.mxu0 0
        %9535 = vmatpush1.bf16.msra.mxu0 0
        %9536 = vmatprep.subr.bf16.mxu0 0
        %9537 = vmatpush1.bf16.msra.mxu0 0
        %9538 = vmatprep.subr.bf16.mxu0 0
        %9539 = vmatpush1.bf16.msra.mxu0 0
        %9540 = vmatprep.subr.bf16.mxu0 0
        %9541 = vmatpush1.bf16.msra.mxu0 0
        %9542 = vmatprep.subr.bf16.mxu0 0
        %9543 = vmatpush1.bf16.msra.mxu0 0
        %9544 = vmatprep.subr.bf16.mxu0 0
        %9545 = vmatpush1.bf16.msra.mxu0 0
        %9546 = vmatprep.subr.bf16.mxu0 0
        %9547 = vmatpush1.bf16.msra.mxu0 0
        %9548 = vmatprep.subr.bf16.mxu0 0
        %9549 = vmatpush1.bf16.msra.mxu0 0
        %9550 = vmatprep.subr.bf16.mxu0 0
        %9551 = vmatpush1.bf16.msra.mxu0 0
        %9552 = vmatprep.subr.bf16.mxu0 0
        %9553 = vmatpush1.bf16.msra.mxu0 0
        %9554 = vmatprep.subr.bf16.mxu0 0
        %9555 = vmatpush1.bf16.msra.mxu0 0
        %9556 = vmatprep.subr.bf16.mxu0 0
        %9557 = vmatpush1.bf16.msra.mxu0 0
        %9558 = vmatprep.subr.bf16.mxu0 0
        %9559 = vmatpush1.bf16.msra.mxu0 0
        %9560 = vmatprep.mubr.bf16.mxu0 0
        %9561 = vmatmul.mubr.bf16.gmra.mrb[0].mxu0 %v9523
        %v9562 = vpop.f32.mrb[0].mxu0
        %v9563 = vadd.f32 0.0, %v9562
        %v9564 = vpop.f32.mrb[0].mxu0
        %v9565 = vpop.f32.mrb[0].mxu0
        %v9566 = vadd.f32 0.0, %v9565
        %v9567 = vpop.f32.mrb[0].mxu0
        %9568 = vdwg.mxu0
        %v9569 = vadd.f32 %v9512, %v9563
        %v9570 = vadd.f32 %v9513, %v9566
        %v9571 = vld [vmem:[%s577 + $0xc] sm:$0xf]
        %v9572 = vld [vmem:[%s3625] sm:$0xf]
        %v9574 = vunpack.c.l.b16 %v9571
        %v9575 = vpack.c.b16 %v9574, %v9449
        %v9577 = vsel %vm956, %v9575, 0
        %v9580 = vsel %vm1029, %v9572, 0
        %9582 = vmatprep.subr.bf16.mxu0 0
        %9583 = vmatpush1.bf16.msra.mxu0 %v9580
        %9584 = vmatprep.subr.bf16.mxu0 0
        %9585 = vmatpush1.bf16.msra.mxu0 0
        %9586 = vmatprep.subr.bf16.mxu0 0
        %9587 = vmatpush1.bf16.msra.mxu0 0
        %9588 = vmatprep.subr.bf16.mxu0 0
        %9589 = vmatpush1.bf16.msra.mxu0 0
        %9590 = vmatprep.subr.bf16.mxu0 0
        %9591 = vmatpush1.bf16.msra.mxu0 0
        %9592 = vmatprep.subr.bf16.mxu0 0
        %9593 = vmatpush1.bf16.msra.mxu0 0
        %9594 = vmatprep.subr.bf16.mxu0 0
        %9595 = vmatpush1.bf16.msra.mxu0 0
        %9596 = vmatprep.subr.bf16.mxu0 0
        %9597 = vmatpush1.bf16.msra.mxu0 0
        %9598 = vmatprep.subr.bf16.mxu0 0
        %9599 = vmatpush1.bf16.msra.mxu0 0
        %9600 = vmatprep.subr.bf16.mxu0 0
        %9601 = vmatpush1.bf16.msra.mxu0 0
        %9602 = vmatprep.subr.bf16.mxu0 0
        %9603 = vmatpush1.bf16.msra.mxu0 0
        %9604 = vmatprep.subr.bf16.mxu0 0
        %9605 = vmatpush1.bf16.msra.mxu0 0
        %9606 = vmatprep.subr.bf16.mxu0 0
        %9607 = vmatpush1.bf16.msra.mxu0 0
        %9608 = vmatprep.subr.bf16.mxu0 0
        %9609 = vmatpush1.bf16.msra.mxu0 0
        %9610 = vmatprep.subr.bf16.mxu0 0
        %9611 = vmatpush1.bf16.msra.mxu0 0
        %9612 = vmatprep.subr.bf16.mxu0 0
        %9613 = vmatpush1.bf16.msra.mxu0 0
        %9614 = vmatprep.mubr.bf16.mxu0 0
        %9615 = vmatmul.mubr.bf16.gmra.mrb[0].mxu0 %v9577
        %v9616 = vpop.f32.mrb[0].mxu0
        %v9617 = vadd.f32 0.0, %v9616
        %v9618 = vpop.f32.mrb[0].mxu0
        %v9619 = vpop.f32.mrb[0].mxu0
        %v9620 = vadd.f32 0.0, %v9619
        %v9621 = vpop.f32.mrb[0].mxu0
        %9622 = vdwg.mxu0
        %v9623 = vadd.f32 %v9569, %v9617
        %v9624 = vadd.f32 %v9570, %v9620
        %v9625 = vld [vmem:[%s577 + $0x8] sm:$0xf]
        %v9626 = vld [vmem:[%s577 + $0xc] sm:$0xf]
        %v9627 = vld [vmem:[%s577 + $0x10] sm:$0x1]
        %v9628 = vld [vmem:[%s4144] sm:$0xf]
        %v9632 = vunpack.c.l.b16 %v9625
        %v9633 = vunpack.c.l.b16 %v9626
        %v9634 = vunpack.c.l.b16 %v9627
        %v9635 = vpack.c.b16 %v9633, %v9632
        %v9636 = vpack.c.b16 %v9634, %v9634
        %v9638 = vshrl.u32 %v9635, 16
        %v9640 = vshll.u32 %v9635, 16
        %v9642 = vrot.slane %v9640, 1
        %v9643 = vor.u32 %v9638, %v9642
        %v9645 = vshll.u32 %v9636, 16
        %v9647 = vrot.slane %v9645, 1
        %v9648 = vsel %vm759, %v9643, %v9647
        %v9650 = vsel %vm956, %v9648, 0
        %v9653 = vsel %vm1029, %v9628, 0
        %9655 = vmatprep.subr.bf16.mxu0 0
        %9656 = vmatpush1.bf16.msra.mxu0 %v9653
        %9657 = vmatprep.subr.bf16.mxu0 0
        %9658 = vmatpush1.bf16.msra.mxu0 0
        %9659 = vmatprep.subr.bf16.mxu0 0
        %9660 = vmatpush1.bf16.msra.mxu0 0
        %9661 = vmatprep.subr.bf16.mxu0 0
        %9662 = vmatpush1.bf16.msra.mxu0 0
        %9663 = vmatprep.subr.bf16.mxu0 0
        %9664 = vmatpush1.bf16.msra.mxu0 0
        %9665 = vmatprep.subr.bf16.mxu0 0
        %9666 = vmatpush1.bf16.msra.mxu0 0
        %9667 = vmatprep.subr.bf16.mxu0 0
        %9668 = vmatpush1.bf16.msra.mxu0 0
        %9669 = vmatprep.subr.bf16.mxu0 0
        %9670 = vmatpush1.bf16.msra.mxu0 0
        %9671 = vmatprep.subr.bf16.mxu0 0
        %9672 = vmatpush1.bf16.msra.mxu0 0
        %9673 = vmatprep.subr.bf16.mxu0 0
        %9674 = vmatpush1.bf16.msra.mxu0 0
        %9675 = vmatprep.subr.bf16.mxu0 0
        %9676 = vmatpush1.bf16.msra.mxu0 0
        %9677 = vmatprep.subr.bf16.mxu0 0
        %9678 = vmatpush1.bf16.msra.mxu0 0
        %9679 = vmatprep.subr.bf16.mxu0 0
        %9680 = vmatpush1.bf16.msra.mxu0 0
        %9681 = vmatprep.subr.bf16.mxu0 0
        %9682 = vmatpush1.bf16.msra.mxu0 0
        %9683 = vmatprep.subr.bf16.mxu0 0
        %9684 = vmatpush1.bf16.msra.mxu0 0
        %9685 = vmatprep.subr.bf16.mxu0 0
        %9686 = vmatpush1.bf16.msra.mxu0 0
        %9687 = vmatprep.mubr.bf16.mxu0 0
        %9688 = vmatmul.mubr.bf16.gmra.mrb[0].mxu0 %v9650
        %v9689 = vpop.f32.mrb[0].mxu0
        %v9690 = vadd.f32 0.0, %v9689
        %v9691 = vpop.f32.mrb[0].mxu0
        %v9692 = vpop.f32.mrb[0].mxu0
        %v9693 = vadd.f32 0.0, %v9692
        %v9694 = vpop.f32.mrb[0].mxu0
        %9695 = vdwg.mxu0
        %v9696 = vadd.f32 %v9623, %v9690
        %v9697 = vadd.f32 %v9624, %v9693
        %v9698 = vld [vmem:[%s577 + $0x8] sm:$0xe]
        %v9699 = vld [vmem:[%s4814] sm:$0xf]
        %v9701 = vunpack.c.l.b16 %v9698
        %v9702 = vpack.c.b16 %v9633, %v9701
        %v9703 = vrot.slane %v9702, 1
        %v9704 = vrot.slane %v9636, 1
        %v9705 = vsel %vm1540, %v9703, %v9704
        %v9707 = vsel %vm956, %v9705, 0
        %v9710 = vsel %vm1029, %v9699, 0
        %9712 = vmatprep.subr.bf16.mxu0 0
        %9713 = vmatpush1.bf16.msra.mxu0 %v9710
        %9714 = vmatprep.subr.bf16.mxu0 0
        %9715 = vmatpush1.bf16.msra.mxu0 0
        %9716 = vmatprep.subr.bf16.mxu0 0
        %9717 = vmatpush1.bf16.msra.mxu0 0
        %9718 = vmatprep.subr.bf16.mxu0 0
        %9719 = vmatpush1.bf16.msra.mxu0 0
        %9720 = vmatprep.subr.bf16.mxu0 0
        %9721 = vmatpush1.bf16.msra.mxu0 0
        %9722 = vmatprep.subr.bf16.mxu0 0
        %9723 = vmatpush1.bf16.msra.mxu0 0
        %9724 = vmatprep.subr.bf16.mxu0 0
        %9725 = vmatpush1.bf16.msra.mxu0 0
        %9726 = vmatprep.subr.bf16.mxu0 0
        %9727 = vmatpush1.bf16.msra.mxu0 0
        %9728 = vmatprep.subr.bf16.mxu0 0
        %9729 = vmatpush1.bf16.msra.mxu0 0
        %9730 = vmatprep.subr.bf16.mxu0 0
        %9731 = vmatpush1.bf16.msra.mxu0 0
        %9732 = vmatprep.subr.bf16.mxu0 0
        %9733 = vmatpush1.bf16.msra.mxu0 0
        %9734 = vmatprep.subr.bf16.mxu0 0
        %9735 = vmatpush1.bf16.msra.mxu0 0
        %9736 = vmatprep.subr.bf16.mxu0 0
        %9737 = vmatpush1.bf16.msra.mxu0 0
        %9738 = vmatprep.subr.bf16.mxu0 0
        %9739 = vmatpush1.bf16.msra.mxu0 0
        %9740 = vmatprep.subr.bf16.mxu0 0
        %9741 = vmatpush1.bf16.msra.mxu0 0
        %9742 = vmatprep.subr.bf16.mxu0 0
        %9743 = vmatpush1.bf16.msra.mxu0 0
        %9744 = vmatprep.mubr.bf16.mxu0 0
        %9745 = vmatmul.mubr.bf16.gmra.mrb[0].mxu0 %v9707
        %v9746 = vpop.f32.mrb[0].mxu0
        %v9747 = vadd.f32 0.0, %v9746
        %v9748 = vpop.f32.mrb[0].mxu0
        %v9749 = vpop.f32.mrb[0].mxu0
        %v9750 = vadd.f32 0.0, %v9749
        %v9751 = vpop.f32.mrb[0].mxu0
        %9752 = vdwg.mxu0
        %v9753 = vadd.f32 %v9696, %v9747
        %v9754 = vadd.f32 %v9697, %v9750
        %v9755 = vld [vmem:[%s7 + $0x3] sm:$0x1]
        %v9756 = vlaneseq
        %v9757 = vshrl.u32 %v9756, 7
        %v9758 = vsub.s32 0, %v9757
        %v9759 = vrot.slane %v9755, %v9758
        %v9760 = vadd.f32 %v9753, %v9759
        %v9761 = vadd.f32 %v9754, %v9759
        %v9762 = vmax.f32 %v9760, 0.0
        %v9763 = vmax.f32 %v9761, 0.0
        %9764 = vxpose.xlu0.b32.start [1/16] %v9762, 128
        %9765 = vxpose.xlu0.b32.cont [2/16] 0.0, 128
        %9766 = vxpose.xlu0.b32.cont [3/16] 0.0, 128
        %9767 = vxpose.xlu0.b32.cont [4/16] 0.0, 128
        %9768 = vxpose.xlu0.b32.cont [5/16] 0.0, 128
        %9769 = vxpose.xlu0.b32.cont [6/16] 0.0, 128
        %9770 = vxpose.xlu0.b32.cont [7/16] 0.0, 128
        %9771 = vxpose.xlu0.b32.cont [8/16] 0.0, 128
        %9772 = vxpose.xlu0.b32.cont [9/16] 0.0, 128
        %9773 = vxpose.xlu0.b32.cont [10/16] 0.0, 128
        %9774 = vxpose.xlu0.b32.cont [11/16] 0.0, 128
        %9775 = vxpose.xlu0.b32.cont [12/16] 0.0, 128
        %9776 = vxpose.xlu0.b32.cont [13/16] 0.0, 128
        %9777 = vxpose.xlu0.b32.cont [14/16] 0.0, 128
        %9778 = vxpose.xlu0.b32.cont [15/16] 0.0, 128
        %9779 = vxpose.xlu0.b32.end [16/16] 0.0, 128
        %v9780 = vpop.trf.xlu0
        %v9781 = vpop.trf.xlu0
        %v9782 = vpop.trf.xlu0
        %v9783 = vpop.trf.xlu0
        %v9784 = vpop.trf.xlu0
        %v9785 = vpop.trf.xlu0
        %v9786 = vpop.trf.xlu0
        %v9787 = vpop.trf.xlu0
        %v9788 = vpop.trf.xlu0
        %v9789 = vpop.trf.xlu0
        %v9790 = vpop.trf.xlu0
        %v9791 = vpop.trf.xlu0
        %v9792 = vpop.trf.xlu0
        %v9793 = vpop.trf.xlu0
        %v9794 = vpop.trf.xlu0
        %v9795 = vpop.trf.xlu0
        %9796 = vxpose.xlu0.b32.start [1/16] %v9763, 128
        %9797 = vxpose.xlu0.b32.cont [2/16] 0.0, 128
        %9798 = vxpose.xlu0.b32.cont [3/16] 0.0, 128
        %9799 = vxpose.xlu0.b32.cont [4/16] 0.0, 128
        %9800 = vxpose.xlu0.b32.cont [5/16] 0.0, 128
        %9801 = vxpose.xlu0.b32.cont [6/16] 0.0, 128
        %9802 = vxpose.xlu0.b32.cont [7/16] 0.0, 128
        %9803 = vxpose.xlu0.b32.cont [8/16] 0.0, 128
        %9804 = vxpose.xlu0.b32.cont [9/16] 0.0, 128
        %9805 = vxpose.xlu0.b32.cont [10/16] 0.0, 128
        %9806 = vxpose.xlu0.b32.cont [11/16] 0.0, 128
        %9807 = vxpose.xlu0.b32.cont [12/16] 0.0, 128
        %9808 = vxpose.xlu0.b32.cont [13/16] 0.0, 128
        %9809 = vxpose.xlu0.b32.cont [14/16] 0.0, 128
        %9810 = vxpose.xlu0.b32.cont [15/16] 0.0, 128
        %9811 = vxpose.xlu0.b32.end [16/16] 0.0, 128
        %v9812 = vpop.trf.xlu0
        %v9813 = vpop.trf.xlu0
        %v9814 = vpop.trf.xlu0
        %v9815 = vpop.trf.xlu0
        %v9816 = vpop.trf.xlu0
        %v9817 = vpop.trf.xlu0
        %v9818 = vpop.trf.xlu0
        %v9819 = vpop.trf.xlu0
        %v9820 = vpop.trf.xlu0
        %v9821 = vpop.trf.xlu0
        %v9822 = vpop.trf.xlu0
        %v9823 = vpop.trf.xlu0
        %v9824 = vpop.trf.xlu0
        %v9825 = vpop.trf.xlu0
        %v9826 = vpop.trf.xlu0
        %v9827 = vpop.trf.xlu0
        %v9828 = vpack.c.bf16 %v9812, %v9780
        %v9829 = vld [vmem:[%s11] sm:$0xf]
        %v9831 = vsel %vm956, %v9828, 0
        %v9834 = vsel %vm1029, %v9829, 0
        %9836 = vmatprep.subr.bf16.mxu0 0
        %9837 = vmatpush1.bf16.msra.mxu0 %v9834
        %9838 = vmatprep.subr.bf16.mxu0 0
        %9839 = vmatpush1.bf16.msra.mxu0 0
        %9840 = vmatprep.subr.bf16.mxu0 0
        %9841 = vmatpush1.bf16.msra.mxu0 0
        %9842 = vmatprep.subr.bf16.mxu0 0
        %9843 = vmatpush1.bf16.msra.mxu0 0
        %9844 = vmatprep.subr.bf16.mxu0 0
        %9845 = vmatpush1.bf16.msra.mxu0 0
        %9846 = vmatprep.subr.bf16.mxu0 0
        %9847 = vmatpush1.bf16.msra.mxu0 0
        %9848 = vmatprep.subr.bf16.mxu0 0
        %9849 = vmatpush1.bf16.msra.mxu0 0
        %9850 = vmatprep.subr.bf16.mxu0 0
        %9851 = vmatpush1.bf16.msra.mxu0 0
        %9852 = vmatprep.subr.bf16.mxu0 0
        %9853 = vmatpush1.bf16.msra.mxu0 0
        %9854 = vmatprep.subr.bf16.mxu0 0
        %9855 = vmatpush1.bf16.msra.mxu0 0
        %9856 = vmatprep.subr.bf16.mxu0 0
        %9857 = vmatpush1.bf16.msra.mxu0 0
        %9858 = vmatprep.subr.bf16.mxu0 0
        %9859 = vmatpush1.bf16.msra.mxu0 0
        %9860 = vmatprep.subr.bf16.mxu0 0
        %9861 = vmatpush1.bf16.msra.mxu0 0
        %9862 = vmatprep.subr.bf16.mxu0 0
        %9863 = vmatpush1.bf16.msra.mxu0 0
        %9864 = vmatprep.subr.bf16.mxu0 0
        %9865 = vmatpush1.bf16.msra.mxu0 0
        %9866 = vmatprep.subr.bf16.mxu0 0
        %9867 = vmatpush1.bf16.msra.mxu0 0
        %9868 = vmatprep.mubr.bf16.mxu0 0
        %9869 = vmatmul.mubr.bf16.gmra.mrb[0].mxu0 %v9831
        %v9870 = vpop.f32.mrb[0].mxu0
        %v9871 = vadd.f32 0.0, %v9870
        %v9872 = vpop.f32.mrb[0].mxu0
        %v9873 = vpop.f32.mrb[0].mxu0
        %v9874 = vadd.f32 0.0, %v9873
        %v9875 = vpop.f32.mrb[0].mxu0
        %9876 = vdwg.mxu0
        %v9877 = vpack.c.bf16 %v9874, %v9871
        %v9879 = vunpack.c.l.b16 %v9877
        %v9880 = vunpack.c.h.b16 %v9877
        %v9881 = vpack.c.b16 %v9879, %v9879
        %v9882 = vpack.c.b16 %v9880, %v9880
        %9885 = vst.msk [vmem:[%s557] sm:$0xf] %vm6038, %v9881
        %9886 = vst.msk [vmem:[%s557 + $0x4] sm:$0xf] %vm6038, %v9882
        %p9887 = scmp.lt.s32.totalorder %s33, 1
        %s9888 = scalar_select %p9887, %s33, 1
        %s9889 = smul.addr %s9888, 16
        %s9890 = smul.addr %s9889, 4
        %s9891 = scalar_lea.vmem %s12, %s9890
        %s9892 = sand.u32 %s339, 1
        %s9893 = scalar_lea.sflag [#allocation3], %s9892
        %s9894 = sand.u32 %s339, 1
        %s9895 = smul.addr %s9894, 32
        %s9896 = scalar_lea.vmem [#allocation2], %s9895
        %s9897 = sand.u32 %s33, 1
        %s9898 = scalar_lea.sflag [#allocation5], %s9897
        %s9899 = sand.u32 %s365, 1
        %s9900 = smul.addr %s9899, 16
        %s9901 = scalar_lea.vmem [#allocation4], %s9900
        %s9902 = sand.u32 %s33, 1
        %s9903 = scalar_lea.sflag [#allocation5], %s9902
        %s9904 = sand.u32 %s391, 1
        %s9905 = smul.addr %s9904, 8
        %s9906 = scalar_lea.vmem [#allocation6], %s9905
        // Predicated region
        $region69: #{tpu_custom_call.1} parent=67 // pred_check
          %p9907 = pneg %p323
        $region70: #{tpu_custom_call.1} parent=67 // pred_check_branch
          %9909 = sbr.rel (%p9907) target = $region72
        $region71: #{tpu_custom_call.1} parent=67 // pred_region
          _
        $region72: #{tpu_custom_call.1} parent=67 // pred_fallthru
          _
        // Predicated region
        $region73: #{tpu_custom_call.1} parent=67 // pred_check
          %p9910 = pneg %p349
        $region74: #{tpu_custom_call.1} parent=67 // pred_check_branch
          %9912 = sbr.rel (%p9910) target = $region76
        $region75: #{tpu_custom_call.1} parent=67 // pred_region
          %s9914 = ssub.s32 512, 512
          %9915 = vsyncadd %s9893, %s9914
          %s9916 = smul.addr %s33, 8
          %s9917 = smul.addr %s9916, 64
          %s9918 = scalar_lea.hbm %s13, %s9917
          %s9919 = sshll.u32 %s9896, 4
          %s9920 = int_to_ptr.vmem [resolvable:$true] %s9919
          %9925 = dma.vmem_to_hbm [thread:$0]  %s9920, 512, %s9918, %s9893, 64, 64, 4
        $region76: #{tpu_custom_call.1} parent=67 // pred_fallthru
          _
        // Predicated region
        $region77: #{tpu_custom_call.1} parent=67 // pred_check
          %p9926 = pneg %p375
        $region78: #{tpu_custom_call.1} parent=67 // pred_check_branch
          %9928 = sbr.rel (%p9926) target = $region80
        $region79: #{tpu_custom_call.1} parent=67 // pred_region
          %s9930 = ssub.s32 256, 256
          %9931 = vsyncadd %s9898, %s9930
          %s9932 = smul.addr %s33, 4
          %s9933 = smul.addr %s9932, 64
          %s9934 = scalar_lea.hbm %s14, %s9933
          %s9935 = sshll.u32 %s9901, 4
          %s9936 = int_to_ptr.vmem [resolvable:$true] %s9935
          %9941 = dma.vmem_to_hbm [thread:$0]  %s9936, 256, %s9934, %s9898, 64, 64, 4
        $region80: #{tpu_custom_call.1} parent=67 // pred_fallthru
          _
        // Predicated region
        $region81: #{tpu_custom_call.1} parent=67 // pred_check
          %p9942 = pneg %p401
        $region82: #{tpu_custom_call.1} parent=67 // pred_check_branch
          %9944 = sbr.rel (%p9942) target = $region84
        $region83: #{tpu_custom_call.1} parent=67 // pred_region
          %s9946 = ssub.s32 128, 128
          %9947 = vsyncadd %s9903, %s9946
          %s9948 = smul.addr %s33, 2
          %s9949 = smul.addr %s9948, 64
          %s9950 = scalar_lea.hbm %s15, %s9949
          %s9951 = sshll.u32 %s9906, 4
          %s9952 = int_to_ptr.vmem [resolvable:$true] %s9951
          %9957 = dma.vmem_to_hbm [thread:$0]  %s9952, 128, %s9950, %s9903, 64, 64, 4
        $region84: #{tpu_custom_call.1} parent=67 // pred_fallthru
          _
      $region68: #{tpu_custom_call.1} parent=5 // pred_fallthru
        _
      %p9958 = scmp.le.s32.totalorder 2, %s28
      // Predicated region
      $region85: #{tpu_custom_call.1} parent=5 // pred_check
        %p9959 = pneg %p9958
      $region86: #{tpu_custom_call.1} parent=5 // pred_check_branch
        %9961 = sbr.rel (%p9959) target = $region88
      $region87: #{tpu_custom_call.1} parent=5 // pred_region
        %s9962 = ssub.s32 %s28, 2
        // Predicated region
        $region89: #{tpu_custom_call.1} parent=87 // pred_check
          %p9963 = pneg %p329
        $region90: #{tpu_custom_call.1} parent=87 // pred_check_branch
          %9965 = sbr.rel (%p9963) target = $region92
        $region91: #{tpu_custom_call.1} parent=87 // pred_region
          %p9966 = scmp.lt.s32.totalorder %s34, 1
          %s9967 = scalar_select %p9966, %s34, 1
          %s9968 = smul.addr %s9967, 16
          %s9969 = smul.addr %s9968, 4
          %s9970 = scalar_lea.vmem %s12, %s9969
        $region92: #{tpu_custom_call.1} parent=87 // pred_fallthru
          _
        // Predicated region
        $region93: #{tpu_custom_call.1} parent=87 // pred_check
          %p9971 = pneg %p355
        $region94: #{tpu_custom_call.1} parent=87 // pred_check_branch
          %9973 = sbr.rel (%p9971) target = $region96
        $region95: #{tpu_custom_call.1} parent=87 // pred_region
          %s9974 = sand.u32 %s340, 1
          %s9975 = scalar_lea.sflag [#allocation3], %s9974
          %s9976 = sand.u32 %s340, 1
          %s9977 = smul.addr %s9976, 32
          %s9978 = scalar_lea.vmem [#allocation2], %s9977
          %9979 = dma.done %s9975, 512
        $region96: #{tpu_custom_call.1} parent=87 // pred_fallthru
          _
        // Predicated region
        $region97: #{tpu_custom_call.1} parent=87 // pred_check
          %p9980 = pneg %p381
        $region98: #{tpu_custom_call.1} parent=87 // pred_check_branch
          %9982 = sbr.rel (%p9980) target = $region100
        $region99: #{tpu_custom_call.1} parent=87 // pred_region
          %s9983 = sand.u32 %s34, 1
          %s9984 = scalar_lea.sflag [#allocation5], %s9983
          %s9985 = sand.u32 %s366, 1
          %s9986 = smul.addr %s9985, 16
          %s9987 = scalar_lea.vmem [#allocation4], %s9986
          %9988 = dma.done %s9984, 256
        $region100: #{tpu_custom_call.1} parent=87 // pred_fallthru
          _
        // Predicated region
        $region101: #{tpu_custom_call.1} parent=87 // pred_check
          %p9989 = pneg %p407
        $region102: #{tpu_custom_call.1} parent=87 // pred_check_branch
          %9991 = sbr.rel (%p9989) target = $region104
        $region103: #{tpu_custom_call.1} parent=87 // pred_region
          %s9992 = sand.u32 %s34, 1
          %s9993 = scalar_lea.sflag [#allocation5], %s9992
          %s9994 = sand.u32 %s392, 1
          %s9995 = smul.addr %s9994, 8
          %s9996 = scalar_lea.vmem [#allocation6], %s9995
          %9997 = dma.done %s9993, 128
        $region104: #{tpu_custom_call.1} parent=87 // pred_fallthru
          _
      $region88: #{tpu_custom_call.1} parent=5 // pred_fallthru
        _
    $region6: #{tpu_custom_call.1} parent=1 // loop_footer
      %s32 = sadd.s32 1, %s28
    $region7: #{tpu_custom_call.1} parent=1 // loop_footer_branch
      %27 = sbr.rel target = $region3
    $region8: #{tpu_custom_call.1} parent=1 // loop_exit
      _
    %9998 = vsyncpa [#allocation3], 1
    %s9999 = scalar_lea.sflag [#allocation3], 1
    %10000 = vsyncpa %s9999, 1
    %10001 = vsyncpa [#allocation5], 1
    %s10002 = scalar_lea.sflag [#allocation5], 1
    %10003 = vsyncpa %s10002, 1

</llo_original>
